<compile_context>
chip_gen: v7x
topology: tpu7x:2x2x1
jax: 0.10.0
libtpu: 0.0.40
codegen_flags: <defaults>
</compile_context>

<pallas_src>
import functools
import math

import jax
import jax.numpy as jnp
from jax import lax
from jax.experimental import pallas as pl
from jax.experimental.pallas import tpu as pltpu


# ---------------------------------------------------------------------------
# small helpers
# ---------------------------------------------------------------------------

def _cparams(*semantics):
    # 48 MiB fits v7x (64 MiB/TC) as well as v5e/v6e (128 MiB).
    return pltpu.CompilerParams(dimension_semantics=semantics,
                                vmem_limit_bytes=48 * 1024 * 1024)


def _pick_tile(n, candidates):
    for t in candidates:
        if n % t == 0:
            return t
    return n


def _layer_norm_f32(y, g, b, eps=1e-5):
    mu = jnp.mean(y, axis=-1, keepdims=True)
    var = jnp.mean((y - mu) * (y - mu), axis=-1, keepdims=True)
    return (y - mu) * lax.rsqrt(var + eps) * g + b


# ---------------------------------------------------------------------------
# Pallas kernels (each is a fully fused block)
# ---------------------------------------------------------------------------

def _self_attn_block_kernel(x_ref, wqkv_ref, bqkv_ref, wo_ref, bo_ref,
                            g_ref, b_ref, o_ref, *, n_head, scale):
    """Fused QKV proj + causal multi-head attention + out proj + residual + LN."""
    x = x_ref[0]                                    # [L, d] bf16
    L, d = x.shape
    dh = d // n_head

    qkv = jnp.dot(x, wqkv_ref[...], preferred_element_type=jnp.float32)
    qkv = qkv + bqkv_ref[...]                       # [L, 3d] f32

    row = lax.broadcasted_iota(jnp.int32, (L, L), 0)
    col = lax.broadcasted_iota(jnp.int32, (L, L), 1)
    causal = jnp.where(col > row, -1e9, 0.0).astype(jnp.float32)

    attn_out = jnp.zeros((L, d), jnp.float32)
    for h in range(n_head):                         # static unroll over heads
        lo = h * dh
        qh = (qkv[:, lo:lo + dh] * scale).astype(jnp.bfloat16)
        kh = qkv[:, d + lo:d + lo + dh].astype(jnp.bfloat16)
        vh = qkv[:, 2 * d + lo:2 * d + lo + dh].astype(jnp.bfloat16)
        s = lax.dot_general(qh, kh, (((1,), (1,)), ((), ())),
                            preferred_element_type=jnp.float32) + causal
        s = s - jnp.max(s, axis=-1, keepdims=True)
        e = jnp.exp(s)
        p = e * pl.reciprocal(jnp.sum(e, axis=-1, keepdims=True), approx=True)
        ctx = jnp.dot(p.astype(jnp.bfloat16), vh,
                      preferred_element_type=jnp.float32)        # [L, dh]
        attn_out = attn_out + jnp.dot(ctx.astype(jnp.bfloat16),
                                      wo_ref[lo:lo + dh, :],
                                      preferred_element_type=jnp.float32)

    y = x.astype(jnp.float32) + attn_out + bo_ref[...]
    o_ref[0] = _layer_norm_f32(y, g_ref[...], b_ref[...]).astype(o_ref.dtype)


def _cross_attn_block_kernel(x_ref, enc_ref, bias_ref, wq_ref, bq_ref,
                             wkv_ref, bkv_ref, wo_ref, bo_ref, g_ref, b_ref,
                             o_ref, *opt_w_ref, n_head, scale):
    """Fused Q / fused-KV proj + encoder attention (+pad bias) + out proj +
    residual + LN. Optionally writes head-averaged attention probs."""
    x = x_ref[0]                                    # [L, d] bf16
    enc = enc_ref[0]                                # [S, d] bf16
    L, d = x.shape
    S = enc.shape[0]
    dh = d // n_head

    q = jnp.dot(x, wq_ref[...], preferred_element_type=jnp.float32) + bq_ref[...]
    kv = jnp.dot(enc, wkv_ref[...], preferred_element_type=jnp.float32) + bkv_ref[...]
    bias = bias_ref[0]                              # [1, S] additive key-pad mask

    attn_out = jnp.zeros((L, d), jnp.float32)
    p_sum = jnp.zeros((L, S), jnp.float32)
    for h in range(n_head):
        lo = h * dh
        qh = (q[:, lo:lo + dh] * scale).astype(jnp.bfloat16)
        kh = kv[:, lo:lo + dh].astype(jnp.bfloat16)
        vh = kv[:, d + lo:d + lo + dh].astype(jnp.bfloat16)
        s = lax.dot_general(qh, kh, (((1,), (1,)), ((), ())),
                            preferred_element_type=jnp.float32) + bias
        s = s - jnp.max(s, axis=-1, keepdims=True)
        e = jnp.exp(s)
        p = e * pl.reciprocal(jnp.sum(e, axis=-1, keepdims=True), approx=True)
        if opt_w_ref:
            p_sum = p_sum + p
        ctx = jnp.dot(p.astype(jnp.bfloat16), vh,
                      preferred_element_type=jnp.float32)
        attn_out = attn_out + jnp.dot(ctx.astype(jnp.bfloat16),
                                      wo_ref[lo:lo + dh, :],
                                      preferred_element_type=jnp.float32)

    y = x.astype(jnp.float32) + attn_out + bo_ref[...]
    o_ref[0] = _layer_norm_f32(y, g_ref[...], b_ref[...]).astype(o_ref.dtype)
    if opt_w_ref:
        opt_w_ref[0][0] = p_sum * (1.0 / n_head)


def _ffn_block_kernel(x_ref, w1_ref, b1_ref, w2_ref, b2_ref, g_ref, b_ref, o_ref):
    """Fused fc1 + ReLU + fc2 + residual + LayerNorm over a row tile."""
    x = x_ref[...]                                  # [TM, d] bf16
    h = jnp.dot(x, w1_ref[...], preferred_element_type=jnp.float32) + b1_ref[...]
    h = jnp.maximum(h, 0.0)                         # F.threshold(., 0, 0) == relu
    y = jnp.dot(h.astype(jnp.bfloat16), w2_ref[...],
                preferred_element_type=jnp.float32) + b2_ref[...]
    y = x.astype(jnp.float32) + y
    o_ref[...] = _layer_norm_f32(y, g_ref[...], b_ref[...]).astype(o_ref.dtype)


def _vocab_proj_kernel(x_ref, w_ref, o_ref):
    # bias-free tied-embedding projection tile: [TM, d] @ [d, TN] -> [TM, TN]
    o_ref[...] = jnp.dot(x_ref[...], w_ref[...], preferred_element_type=jnp.float32)


# ---------------------------------------------------------------------------
# pallas_call wrappers
# ---------------------------------------------------------------------------

def self_attn_block(x, p, *, n_head):
    B, L, d = x.shape
    scale = (d // n_head) ** -0.5
    inv = lambda b: (0, 0)                          # grid-invariant weights
    return pl.pallas_call(
        functools.partial(_self_attn_block_kernel, n_head=n_head, scale=scale),
        out_shape=jax.ShapeDtypeStruct((B, L, d), jnp.bfloat16),
        grid=(B,),
        in_specs=[
            pl.BlockSpec((1, L, d), lambda b: (b, 0, 0)),
            pl.BlockSpec((d, 3 * d), inv),
            pl.BlockSpec((1, 3 * d), inv),
            pl.BlockSpec((d, d), inv),
            pl.BlockSpec((1, d), inv),
            pl.BlockSpec((1, d), inv),
            pl.BlockSpec((1, d), inv),
        ],
        out_specs=pl.BlockSpec((1, L, d), lambda b: (b, 0, 0)),
        compiler_params=_cparams("parallel"),
    )(x, p['wqkv'], p['bqkv'], p['wo'], p['bo'], p['ln_g'], p['ln_b'])


def cross_attn_block(x, enc, bias, p, *, n_head, need_weights):
    B, L, d = x.shape
    S = enc.shape[1]
    scale = (d // n_head) ** -0.5
    inv = lambda b: (0, 0)
    in_specs = [
        pl.BlockSpec((1, L, d), lambda b: (b, 0, 0)),
        pl.BlockSpec((1, S, d), lambda b: (b, 0, 0)),
        pl.BlockSpec((1, 1, S), lambda b: (b, 0, 0)),
        pl.BlockSpec((d, d), inv),
        pl.BlockSpec((1, d), inv),
        pl.BlockSpec((d, 2 * d), inv),
        pl.BlockSpec((1, 2 * d), inv),
        pl.BlockSpec((d, d), inv),
        pl.BlockSpec((1, d), inv),
        pl.BlockSpec((1, d), inv),
        pl.BlockSpec((1, d), inv),
    ]
    args = (x, enc, bias, p['wq'], p['bq'], p['wkv'], p['bkv'],
            p['wo'], p['bo'], p['ln_g'], p['ln_b'])
    kern = functools.partial(_cross_attn_block_kernel, n_head=n_head, scale=scale)
    y_spec = pl.BlockSpec((1, L, d), lambda b: (b, 0, 0))

    if need_weights:
        y, w = pl.pallas_call(
            kern,
            out_shape=(jax.ShapeDtypeStruct((B, L, d), jnp.bfloat16),
                       jax.ShapeDtypeStruct((B, L, S), jnp.float32)),
            grid=(B,),
            in_specs=in_specs,
            out_specs=(y_spec, pl.BlockSpec((1, L, S), lambda b: (b, 0, 0))),
            compiler_params=_cparams("parallel"),
        )(*args)
        return y, w

    y = pl.pallas_call(
        kern,
        out_shape=jax.ShapeDtypeStruct((B, L, d), jnp.bfloat16),
        grid=(B,),
        in_specs=in_specs,
        out_specs=y_spec,
        compiler_params=_cparams("parallel"),
    )(*args)
    return y, None


def ffn_block(x, p):
    B, L, d = x.shape
    M = B * L
    dff = p['w1'].shape[1]
    x2 = x.reshape(M, d)
    tm = _pick_tile(M, (512, 256, 128, 64, 32, 16, 8))
    inv = lambda i: (0, 0)
    out = pl.pallas_call(
        _ffn_block_kernel,
        out_shape=jax.ShapeDtypeStruct((M, d), jnp.bfloat16),
        grid=(M // tm,),
        in_specs=[
            pl.BlockSpec((tm, d), lambda i: (i, 0)),
            pl.BlockSpec((d, dff), inv),
            pl.BlockSpec((1, dff), inv),
            pl.BlockSpec((dff, d), inv),
            pl.BlockSpec((1, d), inv),
            pl.BlockSpec((1, d), inv),
            pl.BlockSpec((1, d), inv),
        ],
        out_specs=pl.BlockSpec((tm, d), lambda i: (i, 0)),
        compiler_params=_cparams("parallel"),
    )(x2, p['w1'], p['b1'], p['w2'], p['b2'], p['ln_g'], p['ln_b'])
    return out.reshape(B, L, d)


def vocab_projection(x2, w_t):
    # x2: [M, d] bf16, w_t: [d, V] bf16 (pre-transposed tied embedding) -> [M, V] f32
    M, d = x2.shape
    V = w_t.shape[1]
    tm = _pick_tile(M, (512, 256, 128, 64, 32, 16, 8))
    tn = _pick_tile(V, (1024, 512, 256, 128))
    return pl.pallas_call(
        _vocab_proj_kernel,
        out_shape=jax.ShapeDtypeStruct((M, V), jnp.float32),
        grid=(M // tm, V // tn),
        in_specs=[pl.BlockSpec((tm, d), lambda i, j: (i, 0)),
                  pl.BlockSpec((d, tn), lambda i, j: (0, j))],
        out_specs=pl.BlockSpec((tm, tn), lambda i, j: (i, j)),
        compiler_params=_cparams("parallel", "parallel"),
    )(x2, w_t)


# ---------------------------------------------------------------------------
# Sinusoidal positional embeddings (fairseq semantics) — XLA glue
# ---------------------------------------------------------------------------

def sinusoidal_table(num_embeddings, dim, padding_idx):
    half = dim // 2
    scale = math.log(10000.0) / (half - 1)
    freqs = jnp.exp(jnp.arange(half, dtype=jnp.float32) * -scale)
    args = jnp.arange(num_embeddings, dtype=jnp.float32)[:, None] * freqs[None, :]
    table = jnp.concatenate([jnp.sin(args), jnp.cos(args)], axis=1)
    if dim % 2 == 1:
        table = jnp.concatenate([table, jnp.zeros((num_embeddings, 1))], axis=1)
    return table.at[padding_idx].set(0.0)


def make_positions(tokens, padding_idx, left_pad):
    B, L = tokens.shape
    mask = tokens != padding_idx
    positions = jnp.broadcast_to(
        jnp.arange(padding_idx + 1, padding_idx + 1 + L, dtype=jnp.int32)[None, :], (B, L))
    if left_pad:
        positions = positions - L + mask.sum(axis=1, keepdims=True).astype(jnp.int32)
    return jnp.where(mask, positions, padding_idx)


def pos_embedding(tokens, table, padding_idx, left_pad):
    return table[make_positions(tokens, padding_idx, left_pad)]


# ---------------------------------------------------------------------------
# Forward pass (TransformerDecoder.forward, incremental_state=None, eval mode)
# ---------------------------------------------------------------------------

def transformer_decoder_forward(params, prev_output_tokens, encoder_out,
                                encoder_padding_mask, *, n_head, padding_idx,
                                left_pad=False):
    emb = params['embedding']                       # [V, d] f32 (lookup table)
    vocab, d = emb.shape
    embed_scale = math.sqrt(d)

    # token + sinusoidal positional embedding (XLA gather; tiny)
    positions = pos_embedding(prev_output_tokens, params['pos_table'],
                              padding_idx, left_pad)
    x = embed_scale * emb[prev_output_tokens] + positions          # [B, L, d] f32
    x = x.astype(jnp.bfloat16)                                     # bf16 activations

    # encoder_out arrives [S, B, d] (fairseq layout); internal layout is [B, S, d]
    enc = jnp.transpose(encoder_out, (1, 0, 2)).astype(jnp.bfloat16)
    # additive key-padding bias; an all-zero bias == the `.any()` None-switch
    bias = jnp.where(encoder_padding_mask[:, None, :], -1e9, 0.0).astype(jnp.float32)

    attn = None
    n_layer = len(params['layers'])
    for li, lp in enumerate(params['layers']):
        x = self_attn_block(x, lp['self_attn'], n_head=n_head)
        # only the last layer's averaged weights are returned by the module,
        # so only that layer pays for the probs writeback
        x, w = cross_attn_block(x, enc, bias, lp['encoder_attn'], n_head=n_head,
                                need_weights=(li == n_layer - 1))
        if w is not None:
            attn = w
        x = ffn_block(x, lp['ffn'])

    B, L, _ = x.shape
    logits = vocab_projection(x.reshape(B * L, d), params['embed_out_t'])
    return logits.reshape(B, L, vocab), attn


# ---------------------------------------------------------------------------
# Deterministic parameter initialization (weights pre-transposed, bf16)
# ---------------------------------------------------------------------------

def _xavier_t(key, in_f, out_f):
    # torch xavier_uniform_ on a [out, in] Linear weight, stored pre-transposed
    # as [in, out] bf16 so kernels compute x @ W directly (no in-kernel .T).
    limit = math.sqrt(6.0 / (in_f + out_f))
    w = jax.random.uniform(key, (in_f, out_f), minval=-limit, maxval=limit,
                           dtype=jnp.float32)
    return w.astype(jnp.bfloat16)


def _zeros_bias(n):
    return jnp.zeros((1, n), jnp.float32)


def _ln_params(d):
    return jnp.ones((1, d), jnp.float32), jnp.zeros((1, d), jnp.float32)


def init_decoder_layer(key, d, dff):
    ks = jax.random.split(key, 10)
    g1, b1 = _ln_params(d)
    g2, b2 = _ln_params(d)
    g3, b3 = _ln_params(d)
    return {
        'self_attn': {
            'wqkv': jnp.concatenate([_xavier_t(ks[0], d, d),
                                     _xavier_t(ks[1], d, d),
                                     _xavier_t(ks[2], d, d)], axis=1),
            'bqkv': _zeros_bias(3 * d),
            'wo': _xavier_t(ks[3], d, d), 'bo': _zeros_bias(d),
            'ln_g': g1, 'ln_b': b1,
        },
        'encoder_attn': {
            'wq': _xavier_t(ks[4], d, d), 'bq': _zeros_bias(d),
            'wkv': jnp.concatenate([_xavier_t(ks[5], d, d),
                                    _xavier_t(ks[6], d, d)], axis=1),
            'bkv': _zeros_bias(2 * d),
            'wo': _xavier_t(ks[7], d, d), 'bo': _zeros_bias(d),
            'ln_g': g2, 'ln_b': b2,
        },
        'ffn': {
            'w1': _xavier_t(ks[8], d, dff), 'b1': _zeros_bias(dff),
            'w2': _xavier_t(ks[9], dff, d), 'b2': _zeros_bias(d),
            'ln_g': g3, 'ln_b': b3,
        },
    }


def init_transformer_decoder(key, *, vocab_size, d_model, padding_idx, n_layer,
                             d_ffn, max_len):
    k_emb, k_layers = jax.random.split(key)
    emb = jax.random.normal(k_emb, (vocab_size, d_model), jnp.float32) * d_model ** -0.5
    emb = emb.at[padding_idx].set(0.0)
    layer_keys = jax.random.split(k_layers, n_layer)
    return {
        'embedding': emb,                                    # f32 lookup table
        'embed_out_t': emb.T.astype(jnp.bfloat16),           # tied output proj [d, V]
        'pos_table': sinusoidal_table(max_len + padding_idx + 1, d_model, padding_idx),
        'layers': [init_decoder_layer(k, d_model, d_ffn) for k in layer_keys],
    }


# ---------------------------------------------------------------------------
# Main
# ---------------------------------------------------------------------------

if __name__ == "__main__":
    d_model, n_head, n_layer, d_ffn = 128, 4, 2, 256
    vocab_size, padding_idx, max_len = 512, 1, 64
    B, L_dec, S_enc = 2, 16, 24

    key = jax.random.PRNGKey(0)
    k_params, k_tok, k_enc = jax.random.split(key, 3)
    params = init_transformer_decoder(
        k_params, vocab_size=vocab_size, d_model=d_model, padding_idx=padding_idx,
        n_layer=n_layer, d_ffn=d_ffn, max_len=max_len)

    prev_output_tokens = jax.random.randint(k_tok, (B, L_dec), 2, vocab_size,
                                            dtype=jnp.int32)
    prev_output_tokens = prev_output_tokens.at[1, -2:].set(padding_idx)
    encoder_out = jax.random.normal(k_enc, (S_enc, B, d_model), jnp.float32)
    encoder_padding_mask = jnp.zeros((B, S_enc), jnp.bool_).at[0, -4:].set(True)

    fwd = jax.jit(functools.partial(transformer_decoder_forward,
                                    n_head=n_head, padding_idx=padding_idx))
    logits, attn = fwd(params, prev_output_tokens, encoder_out, encoder_padding_mask)
    jax.block_until_ready((logits, attn))

    assert logits.shape == (B, L_dec, vocab_size) and logits.dtype == jnp.float32
    assert attn.shape == (B, L_dec, S_enc)
    assert bool(jnp.isfinite(logits).all()) and bool(jnp.isfinite(attn).all())
    # TODO(synk): incremental_state / beam-search reordering and training-mode
    # dropout paths are not represented in this eval-mode forward kernel.
    print("KERNEL_OK")
</pallas_src>

<mosaic_0001>
module attributes {stable_mosaic.version = 11 : i64} {
  func.func @_ffn_block_kernel(%arg0: i32, %arg1: memref<32x128xbf16, #tpu.memory_space<vmem>>, %arg2: memref<128x256xbf16, #tpu.memory_space<vmem>>, %arg3: memref<1x256xf32, #tpu.memory_space<vmem>>, %arg4: memref<256x128xbf16, #tpu.memory_space<vmem>>, %arg5: memref<1x128xf32, #tpu.memory_space<vmem>>, %arg6: memref<1x128xf32, #tpu.memory_space<vmem>>, %arg7: memref<1x128xf32, #tpu.memory_space<vmem>>, %arg8: memref<32x128xbf16, #tpu.memory_space<vmem>>) attributes {dimension_semantics = [#tpu.dimension_semantics<parallel>], iteration_bounds = array<i64: 1>, scalar_prefetch = 0 : i64, scratch_operands = 0 : i64, tpu.core_type = #tpu.core_type<tc>, window_params = [{transform_indices = @transform_0, window_bounds = array<i64: 32, 128>}, {pipeline_mode = #tpu.pipeline_mode<synchronous>, transform_indices = @transform_1, window_bounds = array<i64: 128, 256>}, {pipeline_mode = #tpu.pipeline_mode<synchronous>, transform_indices = @transform_2, window_bounds = array<i64: 1, 256>}, {pipeline_mode = #tpu.pipeline_mode<synchronous>, transform_indices = @transform_3, window_bounds = array<i64: 256, 128>}, {pipeline_mode = #tpu.pipeline_mode<synchronous>, transform_indices = @transform_4, window_bounds = array<i64: 1, 128>}, {pipeline_mode = #tpu.pipeline_mode<synchronous>, transform_indices = @transform_5, window_bounds = array<i64: 1, 128>}, {pipeline_mode = #tpu.pipeline_mode<synchronous>, transform_indices = @transform_6, window_bounds = array<i64: 1, 128>}, {transform_indices = @transform_7, window_bounds = array<i64: 32, 128>}]} {
    %c0 = arith.constant 0 : index
    %c0_0 = arith.constant 0 : index
    %0 = vector.load %arg1[%c0, %c0_0] : memref<32x128xbf16, #tpu.memory_space<vmem>>, vector<32x128xbf16>
    %c0_1 = arith.constant 0 : index
    %c0_2 = arith.constant 0 : index
    %1 = vector.load %arg2[%c0_1, %c0_2] : memref<128x256xbf16, #tpu.memory_space<vmem>>, vector<128x256xbf16>
    %cst = arith.constant dense<0.000000e+00> : vector<32x256xf32>
    %2 = tpu.matmul %0, %1, %cst {dimension_numbers = #tpu.dot_dimension_numbers<[1], [0], [0], [1], [0, 0, 1, 1], [], []>} : vector<32x128xbf16>, vector<128x256xbf16>, vector<32x256xf32> -> vector<32x256xf32>
    %c0_3 = arith.constant 0 : index
    %c0_4 = arith.constant 0 : index
    %3 = vector.load %arg3[%c0_3, %c0_4] : memref<1x256xf32, #tpu.memory_space<vmem>>, vector<1x256xf32>
    %4 = vector.broadcast %3 : vector<1x256xf32> to vector<32x256xf32>
    %5 = arith.addf %2, %4 : vector<32x256xf32>
    %cst_5 = arith.constant 0.000000e+00 : f32
    %6 = vector.broadcast %cst_5 : f32 to vector<32x256xf32>
    %7 = arith.maximumf %5, %6 : vector<32x256xf32>
    %8 = arith.truncf %7 : vector<32x256xf32> to vector<32x256xbf16>
    %c0_6 = arith.constant 0 : index
    %c0_7 = arith.constant 0 : index
    %9 = vector.load %arg4[%c0_6, %c0_7] : memref<256x128xbf16, #tpu.memory_space<vmem>>, vector<256x128xbf16>
    %cst_8 = arith.constant dense<0.000000e+00> : vector<32x128xf32>
    %10 = tpu.matmul %8, %9, %cst_8 {dimension_numbers = #tpu.dot_dimension_numbers<[1], [0], [0], [1], [0, 0, 1, 1], [], []>} : vector<32x256xbf16>, vector<256x128xbf16>, vector<32x128xf32> -> vector<32x128xf32>
    %c0_9 = arith.constant 0 : index
    %c0_10 = arith.constant 0 : index
    %11 = vector.load %arg5[%c0_9, %c0_10] : memref<1x128xf32, #tpu.memory_space<vmem>>, vector<1x128xf32>
    %12 = vector.broadcast %11 : vector<1x128xf32> to vector<32x128xf32>
    %13 = arith.addf %10, %12 : vector<32x128xf32>
    %14 = arith.extf %0 : vector<32x128xbf16> to vector<32x128xf32>
    %15 = arith.addf %14, %13 : vector<32x128xf32>
    %c0_11 = arith.constant 0 : index
    %c0_12 = arith.constant 0 : index
    %16 = vector.load %arg6[%c0_11, %c0_12] : memref<1x128xf32, #tpu.memory_space<vmem>>, vector<1x128xf32>
    %c0_13 = arith.constant 0 : index
    %c0_14 = arith.constant 0 : index
    %17 = vector.load %arg7[%c0_13, %c0_14] : memref<1x128xf32, #tpu.memory_space<vmem>>, vector<1x128xf32>
    %cst_15 = arith.constant dense<0.000000e+00> : vector<32xf32>
    %18 = vector.multi_reduction <add>, %15, %cst_15 [1] : vector<32x128xf32> to vector<32xf32>
    %19 = vector.shape_cast %18 : vector<32xf32> to vector<32x1xf32>
    %cst_16 = arith.constant 1.280000e+02 : f32
    %20 = vector.broadcast %cst_16 : f32 to vector<32x1xf32>
    %21 = arith.divf %19, %20 : vector<32x1xf32>
    %22 = vector.broadcast %21 : vector<32x1xf32> to vector<32x128xf32>
    %23 = arith.subf %15, %22 : vector<32x128xf32>
    %24 = vector.broadcast %21 : vector<32x1xf32> to vector<32x128xf32>
    %25 = arith.subf %15, %24 : vector<32x128xf32>
    %26 = arith.mulf %23, %25 : vector<32x128xf32>
    %cst_17 = arith.constant dense<0.000000e+00> : vector<32xf32>
    %27 = vector.multi_reduction <add>, %26, %cst_17 [1] : vector<32x128xf32> to vector<32xf32>
    %28 = vector.shape_cast %27 : vector<32xf32> to vector<32x1xf32>
    %cst_18 = arith.constant 1.280000e+02 : f32
    %29 = vector.broadcast %cst_18 : f32 to vector<32x1xf32>
    %30 = arith.divf %28, %29 : vector<32x1xf32>
    %31 = vector.broadcast %21 : vector<32x1xf32> to vector<32x128xf32>
    %32 = arith.subf %15, %31 : vector<32x128xf32>
    %cst_19 = arith.constant 9.99999974E-6 : f32
    %33 = vector.broadcast %cst_19 : f32 to vector<32x1xf32>
    %34 = arith.addf %30, %33 : vector<32x1xf32>
    %35 = math.rsqrt %34 : vector<32x1xf32>
    %36 = vector.broadcast %35 : vector<32x1xf32> to vector<32x128xf32>
    %37 = arith.mulf %32, %36 : vector<32x128xf32>
    %38 = vector.broadcast %16 : vector<1x128xf32> to vector<32x128xf32>
    %39 = arith.mulf %37, %38 : vector<32x128xf32>
    %40 = vector.broadcast %17 : vector<1x128xf32> to vector<32x128xf32>
    %41 = arith.addf %39, %40 : vector<32x128xf32>
    %42 = arith.truncf %41 : vector<32x128xf32> to vector<32x128xbf16>
    %c0_20 = arith.constant 0 : index
    %c0_21 = arith.constant 0 : index
    %43 = vector.load %arg8[%c0_20, %c0_21] : memref<32x128xbf16, #tpu.memory_space<vmem>>, vector<32x128xbf16>
    tpu.vector_store %arg8[%c0_20, %c0_21], %42 {strides = array<i32>} : memref<32x128xbf16, #tpu.memory_space<vmem>>, vector<32x128xbf16>,
    return
  }
  func.func @transform_0(%arg0: i32) -> (i32, i32) {
    %c0_i32 = arith.constant 0 : i32
    %c0_i32_0 = arith.constant 0 : i32
    return %arg0, %c0_i32 : i32, i32
  }
  func.func @transform_1(%arg0: i32) -> (i32, i32) {
    %c0_i32 = arith.constant 0 : i32
    %c0_i32_0 = arith.constant 0 : i32
    %c0_i32_1 = arith.constant 0 : i32
    return %c0_i32, %c0_i32_0 : i32, i32
  }
  func.func @transform_2(%arg0: i32) -> (i32, i32) {
    %c0_i32 = arith.constant 0 : i32
    %c0_i32_0 = arith.constant 0 : i32
    %c0_i32_1 = arith.constant 0 : i32
    return %c0_i32, %c0_i32_0 : i32, i32
  }
  func.func @transform_3(%arg0: i32) -> (i32, i32) {
    %c0_i32 = arith.constant 0 : i32
    %c0_i32_0 = arith.constant 0 : i32
    %c0_i32_1 = arith.constant 0 : i32
    return %c0_i32, %c0_i32_0 : i32, i32
  }
  func.func @transform_4(%arg0: i32) -> (i32, i32) {
    %c0_i32 = arith.constant 0 : i32
    %c0_i32_0 = arith.constant 0 : i32
    %c0_i32_1 = arith.constant 0 : i32
    return %c0_i32, %c0_i32_0 : i32, i32
  }
  func.func @transform_5(%arg0: i32) -> (i32, i32) {
    %c0_i32 = arith.constant 0 : i32
    %c0_i32_0 = arith.constant 0 : i32
    %c0_i32_1 = arith.constant 0 : i32
    return %c0_i32, %c0_i32_0 : i32, i32
  }
  func.func @transform_6(%arg0: i32) -> (i32, i32) {
    %c0_i32 = arith.constant 0 : i32
    %c0_i32_0 = arith.constant 0 : i32
    %c0_i32_1 = arith.constant 0 : i32
    return %c0_i32, %c0_i32_0 : i32, i32
  }
  func.func @transform_7(%arg0: i32) -> (i32, i32) {
    %c0_i32 = arith.constant 0 : i32
    %c0_i32_0 = arith.constant 0 : i32
    return %arg0, %c0_i32 : i32, i32
  }
}

module attributes {stable_mosaic.version = 11 : i64} {
  func.func @_self_attn_block_kernel(%arg0: i32, %arg1: memref<1x16x128xbf16, #tpu.memory_space<vmem>>, %arg2: memref<128x384xbf16, #tpu.memory_space<vmem>>, %arg3: memref<1x384xf32, #tpu.memory_space<vmem>>, %arg4: memref<128x128xbf16, #tpu.memory_space<vmem>>, %arg5: memref<1x128xf32, #tpu.memory_space<vmem>>, %arg6: memref<1x128xf32, #tpu.memory_space<vmem>>, %arg7: memref<1x128xf32, #tpu.memory_space<vmem>>, %arg8: memref<1x16x128xbf16, #tpu.memory_space<vmem>>) attributes {dimension_semantics = [#tpu.dimension_semantics<parallel>], iteration_bounds = array<i64: 2>, scalar_prefetch = 0 : i64, scratch_operands = 0 : i64, tpu.core_type = #tpu.core_type<tc>, window_params = [{transform_indices = @transform_0, window_bounds = array<i64: 1, 16, 128>}, {pipeline_mode = #tpu.pipeline_mode<synchronous>, transform_indices = @transform_1, window_bounds = array<i64: 128, 384>}, {pipeline_mode = #tpu.pipeline_mode<synchronous>, transform_indices = @transform_2, window_bounds = array<i64: 1, 384>}, {pipeline_mode = #tpu.pipeline_mode<synchronous>, transform_indices = @transform_3, window_bounds = array<i64: 128, 128>}, {pipeline_mode = #tpu.pipeline_mode<synchronous>, transform_indices = @transform_4, window_bounds = array<i64: 1, 128>}, {pipeline_mode = #tpu.pipeline_mode<synchronous>, transform_indices = @transform_5, window_bounds = array<i64: 1, 128>}, {pipeline_mode = #tpu.pipeline_mode<synchronous>, transform_indices = @transform_6, window_bounds = array<i64: 1, 128>}, {transform_indices = @transform_7, window_bounds = array<i64: 1, 16, 128>}]} {
    %c0 = arith.constant 0 : index
    %c0_0 = arith.constant 0 : index
    %c0_1 = arith.constant 0 : index
    %0 = vector.load %arg1[%c0, %c0_0, %c0_1] : memref<1x16x128xbf16, #tpu.memory_space<vmem>>, vector<1x16x128xbf16>
    %1 = vector.shape_cast %0 : vector<1x16x128xbf16> to vector<16x128xbf16>
    %c0_2 = arith.constant 0 : index
    %c0_3 = arith.constant 0 : index
    %2 = vector.load %arg2[%c0_2, %c0_3] : memref<128x384xbf16, #tpu.memory_space<vmem>>, vector<128x384xbf16>
    %cst = arith.constant dense<0.000000e+00> : vector<16x384xf32>
    %3 = tpu.matmul %1, %2, %cst {dimension_numbers = #tpu.dot_dimension_numbers<[1], [0], [0], [1], [0, 0, 1, 1], [], []>} : vector<16x128xbf16>, vector<128x384xbf16>, vector<16x384xf32> -> vector<16x384xf32>
    %c0_4 = arith.constant 0 : index
    %c0_5 = arith.constant 0 : index
    %4 = vector.load %arg3[%c0_4, %c0_5] : memref<1x384xf32, #tpu.memory_space<vmem>>, vector<1x384xf32>
    %5 = vector.broadcast %4 : vector<1x384xf32> to vector<16x384xf32>
    %6 = arith.addf %3, %5 : vector<16x384xf32>
    %7 = tpu.iota {dimensions = array<i32: 0>} : vector<16x16xi32>
    %8 = tpu.iota {dimensions = array<i32: 1>} : vector<16x16xi32>
    %9 = arith.cmpi sgt, %8, %7 : vector<16x16xi32>
    %cst_6 = arith.constant -1.000000e+09 : f32
    %cst_7 = arith.constant 0.000000e+00 : f32
    %10 = vector.broadcast %cst_6 : f32 to vector<16x16xf32>
    %11 = vector.broadcast %cst_7 : f32 to vector<16x16xf32>
    %12 = arith.select %9, %10, %11 : vector<16x16xi1>, vector<16x16xf32>
    %cst_8 = arith.constant 0.000000e+00 : f32
    %13 = vector.broadcast %cst_8 : f32 to vector<16x128xf32>
    %14 = vector.extract_strided_slice %6 {offsets = [0, 0], sizes = [16, 32], strides = [1, 1]} : vector<16x384xf32> to vector<16x32xf32>
    %cst_9 = arith.constant 0.176776692 : f32
    %15 = vector.broadcast %cst_9 : f32 to vector<16x32xf32>
    %16 = arith.mulf %14, %15 : vector<16x32xf32>
    %17 = arith.truncf %16 : vector<16x32xf32> to vector<16x32xbf16>
    %18 = vector.extract_strided_slice %6 {offsets = [0, 128], sizes = [16, 32], strides = [1, 1]} : vector<16x384xf32> to vector<16x32xf32>
    %19 = arith.truncf %18 : vector<16x32xf32> to vector<16x32xbf16>
    %20 = vector.extract_strided_slice %6 {offsets = [0, 256], sizes = [16, 32], strides = [1, 1]} : vector<16x384xf32> to vector<16x32xf32>
    %21 = arith.truncf %20 : vector<16x32xf32> to vector<16x32xbf16>
    %cst_10 = arith.constant dense<0.000000e+00> : vector<16x16xf32>
    %22 = tpu.matmul %17, %19, %cst_10 {dimension_numbers = #tpu.dot_dimension_numbers<[1], [1], [0], [0], [0, 0, 1, 0], [], []>} : vector<16x32xbf16>, vector<16x32xbf16>, vector<16x16xf32> -> vector<16x16xf32>
    %23 = arith.addf %22, %12 : vector<16x16xf32>
    %cst_11 = arith.constant dense<0xFF800000> : vector<16xf32>
    %24 = vector.multi_reduction <maximumf>, %23, %cst_11 [1] : vector<16x16xf32> to vector<16xf32>
    %25 = vector.shape_cast %24 : vector<16xf32> to vector<16x1xf32>
    %26 = vector.broadcast %25 : vector<16x1xf32> to vector<16x16xf32>
    %27 = arith.subf %23, %26 : vector<16x16xf32>
    %28 = math.exp %27 : vector<16x16xf32>
    %cst_12 = arith.constant dense<0.000000e+00> : vector<16xf32>
    %29 = vector.multi_reduction <add>, %28, %cst_12 [1] : vector<16x16xf32> to vector<16xf32>
    %30 = vector.shape_cast %29 : vector<16xf32> to vector<16x1xf32>
    %31 = tpu.reciprocal %30 {approx = true} : vector<16x1xf32> -> vector<16x1xf32>
    %32 = vector.broadcast %31 : vector<16x1xf32> to vector<16x16xf32>
    %33 = arith.mulf %28, %32 : vector<16x16xf32>
    %34 = arith.truncf %33 : vector<16x16xf32> to vector<16x16xbf16>
    %cst_13 = arith.constant dense<0.000000e+00> : vector<16x32xf32>
    %35 = tpu.matmul %34, %21, %cst_13 {dimension_numbers = #tpu.dot_dimension_numbers<[1], [0], [0], [1], [0, 0, 1, 1], [], []>} : vector<16x16xbf16>, vector<16x32xbf16>, vector<16x32xf32> -> vector<16x32xf32>
    %36 = arith.truncf %35 : vector<16x32xf32> to vector<16x32xbf16>
    %c0_14 = arith.constant 0 : index
    %c0_15 = arith.constant 0 : index
    %37 = vector.load %arg4[%c0_14, %c0_15] : memref<128x128xbf16, #tpu.memory_space<vmem>>, vector<32x128xbf16>
    %cst_16 = arith.constant dense<0.000000e+00> : vector<16x128xf32>
    %38 = tpu.matmul %36, %37, %cst_16 {dimension_numbers = #tpu.dot_dimension_numbers<[1], [0], [0], [1], [0, 0, 1, 1], [], []>} : vector<16x32xbf16>, vector<32x128xbf16>, vector<16x128xf32> -> vector<16x128xf32>
    %39 = arith.addf %13, %38 : vector<16x128xf32>
    %40 = vector.extract_strided_slice %6 {offsets = [0, 32], sizes = [16, 32], strides = [1, 1]} : vector<16x384xf32> to vector<16x32xf32>
    %cst_17 = arith.constant 0.176776692 : f32
    %41 = vector.broadcast %cst_17 : f32 to vector<16x32xf32>
    %42 = arith.mulf %40, %41 : vector<16x32xf32>
    %43 = arith.truncf %42 : vector<16x32xf32> to vector<16x32xbf16>
    %44 = vector.extract_strided_slice %6 {offsets = [0, 160], sizes = [16, 32], strides = [1, 1]} : vector<16x384xf32> to vector<16x32xf32>
    %45 = arith.truncf %44 : vector<16x32xf32> to vector<16x32xbf16>
    %46 = vector.extract_strided_slice %6 {offsets = [0, 288], sizes = [16, 32], strides = [1, 1]} : vector<16x384xf32> to vector<16x32xf32>
    %47 = arith.truncf %46 : vector<16x32xf32> to vector<16x32xbf16>
    %cst_18 = arith.constant dense<0.000000e+00> : vector<16x16xf32>
    %48 = tpu.matmul %43, %45, %cst_18 {dimension_numbers = #tpu.dot_dimension_numbers<[1], [1], [0], [0], [0, 0, 1, 0], [], []>} : vector<16x32xbf16>, vector<16x32xbf16>, vector<16x16xf32> -> vector<16x16xf32>
    %49 = arith.addf %48, %12 : vector<16x16xf32>
    %cst_19 = arith.constant dense<0xFF800000> : vector<16xf32>
    %50 = vector.multi_reduction <maximumf>, %49, %cst_19 [1] : vector<16x16xf32> to vector<16xf32>
    %51 = vector.shape_cast %50 : vector<16xf32> to vector<16x1xf32>
    %52 = vector.broadcast %51 : vector<16x1xf32> to vector<16x16xf32>
    %53 = arith.subf %49, %52 : vector<16x16xf32>
    %54 = math.exp %53 : vector<16x16xf32>
    %cst_20 = arith.constant dense<0.000000e+00> : vector<16xf32>
    %55 = vector.multi_reduction <add>, %54, %cst_20 [1] : vector<16x16xf32> to vector<16xf32>
    %56 = vector.shape_cast %55 : vector<16xf32> to vector<16x1xf32>
    %57 = tpu.reciprocal %56 {approx = true} : vector<16x1xf32> -> vector<16x1xf32>
    %58 = vector.broadcast %57 : vector<16x1xf32> to vector<16x16xf32>
    %59 = arith.mulf %54, %58 : vector<16x16xf32>
    %60 = arith.truncf %59 : vector<16x16xf32> to vector<16x16xbf16>
    %cst_21 = arith.constant dense<0.000000e+00> : vector<16x32xf32>
    %61 = tpu.matmul %60, %47, %cst_21 {dimension_numbers = #tpu.dot_dimension_numbers<[1], [0], [0], [1], [0, 0, 1, 1], [], []>} : vector<16x16xbf16>, vector<16x32xbf16>, vector<16x32xf32> -> vector<16x32xf32>
    %62 = arith.truncf %61 : vector<16x32xf32> to vector<16x32xbf16>
    %c32 = arith.constant 32 : index
    %c0_22 = arith.constant 0 : index
    %63 = vector.load %arg4[%c32, %c0_22] : memref<128x128xbf16, #tpu.memory_space<vmem>>, vector<32x128xbf16>
    %cst_23 = arith.constant dense<0.000000e+00> : vector<16x128xf32>
    %64 = tpu.matmul %62, %63, %cst_23 {dimension_numbers = #tpu.dot_dimension_numbers<[1], [0], [0], [1], [0, 0, 1, 1], [], []>} : vector<16x32xbf16>, vector<32x128xbf16>, vector<16x128xf32> -> vector<16x128xf32>
    %65 = arith.addf %39, %64 : vector<16x128xf32>
    %66 = vector.extract_strided_slice %6 {offsets = [0, 64], sizes = [16, 32], strides = [1, 1]} : vector<16x384xf32> to vector<16x32xf32>
    %cst_24 = arith.constant 0.176776692 : f32
    %67 = vector.broadcast %cst_24 : f32 to vector<16x32xf32>
    %68 = arith.mulf %66, %67 : vector<16x32xf32>
    %69 = arith.truncf %68 : vector<16x32xf32> to vector<16x32xbf16>
    %70 = vector.extract_strided_slice %6 {offsets = [0, 192], sizes = [16, 32], strides = [1, 1]} : vector<16x384xf32> to vector<16x32xf32>
    %71 = arith.truncf %70 : vector<16x32xf32> to vector<16x32xbf16>
    %72 = vector.extract_strided_slice %6 {offsets = [0, 320], sizes = [16, 32], strides = [1, 1]} : vector<16x384xf32> to vector<16x32xf32>
    %73 = arith.truncf %72 : vector<16x32xf32> to vector<16x32xbf16>
    %cst_25 = arith.constant dense<0.000000e+00> : vector<16x16xf32>
    %74 = tpu.matmul %69, %71, %cst_25 {dimension_numbers = #tpu.dot_dimension_numbers<[1], [1], [0], [0], [0, 0, 1, 0], [], []>} : vector<16x32xbf16>, vector<16x32xbf16>, vector<16x16xf32> -> vector<16x16xf32>
    %75 = arith.addf %74, %12 : vector<16x16xf32>
    %cst_26 = arith.constant dense<0xFF800000> : vector<16xf32>
    %76 = vector.multi_reduction <maximumf>, %75, %cst_26 [1] : vector<16x16xf32> to vector<16xf32>
    %77 = vector.shape_cast %76 : vector<16xf32> to vector<16x1xf32>
    %78 = vector.broadcast %77 : vector<16x1xf32> to vector<16x16xf32>
    %79 = arith.subf %75, %78 : vector<16x16xf32>
    %80 = math.exp %79 : vector<16x16xf32>
    %cst_27 = arith.constant dense<0.000000e+00> : vector<16xf32>
    %81 = vector.multi_reduction <add>, %80, %cst_27 [1] : vector<16x16xf32> to vector<16xf32>
    %82 = vector.shape_cast %81 : vector<16xf32> to vector<16x1xf32>
    %83 = tpu.reciprocal %82 {approx = true} : vector<16x1xf32> -> vector<16x1xf32>
    %84 = vector.broadcast %83 : vector<16x1xf32> to vector<16x16xf32>
    %85 = arith.mulf %80, %84 : vector<16x16xf32>
    %86 = arith.truncf %85 : vector<16x16xf32> to vector<16x16xbf16>
    %cst_28 = arith.constant dense<0.000000e+00> : vector<16x32xf32>
    %87 = tpu.matmul %86, %73, %cst_28 {dimension_numbers = #tpu.dot_dimension_numbers<[1], [0], [0], [1], [0, 0, 1, 1], [], []>} : vector<16x16xbf16>, vector<16x32xbf16>, vector<16x32xf32> -> vector<16x32xf32>
    %88 = arith.truncf %87 : vector<16x32xf32> to vector<16x32xbf16>
    %c64 = arith.constant 64 : index
    %c0_29 = arith.constant 0 : index
    %89 = vector.load %arg4[%c64, %c0_29] : memref<128x128xbf16, #tpu.memory_space<vmem>>, vector<32x128xbf16>
    %cst_30 = arith.constant dense<0.000000e+00> : vector<16x128xf32>
    %90 = tpu.matmul %88, %89, %cst_30 {dimension_numbers = #tpu.dot_dimension_numbers<[1], [0], [0], [1], [0, 0, 1, 1], [], []>} : vector<16x32xbf16>, vector<32x128xbf16>, vector<16x128xf32> -> vector<16x128xf32>
    %91 = arith.addf %65, %90 : vector<16x128xf32>
    %92 = vector.extract_strided_slice %6 {offsets = [0, 96], sizes = [16, 32], strides = [1, 1]} : vector<16x384xf32> to vector<16x32xf32>
    %cst_31 = arith.constant 0.176776692 : f32
    %93 = vector.broadcast %cst_31 : f32 to vector<16x32xf32>
    %94 = arith.mulf %92, %93 : vector<16x32xf32>
    %95 = arith.truncf %94 : vector<16x32xf32> to vector<16x32xbf16>
    %96 = vector.extract_strided_slice %6 {offsets = [0, 224], sizes = [16, 32], strides = [1, 1]} : vector<16x384xf32> to vector<16x32xf32>
    %97 = arith.truncf %96 : vector<16x32xf32> to vector<16x32xbf16>
    %98 = vector.extract_strided_slice %6 {offsets = [0, 352], sizes = [16, 32], strides = [1, 1]} : vector<16x384xf32> to vector<16x32xf32>
    %99 = arith.truncf %98 : vector<16x32xf32> to vector<16x32xbf16>
    %cst_32 = arith.constant dense<0.000000e+00> : vector<16x16xf32>
    %100 = tpu.matmul %95, %97, %cst_32 {dimension_numbers = #tpu.dot_dimension_numbers<[1], [1], [0], [0], [0, 0, 1, 0], [], []>} : vector<16x32xbf16>, vector<16x32xbf16>, vector<16x16xf32> -> vector<16x16xf32>
    %101 = arith.addf %100, %12 : vector<16x16xf32>
    %cst_33 = arith.constant dense<0xFF800000> : vector<16xf32>
    %102 = vector.multi_reduction <maximumf>, %101, %cst_33 [1] : vector<16x16xf32> to vector<16xf32>
    %103 = vector.shape_cast %102 : vector<16xf32> to vector<16x1xf32>
    %104 = vector.broadcast %103 : vector<16x1xf32> to vector<16x16xf32>
    %105 = arith.subf %101, %104 : vector<16x16xf32>
    %106 = math.exp %105 : vector<16x16xf32>
    %cst_34 = arith.constant dense<0.000000e+00> : vector<16xf32>
    %107 = vector.multi_reduction <add>, %106, %cst_34 [1] : vector<16x16xf32> to vector<16xf32>
    %108 = vector.shape_cast %107 : vector<16xf32> to vector<16x1xf32>
    %109 = tpu.reciprocal %108 {approx = true} : vector<16x1xf32> -> vector<16x1xf32>
    %110 = vector.broadcast %109 : vector<16x1xf32> to vector<16x16xf32>
    %111 = arith.mulf %106, %110 : vector<16x16xf32>
    %112 = arith.truncf %111 : vector<16x16xf32> to vector<16x16xbf16>
    %cst_35 = arith.constant dense<0.000000e+00> : vector<16x32xf32>
    %113 = tpu.matmul %112, %99, %cst_35 {dimension_numbers = #tpu.dot_dimension_numbers<[1], [0], [0], [1], [0, 0, 1, 1], [], []>} : vector<16x16xbf16>, vector<16x32xbf16>, vector<16x32xf32> -> vector<16x32xf32>
    %114 = arith.truncf %113 : vector<16x32xf32> to vector<16x32xbf16>
    %c96 = arith.constant 96 : index
    %c0_36 = arith.constant 0 : index
    %115 = vector.load %arg4[%c96, %c0_36] : memref<128x128xbf16, #tpu.memory_space<vmem>>, vector<32x128xbf16>
    %cst_37 = arith.constant dense<0.000000e+00> : vector<16x128xf32>
    %116 = tpu.matmul %114, %115, %cst_37 {dimension_numbers = #tpu.dot_dimension_numbers<[1], [0], [0], [1], [0, 0, 1, 1], [], []>} : vector<16x32xbf16>, vector<32x128xbf16>, vector<16x128xf32> -> vector<16x128xf32>
    %117 = arith.addf %91, %116 : vector<16x128xf32>
    %118 = arith.extf %1 : vector<16x128xbf16> to vector<16x128xf32>
    %119 = arith.addf %118, %117 : vector<16x128xf32>
    %c0_38 = arith.constant 0 : index
    %c0_39 = arith.constant 0 : index
    %120 = vector.load %arg5[%c0_38, %c0_39] : memref<1x128xf32, #tpu.memory_space<vmem>>, vector<1x128xf32>
    %121 = vector.broadcast %120 : vector<1x128xf32> to vector<16x128xf32>
    %122 = arith.addf %119, %121 : vector<16x128xf32>
    %c0_40 = arith.constant 0 : index
    %c0_41 = arith.constant 0 : index
    %123 = vector.load %arg6[%c0_40, %c0_41] : memref<1x128xf32, #tpu.memory_space<vmem>>, vector<1x128xf32>
    %c0_42 = arith.constant 0 : index
    %c0_43 = arith.constant 0 : index
    %124 = vector.load %arg7[%c0_42, %c0_43] : memref<1x128xf32, #tpu.memory_space<vmem>>, vector<1x128xf32>
    %cst_44 = arith.constant dense<0.000000e+00> : vector<16xf32>
    %125 = vector.multi_reduction <add>, %122, %cst_44 [1] : vector<16x128xf32> to vector<16xf32>
    %126 = vector.shape_cast %125 : vector<16xf32> to vector<16x1xf32>
    %cst_45 = arith.constant 1.280000e+02 : f32
    %127 = vector.broadcast %cst_45 : f32 to vector<16x1xf32>
    %128 = arith.divf %126, %127 : vector<16x1xf32>
    %129 = vector.broadcast %128 : vector<16x1xf32> to vector<16x128xf32>
    %130 = arith.subf %122, %129 : vector<16x128xf32>
    %131 = vector.broadcast %128 : vector<16x1xf32> to vector<16x128xf32>
    %132 = arith.subf %122, %131 : vector<16x128xf32>
    %133 = arith.mulf %130, %132 : vector<16x128xf32>
    %cst_46 = arith.constant dense<0.000000e+00> : vector<16xf32>
    %134 = vector.multi_reduction <add>, %133, %cst_46 [1] : vector<16x128xf32> to vector<16xf32>
    %135 = vector.shape_cast %134 : vector<16xf32> to vector<16x1xf32>
    %cst_47 = arith.constant 1.280000e+02 : f32
    %136 = vector.broadcast %cst_47 : f32 to vector<16x1xf32>
    %137 = arith.divf %135, %136 : vector<16x1xf32>
    %138 = vector.broadcast %128 : vector<16x1xf32> to vector<16x128xf32>
    %139 = arith.subf %122, %138 : vector<16x128xf32>
    %cst_48 = arith.constant 9.99999974E-6 : f32
    %140 = vector.broadcast %cst_48 : f32 to vector<16x1xf32>
    %141 = arith.addf %137, %140 : vector<16x1xf32>
    %142 = math.rsqrt %141 : vector<16x1xf32>
    %143 = vector.broadcast %142 : vector<16x1xf32> to vector<16x128xf32>
    %144 = arith.mulf %139, %143 : vector<16x128xf32>
    %145 = vector.broadcast %123 : vector<1x128xf32> to vector<16x128xf32>
    %146 = arith.mulf %144, %145 : vector<16x128xf32>
    %147 = vector.broadcast %124 : vector<1x128xf32> to vector<16x128xf32>
    %148 = arith.addf %146, %147 : vector<16x128xf32>
    %149 = arith.truncf %148 : vector<16x128xf32> to vector<16x128xbf16>
    %c0_49 = arith.constant 0 : index
    %c0_50 = arith.constant 0 : index
    %c0_51 = arith.constant 0 : index
    %150 = vector.load %arg8[%c0_49, %c0_50, %c0_51] : memref<1x16x128xbf16, #tpu.memory_space<vmem>>, vector<1x16x128xbf16>
    %151 = vector.shape_cast %150 : vector<1x16x128xbf16> to vector<16x128xbf16>
    %152 = vector.shape_cast %149 : vector<16x128xbf16> to vector<1x16x128xbf16>
    tpu.vector_store %arg8[%c0_49, %c0_50, %c0_51], %152 {strides = array<i32>} : memref<1x16x128xbf16, #tpu.memory_space<vmem>>, vector<1x16x128xbf16>,
    return
  }
  func.func @transform_0(%arg0: i32) -> (i32, i32, i32) {
    %c0_i32 = arith.constant 0 : i32
    %c0_i32_0 = arith.constant 0 : i32
    %c0_i32_1 = arith.constant 0 : i32
    return %arg0, %c0_i32, %c0_i32_0 : i32, i32, i32
  }
  func.func @transform_1(%arg0: i32) -> (i32, i32) {
    %c0_i32 = arith.constant 0 : i32
    %c0_i32_0 = arith.constant 0 : i32
    %c0_i32_1 = arith.constant 0 : i32
    return %c0_i32, %c0_i32_0 : i32, i32
  }
  func.func @transform_2(%arg0: i32) -> (i32, i32) {
    %c0_i32 = arith.constant 0 : i32
    %c0_i32_0 = arith.constant 0 : i32
    %c0_i32_1 = arith.constant 0 : i32
    return %c0_i32, %c0_i32_0 : i32, i32
  }
  func.func @transform_3(%arg0: i32) -> (i32, i32) {
    %c0_i32 = arith.constant 0 : i32
    %c0_i32_0 = arith.constant 0 : i32
    %c0_i32_1 = arith.constant 0 : i32
    return %c0_i32, %c0_i32_0 : i32, i32
  }
  func.func @transform_4(%arg0: i32) -> (i32, i32) {
    %c0_i32 = arith.constant 0 : i32
    %c0_i32_0 = arith.constant 0 : i32
    %c0_i32_1 = arith.constant 0 : i32
    return %c0_i32, %c0_i32_0 : i32, i32
  }
  func.func @transform_5(%arg0: i32) -> (i32, i32) {
    %c0_i32 = arith.constant 0 : i32
    %c0_i32_0 = arith.constant 0 : i32
    %c0_i32_1 = arith.constant 0 : i32
    return %c0_i32, %c0_i32_0 : i32, i32
  }
  func.func @transform_6(%arg0: i32) -> (i32, i32) {
    %c0_i32 = arith.constant 0 : i32
    %c0_i32_0 = arith.constant 0 : i32
    %c0_i32_1 = arith.constant 0 : i32
    return %c0_i32, %c0_i32_0 : i32, i32
  }
  func.func @transform_7(%arg0: i32) -> (i32, i32, i32) {
    %c0_i32 = arith.constant 0 : i32
    %c0_i32_0 = arith.constant 0 : i32
    %c0_i32_1 = arith.constant 0 : i32
    return %arg0, %c0_i32, %c0_i32_0 : i32, i32, i32
  }
}

module attributes {stable_mosaic.version = 11 : i64} {
  func.func @_cross_attn_block_kernel(%arg0: i32, %arg1: memref<1x16x128xbf16, #tpu.memory_space<vmem>>, %arg2: memref<1x24x128xbf16, #tpu.memory_space<vmem>>, %arg3: memref<1x1x24xf32, #tpu.memory_space<vmem>>, %arg4: memref<128x128xbf16, #tpu.memory_space<vmem>>, %arg5: memref<1x128xf32, #tpu.memory_space<vmem>>, %arg6: memref<128x256xbf16, #tpu.memory_space<vmem>>, %arg7: memref<1x256xf32, #tpu.memory_space<vmem>>, %arg8: memref<128x128xbf16, #tpu.memory_space<vmem>>, %arg9: memref<1x128xf32, #tpu.memory_space<vmem>>, %arg10: memref<1x128xf32, #tpu.memory_space<vmem>>, %arg11: memref<1x128xf32, #tpu.memory_space<vmem>>, %arg12: memref<1x16x128xbf16, #tpu.memory_space<vmem>>, %arg13: memref<1x16x24xf32, #tpu.memory_space<vmem>>) attributes {dimension_semantics = [#tpu.dimension_semantics<parallel>], iteration_bounds = array<i64: 2>, scalar_prefetch = 0 : i64, scratch_operands = 0 : i64, tpu.core_type = #tpu.core_type<tc>, window_params = [{transform_indices = @transform_0, window_bounds = array<i64: 1, 16, 128>}, {transform_indices = @transform_1, window_bounds = array<i64: 1, 24, 128>}, {transform_indices = @transform_2, window_bounds = array<i64: 1, 1, 24>}, {pipeline_mode = #tpu.pipeline_mode<synchronous>, transform_indices = @transform_3, window_bounds = array<i64: 128, 128>}, {pipeline_mode = #tpu.pipeline_mode<synchronous>, transform_indices = @transform_4, window_bounds = array<i64: 1, 128>}, {pipeline_mode = #tpu.pipeline_mode<synchronous>, transform_indices = @transform_5, window_bounds = array<i64: 128, 256>}, {pipeline_mode = #tpu.pipeline_mode<synchronous>, transform_indices = @transform_6, window_bounds = array<i64: 1, 256>}, {pipeline_mode = #tpu.pipeline_mode<synchronous>, transform_indices = @transform_7, window_bounds = array<i64: 128, 128>}, {pipeline_mode = #tpu.pipeline_mode<synchronous>, transform_indices = @transform_8, window_bounds = array<i64: 1, 128>}, {pipeline_mode = #tpu.pipeline_mode<synchronous>, transform_indices = @transform_9, window_bounds = array<i64: 1, 128>}, {pipeline_mode = #tpu.pipeline_mode<synchronous>, transform_indices = @transform_10, window_bounds = array<i64: 1, 128>}, {transform_indices = @transform_11, window_bounds = array<i64: 1, 16, 128>}, {transform_indices = @transform_12, window_bounds = array<i64: 1, 16, 24>}]} {
    %c0 = arith.constant 0 : index
    %c0_0 = arith.constant 0 : index
    %c0_1 = arith.constant 0 : index
    %0 = vector.load %arg1[%c0, %c0_0, %c0_1] : memref<1x16x128xbf16, #tpu.memory_space<vmem>>, vector<1x16x128xbf16>
    %1 = vector.shape_cast %0 : vector<1x16x128xbf16> to vector<16x128xbf16>
    %c0_2 = arith.constant 0 : index
    %c0_3 = arith.constant 0 : index
    %c0_4 = arith.constant 0 : index
    %2 = vector.load %arg2[%c0_2, %c0_3, %c0_4] : memref<1x24x128xbf16, #tpu.memory_space<vmem>>, vector<1x24x128xbf16>
    %3 = vector.shape_cast %2 : vector<1x24x128xbf16> to vector<24x128xbf16>
    %c0_5 = arith.constant 0 : index
    %c0_6 = arith.constant 0 : index
    %4 = vector.load %arg4[%c0_5, %c0_6] : memref<128x128xbf16, #tpu.memory_space<vmem>>, vector<128x128xbf16>
    %cst = arith.constant dense<0.000000e+00> : vector<16x128xf32>
    %5 = tpu.matmul %1, %4, %cst {dimension_numbers = #tpu.dot_dimension_numbers<[1], [0], [0], [1], [0, 0, 1, 1], [], []>} : vector<16x128xbf16>, vector<128x128xbf16>, vector<16x128xf32> -> vector<16x128xf32>
    %c0_7 = arith.constant 0 : index
    %c0_8 = arith.constant 0 : index
    %6 = vector.load %arg5[%c0_7, %c0_8] : memref<1x128xf32, #tpu.memory_space<vmem>>, vector<1x128xf32>
    %7 = vector.broadcast %6 : vector<1x128xf32> to vector<16x128xf32>
    %8 = arith.addf %5, %7 : vector<16x128xf32>
    %c0_9 = arith.constant 0 : index
    %c0_10 = arith.constant 0 : index
    %9 = vector.load %arg6[%c0_9, %c0_10] : memref<128x256xbf16, #tpu.memory_space<vmem>>, vector<128x256xbf16>
    %cst_11 = arith.constant dense<0.000000e+00> : vector<24x256xf32>
    %10 = tpu.matmul %3, %9, %cst_11 {dimension_numbers = #tpu.dot_dimension_numbers<[1], [0], [0], [1], [0, 0, 1, 1], [], []>} : vector<24x128xbf16>, vector<128x256xbf16>, vector<24x256xf32> -> vector<24x256xf32>
    %c0_12 = arith.constant 0 : index
    %c0_13 = arith.constant 0 : index
    %11 = vector.load %arg7[%c0_12, %c0_13] : memref<1x256xf32, #tpu.memory_space<vmem>>, vector<1x256xf32>
    %12 = vector.broadcast %11 : vector<1x256xf32> to vector<24x256xf32>
    %13 = arith.addf %10, %12 : vector<24x256xf32>
    %c0_14 = arith.constant 0 : index
    %c0_15 = arith.constant 0 : index
    %c0_16 = arith.constant 0 : index
    %14 = vector.load %arg3[%c0_14, %c0_15, %c0_16] : memref<1x1x24xf32, #tpu.memory_space<vmem>>, vector<1x1x24xf32>
    %15 = vector.shape_cast %14 : vector<1x1x24xf32> to vector<1x24xf32>
    %cst_17 = arith.constant 0.000000e+00 : f32
    %16 = vector.broadcast %cst_17 : f32 to vector<16x128xf32>
    %cst_18 = arith.constant 0.000000e+00 : f32
    %17 = vector.broadcast %cst_18 : f32 to vector<16x24xf32>
    %18 = vector.extract_strided_slice %8 {offsets = [0, 0], sizes = [16, 32], strides = [1, 1]} : vector<16x128xf32> to vector<16x32xf32>
    %cst_19 = arith.constant 0.176776692 : f32
    %19 = vector.broadcast %cst_19 : f32 to vector<16x32xf32>
    %20 = arith.mulf %18, %19 : vector<16x32xf32>
    %21 = arith.truncf %20 : vector<16x32xf32> to vector<16x32xbf16>
    %22 = vector.extract_strided_slice %13 {offsets = [0, 0], sizes = [24, 32], strides = [1, 1]} : vector<24x256xf32> to vector<24x32xf32>
    %23 = arith.truncf %22 : vector<24x32xf32> to vector<24x32xbf16>
    %24 = vector.extract_strided_slice %13 {offsets = [0, 128], sizes = [24, 32], strides = [1, 1]} : vector<24x256xf32> to vector<24x32xf32>
    %25 = arith.truncf %24 : vector<24x32xf32> to vector<24x32xbf16>
    %cst_20 = arith.constant dense<0.000000e+00> : vector<16x24xf32>
    %26 = tpu.matmul %21, %23, %cst_20 {dimension_numbers = #tpu.dot_dimension_numbers<[1], [1], [0], [0], [0, 0, 1, 0], [], []>} : vector<16x32xbf16>, vector<24x32xbf16>, vector<16x24xf32> -> vector<16x24xf32>
    %27 = vector.broadcast %15 : vector<1x24xf32> to vector<16x24xf32>
    %28 = arith.addf %26, %27 : vector<16x24xf32>
    %cst_21 = arith.constant dense<0xFF800000> : vector<16xf32>
    %29 = vector.multi_reduction <maximumf>, %28, %cst_21 [1] : vector<16x24xf32> to vector<16xf32>
    %30 = vector.shape_cast %29 : vector<16xf32> to vector<16x1xf32>
    %31 = vector.broadcast %30 : vector<16x1xf32> to vector<16x24xf32>
    %32 = arith.subf %28, %31 : vector<16x24xf32>
    %33 = math.exp %32 : vector<16x24xf32>
    %cst_22 = arith.constant dense<0.000000e+00> : vector<16xf32>
    %34 = vector.multi_reduction <add>, %33, %cst_22 [1] : vector<16x24xf32> to vector<16xf32>
    %35 = vector.shape_cast %34 : vector<16xf32> to vector<16x1xf32>
    %36 = tpu.reciprocal %35 {approx = true} : vector<16x1xf32> -> vector<16x1xf32>
    %37 = vector.broadcast %36 : vector<16x1xf32> to vector<16x24xf32>
    %38 = arith.mulf %33, %37 : vector<16x24xf32>
    %39 = arith.addf %17, %38 : vector<16x24xf32>
    %40 = arith.truncf %38 : vector<16x24xf32> to vector<16x24xbf16>
    %cst_23 = arith.constant dense<0.000000e+00> : vector<16x32xf32>
    %41 = tpu.matmul %40, %25, %cst_23 {dimension_numbers = #tpu.dot_dimension_numbers<[1], [0], [0], [1], [0, 0, 1, 1], [], []>} : vector<16x24xbf16>, vector<24x32xbf16>, vector<16x32xf32> -> vector<16x32xf32>
    %42 = arith.truncf %41 : vector<16x32xf32> to vector<16x32xbf16>
    %c0_24 = arith.constant 0 : index
    %c0_25 = arith.constant 0 : index
    %43 = vector.load %arg8[%c0_24, %c0_25] : memref<128x128xbf16, #tpu.memory_space<vmem>>, vector<32x128xbf16>
    %cst_26 = arith.constant dense<0.000000e+00> : vector<16x128xf32>
    %44 = tpu.matmul %42, %43, %cst_26 {dimension_numbers = #tpu.dot_dimension_numbers<[1], [0], [0], [1], [0, 0, 1, 1], [], []>} : vector<16x32xbf16>, vector<32x128xbf16>, vector<16x128xf32> -> vector<16x128xf32>
    %45 = arith.addf %16, %44 : vector<16x128xf32>
    %46 = vector.extract_strided_slice %8 {offsets = [0, 32], sizes = [16, 32], strides = [1, 1]} : vector<16x128xf32> to vector<16x32xf32>
    %cst_27 = arith.constant 0.176776692 : f32
    %47 = vector.broadcast %cst_27 : f32 to vector<16x32xf32>
    %48 = arith.mulf %46, %47 : vector<16x32xf32>
    %49 = arith.truncf %48 : vector<16x32xf32> to vector<16x32xbf16>
    %50 = vector.extract_strided_slice %13 {offsets = [0, 32], sizes = [24, 32], strides = [1, 1]} : vector<24x256xf32> to vector<24x32xf32>
    %51 = arith.truncf %50 : vector<24x32xf32> to vector<24x32xbf16>
    %52 = vector.extract_strided_slice %13 {offsets = [0, 160], sizes = [24, 32], strides = [1, 1]} : vector<24x256xf32> to vector<24x32xf32>
    %53 = arith.truncf %52 : vector<24x32xf32> to vector<24x32xbf16>
    %cst_28 = arith.constant dense<0.000000e+00> : vector<16x24xf32>
    %54 = tpu.matmul %49, %51, %cst_28 {dimension_numbers = #tpu.dot_dimension_numbers<[1], [1], [0], [0], [0, 0, 1, 0], [], []>} : vector<16x32xbf16>, vector<24x32xbf16>, vector<16x24xf32> -> vector<16x24xf32>
    %55 = vector.broadcast %15 : vector<1x24xf32> to vector<16x24xf32>
    %56 = arith.addf %54, %55 : vector<16x24xf32>
    %cst_29 = arith.constant dense<0xFF800000> : vector<16xf32>
    %57 = vector.multi_reduction <maximumf>, %56, %cst_29 [1] : vector<16x24xf32> to vector<16xf32>
    %58 = vector.shape_cast %57 : vector<16xf32> to vector<16x1xf32>
    %59 = vector.broadcast %58 : vector<16x1xf32> to vector<16x24xf32>
    %60 = arith.subf %56, %59 : vector<16x24xf32>
    %61 = math.exp %60 : vector<16x24xf32>
    %cst_30 = arith.constant dense<0.000000e+00> : vector<16xf32>
    %62 = vector.multi_reduction <add>, %61, %cst_30 [1] : vector<16x24xf32> to vector<16xf32>
    %63 = vector.shape_cast %62 : vector<16xf32> to vector<16x1xf32>
    %64 = tpu.reciprocal %63 {approx = true} : vector<16x1xf32> -> vector<16x1xf32>
    %65 = vector.broadcast %64 : vector<16x1xf32> to vector<16x24xf32>
    %66 = arith.mulf %61, %65 : vector<16x24xf32>
    %67 = arith.addf %39, %66 : vector<16x24xf32>
    %68 = arith.truncf %66 : vector<16x24xf32> to vector<16x24xbf16>
    %cst_31 = arith.constant dense<0.000000e+00> : vector<16x32xf32>
    %69 = tpu.matmul %68, %53, %cst_31 {dimension_numbers = #tpu.dot_dimension_numbers<[1], [0], [0], [1], [0, 0, 1, 1], [], []>} : vector<16x24xbf16>, vector<24x32xbf16>, vector<16x32xf32> -> vector<16x32xf32>
    %70 = arith.truncf %69 : vector<16x32xf32> to vector<16x32xbf16>
    %c32 = arith.constant 32 : index
    %c0_32 = arith.constant 0 : index
    %71 = vector.load %arg8[%c32, %c0_32] : memref<128x128xbf16, #tpu.memory_space<vmem>>, vector<32x128xbf16>
    %cst_33 = arith.constant dense<0.000000e+00> : vector<16x128xf32>
    %72 = tpu.matmul %70, %71, %cst_33 {dimension_numbers = #tpu.dot_dimension_numbers<[1], [0], [0], [1], [0, 0, 1, 1], [], []>} : vector<16x32xbf16>, vector<32x128xbf16>, vector<16x128xf32> -> vector<16x128xf32>
    %73 = arith.addf %45, %72 : vector<16x128xf32>
    %74 = vector.extract_strided_slice %8 {offsets = [0, 64], sizes = [16, 32], strides = [1, 1]} : vector<16x128xf32> to vector<16x32xf32>
    %cst_34 = arith.constant 0.176776692 : f32
    %75 = vector.broadcast %cst_34 : f32 to vector<16x32xf32>
    %76 = arith.mulf %74, %75 : vector<16x32xf32>
    %77 = arith.truncf %76 : vector<16x32xf32> to vector<16x32xbf16>
    %78 = vector.extract_strided_slice %13 {offsets = [0, 64], sizes = [24, 32], strides = [1, 1]} : vector<24x256xf32> to vector<24x32xf32>
    %79 = arith.truncf %78 : vector<24x32xf32> to vector<24x32xbf16>
    %80 = vector.extract_strided_slice %13 {offsets = [0, 192], sizes = [24, 32], strides = [1, 1]} : vector<24x256xf32> to vector<24x32xf32>
    %81 = arith.truncf %80 : vector<24x32xf32> to vector<24x32xbf16>
    %cst_35 = arith.constant dense<0.000000e+00> : vector<16x24xf32>
    %82 = tpu.matmul %77, %79, %cst_35 {dimension_numbers = #tpu.dot_dimension_numbers<[1], [1], [0], [0], [0, 0, 1, 0], [], []>} : vector<16x32xbf16>, vector<24x32xbf16>, vector<16x24xf32> -> vector<16x24xf32>
    %83 = vector.broadcast %15 : vector<1x24xf32> to vector<16x24xf32>
    %84 = arith.addf %82, %83 : vector<16x24xf32>
    %cst_36 = arith.constant dense<0xFF800000> : vector<16xf32>
    %85 = vector.multi_reduction <maximumf>, %84, %cst_36 [1] : vector<16x24xf32> to vector<16xf32>
    %86 = vector.shape_cast %85 : vector<16xf32> to vector<16x1xf32>
    %87 = vector.broadcast %86 : vector<16x1xf32> to vector<16x24xf32>
    %88 = arith.subf %84, %87 : vector<16x24xf32>
    %89 = math.exp %88 : vector<16x24xf32>
    %cst_37 = arith.constant dense<0.000000e+00> : vector<16xf32>
    %90 = vector.multi_reduction <add>, %89, %cst_37 [1] : vector<16x24xf32> to vector<16xf32>
    %91 = vector.shape_cast %90 : vector<16xf32> to vector<16x1xf32>
    %92 = tpu.reciprocal %91 {approx = true} : vector<16x1xf32> -> vector<16x1xf32>
    %93 = vector.broadcast %92 : vector<16x1xf32> to vector<16x24xf32>
    %94 = arith.mulf %89, %93 : vector<16x24xf32>
    %95 = arith.addf %67, %94 : vector<16x24xf32>
    %96 = arith.truncf %94 : vector<16x24xf32> to vector<16x24xbf16>
    %cst_38 = arith.constant dense<0.000000e+00> : vector<16x32xf32>
    %97 = tpu.matmul %96, %81, %cst_38 {dimension_numbers = #tpu.dot_dimension_numbers<[1], [0], [0], [1], [0, 0, 1, 1], [], []>} : vector<16x24xbf16>, vector<24x32xbf16>, vector<16x32xf32> -> vector<16x32xf32>
    %98 = arith.truncf %97 : vector<16x32xf32> to vector<16x32xbf16>
    %c64 = arith.constant 64 : index
    %c0_39 = arith.constant 0 : index
    %99 = vector.load %arg8[%c64, %c0_39] : memref<128x128xbf16, #tpu.memory_space<vmem>>, vector<32x128xbf16>
    %cst_40 = arith.constant dense<0.000000e+00> : vector<16x128xf32>
    %100 = tpu.matmul %98, %99, %cst_40 {dimension_numbers = #tpu.dot_dimension_numbers<[1], [0], [0], [1], [0, 0, 1, 1], [], []>} : vector<16x32xbf16>, vector<32x128xbf16>, vector<16x128xf32> -> vector<16x128xf32>
    %101 = arith.addf %73, %100 : vector<16x128xf32>
    %102 = vector.extract_strided_slice %8 {offsets = [0, 96], sizes = [16, 32], strides = [1, 1]} : vector<16x128xf32> to vector<16x32xf32>
    %cst_41 = arith.constant 0.176776692 : f32
    %103 = vector.broadcast %cst_41 : f32 to vector<16x32xf32>
    %104 = arith.mulf %102, %103 : vector<16x32xf32>
    %105 = arith.truncf %104 : vector<16x32xf32> to vector<16x32xbf16>
    %106 = vector.extract_strided_slice %13 {offsets = [0, 96], sizes = [24, 32], strides = [1, 1]} : vector<24x256xf32> to vector<24x32xf32>
    %107 = arith.truncf %106 : vector<24x32xf32> to vector<24x32xbf16>
    %108 = vector.extract_strided_slice %13 {offsets = [0, 224], sizes = [24, 32], strides = [1, 1]} : vector<24x256xf32> to vector<24x32xf32>
    %109 = arith.truncf %108 : vector<24x32xf32> to vector<24x32xbf16>
    %cst_42 = arith.constant dense<0.000000e+00> : vector<16x24xf32>
    %110 = tpu.matmul %105, %107, %cst_42 {dimension_numbers = #tpu.dot_dimension_numbers<[1], [1], [0], [0], [0, 0, 1, 0], [], []>} : vector<16x32xbf16>, vector<24x32xbf16>, vector<16x24xf32> -> vector<16x24xf32>
    %111 = vector.broadcast %15 : vector<1x24xf32> to vector<16x24xf32>
    %112 = arith.addf %110, %111 : vector<16x24xf32>
    %cst_43 = arith.constant dense<0xFF800000> : vector<16xf32>
    %113 = vector.multi_reduction <maximumf>, %112, %cst_43 [1] : vector<16x24xf32> to vector<16xf32>
    %114 = vector.shape_cast %113 : vector<16xf32> to vector<16x1xf32>
    %115 = vector.broadcast %114 : vector<16x1xf32> to vector<16x24xf32>
    %116 = arith.subf %112, %115 : vector<16x24xf32>
    %117 = math.exp %116 : vector<16x24xf32>
    %cst_44 = arith.constant dense<0.000000e+00> : vector<16xf32>
    %118 = vector.multi_reduction <add>, %117, %cst_44 [1] : vector<16x24xf32> to vector<16xf32>
    %119 = vector.shape_cast %118 : vector<16xf32> to vector<16x1xf32>
    %120 = tpu.reciprocal %119 {approx = true} : vector<16x1xf32> -> vector<16x1xf32>
    %121 = vector.broadcast %120 : vector<16x1xf32> to vector<16x24xf32>
    %122 = arith.mulf %117, %121 : vector<16x24xf32>
    %123 = arith.addf %95, %122 : vector<16x24xf32>
    %124 = arith.truncf %122 : vector<16x24xf32> to vector<16x24xbf16>
    %cst_45 = arith.constant dense<0.000000e+00> : vector<16x32xf32>
    %125 = tpu.matmul %124, %109, %cst_45 {dimension_numbers = #tpu.dot_dimension_numbers<[1], [0], [0], [1], [0, 0, 1, 1], [], []>} : vector<16x24xbf16>, vector<24x32xbf16>, vector<16x32xf32> -> vector<16x32xf32>
    %126 = arith.truncf %125 : vector<16x32xf32> to vector<16x32xbf16>
    %c96 = arith.constant 96 : index
    %c0_46 = arith.constant 0 : index
    %127 = vector.load %arg8[%c96, %c0_46] : memref<128x128xbf16, #tpu.memory_space<vmem>>, vector<32x128xbf16>
    %cst_47 = arith.constant dense<0.000000e+00> : vector<16x128xf32>
    %128 = tpu.matmul %126, %127, %cst_47 {dimension_numbers = #tpu.dot_dimension_numbers<[1], [0], [0], [1], [0, 0, 1, 1], [], []>} : vector<16x32xbf16>, vector<32x128xbf16>, vector<16x128xf32> -> vector<16x128xf32>
    %129 = arith.addf %101, %128 : vector<16x128xf32>
    %130 = arith.extf %1 : vector<16x128xbf16> to vector<16x128xf32>
    %131 = arith.addf %130, %129 : vector<16x128xf32>
    %c0_48 = arith.constant 0 : index
    %c0_49 = arith.constant 0 : index
    %132 = vector.load %arg9[%c0_48, %c0_49] : memref<1x128xf32, #tpu.memory_space<vmem>>, vector<1x128xf32>
    %133 = vector.broadcast %132 : vector<1x128xf32> to vector<16x128xf32>
    %134 = arith.addf %131, %133 : vector<16x128xf32>
    %c0_50 = arith.constant 0 : index
    %c0_51 = arith.constant 0 : index
    %135 = vector.load %arg10[%c0_50, %c0_51] : memref<1x128xf32, #tpu.memory_space<vmem>>, vector<1x128xf32>
    %c0_52 = arith.constant 0 : index
    %c0_53 = arith.constant 0 : index
    %136 = vector.load %arg11[%c0_52, %c0_53] : memref<1x128xf32, #tpu.memory_space<vmem>>, vector<1x128xf32>
    %cst_54 = arith.constant dense<0.000000e+00> : vector<16xf32>
    %137 = vector.multi_reduction <add>, %134, %cst_54 [1] : vector<16x128xf32> to vector<16xf32>
    %138 = vector.shape_cast %137 : vector<16xf32> to vector<16x1xf32>
    %cst_55 = arith.constant 1.280000e+02 : f32
    %139 = vector.broadcast %cst_55 : f32 to vector<16x1xf32>
    %140 = arith.divf %138, %139 : vector<16x1xf32>
    %141 = vector.broadcast %140 : vector<16x1xf32> to vector<16x128xf32>
    %142 = arith.subf %134, %141 : vector<16x128xf32>
    %143 = vector.broadcast %140 : vector<16x1xf32> to vector<16x128xf32>
    %144 = arith.subf %134, %143 : vector<16x128xf32>
    %145 = arith.mulf %142, %144 : vector<16x128xf32>
    %cst_56 = arith.constant dense<0.000000e+00> : vector<16xf32>
    %146 = vector.multi_reduction <add>, %145, %cst_56 [1] : vector<16x128xf32> to vector<16xf32>
    %147 = vector.shape_cast %146 : vector<16xf32> to vector<16x1xf32>
    %cst_57 = arith.constant 1.280000e+02 : f32
    %148 = vector.broadcast %cst_57 : f32 to vector<16x1xf32>
    %149 = arith.divf %147, %148 : vector<16x1xf32>
    %150 = vector.broadcast %140 : vector<16x1xf32> to vector<16x128xf32>
    %151 = arith.subf %134, %150 : vector<16x128xf32>
    %cst_58 = arith.constant 9.99999974E-6 : f32
    %152 = vector.broadcast %cst_58 : f32 to vector<16x1xf32>
    %153 = arith.addf %149, %152 : vector<16x1xf32>
    %154 = math.rsqrt %153 : vector<16x1xf32>
    %155 = vector.broadcast %154 : vector<16x1xf32> to vector<16x128xf32>
    %156 = arith.mulf %151, %155 : vector<16x128xf32>
    %157 = vector.broadcast %135 : vector<1x128xf32> to vector<16x128xf32>
    %158 = arith.mulf %156, %157 : vector<16x128xf32>
    %159 = vector.broadcast %136 : vector<1x128xf32> to vector<16x128xf32>
    %160 = arith.addf %158, %159 : vector<16x128xf32>
    %161 = arith.truncf %160 : vector<16x128xf32> to vector<16x128xbf16>
    %c0_59 = arith.constant 0 : index
    %c0_60 = arith.constant 0 : index
    %c0_61 = arith.constant 0 : index
    %162 = vector.load %arg12[%c0_59, %c0_60, %c0_61] : memref<1x16x128xbf16, #tpu.memory_space<vmem>>, vector<1x16x128xbf16>
    %163 = vector.shape_cast %162 : vector<1x16x128xbf16> to vector<16x128xbf16>
    %164 = vector.shape_cast %161 : vector<16x128xbf16> to vector<1x16x128xbf16>
    tpu.vector_store %arg12[%c0_59, %c0_60, %c0_61], %164 {strides = array<i32>} : memref<1x16x128xbf16, #tpu.memory_space<vmem>>, vector<1x16x128xbf16>,
    %cst_62 = arith.constant 2.500000e-01 : f32
    %165 = vector.broadcast %cst_62 : f32 to vector<16x24xf32>
    %166 = arith.mulf %123, %165 : vector<16x24xf32>
    %c0_63 = arith.constant 0 : index
    %c0_64 = arith.constant 0 : index
    %c0_65 = arith.constant 0 : index
    %167 = vector.load %arg13[%c0_63, %c0_64, %c0_65] : memref<1x16x24xf32, #tpu.memory_space<vmem>>, vector<1x16x24xf32>
    %168 = vector.shape_cast %167 : vector<1x16x24xf32> to vector<16x24xf32>
    %169 = vector.shape_cast %166 : vector<16x24xf32> to vector<1x16x24xf32>
    tpu.vector_store %arg13[%c0_63, %c0_64, %c0_65], %169 {strides = array<i32>} : memref<1x16x24xf32, #tpu.memory_space<vmem>>, vector<1x16x24xf32>,
    return
  }
  func.func @transform_0(%arg0: i32) -> (i32, i32, i32) {
    %c0_i32 = arith.constant 0 : i32
    %c0_i32_0 = arith.constant 0 : i32
    %c0_i32_1 = arith.constant 0 : i32
    return %arg0, %c0_i32, %c0_i32_0 : i32, i32, i32
  }
  func.func @transform_1(%arg0: i32) -> (i32, i32, i32) {
    %c0_i32 = arith.constant 0 : i32
    %c0_i32_0 = arith.constant 0 : i32
    %c0_i32_1 = arith.constant 0 : i32
    return %arg0, %c0_i32, %c0_i32_0 : i32, i32, i32
  }
  func.func @transform_2(%arg0: i32) -> (i32, i32, i32) {
    %c0_i32 = arith.constant 0 : i32
    %c0_i32_0 = arith.constant 0 : i32
    %c0_i32_1 = arith.constant 0 : i32
    return %arg0, %c0_i32, %c0_i32_0 : i32, i32, i32
  }
  func.func @transform_3(%arg0: i32) -> (i32, i32) {
    %c0_i32 = arith.constant 0 : i32
    %c0_i32_0 = arith.constant 0 : i32
    %c0_i32_1 = arith.constant 0 : i32
    return %c0_i32, %c0_i32_0 : i32, i32
  }
  func.func @transform_4(%arg0: i32) -> (i32, i32) {
    %c0_i32 = arith.constant 0 : i32
    %c0_i32_0 = arith.constant 0 : i32
    %c0_i32_1 = arith.constant 0 : i32
    return %c0_i32, %c0_i32_0 : i32, i32
  }
  func.func @transform_5(%arg0: i32) -> (i32, i32) {
    %c0_i32 = arith.constant 0 : i32
    %c0_i32_0 = arith.constant 0 : i32
    %c0_i32_1 = arith.constant 0 : i32
    return %c0_i32, %c0_i32_0 : i32, i32
  }
  func.func @transform_6(%arg0: i32) -> (i32, i32) {
    %c0_i32 = arith.constant 0 : i32
    %c0_i32_0 = arith.constant 0 : i32
    %c0_i32_1 = arith.constant 0 : i32
    return %c0_i32, %c0_i32_0 : i32, i32
  }
  func.func @transform_7(%arg0: i32) -> (i32, i32) {
    %c0_i32 = arith.constant 0 : i32
    %c0_i32_0 = arith.constant 0 : i32
    %c0_i32_1 = arith.constant 0 : i32
    return %c0_i32, %c0_i32_0 : i32, i32
  }
  func.func @transform_8(%arg0: i32) -> (i32, i32) {
    %c0_i32 = arith.constant 0 : i32
    %c0_i32_0 = arith.constant 0 : i32
    %c0_i32_1 = arith.constant 0 : i32
    return %c0_i32, %c0_i32_0 : i32, i32
  }
  func.func @transform_9(%arg0: i32) -> (i32, i32) {
    %c0_i32 = arith.constant 0 : i32
    %c0_i32_0 = arith.constant 0 : i32
    %c0_i32_1 = arith.constant 0 : i32
    return %c0_i32, %c0_i32_0 : i32, i32
  }
  func.func @transform_10(%arg0: i32) -> (i32, i32) {
    %c0_i32 = arith.constant 0 : i32
    %c0_i32_0 = arith.constant 0 : i32
    %c0_i32_1 = arith.constant 0 : i32
    return %c0_i32, %c0_i32_0 : i32, i32
  }
  func.func @transform_11(%arg0: i32) -> (i32, i32, i32) {
    %c0_i32 = arith.constant 0 : i32
    %c0_i32_0 = arith.constant 0 : i32
    %c0_i32_1 = arith.constant 0 : i32
    return %arg0, %c0_i32, %c0_i32_0 : i32, i32, i32
  }
  func.func @transform_12(%arg0: i32) -> (i32, i32, i32) {
    %c0_i32 = arith.constant 0 : i32
    %c0_i32_0 = arith.constant 0 : i32
    %c0_i32_1 = arith.constant 0 : i32
    return %arg0, %c0_i32, %c0_i32_0 : i32, i32, i32
  }
}

module attributes {stable_mosaic.version = 11 : i64} {
  func.func @_cross_attn_block_kernel(%arg0: i32, %arg1: memref<1x16x128xbf16, #tpu.memory_space<vmem>>, %arg2: memref<1x24x128xbf16, #tpu.memory_space<vmem>>, %arg3: memref<1x1x24xf32, #tpu.memory_space<vmem>>, %arg4: memref<128x128xbf16, #tpu.memory_space<vmem>>, %arg5: memref<1x128xf32, #tpu.memory_space<vmem>>, %arg6: memref<128x256xbf16, #tpu.memory_space<vmem>>, %arg7: memref<1x256xf32, #tpu.memory_space<vmem>>, %arg8: memref<128x128xbf16, #tpu.memory_space<vmem>>, %arg9: memref<1x128xf32, #tpu.memory_space<vmem>>, %arg10: memref<1x128xf32, #tpu.memory_space<vmem>>, %arg11: memref<1x128xf32, #tpu.memory_space<vmem>>, %arg12: memref<1x16x128xbf16, #tpu.memory_space<vmem>>) attributes {dimension_semantics = [#tpu.dimension_semantics<parallel>], iteration_bounds = array<i64: 2>, scalar_prefetch = 0 : i64, scratch_operands = 0 : i64, tpu.core_type = #tpu.core_type<tc>, window_params = [{transform_indices = @transform_0, window_bounds = array<i64: 1, 16, 128>}, {transform_indices = @transform_1, window_bounds = array<i64: 1, 24, 128>}, {transform_indices = @transform_2, window_bounds = array<i64: 1, 1, 24>}, {pipeline_mode = #tpu.pipeline_mode<synchronous>, transform_indices = @transform_3, window_bounds = array<i64: 128, 128>}, {pipeline_mode = #tpu.pipeline_mode<synchronous>, transform_indices = @transform_4, window_bounds = array<i64: 1, 128>}, {pipeline_mode = #tpu.pipeline_mode<synchronous>, transform_indices = @transform_5, window_bounds = array<i64: 128, 256>}, {pipeline_mode = #tpu.pipeline_mode<synchronous>, transform_indices = @transform_6, window_bounds = array<i64: 1, 256>}, {pipeline_mode = #tpu.pipeline_mode<synchronous>, transform_indices = @transform_7, window_bounds = array<i64: 128, 128>}, {pipeline_mode = #tpu.pipeline_mode<synchronous>, transform_indices = @transform_8, window_bounds = array<i64: 1, 128>}, {pipeline_mode = #tpu.pipeline_mode<synchronous>, transform_indices = @transform_9, window_bounds = array<i64: 1, 128>}, {pipeline_mode = #tpu.pipeline_mode<synchronous>, transform_indices = @transform_10, window_bounds = array<i64: 1, 128>}, {transform_indices = @transform_11, window_bounds = array<i64: 1, 16, 128>}]} {
    %c0 = arith.constant 0 : index
    %c0_0 = arith.constant 0 : index
    %c0_1 = arith.constant 0 : index
    %0 = vector.load %arg1[%c0, %c0_0, %c0_1] : memref<1x16x128xbf16, #tpu.memory_space<vmem>>, vector<1x16x128xbf16>
    %1 = vector.shape_cast %0 : vector<1x16x128xbf16> to vector<16x128xbf16>
    %c0_2 = arith.constant 0 : index
    %c0_3 = arith.constant 0 : index
    %c0_4 = arith.constant 0 : index
    %2 = vector.load %arg2[%c0_2, %c0_3, %c0_4] : memref<1x24x128xbf16, #tpu.memory_space<vmem>>, vector<1x24x128xbf16>
    %3 = vector.shape_cast %2 : vector<1x24x128xbf16> to vector<24x128xbf16>
    %c0_5 = arith.constant 0 : index
    %c0_6 = arith.constant 0 : index
    %4 = vector.load %arg4[%c0_5, %c0_6] : memref<128x128xbf16, #tpu.memory_space<vmem>>, vector<128x128xbf16>
    %cst = arith.constant dense<0.000000e+00> : vector<16x128xf32>
    %5 = tpu.matmul %1, %4, %cst {dimension_numbers = #tpu.dot_dimension_numbers<[1], [0], [0], [1], [0, 0, 1, 1], [], []>} : vector<16x128xbf16>, vector<128x128xbf16>, vector<16x128xf32> -> vector<16x128xf32>
    %c0_7 = arith.constant 0 : index
    %c0_8 = arith.constant 0 : index
    %6 = vector.load %arg5[%c0_7, %c0_8] : memref<1x128xf32, #tpu.memory_space<vmem>>, vector<1x128xf32>
    %7 = vector.broadcast %6 : vector<1x128xf32> to vector<16x128xf32>
    %8 = arith.addf %5, %7 : vector<16x128xf32>
    %c0_9 = arith.constant 0 : index
    %c0_10 = arith.constant 0 : index
    %9 = vector.load %arg6[%c0_9, %c0_10] : memref<128x256xbf16, #tpu.memory_space<vmem>>, vector<128x256xbf16>
    %cst_11 = arith.constant dense<0.000000e+00> : vector<24x256xf32>
    %10 = tpu.matmul %3, %9, %cst_11 {dimension_numbers = #tpu.dot_dimension_numbers<[1], [0], [0], [1], [0, 0, 1, 1], [], []>} : vector<24x128xbf16>, vector<128x256xbf16>, vector<24x256xf32> -> vector<24x256xf32>
    %c0_12 = arith.constant 0 : index
    %c0_13 = arith.constant 0 : index
    %11 = vector.load %arg7[%c0_12, %c0_13] : memref<1x256xf32, #tpu.memory_space<vmem>>, vector<1x256xf32>
    %12 = vector.broadcast %11 : vector<1x256xf32> to vector<24x256xf32>
    %13 = arith.addf %10, %12 : vector<24x256xf32>
    %c0_14 = arith.constant 0 : index
    %c0_15 = arith.constant 0 : index
    %c0_16 = arith.constant 0 : index
    %14 = vector.load %arg3[%c0_14, %c0_15, %c0_16] : memref<1x1x24xf32, #tpu.memory_space<vmem>>, vector<1x1x24xf32>
    %15 = vector.shape_cast %14 : vector<1x1x24xf32> to vector<1x24xf32>
    %cst_17 = arith.constant 0.000000e+00 : f32
    %16 = vector.broadcast %cst_17 : f32 to vector<16x128xf32>
    %17 = vector.extract_strided_slice %8 {offsets = [0, 0], sizes = [16, 32], strides = [1, 1]} : vector<16x128xf32> to vector<16x32xf32>
    %cst_18 = arith.constant 0.176776692 : f32
    %18 = vector.broadcast %cst_18 : f32 to vector<16x32xf32>
    %19 = arith.mulf %17, %18 : vector<16x32xf32>
    %20 = arith.truncf %19 : vector<16x32xf32> to vector<16x32xbf16>
    %21 = vector.extract_strided_slice %13 {offsets = [0, 0], sizes = [24, 32], strides = [1, 1]} : vector<24x256xf32> to vector<24x32xf32>
    %22 = arith.truncf %21 : vector<24x32xf32> to vector<24x32xbf16>
    %23 = vector.extract_strided_slice %13 {offsets = [0, 128], sizes = [24, 32], strides = [1, 1]} : vector<24x256xf32> to vector<24x32xf32>
    %24 = arith.truncf %23 : vector<24x32xf32> to vector<24x32xbf16>
    %cst_19 = arith.constant dense<0.000000e+00> : vector<16x24xf32>
    %25 = tpu.matmul %20, %22, %cst_19 {dimension_numbers = #tpu.dot_dimension_numbers<[1], [1], [0], [0], [0, 0, 1, 0], [], []>} : vector<16x32xbf16>, vector<24x32xbf16>, vector<16x24xf32> -> vector<16x24xf32>
    %26 = vector.broadcast %15 : vector<1x24xf32> to vector<16x24xf32>
    %27 = arith.addf %25, %26 : vector<16x24xf32>
    %cst_20 = arith.constant dense<0xFF800000> : vector<16xf32>
    %28 = vector.multi_reduction <maximumf>, %27, %cst_20 [1] : vector<16x24xf32> to vector<16xf32>
    %29 = vector.shape_cast %28 : vector<16xf32> to vector<16x1xf32>
    %30 = vector.broadcast %29 : vector<16x1xf32> to vector<16x24xf32>
    %31 = arith.subf %27, %30 : vector<16x24xf32>
    %32 = math.exp %31 : vector<16x24xf32>
    %cst_21 = arith.constant dense<0.000000e+00> : vector<16xf32>
    %33 = vector.multi_reduction <add>, %32, %cst_21 [1] : vector<16x24xf32> to vector<16xf32>
    %34 = vector.shape_cast %33 : vector<16xf32> to vector<16x1xf32>
    %35 = tpu.reciprocal %34 {approx = true} : vector<16x1xf32> -> vector<16x1xf32>
    %36 = vector.broadcast %35 : vector<16x1xf32> to vector<16x24xf32>
    %37 = arith.mulf %32, %36 : vector<16x24xf32>
    %38 = arith.truncf %37 : vector<16x24xf32> to vector<16x24xbf16>
    %cst_22 = arith.constant dense<0.000000e+00> : vector<16x32xf32>
    %39 = tpu.matmul %38, %24, %cst_22 {dimension_numbers = #tpu.dot_dimension_numbers<[1], [0], [0], [1], [0, 0, 1, 1], [], []>} : vector<16x24xbf16>, vector<24x32xbf16>, vector<16x32xf32> -> vector<16x32xf32>
    %40 = arith.truncf %39 : vector<16x32xf32> to vector<16x32xbf16>
    %c0_23 = arith.constant 0 : index
    %c0_24 = arith.constant 0 : index
    %41 = vector.load %arg8[%c0_23, %c0_24] : memref<128x128xbf16, #tpu.memory_space<vmem>>, vector<32x128xbf16>
    %cst_25 = arith.constant dense<0.000000e+00> : vector<16x128xf32>
    %42 = tpu.matmul %40, %41, %cst_25 {dimension_numbers = #tpu.dot_dimension_numbers<[1], [0], [0], [1], [0, 0, 1, 1], [], []>} : vector<16x32xbf16>, vector<32x128xbf16>, vector<16x128xf32> -> vector<16x128xf32>
    %43 = arith.addf %16, %42 : vector<16x128xf32>
    %44 = vector.extract_strided_slice %8 {offsets = [0, 32], sizes = [16, 32], strides = [1, 1]} : vector<16x128xf32> to vector<16x32xf32>
    %cst_26 = arith.constant 0.176776692 : f32
    %45 = vector.broadcast %cst_26 : f32 to vector<16x32xf32>
    %46 = arith.mulf %44, %45 : vector<16x32xf32>
    %47 = arith.truncf %46 : vector<16x32xf32> to vector<16x32xbf16>
    %48 = vector.extract_strided_slice %13 {offsets = [0, 32], sizes = [24, 32], strides = [1, 1]} : vector<24x256xf32> to vector<24x32xf32>
    %49 = arith.truncf %48 : vector<24x32xf32> to vector<24x32xbf16>
    %50 = vector.extract_strided_slice %13 {offsets = [0, 160], sizes = [24, 32], strides = [1, 1]} : vector<24x256xf32> to vector<24x32xf32>
    %51 = arith.truncf %50 : vector<24x32xf32> to vector<24x32xbf16>
    %cst_27 = arith.constant dense<0.000000e+00> : vector<16x24xf32>
    %52 = tpu.matmul %47, %49, %cst_27 {dimension_numbers = #tpu.dot_dimension_numbers<[1], [1], [0], [0], [0, 0, 1, 0], [], []>} : vector<16x32xbf16>, vector<24x32xbf16>, vector<16x24xf32> -> vector<16x24xf32>
    %53 = vector.broadcast %15 : vector<1x24xf32> to vector<16x24xf32>
    %54 = arith.addf %52, %53 : vector<16x24xf32>
    %cst_28 = arith.constant dense<0xFF800000> : vector<16xf32>
    %55 = vector.multi_reduction <maximumf>, %54, %cst_28 [1] : vector<16x24xf32> to vector<16xf32>
    %56 = vector.shape_cast %55 : vector<16xf32> to vector<16x1xf32>
    %57 = vector.broadcast %56 : vector<16x1xf32> to vector<16x24xf32>
    %58 = arith.subf %54, %57 : vector<16x24xf32>
    %59 = math.exp %58 : vector<16x24xf32>
    %cst_29 = arith.constant dense<0.000000e+00> : vector<16xf32>
    %60 = vector.multi_reduction <add>, %59, %cst_29 [1] : vector<16x24xf32> to vector<16xf32>
    %61 = vector.shape_cast %60 : vector<16xf32> to vector<16x1xf32>
    %62 = tpu.reciprocal %61 {approx = true} : vector<16x1xf32> -> vector<16x1xf32>
    %63 = vector.broadcast %62 : vector<16x1xf32> to vector<16x24xf32>
    %64 = arith.mulf %59, %63 : vector<16x24xf32>
    %65 = arith.truncf %64 : vector<16x24xf32> to vector<16x24xbf16>
    %cst_30 = arith.constant dense<0.000000e+00> : vector<16x32xf32>
    %66 = tpu.matmul %65, %51, %cst_30 {dimension_numbers = #tpu.dot_dimension_numbers<[1], [0], [0], [1], [0, 0, 1, 1], [], []>} : vector<16x24xbf16>, vector<24x32xbf16>, vector<16x32xf32> -> vector<16x32xf32>
    %67 = arith.truncf %66 : vector<16x32xf32> to vector<16x32xbf16>
    %c32 = arith.constant 32 : index
    %c0_31 = arith.constant 0 : index
    %68 = vector.load %arg8[%c32, %c0_31] : memref<128x128xbf16, #tpu.memory_space<vmem>>, vector<32x128xbf16>
    %cst_32 = arith.constant dense<0.000000e+00> : vector<16x128xf32>
    %69 = tpu.matmul %67, %68, %cst_32 {dimension_numbers = #tpu.dot_dimension_numbers<[1], [0], [0], [1], [0, 0, 1, 1], [], []>} : vector<16x32xbf16>, vector<32x128xbf16>, vector<16x128xf32> -> vector<16x128xf32>
    %70 = arith.addf %43, %69 : vector<16x128xf32>
    %71 = vector.extract_strided_slice %8 {offsets = [0, 64], sizes = [16, 32], strides = [1, 1]} : vector<16x128xf32> to vector<16x32xf32>
    %cst_33 = arith.constant 0.176776692 : f32
    %72 = vector.broadcast %cst_33 : f32 to vector<16x32xf32>
    %73 = arith.mulf %71, %72 : vector<16x32xf32>
    %74 = arith.truncf %73 : vector<16x32xf32> to vector<16x32xbf16>
    %75 = vector.extract_strided_slice %13 {offsets = [0, 64], sizes = [24, 32], strides = [1, 1]} : vector<24x256xf32> to vector<24x32xf32>
    %76 = arith.truncf %75 : vector<24x32xf32> to vector<24x32xbf16>
    %77 = vector.extract_strided_slice %13 {offsets = [0, 192], sizes = [24, 32], strides = [1, 1]} : vector<24x256xf32> to vector<24x32xf32>
    %78 = arith.truncf %77 : vector<24x32xf32> to vector<24x32xbf16>
    %cst_34 = arith.constant dense<0.000000e+00> : vector<16x24xf32>
    %79 = tpu.matmul %74, %76, %cst_34 {dimension_numbers = #tpu.dot_dimension_numbers<[1], [1], [0], [0], [0, 0, 1, 0], [], []>} : vector<16x32xbf16>, vector<24x32xbf16>, vector<16x24xf32> -> vector<16x24xf32>
    %80 = vector.broadcast %15 : vector<1x24xf32> to vector<16x24xf32>
    %81 = arith.addf %79, %80 : vector<16x24xf32>
    %cst_35 = arith.constant dense<0xFF800000> : vector<16xf32>
    %82 = vector.multi_reduction <maximumf>, %81, %cst_35 [1] : vector<16x24xf32> to vector<16xf32>
    %83 = vector.shape_cast %82 : vector<16xf32> to vector<16x1xf32>
    %84 = vector.broadcast %83 : vector<16x1xf32> to vector<16x24xf32>
    %85 = arith.subf %81, %84 : vector<16x24xf32>
    %86 = math.exp %85 : vector<16x24xf32>
    %cst_36 = arith.constant dense<0.000000e+00> : vector<16xf32>
    %87 = vector.multi_reduction <add>, %86, %cst_36 [1] : vector<16x24xf32> to vector<16xf32>
    %88 = vector.shape_cast %87 : vector<16xf32> to vector<16x1xf32>
    %89 = tpu.reciprocal %88 {approx = true} : vector<16x1xf32> -> vector<16x1xf32>
    %90 = vector.broadcast %89 : vector<16x1xf32> to vector<16x24xf32>
    %91 = arith.mulf %86, %90 : vector<16x24xf32>
    %92 = arith.truncf %91 : vector<16x24xf32> to vector<16x24xbf16>
    %cst_37 = arith.constant dense<0.000000e+00> : vector<16x32xf32>
    %93 = tpu.matmul %92, %78, %cst_37 {dimension_numbers = #tpu.dot_dimension_numbers<[1], [0], [0], [1], [0, 0, 1, 1], [], []>} : vector<16x24xbf16>, vector<24x32xbf16>, vector<16x32xf32> -> vector<16x32xf32>
    %94 = arith.truncf %93 : vector<16x32xf32> to vector<16x32xbf16>
    %c64 = arith.constant 64 : index
    %c0_38 = arith.constant 0 : index
    %95 = vector.load %arg8[%c64, %c0_38] : memref<128x128xbf16, #tpu.memory_space<vmem>>, vector<32x128xbf16>
    %cst_39 = arith.constant dense<0.000000e+00> : vector<16x128xf32>
    %96 = tpu.matmul %94, %95, %cst_39 {dimension_numbers = #tpu.dot_dimension_numbers<[1], [0], [0], [1], [0, 0, 1, 1], [], []>} : vector<16x32xbf16>, vector<32x128xbf16>, vector<16x128xf32> -> vector<16x128xf32>
    %97 = arith.addf %70, %96 : vector<16x128xf32>
    %98 = vector.extract_strided_slice %8 {offsets = [0, 96], sizes = [16, 32], strides = [1, 1]} : vector<16x128xf32> to vector<16x32xf32>
    %cst_40 = arith.constant 0.176776692 : f32
    %99 = vector.broadcast %cst_40 : f32 to vector<16x32xf32>
    %100 = arith.mulf %98, %99 : vector<16x32xf32>
    %101 = arith.truncf %100 : vector<16x32xf32> to vector<16x32xbf16>
    %102 = vector.extract_strided_slice %13 {offsets = [0, 96], sizes = [24, 32], strides = [1, 1]} : vector<24x256xf32> to vector<24x32xf32>
    %103 = arith.truncf %102 : vector<24x32xf32> to vector<24x32xbf16>
    %104 = vector.extract_strided_slice %13 {offsets = [0, 224], sizes = [24, 32], strides = [1, 1]} : vector<24x256xf32> to vector<24x32xf32>
    %105 = arith.truncf %104 : vector<24x32xf32> to vector<24x32xbf16>
    %cst_41 = arith.constant dense<0.000000e+00> : vector<16x24xf32>
    %106 = tpu.matmul %101, %103, %cst_41 {dimension_numbers = #tpu.dot_dimension_numbers<[1], [1], [0], [0], [0, 0, 1, 0], [], []>} : vector<16x32xbf16>, vector<24x32xbf16>, vector<16x24xf32> -> vector<16x24xf32>
    %107 = vector.broadcast %15 : vector<1x24xf32> to vector<16x24xf32>
    %108 = arith.addf %106, %107 : vector<16x24xf32>
    %cst_42 = arith.constant dense<0xFF800000> : vector<16xf32>
    %109 = vector.multi_reduction <maximumf>, %108, %cst_42 [1] : vector<16x24xf32> to vector<16xf32>
    %110 = vector.shape_cast %109 : vector<16xf32> to vector<16x1xf32>
    %111 = vector.broadcast %110 : vector<16x1xf32> to vector<16x24xf32>
    %112 = arith.subf %108, %111 : vector<16x24xf32>
    %113 = math.exp %112 : vector<16x24xf32>
    %cst_43 = arith.constant dense<0.000000e+00> : vector<16xf32>
    %114 = vector.multi_reduction <add>, %113, %cst_43 [1] : vector<16x24xf32> to vector<16xf32>
    %115 = vector.shape_cast %114 : vector<16xf32> to vector<16x1xf32>
    %116 = tpu.reciprocal %115 {approx = true} : vector<16x1xf32> -> vector<16x1xf32>
    %117 = vector.broadcast %116 : vector<16x1xf32> to vector<16x24xf32>
    %118 = arith.mulf %113, %117 : vector<16x24xf32>
    %119 = arith.truncf %118 : vector<16x24xf32> to vector<16x24xbf16>
    %cst_44 = arith.constant dense<0.000000e+00> : vector<16x32xf32>
    %120 = tpu.matmul %119, %105, %cst_44 {dimension_numbers = #tpu.dot_dimension_numbers<[1], [0], [0], [1], [0, 0, 1, 1], [], []>} : vector<16x24xbf16>, vector<24x32xbf16>, vector<16x32xf32> -> vector<16x32xf32>
    %121 = arith.truncf %120 : vector<16x32xf32> to vector<16x32xbf16>
    %c96 = arith.constant 96 : index
    %c0_45 = arith.constant 0 : index
    %122 = vector.load %arg8[%c96, %c0_45] : memref<128x128xbf16, #tpu.memory_space<vmem>>, vector<32x128xbf16>
    %cst_46 = arith.constant dense<0.000000e+00> : vector<16x128xf32>
    %123 = tpu.matmul %121, %122, %cst_46 {dimension_numbers = #tpu.dot_dimension_numbers<[1], [0], [0], [1], [0, 0, 1, 1], [], []>} : vector<16x32xbf16>, vector<32x128xbf16>, vector<16x128xf32> -> vector<16x128xf32>
    %124 = arith.addf %97, %123 : vector<16x128xf32>
    %125 = arith.extf %1 : vector<16x128xbf16> to vector<16x128xf32>
    %126 = arith.addf %125, %124 : vector<16x128xf32>
    %c0_47 = arith.constant 0 : index
    %c0_48 = arith.constant 0 : index
    %127 = vector.load %arg9[%c0_47, %c0_48] : memref<1x128xf32, #tpu.memory_space<vmem>>, vector<1x128xf32>
    %128 = vector.broadcast %127 : vector<1x128xf32> to vector<16x128xf32>
    %129 = arith.addf %126, %128 : vector<16x128xf32>
    %c0_49 = arith.constant 0 : index
    %c0_50 = arith.constant 0 : index
    %130 = vector.load %arg10[%c0_49, %c0_50] : memref<1x128xf32, #tpu.memory_space<vmem>>, vector<1x128xf32>
    %c0_51 = arith.constant 0 : index
    %c0_52 = arith.constant 0 : index
    %131 = vector.load %arg11[%c0_51, %c0_52] : memref<1x128xf32, #tpu.memory_space<vmem>>, vector<1x128xf32>
    %cst_53 = arith.constant dense<0.000000e+00> : vector<16xf32>
    %132 = vector.multi_reduction <add>, %129, %cst_53 [1] : vector<16x128xf32> to vector<16xf32>
    %133 = vector.shape_cast %132 : vector<16xf32> to vector<16x1xf32>
    %cst_54 = arith.constant 1.280000e+02 : f32
    %134 = vector.broadcast %cst_54 : f32 to vector<16x1xf32>
    %135 = arith.divf %133, %134 : vector<16x1xf32>
    %136 = vector.broadcast %135 : vector<16x1xf32> to vector<16x128xf32>
    %137 = arith.subf %129, %136 : vector<16x128xf32>
    %138 = vector.broadcast %135 : vector<16x1xf32> to vector<16x128xf32>
    %139 = arith.subf %129, %138 : vector<16x128xf32>
    %140 = arith.mulf %137, %139 : vector<16x128xf32>
    %cst_55 = arith.constant dense<0.000000e+00> : vector<16xf32>
    %141 = vector.multi_reduction <add>, %140, %cst_55 [1] : vector<16x128xf32> to vector<16xf32>
    %142 = vector.shape_cast %141 : vector<16xf32> to vector<16x1xf32>
    %cst_56 = arith.constant 1.280000e+02 : f32
    %143 = vector.broadcast %cst_56 : f32 to vector<16x1xf32>
    %144 = arith.divf %142, %143 : vector<16x1xf32>
    %145 = vector.broadcast %135 : vector<16x1xf32> to vector<16x128xf32>
    %146 = arith.subf %129, %145 : vector<16x128xf32>
    %cst_57 = arith.constant 9.99999974E-6 : f32
    %147 = vector.broadcast %cst_57 : f32 to vector<16x1xf32>
    %148 = arith.addf %144, %147 : vector<16x1xf32>
    %149 = math.rsqrt %148 : vector<16x1xf32>
    %150 = vector.broadcast %149 : vector<16x1xf32> to vector<16x128xf32>
    %151 = arith.mulf %146, %150 : vector<16x128xf32>
    %152 = vector.broadcast %130 : vector<1x128xf32> to vector<16x128xf32>
    %153 = arith.mulf %151, %152 : vector<16x128xf32>
    %154 = vector.broadcast %131 : vector<1x128xf32> to vector<16x128xf32>
    %155 = arith.addf %153, %154 : vector<16x128xf32>
    %156 = arith.truncf %155 : vector<16x128xf32> to vector<16x128xbf16>
    %c0_58 = arith.constant 0 : index
    %c0_59 = arith.constant 0 : index
    %c0_60 = arith.constant 0 : index
    %157 = vector.load %arg12[%c0_58, %c0_59, %c0_60] : memref<1x16x128xbf16, #tpu.memory_space<vmem>>, vector<1x16x128xbf16>
    %158 = vector.shape_cast %157 : vector<1x16x128xbf16> to vector<16x128xbf16>
    %159 = vector.shape_cast %156 : vector<16x128xbf16> to vector<1x16x128xbf16>
    tpu.vector_store %arg12[%c0_58, %c0_59, %c0_60], %159 {strides = array<i32>} : memref<1x16x128xbf16, #tpu.memory_space<vmem>>, vector<1x16x128xbf16>,
    return
  }
  func.func @transform_0(%arg0: i32) -> (i32, i32, i32) {
    %c0_i32 = arith.constant 0 : i32
    %c0_i32_0 = arith.constant 0 : i32
    %c0_i32_1 = arith.constant 0 : i32
    return %arg0, %c0_i32, %c0_i32_0 : i32, i32, i32
  }
  func.func @transform_1(%arg0: i32) -> (i32, i32, i32) {
    %c0_i32 = arith.constant 0 : i32
    %c0_i32_0 = arith.constant 0 : i32
    %c0_i32_1 = arith.constant 0 : i32
    return %arg0, %c0_i32, %c0_i32_0 : i32, i32, i32
  }
  func.func @transform_2(%arg0: i32) -> (i32, i32, i32) {
    %c0_i32 = arith.constant 0 : i32
    %c0_i32_0 = arith.constant 0 : i32
    %c0_i32_1 = arith.constant 0 : i32
    return %arg0, %c0_i32, %c0_i32_0 : i32, i32, i32
  }
  func.func @transform_3(%arg0: i32) -> (i32, i32) {
    %c0_i32 = arith.constant 0 : i32
    %c0_i32_0 = arith.constant 0 : i32
    %c0_i32_1 = arith.constant 0 : i32
    return %c0_i32, %c0_i32_0 : i32, i32
  }
  func.func @transform_4(%arg0: i32) -> (i32, i32) {
    %c0_i32 = arith.constant 0 : i32
    %c0_i32_0 = arith.constant 0 : i32
    %c0_i32_1 = arith.constant 0 : i32
    return %c0_i32, %c0_i32_0 : i32, i32
  }
  func.func @transform_5(%arg0: i32) -> (i32, i32) {
    %c0_i32 = arith.constant 0 : i32
    %c0_i32_0 = arith.constant 0 : i32
    %c0_i32_1 = arith.constant 0 : i32
    return %c0_i32, %c0_i32_0 : i32, i32
  }
  func.func @transform_6(%arg0: i32) -> (i32, i32) {
    %c0_i32 = arith.constant 0 : i32
    %c0_i32_0 = arith.constant 0 : i32
    %c0_i32_1 = arith.constant 0 : i32
    return %c0_i32, %c0_i32_0 : i32, i32
  }
  func.func @transform_7(%arg0: i32) -> (i32, i32) {
    %c0_i32 = arith.constant 0 : i32
    %c0_i32_0 = arith.constant 0 : i32
    %c0_i32_1 = arith.constant 0 : i32
    return %c0_i32, %c0_i32_0 : i32, i32
  }
  func.func @transform_8(%arg0: i32) -> (i32, i32) {
    %c0_i32 = arith.constant 0 : i32
    %c0_i32_0 = arith.constant 0 : i32
    %c0_i32_1 = arith.constant 0 : i32
    return %c0_i32, %c0_i32_0 : i32, i32
  }
  func.func @transform_9(%arg0: i32) -> (i32, i32) {
    %c0_i32 = arith.constant 0 : i32
    %c0_i32_0 = arith.constant 0 : i32
    %c0_i32_1 = arith.constant 0 : i32
    return %c0_i32, %c0_i32_0 : i32, i32
  }
  func.func @transform_10(%arg0: i32) -> (i32, i32) {
    %c0_i32 = arith.constant 0 : i32
    %c0_i32_0 = arith.constant 0 : i32
    %c0_i32_1 = arith.constant 0 : i32
    return %c0_i32, %c0_i32_0 : i32, i32
  }
  func.func @transform_11(%arg0: i32) -> (i32, i32, i32) {
    %c0_i32 = arith.constant 0 : i32
    %c0_i32_0 = arith.constant 0 : i32
    %c0_i32_1 = arith.constant 0 : i32
    return %arg0, %c0_i32, %c0_i32_0 : i32, i32, i32
  }
}

module attributes {stable_mosaic.version = 11 : i64} {
  func.func @_vocab_proj_kernel(%arg0: i32, %arg1: i32, %arg2: memref<32x128xbf16, #tpu.memory_space<vmem>>, %arg3: memref<128x512xbf16, #tpu.memory_space<vmem>>, %arg4: memref<32x512xf32, #tpu.memory_space<vmem>>) attributes {dimension_semantics = [#tpu.dimension_semantics<parallel>, #tpu.dimension_semantics<parallel>], iteration_bounds = array<i64: 1, 1>, scalar_prefetch = 0 : i64, scratch_operands = 0 : i64, tpu.core_type = #tpu.core_type<tc>, window_params = [{transform_indices = @transform_0, window_bounds = array<i64: 32, 128>}, {transform_indices = @transform_1, window_bounds = array<i64: 128, 512>}, {transform_indices = @transform_2, window_bounds = array<i64: 32, 512>}]} {
    %c0 = arith.constant 0 : index
    %c0_0 = arith.constant 0 : index
    %0 = vector.load %arg2[%c0, %c0_0] : memref<32x128xbf16, #tpu.memory_space<vmem>>, vector<32x128xbf16>
    %c0_1 = arith.constant 0 : index
    %c0_2 = arith.constant 0 : index
    %1 = vector.load %arg3[%c0_1, %c0_2] : memref<128x512xbf16, #tpu.memory_space<vmem>>, vector<128x512xbf16>
    %cst = arith.constant dense<0.000000e+00> : vector<32x512xf32>
    %2 = tpu.matmul %0, %1, %cst {dimension_numbers = #tpu.dot_dimension_numbers<[1], [0], [0], [1], [0, 0, 1, 1], [], []>} : vector<32x128xbf16>, vector<128x512xbf16>, vector<32x512xf32> -> vector<32x512xf32>
    %c0_3 = arith.constant 0 : index
    %c0_4 = arith.constant 0 : index
    %3 = vector.load %arg4[%c0_3, %c0_4] : memref<32x512xf32, #tpu.memory_space<vmem>>, vector<32x512xf32>
    tpu.vector_store %arg4[%c0_3, %c0_4], %2 {strides = array<i32>} : memref<32x512xf32, #tpu.memory_space<vmem>>, vector<32x512xf32>,
    return
  }
  func.func @transform_0(%arg0: i32, %arg1: i32) -> (i32, i32) {
    %c0_i32 = arith.constant 0 : i32
    %c0_i32_0 = arith.constant 0 : i32
    return %arg0, %c0_i32 : i32, i32
  }
  func.func @transform_1(%arg0: i32, %arg1: i32) -> (i32, i32) {
    %c0_i32 = arith.constant 0 : i32
    %c0_i32_0 = arith.constant 0 : i32
    return %c0_i32, %arg1 : i32, i32
  }
  func.func @transform_2(%arg0: i32, %arg1: i32) -> (i32, i32) {
    %c0_i32 = arith.constant 0 : i32
    return %arg0, %arg1 : i32, i32
  }
}

</mosaic_0001>

<llo_original>
// kernel: transformer_decoder_forward.9
$region0: #{transformer_decoder_forward.9}
  #allocation0 [shape = 'u32[]', space=smem, size = 0x4, offset = 0x4, fixed_abs, tag = 'smem constant byte address 0x4 - core index']
  #allocation1 [shape = 'u32[144,128]{1,0:T(1,128)}', space=vmem, size = 0x12000, scoped, tag = 'internal scratch']
  %s0 = inlined_call_operand.vmem [shape: bf16[32,128], index: 0, kind: input, shape index: {}]
  %s1 = inlined_call_operand.vmem [shape: bf16[128,256], index: 1, kind: input, shape index: {}]
  %s2 = inlined_call_operand.vmem [shape: f32[1,256], index: 2, kind: input, shape index: {}]
  %s3 = inlined_call_operand.vmem [shape: bf16[256,128], index: 3, kind: input, shape index: {}]
  %s4 = inlined_call_operand.vmem [shape: f32[1,128], index: 4, kind: input, shape index: {}]
  %s5 = inlined_call_operand.vmem [shape: f32[1,128], index: 5, kind: input, shape index: {}]
  %s6 = inlined_call_operand.vmem [shape: f32[1,128], index: 6, kind: input, shape index: {}]
  %s7 = inlined_call_operand.vmem [shape: bf16[32,128], index: 7, kind: output, shape index: {}]
  %s8 = sld [smem:[#allocation0]]
  $region38: #{transformer_decoder_forward.9} parent=0
    _
  %s10 = ssub.s32 1, %s8
  %s11 = scalar_select 0, %s10, %s8
  // Predicated region
  $region2: #{transformer_decoder_forward.9} parent=0 // pred_check
    _
  $region3: #{transformer_decoder_forward.9} parent=0 // pred_check_branch
    %13 = sbr.rel (0) target = $region5
  $region4: #{transformer_decoder_forward.9} parent=0 // pred_region
    _
  $region5: #{transformer_decoder_forward.9} parent=0 // pred_fallthru
    _
  // Predicated region
  $region6: #{transformer_decoder_forward.9} parent=0 // pred_check
    _
  $region7: #{transformer_decoder_forward.9} parent=0 // pred_check_branch
    %15 = sbr.rel (0) target = $region9
  $region8: #{transformer_decoder_forward.9} parent=0 // pred_region
    _
  $region9: #{transformer_decoder_forward.9} parent=0 // pred_fallthru
    _
  // Predicated region
  $region10: #{transformer_decoder_forward.9} parent=0 // pred_check
    _
  $region11: #{transformer_decoder_forward.9} parent=0 // pred_check_branch
    %17 = sbr.rel (0) target = $region13
  $region12: #{transformer_decoder_forward.9} parent=0 // pred_region
    _
  $region13: #{transformer_decoder_forward.9} parent=0 // pred_fallthru
    _
  // Predicated region
  $region14: #{transformer_decoder_forward.9} parent=0 // pred_check
    _
  $region15: #{transformer_decoder_forward.9} parent=0 // pred_check_branch
    %19 = sbr.rel (0) target = $region17
  $region16: #{transformer_decoder_forward.9} parent=0 // pred_region
    _
  $region17: #{transformer_decoder_forward.9} parent=0 // pred_fallthru
    _
  // Predicated region
  $region18: #{transformer_decoder_forward.9} parent=0 // pred_check
    _
  $region19: #{transformer_decoder_forward.9} parent=0 // pred_check_branch
    %21 = sbr.rel (0) target = $region21
  $region20: #{transformer_decoder_forward.9} parent=0 // pred_region
    _
  $region21: #{transformer_decoder_forward.9} parent=0 // pred_fallthru
    _
  // Predicated region
  $region22: #{transformer_decoder_forward.9} parent=0 // pred_check
    _
  $region23: #{transformer_decoder_forward.9} parent=0 // pred_check_branch
    %23 = sbr.rel (0) target = $region25
  $region24: #{transformer_decoder_forward.9} parent=0 // pred_region
    _
  $region25: #{transformer_decoder_forward.9} parent=0 // pred_fallthru
    _
  // Predicated region
  $region26: #{transformer_decoder_forward.9} parent=0 // pred_check
    _
  $region27: #{transformer_decoder_forward.9} parent=0 // pred_check_branch
    %25 = sbr.rel (0) target = $region29
  $region28: #{transformer_decoder_forward.9} parent=0 // pred_region
    _
  $region29: #{transformer_decoder_forward.9} parent=0 // pred_fallthru
    _
  %v27 = vld [vmem:[%s0] sm:$0xf]
  %v28 = vld [vmem:[%s0 + $0x4] sm:$0xf]
  %v29 = vld [vmem:[%s0 + $0x8] sm:$0xf]
  %v30 = vld [vmem:[%s0 + $0xc] sm:$0xf]
  %v31 = vld [vmem:[%s1] sm:$0xff]
  %v32 = vld [vmem:[%s1 + $0x8] sm:$0xff]
  %v33 = vld [vmem:[%s1 + $0x10] sm:$0xff]
  %v34 = vld [vmem:[%s1 + $0x18] sm:$0xff]
  %v35 = vld [vmem:[%s1 + $0x20] sm:$0xff]
  %v36 = vld [vmem:[%s1 + $0x28] sm:$0xff]
  %v37 = vld [vmem:[%s1 + $0x30] sm:$0xff]
  %v38 = vld [vmem:[%s1 + $0x38] sm:$0xff]
  %v39 = vld [vmem:[%s1 + $0x40] sm:$0xff]
  %v40 = vld [vmem:[%s1 + $0x48] sm:$0xff]
  %v41 = vld [vmem:[%s1 + $0x50] sm:$0xff]
  %v42 = vld [vmem:[%s1 + $0x58] sm:$0xff]
  %v43 = vld [vmem:[%s1 + $0x60] sm:$0xff]
  %v44 = vld [vmem:[%s1 + $0x68] sm:$0xff]
  %v45 = vld [vmem:[%s1 + $0x70] sm:$0xff]
  %v46 = vld [vmem:[%s1 + $0x78] sm:$0xff]
  %v47 = vld [vmem:[%s2] sm:$0x3]
  %v49 = vlaneseq
  %v50 = vshrl.u32 %v49, 7
  %v51 = vsub.s32 0, %v50
  %v52 = vrot.slane %v47, %v51
  %v53 = vlaneseq
  %v54 = vshrl.u32 %v53, 7
  %v55 = vsub.s32 1, %v54
  %v56 = vrot.slane %v47, %v55
  %v63 = vunpack.c.l.b16 %v27
  %v64 = vunpack.c.l.b16 %v28
  %v65 = vunpack.c.l.b16 %v29
  %v66 = vunpack.c.l.b16 %v30
  %v67 = vpack.c.b16 %v64, %v63
  %v68 = vpack.c.b16 %v66, %v65
  %v87 = vunpack.c.l.b16 %v31
  %v88 = vunpack.c.h.b16 %v31
  %v89 = vunpack.c.l.b16 %v32
  %v90 = vunpack.c.h.b16 %v32
  %v91 = vunpack.c.l.b16 %v33
  %v92 = vunpack.c.h.b16 %v33
  %v93 = vunpack.c.l.b16 %v34
  %v94 = vunpack.c.h.b16 %v34
  %v95 = vunpack.c.l.b16 %v35
  %v96 = vunpack.c.h.b16 %v35
  %v97 = vunpack.c.l.b16 %v36
  %v98 = vunpack.c.h.b16 %v36
  %v99 = vunpack.c.l.b16 %v37
  %v100 = vunpack.c.h.b16 %v37
  %v101 = vunpack.c.l.b16 %v38
  %v102 = vunpack.c.h.b16 %v38
  %v103 = vunpack.c.l.b16 %v39
  %v104 = vunpack.c.h.b16 %v39
  %v105 = vunpack.c.l.b16 %v40
  %v106 = vunpack.c.h.b16 %v40
  %v107 = vunpack.c.l.b16 %v41
  %v108 = vunpack.c.h.b16 %v41
  %v109 = vunpack.c.l.b16 %v42
  %v110 = vunpack.c.h.b16 %v42
  %v111 = vunpack.c.l.b16 %v43
  %v112 = vunpack.c.h.b16 %v43
  %v113 = vunpack.c.l.b16 %v44
  %v114 = vunpack.c.h.b16 %v44
  %v115 = vunpack.c.l.b16 %v45
  %v116 = vunpack.c.h.b16 %v45
  %v117 = vunpack.c.l.b16 %v46
  %v118 = vunpack.c.h.b16 %v46
  %v119 = vpack.c.b16 %v89, %v87
  %v120 = vpack.c.b16 %v90, %v88
  %v121 = vpack.c.b16 %v93, %v91
  %v122 = vpack.c.b16 %v94, %v92
  %v123 = vpack.c.b16 %v97, %v95
  %v124 = vpack.c.b16 %v98, %v96
  %v125 = vpack.c.b16 %v101, %v99
  %v126 = vpack.c.b16 %v102, %v100
  %v127 = vpack.c.b16 %v105, %v103
  %v128 = vpack.c.b16 %v106, %v104
  %v129 = vpack.c.b16 %v109, %v107
  %v130 = vpack.c.b16 %v110, %v108
  %v131 = vpack.c.b16 %v113, %v111
  %v132 = vpack.c.b16 %v114, %v112
  %v133 = vpack.c.b16 %v117, %v115
  %v134 = vpack.c.b16 %v118, %v116
  %151 = vmatprep.subr.bf16.mxu0 %v120
  %152 = vmatpush1.bf16.msra.mxu0 %v119
  %153 = vmatprep.subr.bf16.mxu0 %v122
  %154 = vmatpush1.bf16.msra.mxu0 %v121
  %155 = vmatprep.subr.bf16.mxu0 %v124
  %156 = vmatpush1.bf16.msra.mxu0 %v123
  %157 = vmatprep.subr.bf16.mxu0 %v126
  %158 = vmatpush1.bf16.msra.mxu0 %v125
  %159 = vmatprep.subr.bf16.mxu0 %v128
  %160 = vmatpush1.bf16.msra.mxu0 %v127
  %161 = vmatprep.subr.bf16.mxu0 %v130
  %162 = vmatpush1.bf16.msra.mxu0 %v129
  %163 = vmatprep.subr.bf16.mxu0 %v132
  %164 = vmatpush1.bf16.msra.mxu0 %v131
  %165 = vmatprep.subr.bf16.mxu0 %v134
  %166 = vmatpush1.bf16.msra.mxu0 %v133
  %167 = vmatprep.subr.bf16.mxu0 0
  %168 = vmatpush1.bf16.msra.mxu0 0
  %169 = vmatprep.subr.bf16.mxu0 0
  %170 = vmatpush1.bf16.msra.mxu0 0
  %171 = vmatprep.subr.bf16.mxu0 0
  %172 = vmatpush1.bf16.msra.mxu0 0
  %173 = vmatprep.subr.bf16.mxu0 0
  %174 = vmatpush1.bf16.msra.mxu0 0
  %175 = vmatprep.subr.bf16.mxu0 0
  %176 = vmatpush1.bf16.msra.mxu0 0
  %177 = vmatprep.subr.bf16.mxu0 0
  %178 = vmatpush1.bf16.msra.mxu0 0
  %179 = vmatprep.subr.bf16.mxu0 0
  %180 = vmatpush1.bf16.msra.mxu0 0
  %181 = vmatprep.subr.bf16.mxu0 0
  %182 = vmatpush1.bf16.msra.mxu0 0
  %183 = vmatprep.mubr.bf16.mxu0 0
  %184 = vmatmul.mubr.bf16.gmra.mrb[0].mxu0 %v67
  %v185 = vpop.f32.mrb[0].mxu0
  %v186 = vadd.f32 %v52, %v185
  %v187 = vpop.f32.mrb[0].mxu0
  %v188 = vadd.f32 %v56, %v187
  %v189 = vpop.f32.mrb[0].mxu0
  %v190 = vadd.f32 %v52, %v189
  %v191 = vpop.f32.mrb[0].mxu0
  %v192 = vadd.f32 %v56, %v191
  %193 = vmatprep.mubr.bf16.mxu0 0
  %194 = vmatmul.mubr.bf16.gmra.mrb[0].mxu0 %v68
  %v195 = vpop.f32.mrb[0].mxu0
  %v196 = vadd.f32 %v52, %v195
  %v197 = vpop.f32.mrb[0].mxu0
  %v198 = vadd.f32 %v56, %v197
  %v199 = vpop.f32.mrb[0].mxu0
  %v200 = vadd.f32 %v52, %v199
  %v201 = vpop.f32.mrb[0].mxu0
  %v202 = vadd.f32 %v56, %v201
  %203 = vdwg.mxu0
  %v204 = vmax.f32 %v186, 0.0
  %v205 = vmax.f32 %v188, 0.0
  %v206 = vmax.f32 %v190, 0.0
  %v207 = vmax.f32 %v192, 0.0
  %v208 = vmax.f32 %v196, 0.0
  %v209 = vmax.f32 %v198, 0.0
  %v210 = vmax.f32 %v200, 0.0
  %v211 = vmax.f32 %v202, 0.0
  %v212 = vpack.c.bf16 %v206, %v204
  %v213 = vpack.c.bf16 %v207, %v205
  %v214 = vpack.c.bf16 %v210, %v208
  %v215 = vpack.c.bf16 %v211, %v209
  %v216 = vld [vmem:[%s3] sm:$0xf]
  %v217 = vld [vmem:[%s3 + $0x4] sm:$0xf]
  %v218 = vld [vmem:[%s3 + $0x8] sm:$0xf]
  %v219 = vld [vmem:[%s3 + $0xc] sm:$0xf]
  %v220 = vld [vmem:[%s3 + $0x10] sm:$0xf]
  %v221 = vld [vmem:[%s3 + $0x14] sm:$0xf]
  %v222 = vld [vmem:[%s3 + $0x18] sm:$0xf]
  %v223 = vld [vmem:[%s3 + $0x1c] sm:$0xf]
  %v224 = vld [vmem:[%s3 + $0x20] sm:$0xf]
  %v225 = vld [vmem:[%s3 + $0x24] sm:$0xf]
  %v226 = vld [vmem:[%s3 + $0x28] sm:$0xf]
  %v227 = vld [vmem:[%s3 + $0x2c] sm:$0xf]
  %v228 = vld [vmem:[%s3 + $0x30] sm:$0xf]
  %v229 = vld [vmem:[%s3 + $0x34] sm:$0xf]
  %v230 = vld [vmem:[%s3 + $0x38] sm:$0xf]
  %v231 = vld [vmem:[%s3 + $0x3c] sm:$0xf]
  %v232 = vld [vmem:[%s3 + $0x40] sm:$0xf]
  %v233 = vld [vmem:[%s3 + $0x44] sm:$0xf]
  %v234 = vld [vmem:[%s3 + $0x48] sm:$0xf]
  %v235 = vld [vmem:[%s3 + $0x4c] sm:$0xf]
  %v236 = vld [vmem:[%s3 + $0x50] sm:$0xf]
  %v237 = vld [vmem:[%s3 + $0x54] sm:$0xf]
  %v238 = vld [vmem:[%s3 + $0x58] sm:$0xf]
  %v239 = vld [vmem:[%s3 + $0x5c] sm:$0xf]
  %v240 = vld [vmem:[%s3 + $0x60] sm:$0xf]
  %v241 = vld [vmem:[%s3 + $0x64] sm:$0xf]
  %v242 = vld [vmem:[%s3 + $0x68] sm:$0xf]
  %v243 = vld [vmem:[%s3 + $0x6c] sm:$0xf]
  %v244 = vld [vmem:[%s3 + $0x70] sm:$0xf]
  %v245 = vld [vmem:[%s3 + $0x74] sm:$0xf]
  %v246 = vld [vmem:[%s3 + $0x78] sm:$0xf]
  %v247 = vld [vmem:[%s3 + $0x7c] sm:$0xf]
  %v248 = vld [vmem:[%s4] sm:$0x1]
  %v250 = vlaneseq
  %v251 = vshrl.u32 %v250, 7
  %v252 = vsub.s32 0, %v251
  %v253 = vrot.slane %v248, %v252
  %v287 = vunpack.c.l.b16 %v216
  %v288 = vunpack.c.l.b16 %v217
  %v289 = vunpack.c.l.b16 %v218
  %v290 = vunpack.c.l.b16 %v219
  %v291 = vunpack.c.l.b16 %v220
  %v292 = vunpack.c.l.b16 %v221
  %v293 = vunpack.c.l.b16 %v222
  %v294 = vunpack.c.l.b16 %v223
  %v295 = vunpack.c.l.b16 %v224
  %v296 = vunpack.c.l.b16 %v225
  %v297 = vunpack.c.l.b16 %v226
  %v298 = vunpack.c.l.b16 %v227
  %v299 = vunpack.c.l.b16 %v228
  %v300 = vunpack.c.l.b16 %v229
  %v301 = vunpack.c.l.b16 %v230
  %v302 = vunpack.c.l.b16 %v231
  %v303 = vunpack.c.l.b16 %v232
  %v304 = vunpack.c.l.b16 %v233
  %v305 = vunpack.c.l.b16 %v234
  %v306 = vunpack.c.l.b16 %v235
  %v307 = vunpack.c.l.b16 %v236
  %v308 = vunpack.c.l.b16 %v237
  %v309 = vunpack.c.l.b16 %v238
  %v310 = vunpack.c.l.b16 %v239
  %v311 = vunpack.c.l.b16 %v240
  %v312 = vunpack.c.l.b16 %v241
  %v313 = vunpack.c.l.b16 %v242
  %v314 = vunpack.c.l.b16 %v243
  %v315 = vunpack.c.l.b16 %v244
  %v316 = vunpack.c.l.b16 %v245
  %v317 = vunpack.c.l.b16 %v246
  %v318 = vunpack.c.l.b16 %v247
  %v319 = vpack.c.b16 %v288, %v287
  %v320 = vpack.c.b16 %v290, %v289
  %v321 = vpack.c.b16 %v292, %v291
  %v322 = vpack.c.b16 %v294, %v293
  %v323 = vpack.c.b16 %v296, %v295
  %v324 = vpack.c.b16 %v298, %v297
  %v325 = vpack.c.b16 %v300, %v299
  %v326 = vpack.c.b16 %v302, %v301
  %v327 = vpack.c.b16 %v304, %v303
  %v328 = vpack.c.b16 %v306, %v305
  %v329 = vpack.c.b16 %v308, %v307
  %v330 = vpack.c.b16 %v310, %v309
  %v331 = vpack.c.b16 %v312, %v311
  %v332 = vpack.c.b16 %v314, %v313
  %v333 = vpack.c.b16 %v316, %v315
  %v334 = vpack.c.b16 %v318, %v317
  %351 = vmatprep.subr.bf16.mxu0 0
  %352 = vmatpush1.bf16.msra.mxu0 %v319
  %353 = vmatprep.subr.bf16.mxu0 0
  %354 = vmatpush1.bf16.msra.mxu0 %v320
  %355 = vmatprep.subr.bf16.mxu0 0
  %356 = vmatpush1.bf16.msra.mxu0 %v321
  %357 = vmatprep.subr.bf16.mxu0 0
  %358 = vmatpush1.bf16.msra.mxu0 %v322
  %359 = vmatprep.subr.bf16.mxu0 0
  %360 = vmatpush1.bf16.msra.mxu0 %v323
  %361 = vmatprep.subr.bf16.mxu0 0
  %362 = vmatpush1.bf16.msra.mxu0 %v324
  %363 = vmatprep.subr.bf16.mxu0 0
  %364 = vmatpush1.bf16.msra.mxu0 %v325
  %365 = vmatprep.subr.bf16.mxu0 0
  %366 = vmatpush1.bf16.msra.mxu0 %v326
  %367 = vmatprep.subr.bf16.mxu0 0
  %368 = vmatpush1.bf16.msra.mxu0 %v327
  %369 = vmatprep.subr.bf16.mxu0 0
  %370 = vmatpush1.bf16.msra.mxu0 %v328
  %371 = vmatprep.subr.bf16.mxu0 0
  %372 = vmatpush1.bf16.msra.mxu0 %v329
  %373 = vmatprep.subr.bf16.mxu0 0
  %374 = vmatpush1.bf16.msra.mxu0 %v330
  %375 = vmatprep.subr.bf16.mxu0 0
  %376 = vmatpush1.bf16.msra.mxu0 %v331
  %377 = vmatprep.subr.bf16.mxu0 0
  %378 = vmatpush1.bf16.msra.mxu0 %v332
  %379 = vmatprep.subr.bf16.mxu0 0
  %380 = vmatpush1.bf16.msra.mxu0 %v333
  %381 = vmatprep.subr.bf16.mxu0 0
  %382 = vmatpush1.bf16.msra.mxu0 %v334
  %383 = vmatprep.mubr.bf16.mxu0 %v213
  %384 = vmatmul.mubr.bf16.gmra.mrb[0].mxu0 %v212
  %v385 = vpop.f32.mrb[0].mxu0
  %v386 = vadd.f32 %v253, %v385
  %v387 = vpop.f32.mrb[0].mxu0
  %v388 = vpop.f32.mrb[0].mxu0
  %v389 = vadd.f32 %v253, %v388
  %v390 = vpop.f32.mrb[0].mxu0
  %391 = vmatprep.mubr.bf16.mxu0 %v215
  %392 = vmatmul.mubr.bf16.gmra.mrb[0].mxu0 %v214
  %v393 = vpop.f32.mrb[0].mxu0
  %v394 = vadd.f32 %v253, %v393
  %v395 = vpop.f32.mrb[0].mxu0
  %v396 = vpop.f32.mrb[0].mxu0
  %v397 = vadd.f32 %v253, %v396
  %v398 = vpop.f32.mrb[0].mxu0
  %399 = vdwg.mxu0
  %v400 = vunpack.c.l.bf16 %v27
  %v401 = vunpack.c.l.bf16 %v28
  %v402 = vunpack.c.l.bf16 %v29
  %v403 = vunpack.c.l.bf16 %v30
  %v404 = vadd.f32 %v400, %v386
  %v405 = vadd.f32 %v401, %v389
  %v406 = vadd.f32 %v402, %v394
  %v407 = vadd.f32 %v403, %v397
  %v408 = vld [vmem:[%s5] sm:$0x1]
  %v409 = vld [vmem:[%s6] sm:$0x1]
  %410 = vadd.xlane.f32.xlu0 %v404
  %v411 = vpop.xlane.xlu0 %410
  %412 = vadd.xlane.f32.xlu0 %v405
  %v413 = vpop.xlane.xlu0 %412
  %414 = vadd.xlane.f32.xlu0 %v406
  %v415 = vpop.xlane.xlu0 %414
  %416 = vadd.xlane.f32.xlu0 %v407
  %v417 = vpop.xlane.xlu0 %416
  %v418 = vrcp.pop 128.0
  %v419 = vmul.f32 %v411, %v418
  %v420 = vmul.f32 %v413, %v418
  %v421 = vmul.f32 %v415, %v418
  %v422 = vmul.f32 %v417, %v418
  %v423 = vsub.f32 %v404, %v419
  %v424 = vsub.f32 %v405, %v420
  %v425 = vsub.f32 %v406, %v421
  %v426 = vsub.f32 %v407, %v422
  %v427 = vmul.f32 %v423, %v423
  %v428 = vmul.f32 %v424, %v424
  %v429 = vmul.f32 %v425, %v425
  %v430 = vmul.f32 %v426, %v426
  %431 = vadd.xlane.f32.xlu0 %v427
  %v432 = vpop.xlane.xlu0 %431
  %433 = vadd.xlane.f32.xlu0 %v428
  %v434 = vpop.xlane.xlu0 %433
  %435 = vadd.xlane.f32.xlu0 %v429
  %v436 = vpop.xlane.xlu0 %435
  %437 = vadd.xlane.f32.xlu0 %v430
  %v438 = vpop.xlane.xlu0 %437
  %v439 = vmul.f32 %v432, %v418
  %v440 = vmul.f32 %v434, %v418
  %v441 = vmul.f32 %v436, %v418
  %v442 = vmul.f32 %v438, %v418
  %v443 = vadd.f32 %v439, 1e-05
  %v444 = vadd.f32 %v440, 1e-05
  %v445 = vadd.f32 %v441, 1e-05
  %v446 = vadd.f32 %v442, 1e-05
  %v447 = vrsqrt.pop %v443
  %v448 = vrsqrt.pop %v444
  %v449 = vrsqrt.pop %v445
  %v450 = vrsqrt.pop %v446
  %v451 = vmul.f32 %v423, %v447
  %v452 = vmul.f32 %v424, %v448
  %v453 = vmul.f32 %v425, %v449
  %v454 = vmul.f32 %v426, %v450
  %v456 = vlaneseq
  %v457 = vshrl.u32 %v456, 7
  %v458 = vsub.s32 0, %v457
  %v459 = vrot.slane %v408, %v458
  %v461 = vmul.f32 %v451, %v459
  %v462 = vmul.f32 %v452, %v459
  %v463 = vmul.f32 %v453, %v459
  %v464 = vmul.f32 %v454, %v459
  %v466 = vlaneseq
  %v467 = vshrl.u32 %v466, 7
  %v468 = vsub.s32 0, %v467
  %v469 = vrot.slane %v409, %v468
  %v471 = vadd.f32 %v461, %v469
  %v472 = vadd.f32 %v462, %v469
  %v473 = vadd.f32 %v463, %v469
  %v474 = vadd.f32 %v464, %v469
  %v475 = vpack.c.bf16 %v472, %v471
  %v476 = vpack.c.bf16 %v474, %v473
  %v479 = vunpack.c.l.b16 %v475
  %v480 = vunpack.c.h.b16 %v475
  %v481 = vunpack.c.l.b16 %v476
  %v482 = vunpack.c.h.b16 %v476
  %v483 = vpack.c.b16 %v479, %v479
  %v484 = vpack.c.b16 %v480, %v480
  %v485 = vpack.c.b16 %v481, %v481
  %v486 = vpack.c.b16 %v482, %v482
  %491 = vst [vmem:[%s7] sm:$0xf] %v483
  %492 = vst [vmem:[%s7 + $0x4] sm:$0xf] %v484
  %493 = vst [vmem:[%s7 + $0x8] sm:$0xf] %v485
  %494 = vst [vmem:[%s7 + $0xc] sm:$0xf] %v486
  // Predicated region
  $region30: #{transformer_decoder_forward.9} parent=0 // pred_check
    _
  $region31: #{transformer_decoder_forward.9} parent=0 // pred_check_branch
    %496 = sbr.rel (0) target = $region33
  $region32: #{transformer_decoder_forward.9} parent=0 // pred_region
    _
  $region33: #{transformer_decoder_forward.9} parent=0 // pred_fallthru
    _
  // Predicated region
  $region34: #{transformer_decoder_forward.9} parent=0 // pred_check
    _
  $region35: #{transformer_decoder_forward.9} parent=0 // pred_check_branch
    %498 = sbr.rel (0) target = $region37
  $region36: #{transformer_decoder_forward.9} parent=0 // pred_region
    _
  $region37: #{transformer_decoder_forward.9} parent=0 // pred_fallthru
    _

// kernel: transformer_decoder_forward.7
$region0: #{transformer_decoder_forward.7}
  #allocation0 [shape = 'u32[]', space=smem, size = 0x4, offset = 0x4, fixed_abs, tag = 'smem constant byte address 0x4 - core index']
  #allocation1 [shape = 'u32[144,128]{1,0:T(1,128)}', space=vmem, size = 0x12000, scoped, tag = 'internal scratch']
  %s0 = inlined_call_operand.vmem [shape: bf16[2,16,128], index: 0, kind: input, shape index: {}]
  %s1 = inlined_call_operand.vmem [shape: bf16[128,384], index: 1, kind: input, shape index: {}]
  %s2 = inlined_call_operand.vmem [shape: f32[1,384], index: 2, kind: input, shape index: {}]
  %s3 = inlined_call_operand.vmem [shape: bf16[128,128], index: 3, kind: input, shape index: {}]
  %s4 = inlined_call_operand.vmem [shape: f32[1,128], index: 4, kind: input, shape index: {}]
  %s5 = inlined_call_operand.vmem [shape: f32[1,128], index: 5, kind: input, shape index: {}]
  %s6 = inlined_call_operand.vmem [shape: f32[1,128], index: 6, kind: input, shape index: {}]
  %s7 = inlined_call_operand.vmem [shape: bf16[2,16,128], index: 7, kind: output, shape index: {}]
  %s8 = sld [smem:[#allocation0]]
  $region61: #{transformer_decoder_forward.7} parent=0
    _
  %s10 = ssub.s32 1, %s8
  %s11 = scalar_select 0, %s10, %s8
  loop: start=0, step=1, limit=4
  $region2: #{transformer_decoder_forward.7} parent=0 // loop_pre_header
    _
  $region3: #{transformer_decoder_forward.7} parent=0 // loop_header
    %s13 = sphi 0, %s17
    %p14 = scmp.ge.s32.totalorder %s13, 4
    %s23 = sphi 0, %s25
    %s26 = sphi 0, %s23
    %s27 = sphi 0, %s26
    %s43 = sphi 0, %s27
    %s47 = sphi 0, %s47
    %s49 = sphi 0, %s47
    %s50 = sphi 0, %s49
    %s64 = sphi 0, %s50
    %s68 = sphi 0, %s68
    %s70 = sphi 0, %s68
    %s71 = sphi 0, %s70
    %s85 = sphi 0, %s71
    %s89 = sphi 0, %s89
    %s91 = sphi 0, %s89
    %s92 = sphi 0, %s91
    %s106 = sphi 0, %s92
    %s110 = sphi 0, %s110
    %s112 = sphi 0, %s110
    %s113 = sphi 0, %s112
    %s127 = sphi 0, %s113
    %s131 = sphi 0, %s131
    %s133 = sphi 0, %s131
    %s134 = sphi 0, %s133
    %s148 = sphi 0, %s134
    %s152 = sphi 0, %s152
    %s154 = sphi 0, %s152
    %s155 = sphi 0, %s154
    %s169 = sphi 0, %s155
    %s175 = sphi 0, %s177
    %s178 = sphi 0, %s175
    %s179 = sphi 0, %s178
    %s195 = sphi 0, %s179
  $region4: #{transformer_decoder_forward.7} parent=0 // loop_header_branch
    %16 = sbr.rel (%p14) target = $region8
  $region5: #{transformer_decoder_forward.7} parent=0 // loop_body
    %s18 = ssub.s32 %s13, 1
    %s19 = ssub.s32 %s13, 2
    %s20 = sadd.s32 %s13, 1
    %s21 = ssub.s32 %s13, %s20
    %p22 = scmp.eq.s32.totalorder %s21, 0
    %s24 = sadd.s32 %s23, 1
    %s25 = scalar_select %p22, %s23, %s24
    %p28 = pneg %p22
    %p29 = scmp.eq.s32.totalorder %s13, 1
    %p30 = por %p28, %p29
    %p31 = scmp.ne.s32.totalorder %s23, %s26
    %p32 = scmp.eq.s32.totalorder %s13, 0
    %p33 = por %p31, %p32
    %p34 = scmp.ne.s32.totalorder %s23, %s26
    %p35 = scmp.eq.s32.totalorder %s18, 1
    %p36 = por %p34, %p35
    %p37 = scmp.ne.s32.totalorder %s26, %s27
    %p38 = scmp.eq.s32.totalorder %s18, 0
    %p39 = por %p37, %p38
    %p40 = scmp.ne.s32.totalorder %s26, %s27
    %p41 = scmp.eq.s32.totalorder %s19, 1
    %p42 = por %p40, %p41
    %p44 = scmp.ne.s32.totalorder %s27, %s43
    %p45 = scmp.eq.s32.totalorder %s19, 0
    %p46 = por %p44, %p45
    %s48 = sadd.s32 %s47, 1
    %p51 = scmp.eq.s32.totalorder %s13, 1
    %p52 = scmp.ne.s32.totalorder %s47, %s49
    %p53 = scmp.eq.s32.totalorder %s13, 0
    %p54 = por %p52, %p53
    %p55 = scmp.ne.s32.totalorder %s47, %s49
    %p56 = scmp.eq.s32.totalorder %s18, 1
    %p57 = por %p55, %p56
    %p58 = scmp.ne.s32.totalorder %s49, %s50
    %p59 = scmp.eq.s32.totalorder %s18, 0
    %p60 = por %p58, %p59
    %p61 = scmp.ne.s32.totalorder %s49, %s50
    %p62 = scmp.eq.s32.totalorder %s19, 1
    %p63 = por %p61, %p62
    %p65 = scmp.ne.s32.totalorder %s50, %s64
    %p66 = scmp.eq.s32.totalorder %s19, 0
    %p67 = por %p65, %p66
    %s69 = sadd.s32 %s68, 1
    %p72 = scmp.eq.s32.totalorder %s13, 1
    %p73 = scmp.ne.s32.totalorder %s68, %s70
    %p74 = scmp.eq.s32.totalorder %s13, 0
    %p75 = por %p73, %p74
    %p76 = scmp.ne.s32.totalorder %s68, %s70
    %p77 = scmp.eq.s32.totalorder %s18, 1
    %p78 = por %p76, %p77
    %p79 = scmp.ne.s32.totalorder %s70, %s71
    %p80 = scmp.eq.s32.totalorder %s18, 0
    %p81 = por %p79, %p80
    %p82 = scmp.ne.s32.totalorder %s70, %s71
    %p83 = scmp.eq.s32.totalorder %s19, 1
    %p84 = por %p82, %p83
    %p86 = scmp.ne.s32.totalorder %s71, %s85
    %p87 = scmp.eq.s32.totalorder %s19, 0
    %p88 = por %p86, %p87
    %s90 = sadd.s32 %s89, 1
    %p93 = scmp.eq.s32.totalorder %s13, 1
    %p94 = scmp.ne.s32.totalorder %s89, %s91
    %p95 = scmp.eq.s32.totalorder %s13, 0
    %p96 = por %p94, %p95
    %p97 = scmp.ne.s32.totalorder %s89, %s91
    %p98 = scmp.eq.s32.totalorder %s18, 1
    %p99 = por %p97, %p98
    %p100 = scmp.ne.s32.totalorder %s91, %s92
    %p101 = scmp.eq.s32.totalorder %s18, 0
    %p102 = por %p100, %p101
    %p103 = scmp.ne.s32.totalorder %s91, %s92
    %p104 = scmp.eq.s32.totalorder %s19, 1
    %p105 = por %p103, %p104
    %p107 = scmp.ne.s32.totalorder %s92, %s106
    %p108 = scmp.eq.s32.totalorder %s19, 0
    %p109 = por %p107, %p108
    %s111 = sadd.s32 %s110, 1
    %p114 = scmp.eq.s32.totalorder %s13, 1
    %p115 = scmp.ne.s32.totalorder %s110, %s112
    %p116 = scmp.eq.s32.totalorder %s13, 0
    %p117 = por %p115, %p116
    %p118 = scmp.ne.s32.totalorder %s110, %s112
    %p119 = scmp.eq.s32.totalorder %s18, 1
    %p120 = por %p118, %p119
    %p121 = scmp.ne.s32.totalorder %s112, %s113
    %p122 = scmp.eq.s32.totalorder %s18, 0
    %p123 = por %p121, %p122
    %p124 = scmp.ne.s32.totalorder %s112, %s113
    %p125 = scmp.eq.s32.totalorder %s19, 1
    %p126 = por %p124, %p125
    %p128 = scmp.ne.s32.totalorder %s113, %s127
    %p129 = scmp.eq.s32.totalorder %s19, 0
    %p130 = por %p128, %p129
    %s132 = sadd.s32 %s131, 1
    %p135 = scmp.eq.s32.totalorder %s13, 1
    %p136 = scmp.ne.s32.totalorder %s131, %s133
    %p137 = scmp.eq.s32.totalorder %s13, 0
    %p138 = por %p136, %p137
    %p139 = scmp.ne.s32.totalorder %s131, %s133
    %p140 = scmp.eq.s32.totalorder %s18, 1
    %p141 = por %p139, %p140
    %p142 = scmp.ne.s32.totalorder %s133, %s134
    %p143 = scmp.eq.s32.totalorder %s18, 0
    %p144 = por %p142, %p143
    %p145 = scmp.ne.s32.totalorder %s133, %s134
    %p146 = scmp.eq.s32.totalorder %s19, 1
    %p147 = por %p145, %p146
    %p149 = scmp.ne.s32.totalorder %s134, %s148
    %p150 = scmp.eq.s32.totalorder %s19, 0
    %p151 = por %p149, %p150
    %s153 = sadd.s32 %s152, 1
    %p156 = scmp.eq.s32.totalorder %s13, 1
    %p157 = scmp.ne.s32.totalorder %s152, %s154
    %p158 = scmp.eq.s32.totalorder %s13, 0
    %p159 = por %p157, %p158
    %p160 = scmp.ne.s32.totalorder %s152, %s154
    %p161 = scmp.eq.s32.totalorder %s18, 1
    %p162 = por %p160, %p161
    %p163 = scmp.ne.s32.totalorder %s154, %s155
    %p164 = scmp.eq.s32.totalorder %s18, 0
    %p165 = por %p163, %p164
    %p166 = scmp.ne.s32.totalorder %s154, %s155
    %p167 = scmp.eq.s32.totalorder %s19, 1
    %p168 = por %p166, %p167
    %p170 = scmp.ne.s32.totalorder %s155, %s169
    %p171 = scmp.eq.s32.totalorder %s19, 0
    %p172 = por %p170, %p171
    %s173 = ssub.s32 %s13, %s20
    %p174 = scmp.eq.s32.totalorder %s173, 0
    %s176 = sadd.s32 %s175, 1
    %s177 = scalar_select %p174, %s175, %s176
    %p180 = pneg %p174
    %p181 = scmp.eq.s32.totalorder %s13, 1
    %p182 = por %p180, %p181
    %p183 = scmp.ne.s32.totalorder %s175, %s178
    %p184 = scmp.eq.s32.totalorder %s13, 0
    %p185 = por %p183, %p184
    %p186 = scmp.ne.s32.totalorder %s175, %s178
    %p187 = scmp.eq.s32.totalorder %s18, 1
    %p188 = por %p186, %p187
    %p189 = scmp.ne.s32.totalorder %s178, %s179
    %p190 = scmp.eq.s32.totalorder %s18, 0
    %p191 = por %p189, %p190
    %p192 = scmp.ne.s32.totalorder %s178, %s179
    %p193 = scmp.eq.s32.totalorder %s19, 1
    %p194 = por %p192, %p193
    %p196 = scmp.ne.s32.totalorder %s179, %s195
    %p197 = scmp.eq.s32.totalorder %s19, 0
    %p198 = por %p196, %p197
    %p199 = scmp.le.s32.totalorder 1, %s13
    %p200 = scmp.lt.s32.totalorder %s13, 3
    %p201 = pnand %p199, %p200
    %p202 = pneg %p201
    // Predicated region
    $region9: #{transformer_decoder_forward.7} parent=5 // pred_check
      _
    $region10: #{transformer_decoder_forward.7} parent=5 // pred_check_branch
      %204 = sbr.rel (%p201) target = $region12
    $region11: #{transformer_decoder_forward.7} parent=5 // pred_region
      %s205 = ssub.s32 %s13, 1
      // Predicated region
      $region13: #{transformer_decoder_forward.7} parent=11 // pred_check
        %p206 = pneg %p60
      $region14: #{transformer_decoder_forward.7} parent=11 // pred_check_branch
        %208 = sbr.rel (%p206) target = $region16
      $region15: #{transformer_decoder_forward.7} parent=11 // pred_region
        _
      $region16: #{transformer_decoder_forward.7} parent=11 // pred_fallthru
        _
      // Predicated region
      $region17: #{transformer_decoder_forward.7} parent=11 // pred_check
        %p209 = pneg %p81
      $region18: #{transformer_decoder_forward.7} parent=11 // pred_check_branch
        %211 = sbr.rel (%p209) target = $region20
      $region19: #{transformer_decoder_forward.7} parent=11 // pred_region
        _
      $region20: #{transformer_decoder_forward.7} parent=11 // pred_fallthru
        _
      // Predicated region
      $region21: #{transformer_decoder_forward.7} parent=11 // pred_check
        %p212 = pneg %p102
      $region22: #{transformer_decoder_forward.7} parent=11 // pred_check_branch
        %214 = sbr.rel (%p212) target = $region24
      $region23: #{transformer_decoder_forward.7} parent=11 // pred_region
        _
      $region24: #{transformer_decoder_forward.7} parent=11 // pred_fallthru
        _
      // Predicated region
      $region25: #{transformer_decoder_forward.7} parent=11 // pred_check
        %p215 = pneg %p123
      $region26: #{transformer_decoder_forward.7} parent=11 // pred_check_branch
        %217 = sbr.rel (%p215) target = $region28
      $region27: #{transformer_decoder_forward.7} parent=11 // pred_region
        _
      $region28: #{transformer_decoder_forward.7} parent=11 // pred_fallthru
        _
      // Predicated region
      $region29: #{transformer_decoder_forward.7} parent=11 // pred_check
        %p218 = pneg %p144
      $region30: #{transformer_decoder_forward.7} parent=11 // pred_check_branch
        %220 = sbr.rel (%p218) target = $region32
      $region31: #{transformer_decoder_forward.7} parent=11 // pred_region
        _
      $region32: #{transformer_decoder_forward.7} parent=11 // pred_fallthru
        _
      // Predicated region
      $region33: #{transformer_decoder_forward.7} parent=11 // pred_check
        %p221 = pneg %p165
      $region34: #{transformer_decoder_forward.7} parent=11 // pred_check_branch
        %223 = sbr.rel (%p221) target = $region36
      $region35: #{transformer_decoder_forward.7} parent=11 // pred_region
        _
      $region36: #{transformer_decoder_forward.7} parent=11 // pred_fallthru
        _
    $region12: #{transformer_decoder_forward.7} parent=5 // pred_fallthru
      _
    %p224 = scmp.lt.s32.totalorder %s13, 2
    // Predicated region
    $region37: #{transformer_decoder_forward.7} parent=5 // pred_check
      %p225 = pneg %p224
    $region38: #{transformer_decoder_forward.7} parent=5 // pred_check_branch
      %227 = sbr.rel (%p225) target = $region40
    $region39: #{transformer_decoder_forward.7} parent=5 // pred_region
      // Predicated region
      $region41: #{transformer_decoder_forward.7} parent=39 // pred_check
        %p228 = pneg %p33
      $region42: #{transformer_decoder_forward.7} parent=39 // pred_check_branch
        %230 = sbr.rel (%p228) target = $region44
      $region43: #{transformer_decoder_forward.7} parent=39 // pred_region
        %p231 = scmp.lt.s32.totalorder %s13, 1
        %s232 = scalar_select %p231, %s13, 1
        %s233 = smul.addr %s232, 2
        %s234 = smul.addr %s233, 4
        %s235 = scalar_lea.vmem %s0, %s234
      $region44: #{transformer_decoder_forward.7} parent=39 // pred_fallthru
        _
    $region40: #{transformer_decoder_forward.7} parent=5 // pred_fallthru
      _
    %p236 = scmp.le.s32.totalorder 1, %s13
    %p237 = scmp.lt.s32.totalorder %s13, 3
    %p238 = pnand %p236, %p237
    %p239 = pneg %p238
    // Predicated region
    $region45: #{transformer_decoder_forward.7} parent=5 // pred_check
      _
    $region46: #{transformer_decoder_forward.7} parent=5 // pred_check_branch
      %241 = sbr.rel (%p238) target = $region48
    $region47: #{transformer_decoder_forward.7} parent=5 // pred_region
      %s242 = ssub.s32 %s13, 1
      %p243 = scmp.lt.s32.totalorder %s18, 1
      %s244 = scalar_select %p243, %s18, 1
      %s245 = smul.addr %s244, 2
      %s246 = smul.addr %s245, 4
      %s247 = scalar_lea.vmem %s0, %s246
      %p248 = pneg %p39
      %p249 = pneg %p36
      %p250 = pneg %p60
      %p251 = pneg %p57
      %p252 = pneg %p81
      %p253 = pneg %p78
      %p254 = pneg %p102
      %p255 = pneg %p99
      %p256 = pneg %p123
      %p257 = pneg %p120
      %p258 = pneg %p144
      %p259 = pneg %p141
      %p260 = pneg %p165
      %p261 = pneg %p162
      %p262 = pneg %p191
      %p263 = pneg %p188
      %p264 = scmp.lt.s32.totalorder %s18, 1
      %s265 = scalar_select %p264, %s18, 1
      %s266 = smul.addr %s265, 2
      %s267 = smul.addr %s266, 4
      %s268 = scalar_lea.vmem %s7, %s267
      %p269 = scmp.lt.s32.totalorder %s18, 1
      %s270 = scalar_select %p269, %s18, 1
      %s271 = smul.addr %s270, 2
      %s272 = smul.addr %s271, 4
      %s273 = scalar_lea.vmem %s0, %s272
      %p274 = scmp.lt.s32.totalorder %s18, 1
      %s275 = scalar_select %p274, %s18, 1
      %s276 = smul.addr %s275, 2
      %s277 = smul.addr %s276, 4
      %s278 = scalar_lea.vmem %s7, %s277
      %v280 = vld [vmem:[%s273] sm:$0xf]
      %v281 = vld [vmem:[%s273 + $0x4] sm:$0xf]
      %v282 = vld [vmem:[%s1] sm:$0xff]
      %v283 = vld [vmem:[%s1 + $0x8] sm:$0xf]
      %v284 = vld [vmem:[%s1 + $0xc] sm:$0xff]
      %v285 = vld [vmem:[%s1 + $0x14] sm:$0xf]
      %v286 = vld [vmem:[%s1 + $0x18] sm:$0xff]
      %v287 = vld [vmem:[%s1 + $0x20] sm:$0xf]
      %v288 = vld [vmem:[%s1 + $0x24] sm:$0xff]
      %v289 = vld [vmem:[%s1 + $0x2c] sm:$0xf]
      %v290 = vld [vmem:[%s1 + $0x30] sm:$0xff]
      %v291 = vld [vmem:[%s1 + $0x38] sm:$0xf]
      %v292 = vld [vmem:[%s1 + $0x3c] sm:$0xff]
      %v293 = vld [vmem:[%s1 + $0x44] sm:$0xf]
      %v294 = vld [vmem:[%s1 + $0x48] sm:$0xff]
      %v295 = vld [vmem:[%s1 + $0x50] sm:$0xf]
      %v296 = vld [vmem:[%s1 + $0x54] sm:$0xff]
      %v297 = vld [vmem:[%s1 + $0x5c] sm:$0xf]
      %v298 = vld [vmem:[%s1 + $0x60] sm:$0xff]
      %v299 = vld [vmem:[%s1 + $0x68] sm:$0xf]
      %v300 = vld [vmem:[%s1 + $0x6c] sm:$0xff]
      %v301 = vld [vmem:[%s1 + $0x74] sm:$0xf]
      %v302 = vld [vmem:[%s1 + $0x78] sm:$0xff]
      %v303 = vld [vmem:[%s1 + $0x80] sm:$0xf]
      %v304 = vld [vmem:[%s1 + $0x84] sm:$0xff]
      %v305 = vld [vmem:[%s1 + $0x8c] sm:$0xf]
      %v306 = vld [vmem:[%s1 + $0x90] sm:$0xff]
      %v307 = vld [vmem:[%s1 + $0x98] sm:$0xf]
      %v308 = vld [vmem:[%s1 + $0x9c] sm:$0xff]
      %v309 = vld [vmem:[%s1 + $0xa4] sm:$0xf]
      %v310 = vld [vmem:[%s1 + $0xa8] sm:$0xff]
      %v311 = vld [vmem:[%s1 + $0xb0] sm:$0xf]
      %v312 = vld [vmem:[%s1 + $0xb4] sm:$0xff]
      %v313 = vld [vmem:[%s1 + $0xbc] sm:$0xf]
      %v314 = vld [vmem:[%s2] sm:$0x7]
      %v316 = vlaneseq
      %v317 = vshrl.u32 %v316, 7
      %v318 = vsub.s32 0, %v317
      %v319 = vrot.slane %v314, %v318
      %v320 = vlaneseq
      %v321 = vshrl.u32 %v320, 7
      %v322 = vsub.s32 1, %v321
      %v323 = vrot.slane %v314, %v322
      %v324 = vlaneseq
      %v325 = vshrl.u32 %v324, 7
      %v326 = vsub.s32 2, %v325
      %v327 = vrot.slane %v314, %v326
      %v333 = vunpack.c.l.b16 %v280
      %v334 = vunpack.c.l.b16 %v281
      %v335 = vpack.c.b16 %v334, %v333
      %v369 = vunpack.c.l.b16 %v282
      %v370 = vunpack.c.h.b16 %v282
      %v371 = vunpack.c.l.b16 %v283
      %v372 = vunpack.c.l.b16 %v284
      %v373 = vunpack.c.h.b16 %v284
      %v374 = vunpack.c.l.b16 %v285
      %v375 = vunpack.c.l.b16 %v286
      %v376 = vunpack.c.h.b16 %v286
      %v377 = vunpack.c.l.b16 %v287
      %v378 = vunpack.c.l.b16 %v288
      %v379 = vunpack.c.h.b16 %v288
      %v380 = vunpack.c.l.b16 %v289
      %v381 = vunpack.c.l.b16 %v290
      %v382 = vunpack.c.h.b16 %v290
      %v383 = vunpack.c.l.b16 %v291
      %v384 = vunpack.c.l.b16 %v292
      %v385 = vunpack.c.h.b16 %v292
      %v386 = vunpack.c.l.b16 %v293
      %v387 = vunpack.c.l.b16 %v294
      %v388 = vunpack.c.h.b16 %v294
      %v389 = vunpack.c.l.b16 %v295
      %v390 = vunpack.c.l.b16 %v296
      %v391 = vunpack.c.h.b16 %v296
      %v392 = vunpack.c.l.b16 %v297
      %v393 = vunpack.c.l.b16 %v298
      %v394 = vunpack.c.h.b16 %v298
      %v395 = vunpack.c.l.b16 %v299
      %v396 = vunpack.c.l.b16 %v300
      %v397 = vunpack.c.h.b16 %v300
      %v398 = vunpack.c.l.b16 %v301
      %v399 = vunpack.c.l.b16 %v302
      %v400 = vunpack.c.h.b16 %v302
      %v401 = vunpack.c.l.b16 %v303
      %v402 = vunpack.c.l.b16 %v304
      %v403 = vunpack.c.h.b16 %v304
      %v404 = vunpack.c.l.b16 %v305
      %v405 = vunpack.c.l.b16 %v306
      %v406 = vunpack.c.h.b16 %v306
      %v407 = vunpack.c.l.b16 %v307
      %v408 = vunpack.c.l.b16 %v308
      %v409 = vunpack.c.h.b16 %v308
      %v410 = vunpack.c.l.b16 %v309
      %v411 = vunpack.c.l.b16 %v310
      %v412 = vunpack.c.h.b16 %v310
      %v413 = vunpack.c.l.b16 %v311
      %v414 = vunpack.c.l.b16 %v312
      %v415 = vunpack.c.h.b16 %v312
      %v416 = vunpack.c.l.b16 %v313
      %v417 = vpack.c.b16 %v372, %v369
      %v418 = vpack.c.b16 %v373, %v370
      %v419 = vpack.c.b16 %v374, %v371
      %v420 = vpack.c.b16 %v378, %v375
      %v421 = vpack.c.b16 %v379, %v376
      %v422 = vpack.c.b16 %v380, %v377
      %v423 = vpack.c.b16 %v384, %v381
      %v424 = vpack.c.b16 %v385, %v382
      %v425 = vpack.c.b16 %v386, %v383
      %v426 = vpack.c.b16 %v390, %v387
      %v427 = vpack.c.b16 %v391, %v388
      %v428 = vpack.c.b16 %v392, %v389
      %v429 = vpack.c.b16 %v396, %v393
      %v430 = vpack.c.b16 %v397, %v394
      %v431 = vpack.c.b16 %v398, %v395
      %v432 = vpack.c.b16 %v402, %v399
      %v433 = vpack.c.b16 %v403, %v400
      %v434 = vpack.c.b16 %v404, %v401
      %v435 = vpack.c.b16 %v408, %v405
      %v436 = vpack.c.b16 %v409, %v406
      %v437 = vpack.c.b16 %v410, %v407
      %v438 = vpack.c.b16 %v414, %v411
      %v439 = vpack.c.b16 %v415, %v412
      %v440 = vpack.c.b16 %v416, %v413
      %465 = vmatprep.subr.bf16.mxu0 %v418
      %466 = vmatpush1.bf16.msra.mxu0 %v417
      %467 = vmatprep.subr.bf16.mxu0 %v421
      %468 = vmatpush1.bf16.msra.mxu0 %v420
      %469 = vmatprep.subr.bf16.mxu0 %v424
      %470 = vmatpush1.bf16.msra.mxu0 %v423
      %471 = vmatprep.subr.bf16.mxu0 %v427
      %472 = vmatpush1.bf16.msra.mxu0 %v426
      %473 = vmatprep.subr.bf16.mxu0 %v430
      %474 = vmatpush1.bf16.msra.mxu0 %v429
      %475 = vmatprep.subr.bf16.mxu0 %v433
      %476 = vmatpush1.bf16.msra.mxu0 %v432
      %477 = vmatprep.subr.bf16.mxu0 %v436
      %478 = vmatpush1.bf16.msra.mxu0 %v435
      %479 = vmatprep.subr.bf16.mxu0 %v439
      %480 = vmatpush1.bf16.msra.mxu0 %v438
      %481 = vmatprep.subr.bf16.mxu0 0
      %482 = vmatpush1.bf16.msra.mxu0 0
      %483 = vmatprep.subr.bf16.mxu0 0
      %484 = vmatpush1.bf16.msra.mxu0 0
      %485 = vmatprep.subr.bf16.mxu0 0
      %486 = vmatpush1.bf16.msra.mxu0 0
      %487 = vmatprep.subr.bf16.mxu0 0
      %488 = vmatpush1.bf16.msra.mxu0 0
      %489 = vmatprep.subr.bf16.mxu0 0
      %490 = vmatpush1.bf16.msra.mxu0 0
      %491 = vmatprep.subr.bf16.mxu0 0
      %492 = vmatpush1.bf16.msra.mxu0 0
      %493 = vmatprep.subr.bf16.mxu0 0
      %494 = vmatpush1.bf16.msra.mxu0 0
      %495 = vmatprep.subr.bf16.mxu0 0
      %496 = vmatpush1.bf16.msra.mxu0 0
      %497 = vmatprep.mubr.bf16.mxu0 0
      %498 = vmatmul.mubr.bf16.gmra.mrb[0].mxu0 %v335
      %v499 = vpop.f32.mrb[0].mxu0
      %v500 = vadd.f32 %v319, %v499
      %v501 = vpop.f32.mrb[0].mxu0
      %v502 = vadd.f32 %v323, %v501
      %v503 = vpop.f32.mrb[0].mxu0
      %v504 = vadd.f32 %v319, %v503
      %v505 = vpop.f32.mrb[0].mxu0
      %v506 = vadd.f32 %v323, %v505
      %507 = vdwg.mxu0
      %508 = vmatprep.subr.bf16.mxu0 0
      %509 = vmatpush1.bf16.msra.mxu0 %v419
      %510 = vmatprep.subr.bf16.mxu0 0
      %511 = vmatpush1.bf16.msra.mxu0 %v422
      %512 = vmatprep.subr.bf16.mxu0 0
      %513 = vmatpush1.bf16.msra.mxu0 %v425
      %514 = vmatprep.subr.bf16.mxu0 0
      %515 = vmatpush1.bf16.msra.mxu0 %v428
      %516 = vmatprep.subr.bf16.mxu0 0
      %517 = vmatpush1.bf16.msra.mxu0 %v431
      %518 = vmatprep.subr.bf16.mxu0 0
      %519 = vmatpush1.bf16.msra.mxu0 %v434
      %520 = vmatprep.subr.bf16.mxu0 0
      %521 = vmatpush1.bf16.msra.mxu0 %v437
      %522 = vmatprep.subr.bf16.mxu0 0
      %523 = vmatpush1.bf16.msra.mxu0 %v440
      %524 = vmatprep.subr.bf16.mxu0 0
      %525 = vmatpush1.bf16.msra.mxu0 0
      %526 = vmatprep.subr.bf16.mxu0 0
      %527 = vmatpush1.bf16.msra.mxu0 0
      %528 = vmatprep.subr.bf16.mxu0 0
      %529 = vmatpush1.bf16.msra.mxu0 0
      %530 = vmatprep.subr.bf16.mxu0 0
      %531 = vmatpush1.bf16.msra.mxu0 0
      %532 = vmatprep.subr.bf16.mxu0 0
      %533 = vmatpush1.bf16.msra.mxu0 0
      %534 = vmatprep.subr.bf16.mxu0 0
      %535 = vmatpush1.bf16.msra.mxu0 0
      %536 = vmatprep.subr.bf16.mxu0 0
      %537 = vmatpush1.bf16.msra.mxu0 0
      %538 = vmatprep.subr.bf16.mxu0 0
      %539 = vmatpush1.bf16.msra.mxu0 0
      %540 = vmatprep.mubr.bf16.mxu0 0
      %541 = vmatmul.mubr.bf16.gmra.mrb[0].mxu0 %v335
      %v542 = vpop.f32.mrb[0].mxu0
      %v543 = vadd.f32 %v327, %v542
      %v544 = vpop.f32.mrb[0].mxu0
      %v545 = vpop.f32.mrb[0].mxu0
      %v546 = vadd.f32 %v327, %v545
      %v547 = vpop.f32.mrb[0].mxu0
      %548 = vdwg.mxu0
      %v549 = vlaneseq
      %v550 = vshrl.u32 %v549, 7
      %v551 = vadd.s32 %v550, 8
      %v552 = vlaneseq
      %v553 = vand.u32 %v552, 127
      %vm554 = vcmp.gt.s32.totalorder %v553, %v550
      %vm555 = vcmp.gt.s32.totalorder %v553, %v551
      %v556 = vsel %vm554, -1e+09, 0.0
      %v557 = vsel %vm555, -1e+09, 0.0
      %v558 = vmul.f32 %v500, 0.17677669
      %v559 = vmul.f32 %v504, 0.17677669
      %v560 = vpack.c.bf16 %v559, %v558
      %v561 = vpack.c.bf16 %v506, %v502
      %v562 = vpack.c.bf16 %v546, %v543
      %vm563 = vcmask 261120
      %v565 = vsel %vm563, %v560, 0
      %v568 = vsel %vm563, %v561, 0
      %570 = vmatprep.subr.bf16.mxu0 0
      %571 = vmatpush1.bf16.xpose.msra.mxu0 %v568
      %572 = vmatprep.subr.bf16.mxu0 0
      %573 = vmatpush1.bf16.xpose.msra.mxu0 0
      %574 = vmatprep.subr.bf16.mxu0 0
      %575 = vmatpush1.bf16.xpose.msra.mxu0 0
      %576 = vmatprep.subr.bf16.mxu0 0
      %577 = vmatpush1.bf16.xpose.msra.mxu0 0
      %578 = vmatprep.subr.bf16.mxu0 0
      %579 = vmatpush1.bf16.xpose.msra.mxu0 0
      %580 = vmatprep.subr.bf16.mxu0 0
      %581 = vmatpush1.bf16.xpose.msra.mxu0 0
      %582 = vmatprep.subr.bf16.mxu0 0
      %583 = vmatpush1.bf16.xpose.msra.mxu0 0
      %584 = vmatprep.subr.bf16.mxu0 0
      %585 = vmatpush1.bf16.xpose.msra.mxu0 0
      %586 = vmatprep.subr.bf16.mxu0 0
      %587 = vmatpush1.bf16.xpose.msra.mxu0 0
      %588 = vmatprep.subr.bf16.mxu0 0
      %589 = vmatpush1.bf16.xpose.msra.mxu0 0
      %590 = vmatprep.subr.bf16.mxu0 0
      %591 = vmatpush1.bf16.xpose.msra.mxu0 0
      %592 = vmatprep.subr.bf16.mxu0 0
      %593 = vmatpush1.bf16.xpose.msra.mxu0 0
      %594 = vmatprep.subr.bf16.mxu0 0
      %595 = vmatpush1.bf16.xpose.msra.mxu0 0
      %596 = vmatprep.subr.bf16.mxu0 0
      %597 = vmatpush1.bf16.xpose.msra.mxu0 0
      %598 = vmatprep.subr.bf16.mxu0 0
      %599 = vmatpush1.bf16.xpose.msra.mxu0 0
      %600 = vmatprep.subr.bf16.mxu0 0
      %601 = vmatpush1.bf16.xpose.msra.mxu0 0
      %602 = vmatprep.mubr.bf16.mxu0 0
      %603 = vmatmul.mubr.bf16.gmra.mrb[0].mxu0 %v565
      %v604 = vpop.f32.mrb[0].mxu0
      %v605 = vadd.f32 %v556, %v604
      %v606 = vpop.f32.mrb[0].mxu0
      %v607 = vpop.f32.mrb[0].mxu0
      %v608 = vadd.f32 %v557, %v607
      %v609 = vpop.f32.mrb[0].mxu0
      %610 = vdwg.mxu0
      %vm611 = vcmask 130048
      %v612 = vsel %vm611, %v605, -inf
      %613 = vmax.xlane.f32.xlu0 %v612
      %v614 = vpop.xlane.xlu0 %613
      %v615 = vsel %vm611, %v608, -inf
      %616 = vmax.xlane.f32.xlu0 %v615
      %v617 = vpop.xlane.xlu0 %616
      %v618 = vsub.f32 %v605, %v614
      %v619 = vsub.f32 %v608, %v617
      %v620 = vmul.f32 %v618, 1.442695
      %v621 = vpow.pop %v620
      %v622 = vmul.f32 %v619, 1.442695
      %v623 = vpow.pop %v622
      %v624 = vsel %vm611, %v621, 0.0
      %625 = vadd.xlane.f32.xlu0 %v624
      %v626 = vpop.xlane.xlu0 %625
      %v627 = vsel %vm611, %v623, 0.0
      %628 = vadd.xlane.f32.xlu0 %v627
      %v629 = vpop.xlane.xlu0 %628
      %v630 = vrcp.pop %v626
      %v631 = vrcp.pop %v629
      %v632 = vmul.f32 %v621, %v630
      %v633 = vmul.f32 %v623, %v631
      %v634 = vpack.c.bf16 %v633, %v632
      %v636 = vsel %vm611, %v634, 0
      %638 = vmatprep.subr.bf16.mxu0 0
      %639 = vmatpush1.bf16.msra.mxu0 %v562
      %640 = vmatprep.subr.bf16.mxu0 0
      %641 = vmatpush1.bf16.msra.mxu0 0
      %642 = vmatprep.subr.bf16.mxu0 0
      %643 = vmatpush1.bf16.msra.mxu0 0
      %644 = vmatprep.subr.bf16.mxu0 0
      %645 = vmatpush1.bf16.msra.mxu0 0
      %646 = vmatprep.subr.bf16.mxu0 0
      %647 = vmatpush1.bf16.msra.mxu0 0
      %648 = vmatprep.subr.bf16.mxu0 0
      %649 = vmatpush1.bf16.msra.mxu0 0
      %650 = vmatprep.subr.bf16.mxu0 0
      %651 = vmatpush1.bf16.msra.mxu0 0
      %652 = vmatprep.subr.bf16.mxu0 0
      %653 = vmatpush1.bf16.msra.mxu0 0
      %654 = vmatprep.subr.bf16.mxu0 0
      %655 = vmatpush1.bf16.msra.mxu0 0
      %656 = vmatprep.subr.bf16.mxu0 0
      %657 = vmatpush1.bf16.msra.mxu0 0
      %658 = vmatprep.subr.bf16.mxu0 0
      %659 = vmatpush1.bf16.msra.mxu0 0
      %660 = vmatprep.subr.bf16.mxu0 0
      %661 = vmatpush1.bf16.msra.mxu0 0
      %662 = vmatprep.subr.bf16.mxu0 0
      %663 = vmatpush1.bf16.msra.mxu0 0
      %664 = vmatprep.subr.bf16.mxu0 0
      %665 = vmatpush1.bf16.msra.mxu0 0
      %666 = vmatprep.subr.bf16.mxu0 0
      %667 = vmatpush1.bf16.msra.mxu0 0
      %668 = vmatprep.subr.bf16.mxu0 0
      %669 = vmatpush1.bf16.msra.mxu0 0
      %670 = vmatprep.mubr.bf16.mxu0 0
      %671 = vmatmul.mubr.bf16.gmra.mrb[0].mxu0 %v636
      %v672 = vpop.f32.mrb[0].mxu0
      %v673 = vadd.f32 0.0, %v672
      %v674 = vpop.f32.mrb[0].mxu0
      %v675 = vpop.f32.mrb[0].mxu0
      %v676 = vadd.f32 0.0, %v675
      %v677 = vpop.f32.mrb[0].mxu0
      %678 = vdwg.mxu0
      %v679 = vpack.c.bf16 %v676, %v673
      %v680 = vld [vmem:[%s3] sm:$0xf]
      %v681 = vld [vmem:[%s3 + $0x4] sm:$0xf]
      %v682 = vld [vmem:[%s3 + $0x8] sm:$0xf]
      %v683 = vld [vmem:[%s3 + $0xc] sm:$0xf]
      %685 = vrot.lane.b32.xlu0 %v560, 96
      %v686 = vpop.permute.xlu0 %685
      %688 = vrot.lane.b32.xlu0 %v561, 96
      %v689 = vpop.permute.xlu0 %688
      %v691 = vsel %vm563, %v686, 0
      %v694 = vsel %vm563, %v689, 0
      %696 = vmatprep.subr.bf16.mxu0 0
      %697 = vmatpush1.bf16.xpose.msra.mxu0 %v694
      %698 = vmatprep.subr.bf16.mxu0 0
      %699 = vmatpush1.bf16.xpose.msra.mxu0 0
      %700 = vmatprep.subr.bf16.mxu0 0
      %701 = vmatpush1.bf16.xpose.msra.mxu0 0
      %702 = vmatprep.subr.bf16.mxu0 0
      %703 = vmatpush1.bf16.xpose.msra.mxu0 0
      %704 = vmatprep.subr.bf16.mxu0 0
      %705 = vmatpush1.bf16.xpose.msra.mxu0 0
      %706 = vmatprep.subr.bf16.mxu0 0
      %707 = vmatpush1.bf16.xpose.msra.mxu0 0
      %708 = vmatprep.subr.bf16.mxu0 0
      %709 = vmatpush1.bf16.xpose.msra.mxu0 0
      %710 = vmatprep.subr.bf16.mxu0 0
      %711 = vmatpush1.bf16.xpose.msra.mxu0 0
      %712 = vmatprep.subr.bf16.mxu0 0
      %713 = vmatpush1.bf16.xpose.msra.mxu0 0
      %714 = vmatprep.subr.bf16.mxu0 0
      %715 = vmatpush1.bf16.xpose.msra.mxu0 0
      %716 = vmatprep.subr.bf16.mxu0 0
      %717 = vmatpush1.bf16.xpose.msra.mxu0 0
      %718 = vmatprep.subr.bf16.mxu0 0
      %719 = vmatpush1.bf16.xpose.msra.mxu0 0
      %720 = vmatprep.subr.bf16.mxu0 0
      %721 = vmatpush1.bf16.xpose.msra.mxu0 0
      %722 = vmatprep.subr.bf16.mxu0 0
      %723 = vmatpush1.bf16.xpose.msra.mxu0 0
      %724 = vmatprep.subr.bf16.mxu0 0
      %725 = vmatpush1.bf16.xpose.msra.mxu0 0
      %726 = vmatprep.subr.bf16.mxu0 0
      %727 = vmatpush1.bf16.xpose.msra.mxu0 0
      %728 = vmatprep.mubr.bf16.mxu0 0
      %729 = vmatmul.mubr.bf16.gmra.mrb[0].mxu0 %v691
      %v730 = vpop.f32.mrb[0].mxu0
      %v731 = vadd.f32 %v556, %v730
      %v732 = vpop.f32.mrb[0].mxu0
      %v733 = vpop.f32.mrb[0].mxu0
      %v734 = vadd.f32 %v557, %v733
      %v735 = vpop.f32.mrb[0].mxu0
      %736 = vdwg.mxu0
      %v737 = vsel %vm611, %v731, -inf
      %738 = vmax.xlane.f32.xlu0 %v737
      %v739 = vpop.xlane.xlu0 %738
      %v740 = vsel %vm611, %v734, -inf
      %741 = vmax.xlane.f32.xlu0 %v740
      %v742 = vpop.xlane.xlu0 %741
      %v743 = vsub.f32 %v731, %v739
      %v744 = vsub.f32 %v734, %v742
      %v745 = vmul.f32 %v743, 1.442695
      %v746 = vpow.pop %v745
      %v747 = vmul.f32 %v744, 1.442695
      %v748 = vpow.pop %v747
      %v749 = vsel %vm611, %v746, 0.0
      %750 = vadd.xlane.f32.xlu0 %v749
      %v751 = vpop.xlane.xlu0 %750
      %v752 = vsel %vm611, %v748, 0.0
      %753 = vadd.xlane.f32.xlu0 %v752
      %v754 = vpop.xlane.xlu0 %753
      %v755 = vrcp.pop %v751
      %v756 = vrcp.pop %v754
      %v757 = vmul.f32 %v746, %v755
      %v758 = vmul.f32 %v748, %v756
      %v759 = vpack.c.bf16 %v758, %v757
      %761 = vrot.lane.b32.xlu0 %v562, 96
      %v762 = vpop.permute.xlu0 %761
      %v765 = vsel %vm611, %v759, 0
      %767 = vmatprep.subr.bf16.mxu0 0
      %768 = vmatpush1.bf16.msra.mxu0 %v762
      %769 = vmatprep.subr.bf16.mxu0 0
      %770 = vmatpush1.bf16.msra.mxu0 0
      %771 = vmatprep.subr.bf16.mxu0 0
      %772 = vmatpush1.bf16.msra.mxu0 0
      %773 = vmatprep.subr.bf16.mxu0 0
      %774 = vmatpush1.bf16.msra.mxu0 0
      %775 = vmatprep.subr.bf16.mxu0 0
      %776 = vmatpush1.bf16.msra.mxu0 0
      %777 = vmatprep.subr.bf16.mxu0 0
      %778 = vmatpush1.bf16.msra.mxu0 0
      %779 = vmatprep.subr.bf16.mxu0 0
      %780 = vmatpush1.bf16.msra.mxu0 0
      %781 = vmatprep.subr.bf16.mxu0 0
      %782 = vmatpush1.bf16.msra.mxu0 0
      %783 = vmatprep.subr.bf16.mxu0 0
      %784 = vmatpush1.bf16.msra.mxu0 0
      %785 = vmatprep.subr.bf16.mxu0 0
      %786 = vmatpush1.bf16.msra.mxu0 0
      %787 = vmatprep.subr.bf16.mxu0 0
      %788 = vmatpush1.bf16.msra.mxu0 0
      %789 = vmatprep.subr.bf16.mxu0 0
      %790 = vmatpush1.bf16.msra.mxu0 0
      %791 = vmatprep.subr.bf16.mxu0 0
      %792 = vmatpush1.bf16.msra.mxu0 0
      %793 = vmatprep.subr.bf16.mxu0 0
      %794 = vmatpush1.bf16.msra.mxu0 0
      %795 = vmatprep.subr.bf16.mxu0 0
      %796 = vmatpush1.bf16.msra.mxu0 0
      %797 = vmatprep.subr.bf16.mxu0 0
      %798 = vmatpush1.bf16.msra.mxu0 0
      %799 = vmatprep.mubr.bf16.mxu0 0
      %800 = vmatmul.mubr.bf16.gmra.mrb[0].mxu0 %v765
      %v801 = vpop.f32.mrb[0].mxu0
      %v802 = vadd.f32 0.0, %v801
      %v803 = vpop.f32.mrb[0].mxu0
      %v804 = vpop.f32.mrb[0].mxu0
      %v805 = vadd.f32 0.0, %v804
      %v806 = vpop.f32.mrb[0].mxu0
      %807 = vdwg.mxu0
      %v808 = vpack.c.bf16 %v805, %v802
      %v809 = vld [vmem:[%s3 + $0x10] sm:$0xf]
      %v810 = vld [vmem:[%s3 + $0x14] sm:$0xf]
      %v811 = vld [vmem:[%s3 + $0x18] sm:$0xf]
      %v812 = vld [vmem:[%s3 + $0x1c] sm:$0xf]
      %v817 = vunpack.c.l.b16 %v809
      %v818 = vunpack.c.l.b16 %v810
      %v819 = vunpack.c.l.b16 %v811
      %v820 = vunpack.c.l.b16 %v812
      %v821 = vpack.c.b16 %v818, %v817
      %v822 = vpack.c.b16 %v820, %v819
      %v826 = vsel %vm563, %v808, 0
      %828 = vmatprep.subr.bf16.mxu0 0
      %829 = vmatpush1.bf16.msra.mxu0 %v821
      %830 = vmatprep.subr.bf16.mxu0 0
      %831 = vmatpush1.bf16.msra.mxu0 %v822
      %832 = vmatprep.subr.bf16.mxu0 0
      %833 = vmatpush1.bf16.msra.mxu0 0
      %834 = vmatprep.subr.bf16.mxu0 0
      %835 = vmatpush1.bf16.msra.mxu0 0
      %836 = vmatprep.subr.bf16.mxu0 0
      %837 = vmatpush1.bf16.msra.mxu0 0
      %838 = vmatprep.subr.bf16.mxu0 0
      %839 = vmatpush1.bf16.msra.mxu0 0
      %840 = vmatprep.subr.bf16.mxu0 0
      %841 = vmatpush1.bf16.msra.mxu0 0
      %842 = vmatprep.subr.bf16.mxu0 0
      %843 = vmatpush1.bf16.msra.mxu0 0
      %844 = vmatprep.subr.bf16.mxu0 0
      %845 = vmatpush1.bf16.msra.mxu0 0
      %846 = vmatprep.subr.bf16.mxu0 0
      %847 = vmatpush1.bf16.msra.mxu0 0
      %848 = vmatprep.subr.bf16.mxu0 0
      %849 = vmatpush1.bf16.msra.mxu0 0
      %850 = vmatprep.subr.bf16.mxu0 0
      %851 = vmatpush1.bf16.msra.mxu0 0
      %852 = vmatprep.subr.bf16.mxu0 0
      %853 = vmatpush1.bf16.msra.mxu0 0
      %854 = vmatprep.subr.bf16.mxu0 0
      %855 = vmatpush1.bf16.msra.mxu0 0
      %856 = vmatprep.subr.bf16.mxu0 0
      %857 = vmatpush1.bf16.msra.mxu0 0
      %858 = vmatprep.subr.bf16.mxu0 0
      %859 = vmatpush1.bf16.msra.mxu0 0
      %860 = vmatprep.mubr.bf16.mxu0 0
      %861 = vmatmul.mubr.bf16.gmra.mrb[0].mxu0 %v826
      %v862 = vpop.f32.mrb[0].mxu0
      %v863 = vadd.f32 0.0, %v862
      %v864 = vpop.f32.mrb[0].mxu0
      %v865 = vpop.f32.mrb[0].mxu0
      %v866 = vadd.f32 0.0, %v865
      %v867 = vpop.f32.mrb[0].mxu0
      %868 = vdwg.mxu0
      %v873 = vunpack.c.l.b16 %v680
      %v874 = vunpack.c.l.b16 %v681
      %v875 = vunpack.c.l.b16 %v682
      %v876 = vunpack.c.l.b16 %v683
      %v877 = vpack.c.b16 %v874, %v873
      %v878 = vpack.c.b16 %v876, %v875
      %v882 = vsel %vm563, %v679, 0
      %884 = vmatprep.subr.bf16.mxu0 0
      %885 = vmatpush1.bf16.msra.mxu0 %v877
      %886 = vmatprep.subr.bf16.mxu0 0
      %887 = vmatpush1.bf16.msra.mxu0 %v878
      %888 = vmatprep.subr.bf16.mxu0 0
      %889 = vmatpush1.bf16.msra.mxu0 0
      %890 = vmatprep.subr.bf16.mxu0 0
      %891 = vmatpush1.bf16.msra.mxu0 0
      %892 = vmatprep.subr.bf16.mxu0 0
      %893 = vmatpush1.bf16.msra.mxu0 0
      %894 = vmatprep.subr.bf16.mxu0 0
      %895 = vmatpush1.bf16.msra.mxu0 0
      %896 = vmatprep.subr.bf16.mxu0 0
      %897 = vmatpush1.bf16.msra.mxu0 0
      %898 = vmatprep.subr.bf16.mxu0 0
      %899 = vmatpush1.bf16.msra.mxu0 0
      %900 = vmatprep.subr.bf16.mxu0 0
      %901 = vmatpush1.bf16.msra.mxu0 0
      %902 = vmatprep.subr.bf16.mxu0 0
      %903 = vmatpush1.bf16.msra.mxu0 0
      %904 = vmatprep.subr.bf16.mxu0 0
      %905 = vmatpush1.bf16.msra.mxu0 0
      %906 = vmatprep.subr.bf16.mxu0 0
      %907 = vmatpush1.bf16.msra.mxu0 0
      %908 = vmatprep.subr.bf16.mxu0 0
      %909 = vmatpush1.bf16.msra.mxu0 0
      %910 = vmatprep.subr.bf16.mxu0 0
      %911 = vmatpush1.bf16.msra.mxu0 0
      %912 = vmatprep.subr.bf16.mxu0 0
      %913 = vmatpush1.bf16.msra.mxu0 0
      %914 = vmatprep.subr.bf16.mxu0 0
      %915 = vmatpush1.bf16.msra.mxu0 0
      %916 = vmatprep.mubr.bf16.mxu0 0
      %917 = vmatmul.mubr.bf16.gmra.mrb[0].mxu0 %v882
      %v918 = vpop.f32.mrb[0].mxu0
      %v919 = vadd.f32 %v863, %v918
      %v920 = vpop.f32.mrb[0].mxu0
      %v921 = vpop.f32.mrb[0].mxu0
      %v922 = vadd.f32 %v866, %v921
      %v923 = vpop.f32.mrb[0].mxu0
      %924 = vdwg.mxu0
      %925 = vrot.lane.b32.xlu0 %v560, 64
      %v926 = vpop.permute.xlu0 %925
      %927 = vrot.lane.b32.xlu0 %v561, 64
      %v928 = vpop.permute.xlu0 %927
      %v930 = vsel %vm563, %v926, 0
      %v933 = vsel %vm563, %v928, 0
      %935 = vmatprep.subr.bf16.mxu0 0
      %936 = vmatpush1.bf16.xpose.msra.mxu0 %v933
      %937 = vmatprep.subr.bf16.mxu0 0
      %938 = vmatpush1.bf16.xpose.msra.mxu0 0
      %939 = vmatprep.subr.bf16.mxu0 0
      %940 = vmatpush1.bf16.xpose.msra.mxu0 0
      %941 = vmatprep.subr.bf16.mxu0 0
      %942 = vmatpush1.bf16.xpose.msra.mxu0 0
      %943 = vmatprep.subr.bf16.mxu0 0
      %944 = vmatpush1.bf16.xpose.msra.mxu0 0
      %945 = vmatprep.subr.bf16.mxu0 0
      %946 = vmatpush1.bf16.xpose.msra.mxu0 0
      %947 = vmatprep.subr.bf16.mxu0 0
      %948 = vmatpush1.bf16.xpose.msra.mxu0 0
      %949 = vmatprep.subr.bf16.mxu0 0
      %950 = vmatpush1.bf16.xpose.msra.mxu0 0
      %951 = vmatprep.subr.bf16.mxu0 0
      %952 = vmatpush1.bf16.xpose.msra.mxu0 0
      %953 = vmatprep.subr.bf16.mxu0 0
      %954 = vmatpush1.bf16.xpose.msra.mxu0 0
      %955 = vmatprep.subr.bf16.mxu0 0
      %956 = vmatpush1.bf16.xpose.msra.mxu0 0
      %957 = vmatprep.subr.bf16.mxu0 0
      %958 = vmatpush1.bf16.xpose.msra.mxu0 0
      %959 = vmatprep.subr.bf16.mxu0 0
      %960 = vmatpush1.bf16.xpose.msra.mxu0 0
      %961 = vmatprep.subr.bf16.mxu0 0
      %962 = vmatpush1.bf16.xpose.msra.mxu0 0
      %963 = vmatprep.subr.bf16.mxu0 0
      %964 = vmatpush1.bf16.xpose.msra.mxu0 0
      %965 = vmatprep.subr.bf16.mxu0 0
      %966 = vmatpush1.bf16.xpose.msra.mxu0 0
      %967 = vmatprep.mubr.bf16.mxu0 0
      %968 = vmatmul.mubr.bf16.gmra.mrb[0].mxu0 %v930
      %v969 = vpop.f32.mrb[0].mxu0
      %v970 = vadd.f32 %v556, %v969
      %v971 = vpop.f32.mrb[0].mxu0
      %v972 = vpop.f32.mrb[0].mxu0
      %v973 = vadd.f32 %v557, %v972
      %v974 = vpop.f32.mrb[0].mxu0
      %975 = vdwg.mxu0
      %v976 = vsel %vm611, %v970, -inf
      %977 = vmax.xlane.f32.xlu0 %v976
      %v978 = vpop.xlane.xlu0 %977
      %v979 = vsel %vm611, %v973, -inf
      %980 = vmax.xlane.f32.xlu0 %v979
      %v981 = vpop.xlane.xlu0 %980
      %v982 = vsub.f32 %v970, %v978
      %v983 = vsub.f32 %v973, %v981
      %v984 = vmul.f32 %v982, 1.442695
      %v985 = vpow.pop %v984
      %v986 = vmul.f32 %v983, 1.442695
      %v987 = vpow.pop %v986
      %v988 = vsel %vm611, %v985, 0.0
      %989 = vadd.xlane.f32.xlu0 %v988
      %v990 = vpop.xlane.xlu0 %989
      %v991 = vsel %vm611, %v987, 0.0
      %992 = vadd.xlane.f32.xlu0 %v991
      %v993 = vpop.xlane.xlu0 %992
      %v994 = vrcp.pop %v990
      %v995 = vrcp.pop %v993
      %v996 = vmul.f32 %v985, %v994
      %v997 = vmul.f32 %v987, %v995
      %v998 = vpack.c.bf16 %v997, %v996
      %999 = vrot.lane.b32.xlu0 %v562, 64
      %v1000 = vpop.permute.xlu0 %999
      %v1003 = vsel %vm611, %v998, 0
      %1005 = vmatprep.subr.bf16.mxu0 0
      %1006 = vmatpush1.bf16.msra.mxu0 %v1000
      %1007 = vmatprep.subr.bf16.mxu0 0
      %1008 = vmatpush1.bf16.msra.mxu0 0
      %1009 = vmatprep.subr.bf16.mxu0 0
      %1010 = vmatpush1.bf16.msra.mxu0 0
      %1011 = vmatprep.subr.bf16.mxu0 0
      %1012 = vmatpush1.bf16.msra.mxu0 0
      %1013 = vmatprep.subr.bf16.mxu0 0
      %1014 = vmatpush1.bf16.msra.mxu0 0
      %1015 = vmatprep.subr.bf16.mxu0 0
      %1016 = vmatpush1.bf16.msra.mxu0 0
      %1017 = vmatprep.subr.bf16.mxu0 0
      %1018 = vmatpush1.bf16.msra.mxu0 0
      %1019 = vmatprep.subr.bf16.mxu0 0
      %1020 = vmatpush1.bf16.msra.mxu0 0
      %1021 = vmatprep.subr.bf16.mxu0 0
      %1022 = vmatpush1.bf16.msra.mxu0 0
      %1023 = vmatprep.subr.bf16.mxu0 0
      %1024 = vmatpush1.bf16.msra.mxu0 0
      %1025 = vmatprep.subr.bf16.mxu0 0
      %1026 = vmatpush1.bf16.msra.mxu0 0
      %1027 = vmatprep.subr.bf16.mxu0 0
      %1028 = vmatpush1.bf16.msra.mxu0 0
      %1029 = vmatprep.subr.bf16.mxu0 0
      %1030 = vmatpush1.bf16.msra.mxu0 0
      %1031 = vmatprep.subr.bf16.mxu0 0
      %1032 = vmatpush1.bf16.msra.mxu0 0
      %1033 = vmatprep.subr.bf16.mxu0 0
      %1034 = vmatpush1.bf16.msra.mxu0 0
      %1035 = vmatprep.subr.bf16.mxu0 0
      %1036 = vmatpush1.bf16.msra.mxu0 0
      %1037 = vmatprep.mubr.bf16.mxu0 0
      %1038 = vmatmul.mubr.bf16.gmra.mrb[0].mxu0 %v1003
      %v1039 = vpop.f32.mrb[0].mxu0
      %v1040 = vadd.f32 0.0, %v1039
      %v1041 = vpop.f32.mrb[0].mxu0
      %v1042 = vpop.f32.mrb[0].mxu0
      %v1043 = vadd.f32 0.0, %v1042
      %v1044 = vpop.f32.mrb[0].mxu0
      %1045 = vdwg.mxu0
      %v1046 = vpack.c.bf16 %v1043, %v1040
      %v1047 = vld [vmem:[%s3 + $0x20] sm:$0xf]
      %v1048 = vld [vmem:[%s3 + $0x24] sm:$0xf]
      %v1049 = vld [vmem:[%s3 + $0x28] sm:$0xf]
      %v1050 = vld [vmem:[%s3 + $0x2c] sm:$0xf]
      %v1055 = vunpack.c.l.b16 %v1047
      %v1056 = vunpack.c.l.b16 %v1048
      %v1057 = vunpack.c.l.b16 %v1049
      %v1058 = vunpack.c.l.b16 %v1050
      %v1059 = vpack.c.b16 %v1056, %v1055
      %v1060 = vpack.c.b16 %v1058, %v1057
      %v1064 = vsel %vm563, %v1046, 0
      %1066 = vmatprep.subr.bf16.mxu0 0
      %1067 = vmatpush1.bf16.msra.mxu0 %v1059
      %1068 = vmatprep.subr.bf16.mxu0 0
      %1069 = vmatpush1.bf16.msra.mxu0 %v1060
      %1070 = vmatprep.subr.bf16.mxu0 0
      %1071 = vmatpush1.bf16.msra.mxu0 0
      %1072 = vmatprep.subr.bf16.mxu0 0
      %1073 = vmatpush1.bf16.msra.mxu0 0
      %1074 = vmatprep.subr.bf16.mxu0 0
      %1075 = vmatpush1.bf16.msra.mxu0 0
      %1076 = vmatprep.subr.bf16.mxu0 0
      %1077 = vmatpush1.bf16.msra.mxu0 0
      %1078 = vmatprep.subr.bf16.mxu0 0
      %1079 = vmatpush1.bf16.msra.mxu0 0
      %1080 = vmatprep.subr.bf16.mxu0 0
      %1081 = vmatpush1.bf16.msra.mxu0 0
      %1082 = vmatprep.subr.bf16.mxu0 0
      %1083 = vmatpush1.bf16.msra.mxu0 0
      %1084 = vmatprep.subr.bf16.mxu0 0
      %1085 = vmatpush1.bf16.msra.mxu0 0
      %1086 = vmatprep.subr.bf16.mxu0 0
      %1087 = vmatpush1.bf16.msra.mxu0 0
      %1088 = vmatprep.subr.bf16.mxu0 0
      %1089 = vmatpush1.bf16.msra.mxu0 0
      %1090 = vmatprep.subr.bf16.mxu0 0
      %1091 = vmatpush1.bf16.msra.mxu0 0
      %1092 = vmatprep.subr.bf16.mxu0 0
      %1093 = vmatpush1.bf16.msra.mxu0 0
      %1094 = vmatprep.subr.bf16.mxu0 0
      %1095 = vmatpush1.bf16.msra.mxu0 0
      %1096 = vmatprep.subr.bf16.mxu0 0
      %1097 = vmatpush1.bf16.msra.mxu0 0
      %1098 = vmatprep.mubr.bf16.mxu0 0
      %1099 = vmatmul.mubr.bf16.gmra.mrb[0].mxu0 %v1064
      %v1100 = vpop.f32.mrb[0].mxu0
      %v1101 = vadd.f32 0.0, %v1100
      %v1102 = vpop.f32.mrb[0].mxu0
      %v1103 = vpop.f32.mrb[0].mxu0
      %v1104 = vadd.f32 0.0, %v1103
      %v1105 = vpop.f32.mrb[0].mxu0
      %1106 = vdwg.mxu0
      %v1107 = vadd.f32 %v919, %v1101
      %v1108 = vadd.f32 %v922, %v1104
      %1109 = vrot.lane.b32.xlu0 %v560, 32
      %v1110 = vpop.permute.xlu0 %1109
      %1111 = vrot.lane.b32.xlu0 %v561, 32
      %v1112 = vpop.permute.xlu0 %1111
      %v1114 = vsel %vm563, %v1110, 0
      %v1117 = vsel %vm563, %v1112, 0
      %1119 = vmatprep.subr.bf16.mxu0 0
      %1120 = vmatpush1.bf16.xpose.msra.mxu0 %v1117
      %1121 = vmatprep.subr.bf16.mxu0 0
      %1122 = vmatpush1.bf16.xpose.msra.mxu0 0
      %1123 = vmatprep.subr.bf16.mxu0 0
      %1124 = vmatpush1.bf16.xpose.msra.mxu0 0
      %1125 = vmatprep.subr.bf16.mxu0 0
      %1126 = vmatpush1.bf16.xpose.msra.mxu0 0
      %1127 = vmatprep.subr.bf16.mxu0 0
      %1128 = vmatpush1.bf16.xpose.msra.mxu0 0
      %1129 = vmatprep.subr.bf16.mxu0 0
      %1130 = vmatpush1.bf16.xpose.msra.mxu0 0
      %1131 = vmatprep.subr.bf16.mxu0 0
      %1132 = vmatpush1.bf16.xpose.msra.mxu0 0
      %1133 = vmatprep.subr.bf16.mxu0 0
      %1134 = vmatpush1.bf16.xpose.msra.mxu0 0
      %1135 = vmatprep.subr.bf16.mxu0 0
      %1136 = vmatpush1.bf16.xpose.msra.mxu0 0
      %1137 = vmatprep.subr.bf16.mxu0 0
      %1138 = vmatpush1.bf16.xpose.msra.mxu0 0
      %1139 = vmatprep.subr.bf16.mxu0 0
      %1140 = vmatpush1.bf16.xpose.msra.mxu0 0
      %1141 = vmatprep.subr.bf16.mxu0 0
      %1142 = vmatpush1.bf16.xpose.msra.mxu0 0
      %1143 = vmatprep.subr.bf16.mxu0 0
      %1144 = vmatpush1.bf16.xpose.msra.mxu0 0
      %1145 = vmatprep.subr.bf16.mxu0 0
      %1146 = vmatpush1.bf16.xpose.msra.mxu0 0
      %1147 = vmatprep.subr.bf16.mxu0 0
      %1148 = vmatpush1.bf16.xpose.msra.mxu0 0
      %1149 = vmatprep.subr.bf16.mxu0 0
      %1150 = vmatpush1.bf16.xpose.msra.mxu0 0
      %1151 = vmatprep.mubr.bf16.mxu0 0
      %1152 = vmatmul.mubr.bf16.gmra.mrb[0].mxu0 %v1114
      %v1153 = vpop.f32.mrb[0].mxu0
      %v1154 = vadd.f32 %v556, %v1153
      %v1155 = vpop.f32.mrb[0].mxu0
      %v1156 = vpop.f32.mrb[0].mxu0
      %v1157 = vadd.f32 %v557, %v1156
      %v1158 = vpop.f32.mrb[0].mxu0
      %1159 = vdwg.mxu0
      %v1160 = vsel %vm611, %v1154, -inf
      %1161 = vmax.xlane.f32.xlu0 %v1160
      %v1162 = vpop.xlane.xlu0 %1161
      %v1163 = vsel %vm611, %v1157, -inf
      %1164 = vmax.xlane.f32.xlu0 %v1163
      %v1165 = vpop.xlane.xlu0 %1164
      %v1166 = vsub.f32 %v1154, %v1162
      %v1167 = vsub.f32 %v1157, %v1165
      %v1168 = vmul.f32 %v1166, 1.442695
      %v1169 = vpow.pop %v1168
      %v1170 = vmul.f32 %v1167, 1.442695
      %v1171 = vpow.pop %v1170
      %v1172 = vsel %vm611, %v1169, 0.0
      %1173 = vadd.xlane.f32.xlu0 %v1172
      %v1174 = vpop.xlane.xlu0 %1173
      %v1175 = vsel %vm611, %v1171, 0.0
      %1176 = vadd.xlane.f32.xlu0 %v1175
      %v1177 = vpop.xlane.xlu0 %1176
      %v1178 = vrcp.pop %v1174
      %v1179 = vrcp.pop %v1177
      %v1180 = vmul.f32 %v1169, %v1178
      %v1181 = vmul.f32 %v1171, %v1179
      %v1182 = vpack.c.bf16 %v1181, %v1180
      %1183 = vrot.lane.b32.xlu0 %v562, 32
      %v1184 = vpop.permute.xlu0 %1183
      %v1187 = vsel %vm611, %v1182, 0
      %1189 = vmatprep.subr.bf16.mxu0 0
      %1190 = vmatpush1.bf16.msra.mxu0 %v1184
      %1191 = vmatprep.subr.bf16.mxu0 0
      %1192 = vmatpush1.bf16.msra.mxu0 0
      %1193 = vmatprep.subr.bf16.mxu0 0
      %1194 = vmatpush1.bf16.msra.mxu0 0
      %1195 = vmatprep.subr.bf16.mxu0 0
      %1196 = vmatpush1.bf16.msra.mxu0 0
      %1197 = vmatprep.subr.bf16.mxu0 0
      %1198 = vmatpush1.bf16.msra.mxu0 0
      %1199 = vmatprep.subr.bf16.mxu0 0
      %1200 = vmatpush1.bf16.msra.mxu0 0
      %1201 = vmatprep.subr.bf16.mxu0 0
      %1202 = vmatpush1.bf16.msra.mxu0 0
      %1203 = vmatprep.subr.bf16.mxu0 0
      %1204 = vmatpush1.bf16.msra.mxu0 0
      %1205 = vmatprep.subr.bf16.mxu0 0
      %1206 = vmatpush1.bf16.msra.mxu0 0
      %1207 = vmatprep.subr.bf16.mxu0 0
      %1208 = vmatpush1.bf16.msra.mxu0 0
      %1209 = vmatprep.subr.bf16.mxu0 0
      %1210 = vmatpush1.bf16.msra.mxu0 0
      %1211 = vmatprep.subr.bf16.mxu0 0
      %1212 = vmatpush1.bf16.msra.mxu0 0
      %1213 = vmatprep.subr.bf16.mxu0 0
      %1214 = vmatpush1.bf16.msra.mxu0 0
      %1215 = vmatprep.subr.bf16.mxu0 0
      %1216 = vmatpush1.bf16.msra.mxu0 0
      %1217 = vmatprep.subr.bf16.mxu0 0
      %1218 = vmatpush1.bf16.msra.mxu0 0
      %1219 = vmatprep.subr.bf16.mxu0 0
      %1220 = vmatpush1.bf16.msra.mxu0 0
      %1221 = vmatprep.mubr.bf16.mxu0 0
      %1222 = vmatmul.mubr.bf16.gmra.mrb[0].mxu0 %v1187
      %v1223 = vpop.f32.mrb[0].mxu0
      %v1224 = vadd.f32 0.0, %v1223
      %v1225 = vpop.f32.mrb[0].mxu0
      %v1226 = vpop.f32.mrb[0].mxu0
      %v1227 = vadd.f32 0.0, %v1226
      %v1228 = vpop.f32.mrb[0].mxu0
      %1229 = vdwg.mxu0
      %v1230 = vpack.c.bf16 %v1227, %v1224
      %v1231 = vld [vmem:[%s3 + $0x30] sm:$0xf]
      %v1232 = vld [vmem:[%s3 + $0x34] sm:$0xf]
      %v1233 = vld [vmem:[%s3 + $0x38] sm:$0xf]
      %v1234 = vld [vmem:[%s3 + $0x3c] sm:$0xf]
      %v1239 = vunpack.c.l.b16 %v1231
      %v1240 = vunpack.c.l.b16 %v1232
      %v1241 = vunpack.c.l.b16 %v1233
      %v1242 = vunpack.c.l.b16 %v1234
      %v1243 = vpack.c.b16 %v1240, %v1239
      %v1244 = vpack.c.b16 %v1242, %v1241
      %v1248 = vsel %vm563, %v1230, 0
      %1250 = vmatprep.subr.bf16.mxu0 0
      %1251 = vmatpush1.bf16.msra.mxu0 %v1243
      %1252 = vmatprep.subr.bf16.mxu0 0
      %1253 = vmatpush1.bf16.msra.mxu0 %v1244
      %1254 = vmatprep.subr.bf16.mxu0 0
      %1255 = vmatpush1.bf16.msra.mxu0 0
      %1256 = vmatprep.subr.bf16.mxu0 0
      %1257 = vmatpush1.bf16.msra.mxu0 0
      %1258 = vmatprep.subr.bf16.mxu0 0
      %1259 = vmatpush1.bf16.msra.mxu0 0
      %1260 = vmatprep.subr.bf16.mxu0 0
      %1261 = vmatpush1.bf16.msra.mxu0 0
      %1262 = vmatprep.subr.bf16.mxu0 0
      %1263 = vmatpush1.bf16.msra.mxu0 0
      %1264 = vmatprep.subr.bf16.mxu0 0
      %1265 = vmatpush1.bf16.msra.mxu0 0
      %1266 = vmatprep.subr.bf16.mxu0 0
      %1267 = vmatpush1.bf16.msra.mxu0 0
      %1268 = vmatprep.subr.bf16.mxu0 0
      %1269 = vmatpush1.bf16.msra.mxu0 0
      %1270 = vmatprep.subr.bf16.mxu0 0
      %1271 = vmatpush1.bf16.msra.mxu0 0
      %1272 = vmatprep.subr.bf16.mxu0 0
      %1273 = vmatpush1.bf16.msra.mxu0 0
      %1274 = vmatprep.subr.bf16.mxu0 0
      %1275 = vmatpush1.bf16.msra.mxu0 0
      %1276 = vmatprep.subr.bf16.mxu0 0
      %1277 = vmatpush1.bf16.msra.mxu0 0
      %1278 = vmatprep.subr.bf16.mxu0 0
      %1279 = vmatpush1.bf16.msra.mxu0 0
      %1280 = vmatprep.subr.bf16.mxu0 0
      %1281 = vmatpush1.bf16.msra.mxu0 0
      %1282 = vmatprep.mubr.bf16.mxu0 0
      %1283 = vmatmul.mubr.bf16.gmra.mrb[0].mxu0 %v1248
      %v1284 = vpop.f32.mrb[0].mxu0
      %v1285 = vadd.f32 0.0, %v1284
      %v1286 = vpop.f32.mrb[0].mxu0
      %v1287 = vpop.f32.mrb[0].mxu0
      %v1288 = vadd.f32 0.0, %v1287
      %v1289 = vpop.f32.mrb[0].mxu0
      %1290 = vdwg.mxu0
      %v1291 = vadd.f32 %v1107, %v1285
      %v1292 = vadd.f32 %v1108, %v1288
      %v1293 = vunpack.c.l.bf16 %v280
      %v1294 = vunpack.c.l.bf16 %v281
      %v1295 = vadd.f32 %v1293, %v1291
      %v1296 = vadd.f32 %v1294, %v1292
      %v1297 = vld [vmem:[%s4] sm:$0x1]
      %v1299 = vlaneseq
      %v1300 = vshrl.u32 %v1299, 7
      %v1301 = vsub.s32 0, %v1300
      %v1302 = vrot.slane %v1297, %v1301
      %v1304 = vadd.f32 %v1295, %v1302
      %v1305 = vadd.f32 %v1296, %v1302
      %v1306 = vld [vmem:[%s5] sm:$0x1]
      %v1307 = vld [vmem:[%s6] sm:$0x1]
      %1308 = vadd.xlane.f32.xlu0 %v1304
      %v1309 = vpop.xlane.xlu0 %1308
      %1310 = vadd.xlane.f32.xlu0 %v1305
      %v1311 = vpop.xlane.xlu0 %1310
      %v1312 = vrcp.pop 128.0
      %v1313 = vmul.f32 %v1309, %v1312
      %v1314 = vmul.f32 %v1311, %v1312
      %v1315 = vsub.f32 %v1304, %v1313
      %v1316 = vsub.f32 %v1305, %v1314
      %v1317 = vmul.f32 %v1315, %v1315
      %v1318 = vmul.f32 %v1316, %v1316
      %1319 = vadd.xlane.f32.xlu0 %v1317
      %v1320 = vpop.xlane.xlu0 %1319
      %1321 = vadd.xlane.f32.xlu0 %v1318
      %v1322 = vpop.xlane.xlu0 %1321
      %v1323 = vmul.f32 %v1320, %v1312
      %v1324 = vmul.f32 %v1322, %v1312
      %v1325 = vadd.f32 %v1323, 1e-05
      %v1326 = vadd.f32 %v1324, 1e-05
      %v1327 = vrsqrt.pop %v1325
      %v1328 = vrsqrt.pop %v1326
      %v1329 = vmul.f32 %v1315, %v1327
      %v1330 = vmul.f32 %v1316, %v1328
      %v1332 = vlaneseq
      %v1333 = vshrl.u32 %v1332, 7
      %v1334 = vsub.s32 0, %v1333
      %v1335 = vrot.slane %v1306, %v1334
      %v1337 = vmul.f32 %v1329, %v1335
      %v1338 = vmul.f32 %v1330, %v1335
      %v1340 = vlaneseq
      %v1341 = vshrl.u32 %v1340, 7
      %v1342 = vsub.s32 0, %v1341
      %v1343 = vrot.slane %v1307, %v1342
      %v1345 = vadd.f32 %v1337, %v1343
      %v1346 = vadd.f32 %v1338, %v1343
      %v1347 = vpack.c.bf16 %v1346, %v1345
      %v1349 = vunpack.c.l.b16 %v1347
      %v1350 = vunpack.c.h.b16 %v1347
      %v1351 = vpack.c.b16 %v1349, %v1349
      %v1352 = vpack.c.b16 %v1350, %v1350
      %1355 = vst [vmem:[%s278] sm:$0xf] %v1351
      %1356 = vst [vmem:[%s278 + $0x4] sm:$0xf] %v1352
      %p1357 = scmp.lt.s32.totalorder %s18, 1
      %s1358 = scalar_select %p1357, %s18, 1
      %s1359 = smul.addr %s1358, 2
      %s1360 = smul.addr %s1359, 4
      %s1361 = scalar_lea.vmem %s7, %s1360
      // Predicated region
      $region49: #{transformer_decoder_forward.7} parent=47 // pred_check
        %p1362 = pneg %p188
      $region50: #{transformer_decoder_forward.7} parent=47 // pred_check_branch
        %1364 = sbr.rel (%p1362) target = $region52
      $region51: #{transformer_decoder_forward.7} parent=47 // pred_region
        _
      $region52: #{transformer_decoder_forward.7} parent=47 // pred_fallthru
        _
    $region48: #{transformer_decoder_forward.7} parent=5 // pred_fallthru
      _
    %p1365 = scmp.le.s32.totalorder 2, %s13
    // Predicated region
    $region53: #{transformer_decoder_forward.7} parent=5 // pred_check
      %p1366 = pneg %p1365
    $region54: #{transformer_decoder_forward.7} parent=5 // pred_check_branch
      %1368 = sbr.rel (%p1366) target = $region56
    $region55: #{transformer_decoder_forward.7} parent=5 // pred_region
      %s1369 = ssub.s32 %s13, 2
      // Predicated region
      $region57: #{transformer_decoder_forward.7} parent=55 // pred_check
        %p1370 = pneg %p194
      $region58: #{transformer_decoder_forward.7} parent=55 // pred_check_branch
        %1372 = sbr.rel (%p1370) target = $region60
      $region59: #{transformer_decoder_forward.7} parent=55 // pred_region
        %p1373 = scmp.lt.s32.totalorder %s19, 1
        %s1374 = scalar_select %p1373, %s19, 1
        %s1375 = smul.addr %s1374, 2
        %s1376 = smul.addr %s1375, 4
        %s1377 = scalar_lea.vmem %s7, %s1376
      $region60: #{transformer_decoder_forward.7} parent=55 // pred_fallthru
        _
    $region56: #{transformer_decoder_forward.7} parent=5 // pred_fallthru
      _
  $region6: #{transformer_decoder_forward.7} parent=0 // loop_footer
    %s17 = sadd.s32 1, %s13
  $region7: #{transformer_decoder_forward.7} parent=0 // loop_footer_branch
    %12 = sbr.rel target = $region3
  $region8: #{transformer_decoder_forward.7} parent=0 // loop_exit
    _

// kernel: transformer_decoder_forward.8
$region0: #{transformer_decoder_forward.8}
  #allocation0 [shape = 'u32[]', space=smem, size = 0x4, offset = 0x4, fixed_abs, tag = 'smem constant byte address 0x4 - core index']
  #allocation1 [shape = 'u32[144,128]{1,0:T(1,128)}', space=vmem, size = 0x12000, scoped, tag = 'internal scratch']
  %s0 = inlined_call_operand.vmem [shape: bf16[2,16,128], index: 0, kind: input, shape index: {}]
  %s1 = inlined_call_operand.vmem [shape: bf16[2,24,128], index: 1, kind: input, shape index: {}]
  %s2 = inlined_call_operand.vmem [shape: f32[2,1,24], index: 2, kind: input, shape index: {}]
  %s3 = inlined_call_operand.vmem [shape: bf16[128,128], index: 3, kind: input, shape index: {}]
  %s4 = inlined_call_operand.vmem [shape: f32[1,128], index: 4, kind: input, shape index: {}]
  %s5 = inlined_call_operand.vmem [shape: bf16[128,256], index: 5, kind: input, shape index: {}]
  %s6 = inlined_call_operand.vmem [shape: f32[1,256], index: 6, kind: input, shape index: {}]
  %s7 = inlined_call_operand.vmem [shape: bf16[128,128], index: 7, kind: input, shape index: {}]
  %s8 = inlined_call_operand.vmem [shape: f32[1,128], index: 8, kind: input, shape index: {}]
  %s9 = inlined_call_operand.vmem [shape: f32[1,128], index: 9, kind: input, shape index: {}]
  %s10 = inlined_call_operand.vmem [shape: f32[1,128], index: 10, kind: input, shape index: {}]
  %s11 = inlined_call_operand.vmem [shape: bf16[2,16,128], index: 11, kind: output, shape index: {}]
  %s12 = sld [smem:[#allocation0]]
  $region77: #{transformer_decoder_forward.8} parent=0
    _
  %s14 = ssub.s32 1, %s12
  %s15 = scalar_select 0, %s14, %s12
  loop: start=0, step=1, limit=4
  $region2: #{transformer_decoder_forward.8} parent=0 // loop_pre_header
    _
  $region3: #{transformer_decoder_forward.8} parent=0 // loop_header
    %s17 = sphi 0, %s21
    %p18 = scmp.ge.s32.totalorder %s17, 4
    %s27 = sphi 0, %s29
    %s30 = sphi 0, %s27
    %s31 = sphi 0, %s30
    %s47 = sphi 0, %s31
    %s53 = sphi 0, %s55
    %s56 = sphi 0, %s53
    %s57 = sphi 0, %s56
    %s73 = sphi 0, %s57
    %s79 = sphi 0, %s81
    %s82 = sphi 0, %s79
    %s83 = sphi 0, %s82
    %s99 = sphi 0, %s83
    %s103 = sphi 0, %s103
    %s105 = sphi 0, %s103
    %s106 = sphi 0, %s105
    %s120 = sphi 0, %s106
    %s124 = sphi 0, %s124
    %s126 = sphi 0, %s124
    %s127 = sphi 0, %s126
    %s141 = sphi 0, %s127
    %s145 = sphi 0, %s145
    %s147 = sphi 0, %s145
    %s148 = sphi 0, %s147
    %s162 = sphi 0, %s148
    %s166 = sphi 0, %s166
    %s168 = sphi 0, %s166
    %s169 = sphi 0, %s168
    %s183 = sphi 0, %s169
    %s187 = sphi 0, %s187
    %s189 = sphi 0, %s187
    %s190 = sphi 0, %s189
    %s204 = sphi 0, %s190
    %s208 = sphi 0, %s208
    %s210 = sphi 0, %s208
    %s211 = sphi 0, %s210
    %s225 = sphi 0, %s211
    %s229 = sphi 0, %s229
    %s231 = sphi 0, %s229
    %s232 = sphi 0, %s231
    %s246 = sphi 0, %s232
    %s250 = sphi 0, %s250
    %s252 = sphi 0, %s250
    %s253 = sphi 0, %s252
    %s267 = sphi 0, %s253
    %s273 = sphi 0, %s275
    %s276 = sphi 0, %s273
    %s277 = sphi 0, %s276
    %s293 = sphi 0, %s277
  $region4: #{transformer_decoder_forward.8} parent=0 // loop_header_branch
    %20 = sbr.rel (%p18) target = $region8
  $region5: #{transformer_decoder_forward.8} parent=0 // loop_body
    %s22 = ssub.s32 %s17, 1
    %s23 = ssub.s32 %s17, 2
    %s24 = sadd.s32 %s17, 1
    %s25 = ssub.s32 %s17, %s24
    %p26 = scmp.eq.s32.totalorder %s25, 0
    %s28 = sadd.s32 %s27, 1
    %s29 = scalar_select %p26, %s27, %s28
    %p32 = pneg %p26
    %p33 = scmp.eq.s32.totalorder %s17, 1
    %p34 = por %p32, %p33
    %p35 = scmp.ne.s32.totalorder %s27, %s30
    %p36 = scmp.eq.s32.totalorder %s17, 0
    %p37 = por %p35, %p36
    %p38 = scmp.ne.s32.totalorder %s27, %s30
    %p39 = scmp.eq.s32.totalorder %s22, 1
    %p40 = por %p38, %p39
    %p41 = scmp.ne.s32.totalorder %s30, %s31
    %p42 = scmp.eq.s32.totalorder %s22, 0
    %p43 = por %p41, %p42
    %p44 = scmp.ne.s32.totalorder %s30, %s31
    %p45 = scmp.eq.s32.totalorder %s23, 1
    %p46 = por %p44, %p45
    %p48 = scmp.ne.s32.totalorder %s31, %s47
    %p49 = scmp.eq.s32.totalorder %s23, 0
    %p50 = por %p48, %p49
    %s51 = ssub.s32 %s17, %s24
    %p52 = scmp.eq.s32.totalorder %s51, 0
    %s54 = sadd.s32 %s53, 1
    %s55 = scalar_select %p52, %s53, %s54
    %p58 = pneg %p52
    %p59 = scmp.eq.s32.totalorder %s17, 1
    %p60 = por %p58, %p59
    %p61 = scmp.ne.s32.totalorder %s53, %s56
    %p62 = scmp.eq.s32.totalorder %s17, 0
    %p63 = por %p61, %p62
    %p64 = scmp.ne.s32.totalorder %s53, %s56
    %p65 = scmp.eq.s32.totalorder %s22, 1
    %p66 = por %p64, %p65
    %p67 = scmp.ne.s32.totalorder %s56, %s57
    %p68 = scmp.eq.s32.totalorder %s22, 0
    %p69 = por %p67, %p68
    %p70 = scmp.ne.s32.totalorder %s56, %s57
    %p71 = scmp.eq.s32.totalorder %s23, 1
    %p72 = por %p70, %p71
    %p74 = scmp.ne.s32.totalorder %s57, %s73
    %p75 = scmp.eq.s32.totalorder %s23, 0
    %p76 = por %p74, %p75
    %s77 = ssub.s32 %s17, %s24
    %p78 = scmp.eq.s32.totalorder %s77, 0
    %s80 = sadd.s32 %s79, 1
    %s81 = scalar_select %p78, %s79, %s80
    %p84 = pneg %p78
    %p85 = scmp.eq.s32.totalorder %s17, 1
    %p86 = por %p84, %p85
    %p87 = scmp.ne.s32.totalorder %s79, %s82
    %p88 = scmp.eq.s32.totalorder %s17, 0
    %p89 = por %p87, %p88
    %p90 = scmp.ne.s32.totalorder %s79, %s82
    %p91 = scmp.eq.s32.totalorder %s22, 1
    %p92 = por %p90, %p91
    %p93 = scmp.ne.s32.totalorder %s82, %s83
    %p94 = scmp.eq.s32.totalorder %s22, 0
    %p95 = por %p93, %p94
    %p96 = scmp.ne.s32.totalorder %s82, %s83
    %p97 = scmp.eq.s32.totalorder %s23, 1
    %p98 = por %p96, %p97
    %p100 = scmp.ne.s32.totalorder %s83, %s99
    %p101 = scmp.eq.s32.totalorder %s23, 0
    %p102 = por %p100, %p101
    %s104 = sadd.s32 %s103, 1
    %p107 = scmp.eq.s32.totalorder %s17, 1
    %p108 = scmp.ne.s32.totalorder %s103, %s105
    %p109 = scmp.eq.s32.totalorder %s17, 0
    %p110 = por %p108, %p109
    %p111 = scmp.ne.s32.totalorder %s103, %s105
    %p112 = scmp.eq.s32.totalorder %s22, 1
    %p113 = por %p111, %p112
    %p114 = scmp.ne.s32.totalorder %s105, %s106
    %p115 = scmp.eq.s32.totalorder %s22, 0
    %p116 = por %p114, %p115
    %p117 = scmp.ne.s32.totalorder %s105, %s106
    %p118 = scmp.eq.s32.totalorder %s23, 1
    %p119 = por %p117, %p118
    %p121 = scmp.ne.s32.totalorder %s106, %s120
    %p122 = scmp.eq.s32.totalorder %s23, 0
    %p123 = por %p121, %p122
    %s125 = sadd.s32 %s124, 1
    %p128 = scmp.eq.s32.totalorder %s17, 1
    %p129 = scmp.ne.s32.totalorder %s124, %s126
    %p130 = scmp.eq.s32.totalorder %s17, 0
    %p131 = por %p129, %p130
    %p132 = scmp.ne.s32.totalorder %s124, %s126
    %p133 = scmp.eq.s32.totalorder %s22, 1
    %p134 = por %p132, %p133
    %p135 = scmp.ne.s32.totalorder %s126, %s127
    %p136 = scmp.eq.s32.totalorder %s22, 0
    %p137 = por %p135, %p136
    %p138 = scmp.ne.s32.totalorder %s126, %s127
    %p139 = scmp.eq.s32.totalorder %s23, 1
    %p140 = por %p138, %p139
    %p142 = scmp.ne.s32.totalorder %s127, %s141
    %p143 = scmp.eq.s32.totalorder %s23, 0
    %p144 = por %p142, %p143
    %s146 = sadd.s32 %s145, 1
    %p149 = scmp.eq.s32.totalorder %s17, 1
    %p150 = scmp.ne.s32.totalorder %s145, %s147
    %p151 = scmp.eq.s32.totalorder %s17, 0
    %p152 = por %p150, %p151
    %p153 = scmp.ne.s32.totalorder %s145, %s147
    %p154 = scmp.eq.s32.totalorder %s22, 1
    %p155 = por %p153, %p154
    %p156 = scmp.ne.s32.totalorder %s147, %s148
    %p157 = scmp.eq.s32.totalorder %s22, 0
    %p158 = por %p156, %p157
    %p159 = scmp.ne.s32.totalorder %s147, %s148
    %p160 = scmp.eq.s32.totalorder %s23, 1
    %p161 = por %p159, %p160
    %p163 = scmp.ne.s32.totalorder %s148, %s162
    %p164 = scmp.eq.s32.totalorder %s23, 0
    %p165 = por %p163, %p164
    %s167 = sadd.s32 %s166, 1
    %p170 = scmp.eq.s32.totalorder %s17, 1
    %p171 = scmp.ne.s32.totalorder %s166, %s168
    %p172 = scmp.eq.s32.totalorder %s17, 0
    %p173 = por %p171, %p172
    %p174 = scmp.ne.s32.totalorder %s166, %s168
    %p175 = scmp.eq.s32.totalorder %s22, 1
    %p176 = por %p174, %p175
    %p177 = scmp.ne.s32.totalorder %s168, %s169
    %p178 = scmp.eq.s32.totalorder %s22, 0
    %p179 = por %p177, %p178
    %p180 = scmp.ne.s32.totalorder %s168, %s169
    %p181 = scmp.eq.s32.totalorder %s23, 1
    %p182 = por %p180, %p181
    %p184 = scmp.ne.s32.totalorder %s169, %s183
    %p185 = scmp.eq.s32.totalorder %s23, 0
    %p186 = por %p184, %p185
    %s188 = sadd.s32 %s187, 1
    %p191 = scmp.eq.s32.totalorder %s17, 1
    %p192 = scmp.ne.s32.totalorder %s187, %s189
    %p193 = scmp.eq.s32.totalorder %s17, 0
    %p194 = por %p192, %p193
    %p195 = scmp.ne.s32.totalorder %s187, %s189
    %p196 = scmp.eq.s32.totalorder %s22, 1
    %p197 = por %p195, %p196
    %p198 = scmp.ne.s32.totalorder %s189, %s190
    %p199 = scmp.eq.s32.totalorder %s22, 0
    %p200 = por %p198, %p199
    %p201 = scmp.ne.s32.totalorder %s189, %s190
    %p202 = scmp.eq.s32.totalorder %s23, 1
    %p203 = por %p201, %p202
    %p205 = scmp.ne.s32.totalorder %s190, %s204
    %p206 = scmp.eq.s32.totalorder %s23, 0
    %p207 = por %p205, %p206
    %s209 = sadd.s32 %s208, 1
    %p212 = scmp.eq.s32.totalorder %s17, 1
    %p213 = scmp.ne.s32.totalorder %s208, %s210
    %p214 = scmp.eq.s32.totalorder %s17, 0
    %p215 = por %p213, %p214
    %p216 = scmp.ne.s32.totalorder %s208, %s210
    %p217 = scmp.eq.s32.totalorder %s22, 1
    %p218 = por %p216, %p217
    %p219 = scmp.ne.s32.totalorder %s210, %s211
    %p220 = scmp.eq.s32.totalorder %s22, 0
    %p221 = por %p219, %p220
    %p222 = scmp.ne.s32.totalorder %s210, %s211
    %p223 = scmp.eq.s32.totalorder %s23, 1
    %p224 = por %p222, %p223
    %p226 = scmp.ne.s32.totalorder %s211, %s225
    %p227 = scmp.eq.s32.totalorder %s23, 0
    %p228 = por %p226, %p227
    %s230 = sadd.s32 %s229, 1
    %p233 = scmp.eq.s32.totalorder %s17, 1
    %p234 = scmp.ne.s32.totalorder %s229, %s231
    %p235 = scmp.eq.s32.totalorder %s17, 0
    %p236 = por %p234, %p235
    %p237 = scmp.ne.s32.totalorder %s229, %s231
    %p238 = scmp.eq.s32.totalorder %s22, 1
    %p239 = por %p237, %p238
    %p240 = scmp.ne.s32.totalorder %s231, %s232
    %p241 = scmp.eq.s32.totalorder %s22, 0
    %p242 = por %p240, %p241
    %p243 = scmp.ne.s32.totalorder %s231, %s232
    %p244 = scmp.eq.s32.totalorder %s23, 1
    %p245 = por %p243, %p244
    %p247 = scmp.ne.s32.totalorder %s232, %s246
    %p248 = scmp.eq.s32.totalorder %s23, 0
    %p249 = por %p247, %p248
    %s251 = sadd.s32 %s250, 1
    %p254 = scmp.eq.s32.totalorder %s17, 1
    %p255 = scmp.ne.s32.totalorder %s250, %s252
    %p256 = scmp.eq.s32.totalorder %s17, 0
    %p257 = por %p255, %p256
    %p258 = scmp.ne.s32.totalorder %s250, %s252
    %p259 = scmp.eq.s32.totalorder %s22, 1
    %p260 = por %p258, %p259
    %p261 = scmp.ne.s32.totalorder %s252, %s253
    %p262 = scmp.eq.s32.totalorder %s22, 0
    %p263 = por %p261, %p262
    %p264 = scmp.ne.s32.totalorder %s252, %s253
    %p265 = scmp.eq.s32.totalorder %s23, 1
    %p266 = por %p264, %p265
    %p268 = scmp.ne.s32.totalorder %s253, %s267
    %p269 = scmp.eq.s32.totalorder %s23, 0
    %p270 = por %p268, %p269
    %s271 = ssub.s32 %s17, %s24
    %p272 = scmp.eq.s32.totalorder %s271, 0
    %s274 = sadd.s32 %s273, 1
    %s275 = scalar_select %p272, %s273, %s274
    %p278 = pneg %p272
    %p279 = scmp.eq.s32.totalorder %s17, 1
    %p280 = por %p278, %p279
    %p281 = scmp.ne.s32.totalorder %s273, %s276
    %p282 = scmp.eq.s32.totalorder %s17, 0
    %p283 = por %p281, %p282
    %p284 = scmp.ne.s32.totalorder %s273, %s276
    %p285 = scmp.eq.s32.totalorder %s22, 1
    %p286 = por %p284, %p285
    %p287 = scmp.ne.s32.totalorder %s276, %s277
    %p288 = scmp.eq.s32.totalorder %s22, 0
    %p289 = por %p287, %p288
    %p290 = scmp.ne.s32.totalorder %s276, %s277
    %p291 = scmp.eq.s32.totalorder %s23, 1
    %p292 = por %p290, %p291
    %p294 = scmp.ne.s32.totalorder %s277, %s293
    %p295 = scmp.eq.s32.totalorder %s23, 0
    %p296 = por %p294, %p295
    %p297 = scmp.le.s32.totalorder 1, %s17
    %p298 = scmp.lt.s32.totalorder %s17, 3
    %p299 = pnand %p297, %p298
    %p300 = pneg %p299
    // Predicated region
    $region9: #{transformer_decoder_forward.8} parent=5 // pred_check
      _
    $region10: #{transformer_decoder_forward.8} parent=5 // pred_check_branch
      %302 = sbr.rel (%p299) target = $region12
    $region11: #{transformer_decoder_forward.8} parent=5 // pred_region
      %s303 = ssub.s32 %s17, 1
      // Predicated region
      $region13: #{transformer_decoder_forward.8} parent=11 // pred_check
        %p304 = pneg %p116
      $region14: #{transformer_decoder_forward.8} parent=11 // pred_check_branch
        %306 = sbr.rel (%p304) target = $region16
      $region15: #{transformer_decoder_forward.8} parent=11 // pred_region
        _
      $region16: #{transformer_decoder_forward.8} parent=11 // pred_fallthru
        _
      // Predicated region
      $region17: #{transformer_decoder_forward.8} parent=11 // pred_check
        %p307 = pneg %p137
      $region18: #{transformer_decoder_forward.8} parent=11 // pred_check_branch
        %309 = sbr.rel (%p307) target = $region20
      $region19: #{transformer_decoder_forward.8} parent=11 // pred_region
        _
      $region20: #{transformer_decoder_forward.8} parent=11 // pred_fallthru
        _
      // Predicated region
      $region21: #{transformer_decoder_forward.8} parent=11 // pred_check
        %p310 = pneg %p158
      $region22: #{transformer_decoder_forward.8} parent=11 // pred_check_branch
        %312 = sbr.rel (%p310) target = $region24
      $region23: #{transformer_decoder_forward.8} parent=11 // pred_region
        _
      $region24: #{transformer_decoder_forward.8} parent=11 // pred_fallthru
        _
      // Predicated region
      $region25: #{transformer_decoder_forward.8} parent=11 // pred_check
        %p313 = pneg %p179
      $region26: #{transformer_decoder_forward.8} parent=11 // pred_check_branch
        %315 = sbr.rel (%p313) target = $region28
      $region27: #{transformer_decoder_forward.8} parent=11 // pred_region
        _
      $region28: #{transformer_decoder_forward.8} parent=11 // pred_fallthru
        _
      // Predicated region
      $region29: #{transformer_decoder_forward.8} parent=11 // pred_check
        %p316 = pneg %p200
      $region30: #{transformer_decoder_forward.8} parent=11 // pred_check_branch
        %318 = sbr.rel (%p316) target = $region32
      $region31: #{transformer_decoder_forward.8} parent=11 // pred_region
        _
      $region32: #{transformer_decoder_forward.8} parent=11 // pred_fallthru
        _
      // Predicated region
      $region33: #{transformer_decoder_forward.8} parent=11 // pred_check
        %p319 = pneg %p221
      $region34: #{transformer_decoder_forward.8} parent=11 // pred_check_branch
        %321 = sbr.rel (%p319) target = $region36
      $region35: #{transformer_decoder_forward.8} parent=11 // pred_region
        _
      $region36: #{transformer_decoder_forward.8} parent=11 // pred_fallthru
        _
      // Predicated region
      $region37: #{transformer_decoder_forward.8} parent=11 // pred_check
        %p322 = pneg %p242
      $region38: #{transformer_decoder_forward.8} parent=11 // pred_check_branch
        %324 = sbr.rel (%p322) target = $region40
      $region39: #{transformer_decoder_forward.8} parent=11 // pred_region
        _
      $region40: #{transformer_decoder_forward.8} parent=11 // pred_fallthru
        _
      // Predicated region
      $region41: #{transformer_decoder_forward.8} parent=11 // pred_check
        %p325 = pneg %p263
      $region42: #{transformer_decoder_forward.8} parent=11 // pred_check_branch
        %327 = sbr.rel (%p325) target = $region44
      $region43: #{transformer_decoder_forward.8} parent=11 // pred_region
        _
      $region44: #{transformer_decoder_forward.8} parent=11 // pred_fallthru
        _
    $region12: #{transformer_decoder_forward.8} parent=5 // pred_fallthru
      _
    %p328 = scmp.lt.s32.totalorder %s17, 2
    // Predicated region
    $region45: #{transformer_decoder_forward.8} parent=5 // pred_check
      %p329 = pneg %p328
    $region46: #{transformer_decoder_forward.8} parent=5 // pred_check_branch
      %331 = sbr.rel (%p329) target = $region48
    $region47: #{transformer_decoder_forward.8} parent=5 // pred_region
      // Predicated region
      $region49: #{transformer_decoder_forward.8} parent=47 // pred_check
        %p332 = pneg %p37
      $region50: #{transformer_decoder_forward.8} parent=47 // pred_check_branch
        %334 = sbr.rel (%p332) target = $region52
      $region51: #{transformer_decoder_forward.8} parent=47 // pred_region
        %p335 = scmp.lt.s32.totalorder %s17, 1
        %s336 = scalar_select %p335, %s17, 1
        %s337 = smul.addr %s336, 2
        %s338 = smul.addr %s337, 4
        %s339 = scalar_lea.vmem %s0, %s338
      $region52: #{transformer_decoder_forward.8} parent=47 // pred_fallthru
        _
      // Predicated region
      $region53: #{transformer_decoder_forward.8} parent=47 // pred_check
        %p340 = pneg %p63
      $region54: #{transformer_decoder_forward.8} parent=47 // pred_check_branch
        %342 = sbr.rel (%p340) target = $region56
      $region55: #{transformer_decoder_forward.8} parent=47 // pred_region
        %p343 = scmp.lt.s32.totalorder %s17, 1
        %s344 = scalar_select %p343, %s17, 1
        %s345 = smul.addr %s344, 3
        %s346 = smul.addr %s345, 4
        %s347 = scalar_lea.vmem %s1, %s346
      $region56: #{transformer_decoder_forward.8} parent=47 // pred_fallthru
        _
      // Predicated region
      $region57: #{transformer_decoder_forward.8} parent=47 // pred_check
        %p348 = pneg %p89
      $region58: #{transformer_decoder_forward.8} parent=47 // pred_check_branch
        %350 = sbr.rel (%p348) target = $region60
      $region59: #{transformer_decoder_forward.8} parent=47 // pred_region
        %p351 = scmp.lt.s32.totalorder %s17, 1
        %s352 = scalar_select %p351, %s17, 1
        %s353 = scalar_lea.vmem %s2, %s352
      $region60: #{transformer_decoder_forward.8} parent=47 // pred_fallthru
        _
    $region48: #{transformer_decoder_forward.8} parent=5 // pred_fallthru
      _
    %p354 = scmp.le.s32.totalorder 1, %s17
    %p355 = scmp.lt.s32.totalorder %s17, 3
    %p356 = pnand %p354, %p355
    %p357 = pneg %p356
    // Predicated region
    $region61: #{transformer_decoder_forward.8} parent=5 // pred_check
      _
    $region62: #{transformer_decoder_forward.8} parent=5 // pred_check_branch
      %359 = sbr.rel (%p356) target = $region64
    $region63: #{transformer_decoder_forward.8} parent=5 // pred_region
      %s360 = ssub.s32 %s17, 1
      %p361 = scmp.lt.s32.totalorder %s22, 1
      %s362 = scalar_select %p361, %s22, 1
      %s363 = smul.addr %s362, 2
      %s364 = smul.addr %s363, 4
      %s365 = scalar_lea.vmem %s0, %s364
      %p366 = pneg %p43
      %p367 = pneg %p40
      %p368 = scmp.lt.s32.totalorder %s22, 1
      %s369 = scalar_select %p368, %s22, 1
      %s370 = smul.addr %s369, 3
      %s371 = smul.addr %s370, 4
      %s372 = scalar_lea.vmem %s1, %s371
      %p373 = pneg %p69
      %p374 = pneg %p66
      %p375 = scmp.lt.s32.totalorder %s22, 1
      %s376 = scalar_select %p375, %s22, 1
      %s377 = scalar_lea.vmem %s2, %s376
      %p378 = pneg %p95
      %p379 = pneg %p92
      %p380 = pneg %p116
      %p381 = pneg %p113
      %p382 = pneg %p137
      %p383 = pneg %p134
      %p384 = pneg %p158
      %p385 = pneg %p155
      %p386 = pneg %p179
      %p387 = pneg %p176
      %p388 = pneg %p200
      %p389 = pneg %p197
      %p390 = pneg %p221
      %p391 = pneg %p218
      %p392 = pneg %p242
      %p393 = pneg %p239
      %p394 = pneg %p263
      %p395 = pneg %p260
      %p396 = pneg %p289
      %p397 = pneg %p286
      %p398 = scmp.lt.s32.totalorder %s22, 1
      %s399 = scalar_select %p398, %s22, 1
      %s400 = smul.addr %s399, 2
      %s401 = smul.addr %s400, 4
      %s402 = scalar_lea.vmem %s11, %s401
      %p403 = scmp.lt.s32.totalorder %s22, 1
      %s404 = scalar_select %p403, %s22, 1
      %s405 = smul.addr %s404, 2
      %s406 = smul.addr %s405, 4
      %s407 = scalar_lea.vmem %s0, %s406
      %p408 = scmp.lt.s32.totalorder %s22, 1
      %s409 = scalar_select %p408, %s22, 1
      %s410 = smul.addr %s409, 3
      %s411 = smul.addr %s410, 4
      %s412 = scalar_lea.vmem %s1, %s411
      %p413 = scmp.lt.s32.totalorder %s22, 1
      %s414 = scalar_select %p413, %s22, 1
      %s415 = scalar_lea.vmem %s2, %s414
      %p416 = scmp.lt.s32.totalorder %s22, 1
      %s417 = scalar_select %p416, %s22, 1
      %s418 = smul.addr %s417, 2
      %s419 = smul.addr %s418, 4
      %s420 = scalar_lea.vmem %s11, %s419
      %v422 = vld [vmem:[%s407] sm:$0xf]
      %v423 = vld [vmem:[%s407 + $0x4] sm:$0xf]
      %v424 = vld [vmem:[%s412] sm:$0xf]
      %v425 = vld [vmem:[%s412 + $0x4] sm:$0xf]
      %v426 = vld [vmem:[%s412 + $0x8] sm:$0xf]
      %v427 = vld [vmem:[%s3] sm:$0xf]
      %v428 = vld [vmem:[%s3 + $0x4] sm:$0xf]
      %v429 = vld [vmem:[%s3 + $0x8] sm:$0xf]
      %v430 = vld [vmem:[%s3 + $0xc] sm:$0xf]
      %v431 = vld [vmem:[%s3 + $0x10] sm:$0xf]
      %v432 = vld [vmem:[%s3 + $0x14] sm:$0xf]
      %v433 = vld [vmem:[%s3 + $0x18] sm:$0xf]
      %v434 = vld [vmem:[%s3 + $0x1c] sm:$0xf]
      %v435 = vld [vmem:[%s3 + $0x20] sm:$0xf]
      %v436 = vld [vmem:[%s3 + $0x24] sm:$0xf]
      %v437 = vld [vmem:[%s3 + $0x28] sm:$0xf]
      %v438 = vld [vmem:[%s3 + $0x2c] sm:$0xf]
      %v439 = vld [vmem:[%s3 + $0x30] sm:$0xf]
      %v440 = vld [vmem:[%s3 + $0x34] sm:$0xf]
      %v441 = vld [vmem:[%s3 + $0x38] sm:$0xf]
      %v442 = vld [vmem:[%s3 + $0x3c] sm:$0xf]
      %v443 = vld [vmem:[%s4] sm:$0x1]
      %v445 = vlaneseq
      %v446 = vshrl.u32 %v445, 7
      %v447 = vsub.s32 0, %v446
      %v448 = vrot.slane %v443, %v447
      %v452 = vunpack.c.l.b16 %v422
      %v453 = vunpack.c.l.b16 %v423
      %v454 = vpack.c.b16 %v453, %v452
      %v472 = vunpack.c.l.b16 %v427
      %v473 = vunpack.c.l.b16 %v428
      %v474 = vunpack.c.l.b16 %v429
      %v475 = vunpack.c.l.b16 %v430
      %v476 = vunpack.c.l.b16 %v431
      %v477 = vunpack.c.l.b16 %v432
      %v478 = vunpack.c.l.b16 %v433
      %v479 = vunpack.c.l.b16 %v434
      %v480 = vunpack.c.l.b16 %v435
      %v481 = vunpack.c.l.b16 %v436
      %v482 = vunpack.c.l.b16 %v437
      %v483 = vunpack.c.l.b16 %v438
      %v484 = vunpack.c.l.b16 %v439
      %v485 = vunpack.c.l.b16 %v440
      %v486 = vunpack.c.l.b16 %v441
      %v487 = vunpack.c.l.b16 %v442
      %v488 = vpack.c.b16 %v473, %v472
      %v489 = vpack.c.b16 %v475, %v474
      %v490 = vpack.c.b16 %v477, %v476
      %v491 = vpack.c.b16 %v479, %v478
      %v492 = vpack.c.b16 %v481, %v480
      %v493 = vpack.c.b16 %v483, %v482
      %v494 = vpack.c.b16 %v485, %v484
      %v495 = vpack.c.b16 %v487, %v486
      %504 = vmatprep.subr.bf16.mxu0 0
      %505 = vmatpush1.bf16.msra.mxu0 %v488
      %506 = vmatprep.subr.bf16.mxu0 0
      %507 = vmatpush1.bf16.msra.mxu0 %v489
      %508 = vmatprep.subr.bf16.mxu0 0
      %509 = vmatpush1.bf16.msra.mxu0 %v490
      %510 = vmatprep.subr.bf16.mxu0 0
      %511 = vmatpush1.bf16.msra.mxu0 %v491
      %512 = vmatprep.subr.bf16.mxu0 0
      %513 = vmatpush1.bf16.msra.mxu0 %v492
      %514 = vmatprep.subr.bf16.mxu0 0
      %515 = vmatpush1.bf16.msra.mxu0 %v493
      %516 = vmatprep.subr.bf16.mxu0 0
      %517 = vmatpush1.bf16.msra.mxu0 %v494
      %518 = vmatprep.subr.bf16.mxu0 0
      %519 = vmatpush1.bf16.msra.mxu0 %v495
      %520 = vmatprep.subr.bf16.mxu0 0
      %521 = vmatpush1.bf16.msra.mxu0 0
      %522 = vmatprep.subr.bf16.mxu0 0
      %523 = vmatpush1.bf16.msra.mxu0 0
      %524 = vmatprep.subr.bf16.mxu0 0
      %525 = vmatpush1.bf16.msra.mxu0 0
      %526 = vmatprep.subr.bf16.mxu0 0
      %527 = vmatpush1.bf16.msra.mxu0 0
      %528 = vmatprep.subr.bf16.mxu0 0
      %529 = vmatpush1.bf16.msra.mxu0 0
      %530 = vmatprep.subr.bf16.mxu0 0
      %531 = vmatpush1.bf16.msra.mxu0 0
      %532 = vmatprep.subr.bf16.mxu0 0
      %533 = vmatpush1.bf16.msra.mxu0 0
      %534 = vmatprep.subr.bf16.mxu0 0
      %535 = vmatpush1.bf16.msra.mxu0 0
      %536 = vmatprep.mubr.bf16.mxu0 0
      %537 = vmatmul.mubr.bf16.gmra.mrb[0].mxu0 %v454
      %v538 = vpop.f32.mrb[0].mxu0
      %v539 = vadd.f32 %v448, %v538
      %v540 = vpop.f32.mrb[0].mxu0
      %v541 = vpop.f32.mrb[0].mxu0
      %v542 = vadd.f32 %v448, %v541
      %v543 = vpop.f32.mrb[0].mxu0
      %544 = vdwg.mxu0
      %v545 = vld [vmem:[%s5] sm:$0xff]
      %v546 = vld [vmem:[%s5 + $0x8] sm:$0xff]
      %v547 = vld [vmem:[%s5 + $0x10] sm:$0xff]
      %v548 = vld [vmem:[%s5 + $0x18] sm:$0xff]
      %v549 = vld [vmem:[%s5 + $0x20] sm:$0xff]
      %v550 = vld [vmem:[%s5 + $0x28] sm:$0xff]
      %v551 = vld [vmem:[%s5 + $0x30] sm:$0xff]
      %v552 = vld [vmem:[%s5 + $0x38] sm:$0xff]
      %v553 = vld [vmem:[%s5 + $0x40] sm:$0xff]
      %v554 = vld [vmem:[%s5 + $0x48] sm:$0xff]
      %v555 = vld [vmem:[%s5 + $0x50] sm:$0xff]
      %v556 = vld [vmem:[%s5 + $0x58] sm:$0xff]
      %v557 = vld [vmem:[%s5 + $0x60] sm:$0xff]
      %v558 = vld [vmem:[%s5 + $0x68] sm:$0xff]
      %v559 = vld [vmem:[%s5 + $0x70] sm:$0xff]
      %v560 = vld [vmem:[%s5 + $0x78] sm:$0xff]
      %v561 = vld [vmem:[%s6] sm:$0x3]
      %v563 = vlaneseq
      %v564 = vshrl.u32 %v563, 7
      %v565 = vsub.s32 0, %v564
      %v566 = vrot.slane %v561, %v565
      %v567 = vlaneseq
      %v568 = vshrl.u32 %v567, 7
      %v569 = vsub.s32 1, %v568
      %v570 = vrot.slane %v561, %v569
      %v576 = vunpack.c.l.b16 %v424
      %v577 = vunpack.c.l.b16 %v425
      %v578 = vunpack.c.l.b16 %v426
      %v579 = vpack.c.b16 %v577, %v576
      %v580 = vpack.c.b16 %v578, %v578
      %v599 = vunpack.c.l.b16 %v545
      %v600 = vunpack.c.h.b16 %v545
      %v601 = vunpack.c.l.b16 %v546
      %v602 = vunpack.c.h.b16 %v546
      %v603 = vunpack.c.l.b16 %v547
      %v604 = vunpack.c.h.b16 %v547
      %v605 = vunpack.c.l.b16 %v548
      %v606 = vunpack.c.h.b16 %v548
      %v607 = vunpack.c.l.b16 %v549
      %v608 = vunpack.c.h.b16 %v549
      %v609 = vunpack.c.l.b16 %v550
      %v610 = vunpack.c.h.b16 %v550
      %v611 = vunpack.c.l.b16 %v551
      %v612 = vunpack.c.h.b16 %v551
      %v613 = vunpack.c.l.b16 %v552
      %v614 = vunpack.c.h.b16 %v552
      %v615 = vunpack.c.l.b16 %v553
      %v616 = vunpack.c.h.b16 %v553
      %v617 = vunpack.c.l.b16 %v554
      %v618 = vunpack.c.h.b16 %v554
      %v619 = vunpack.c.l.b16 %v555
      %v620 = vunpack.c.h.b16 %v555
      %v621 = vunpack.c.l.b16 %v556
      %v622 = vunpack.c.h.b16 %v556
      %v623 = vunpack.c.l.b16 %v557
      %v624 = vunpack.c.h.b16 %v557
      %v625 = vunpack.c.l.b16 %v558
      %v626 = vunpack.c.h.b16 %v558
      %v627 = vunpack.c.l.b16 %v559
      %v628 = vunpack.c.h.b16 %v559
      %v629 = vunpack.c.l.b16 %v560
      %v630 = vunpack.c.h.b16 %v560
      %v631 = vpack.c.b16 %v601, %v599
      %v632 = vpack.c.b16 %v602, %v600
      %v633 = vpack.c.b16 %v605, %v603
      %v634 = vpack.c.b16 %v606, %v604
      %v635 = vpack.c.b16 %v609, %v607
      %v636 = vpack.c.b16 %v610, %v608
      %v637 = vpack.c.b16 %v613, %v611
      %v638 = vpack.c.b16 %v614, %v612
      %v639 = vpack.c.b16 %v617, %v615
      %v640 = vpack.c.b16 %v618, %v616
      %v641 = vpack.c.b16 %v621, %v619
      %v642 = vpack.c.b16 %v622, %v620
      %v643 = vpack.c.b16 %v625, %v623
      %v644 = vpack.c.b16 %v626, %v624
      %v645 = vpack.c.b16 %v629, %v627
      %v646 = vpack.c.b16 %v630, %v628
      %663 = vmatprep.subr.bf16.mxu0 %v632
      %664 = vmatpush1.bf16.msra.mxu0 %v631
      %665 = vmatprep.subr.bf16.mxu0 %v634
      %666 = vmatpush1.bf16.msra.mxu0 %v633
      %667 = vmatprep.subr.bf16.mxu0 %v636
      %668 = vmatpush1.bf16.msra.mxu0 %v635
      %669 = vmatprep.subr.bf16.mxu0 %v638
      %670 = vmatpush1.bf16.msra.mxu0 %v637
      %671 = vmatprep.subr.bf16.mxu0 %v640
      %672 = vmatpush1.bf16.msra.mxu0 %v639
      %673 = vmatprep.subr.bf16.mxu0 %v642
      %674 = vmatpush1.bf16.msra.mxu0 %v641
      %675 = vmatprep.subr.bf16.mxu0 %v644
      %676 = vmatpush1.bf16.msra.mxu0 %v643
      %677 = vmatprep.subr.bf16.mxu0 %v646
      %678 = vmatpush1.bf16.msra.mxu0 %v645
      %679 = vmatprep.subr.bf16.mxu0 0
      %680 = vmatpush1.bf16.msra.mxu0 0
      %681 = vmatprep.subr.bf16.mxu0 0
      %682 = vmatpush1.bf16.msra.mxu0 0
      %683 = vmatprep.subr.bf16.mxu0 0
      %684 = vmatpush1.bf16.msra.mxu0 0
      %685 = vmatprep.subr.bf16.mxu0 0
      %686 = vmatpush1.bf16.msra.mxu0 0
      %687 = vmatprep.subr.bf16.mxu0 0
      %688 = vmatpush1.bf16.msra.mxu0 0
      %689 = vmatprep.subr.bf16.mxu0 0
      %690 = vmatpush1.bf16.msra.mxu0 0
      %691 = vmatprep.subr.bf16.mxu0 0
      %692 = vmatpush1.bf16.msra.mxu0 0
      %693 = vmatprep.subr.bf16.mxu0 0
      %694 = vmatpush1.bf16.msra.mxu0 0
      %695 = vmatprep.mubr.bf16.mxu0 0
      %696 = vmatmul.mubr.bf16.gmra.mrb[0].mxu0 %v579
      %v697 = vpop.f32.mrb[0].mxu0
      %v698 = vadd.f32 %v566, %v697
      %v699 = vpop.f32.mrb[0].mxu0
      %v700 = vadd.f32 %v570, %v699
      %v701 = vpop.f32.mrb[0].mxu0
      %v702 = vadd.f32 %v566, %v701
      %v703 = vpop.f32.mrb[0].mxu0
      %v704 = vadd.f32 %v570, %v703
      %705 = vmatprep.mubr.bf16.mxu0 0
      %706 = vmatmul.mubr.bf16.gmra.mrb[0].mxu0 %v580
      %v707 = vpop.f32.mrb[0].mxu0
      %v708 = vadd.f32 %v566, %v707
      %v709 = vpop.f32.mrb[0].mxu0
      %v710 = vadd.f32 %v570, %v709
      %v711 = vpop.f32.mrb[0].mxu0
      %v712 = vpop.f32.mrb[0].mxu0
      %713 = vdwg.mxu0
      %v714 = vld [vmem:[%s415] sm:$0x1]
      %v715 = vmul.f32 %v539, 0.17677669
      %v716 = vmul.f32 %v542, 0.17677669
      %v717 = vpack.c.bf16 %v716, %v715
      %v718 = vpack.c.bf16 %v702, %v698
      %v719 = vpack.c.bf16 %v708, %v708
      %v720 = vpack.c.bf16 %v704, %v700
      %v721 = vpack.c.bf16 %v710, %v710
      %v723 = vlaneseq
      %v724 = vshrl.u32 %v723, 7
      %v725 = vsub.s32 0, %v724
      %v726 = vrot.slane %v714, %v725
      %vm728 = vcmask 261120
      %v730 = vsel %vm728, %v717, 0
      %v733 = vsel %vm728, %v718, 0
      %v736 = vsel %vm728, %v719, 0
      %738 = vmatprep.subr.bf16.mxu0 0
      %739 = vmatpush1.bf16.xpose.msra.mxu0 %v733
      %740 = vmatprep.subr.bf16.mxu0 0
      %741 = vmatpush1.bf16.xpose.msra.mxu0 %v736
      %742 = vmatprep.subr.bf16.mxu0 0
      %743 = vmatpush1.bf16.xpose.msra.mxu0 0
      %744 = vmatprep.subr.bf16.mxu0 0
      %745 = vmatpush1.bf16.xpose.msra.mxu0 0
      %746 = vmatprep.subr.bf16.mxu0 0
      %747 = vmatpush1.bf16.xpose.msra.mxu0 0
      %748 = vmatprep.subr.bf16.mxu0 0
      %749 = vmatpush1.bf16.xpose.msra.mxu0 0
      %750 = vmatprep.subr.bf16.mxu0 0
      %751 = vmatpush1.bf16.xpose.msra.mxu0 0
      %752 = vmatprep.subr.bf16.mxu0 0
      %753 = vmatpush1.bf16.xpose.msra.mxu0 0
      %754 = vmatprep.subr.bf16.mxu0 0
      %755 = vmatpush1.bf16.xpose.msra.mxu0 0
      %756 = vmatprep.subr.bf16.mxu0 0
      %757 = vmatpush1.bf16.xpose.msra.mxu0 0
      %758 = vmatprep.subr.bf16.mxu0 0
      %759 = vmatpush1.bf16.xpose.msra.mxu0 0
      %760 = vmatprep.subr.bf16.mxu0 0
      %761 = vmatpush1.bf16.xpose.msra.mxu0 0
      %762 = vmatprep.subr.bf16.mxu0 0
      %763 = vmatpush1.bf16.xpose.msra.mxu0 0
      %764 = vmatprep.subr.bf16.mxu0 0
      %765 = vmatpush1.bf16.xpose.msra.mxu0 0
      %766 = vmatprep.subr.bf16.mxu0 0
      %767 = vmatpush1.bf16.xpose.msra.mxu0 0
      %768 = vmatprep.subr.bf16.mxu0 0
      %769 = vmatpush1.bf16.xpose.msra.mxu0 0
      %770 = vmatprep.mubr.bf16.mxu0 0
      %771 = vmatmul.mubr.bf16.gmra.mrb[0].mxu0 %v730
      %v772 = vpop.f32.mrb[0].mxu0
      %v773 = vadd.f32 %v726, %v772
      %v774 = vpop.f32.mrb[0].mxu0
      %v775 = vpop.f32.mrb[0].mxu0
      %v776 = vadd.f32 %v726, %v775
      %v777 = vpop.f32.mrb[0].mxu0
      %778 = vdwg.mxu0
      %vm779 = vcmask 195584
      %v780 = vsel %vm779, %v773, -inf
      %781 = vmax.xlane.f32.xlu0 %v780
      %v782 = vpop.xlane.xlu0 %781
      %v783 = vsel %vm779, %v776, -inf
      %784 = vmax.xlane.f32.xlu0 %v783
      %v785 = vpop.xlane.xlu0 %784
      %v786 = vsub.f32 %v773, %v782
      %v787 = vsub.f32 %v776, %v785
      %v788 = vmul.f32 %v786, 1.442695
      %v789 = vpow.pop %v788
      %v790 = vmul.f32 %v787, 1.442695
      %v791 = vpow.pop %v790
      %v792 = vsel %vm779, %v789, 0.0
      %793 = vadd.xlane.f32.xlu0 %v792
      %v794 = vpop.xlane.xlu0 %793
      %v795 = vsel %vm779, %v791, 0.0
      %796 = vadd.xlane.f32.xlu0 %v795
      %v797 = vpop.xlane.xlu0 %796
      %v798 = vrcp.pop %v794
      %v799 = vrcp.pop %v797
      %v800 = vmul.f32 %v789, %v798
      %v801 = vmul.f32 %v791, %v799
      %v802 = vpack.c.bf16 %v801, %v800
      %v804 = vsel %vm779, %v802, 0
      %vm806 = vcmask 1043456
      %v808 = vsel %vm806, %v721, 0
      %810 = vmatprep.subr.bf16.mxu0 0
      %811 = vmatpush1.bf16.msra.mxu0 %v720
      %812 = vmatprep.subr.bf16.mxu0 0
      %813 = vmatpush1.bf16.msra.mxu0 %v808
      %814 = vmatprep.subr.bf16.mxu0 0
      %815 = vmatpush1.bf16.msra.mxu0 0
      %816 = vmatprep.subr.bf16.mxu0 0
      %817 = vmatpush1.bf16.msra.mxu0 0
      %818 = vmatprep.subr.bf16.mxu0 0
      %819 = vmatpush1.bf16.msra.mxu0 0
      %820 = vmatprep.subr.bf16.mxu0 0
      %821 = vmatpush1.bf16.msra.mxu0 0
      %822 = vmatprep.subr.bf16.mxu0 0
      %823 = vmatpush1.bf16.msra.mxu0 0
      %824 = vmatprep.subr.bf16.mxu0 0
      %825 = vmatpush1.bf16.msra.mxu0 0
      %826 = vmatprep.subr.bf16.mxu0 0
      %827 = vmatpush1.bf16.msra.mxu0 0
      %828 = vmatprep.subr.bf16.mxu0 0
      %829 = vmatpush1.bf16.msra.mxu0 0
      %830 = vmatprep.subr.bf16.mxu0 0
      %831 = vmatpush1.bf16.msra.mxu0 0
      %832 = vmatprep.subr.bf16.mxu0 0
      %833 = vmatpush1.bf16.msra.mxu0 0
      %834 = vmatprep.subr.bf16.mxu0 0
      %835 = vmatpush1.bf16.msra.mxu0 0
      %836 = vmatprep.subr.bf16.mxu0 0
      %837 = vmatpush1.bf16.msra.mxu0 0
      %838 = vmatprep.subr.bf16.mxu0 0
      %839 = vmatpush1.bf16.msra.mxu0 0
      %840 = vmatprep.subr.bf16.mxu0 0
      %841 = vmatpush1.bf16.msra.mxu0 0
      %842 = vmatprep.mubr.bf16.mxu0 0
      %843 = vmatmul.mubr.bf16.gmra.mrb[0].mxu0 %v804
      %v844 = vpop.f32.mrb[0].mxu0
      %v845 = vadd.f32 0.0, %v844
      %v846 = vpop.f32.mrb[0].mxu0
      %v847 = vpop.f32.mrb[0].mxu0
      %v848 = vadd.f32 0.0, %v847
      %v849 = vpop.f32.mrb[0].mxu0
      %850 = vdwg.mxu0
      %v851 = vpack.c.bf16 %v848, %v845
      %v852 = vld [vmem:[%s7] sm:$0xf]
      %v853 = vld [vmem:[%s7 + $0x4] sm:$0xf]
      %v854 = vld [vmem:[%s7 + $0x8] sm:$0xf]
      %v855 = vld [vmem:[%s7 + $0xc] sm:$0xf]
      %857 = vrot.lane.b32.xlu0 %v717, 96
      %v858 = vpop.permute.xlu0 %857
      %861 = vrot.lane.b32.xlu0 %v718, 96
      %v862 = vpop.permute.xlu0 %861
      %863 = vrot.lane.b32.xlu0 %v719, 96
      %v864 = vpop.permute.xlu0 %863
      %v866 = vsel %vm728, %v858, 0
      %v869 = vsel %vm728, %v862, 0
      %v872 = vsel %vm728, %v864, 0
      %874 = vmatprep.subr.bf16.mxu0 0
      %875 = vmatpush1.bf16.xpose.msra.mxu0 %v869
      %876 = vmatprep.subr.bf16.mxu0 0
      %877 = vmatpush1.bf16.xpose.msra.mxu0 %v872
      %878 = vmatprep.subr.bf16.mxu0 0
      %879 = vmatpush1.bf16.xpose.msra.mxu0 0
      %880 = vmatprep.subr.bf16.mxu0 0
      %881 = vmatpush1.bf16.xpose.msra.mxu0 0
      %882 = vmatprep.subr.bf16.mxu0 0
      %883 = vmatpush1.bf16.xpose.msra.mxu0 0
      %884 = vmatprep.subr.bf16.mxu0 0
      %885 = vmatpush1.bf16.xpose.msra.mxu0 0
      %886 = vmatprep.subr.bf16.mxu0 0
      %887 = vmatpush1.bf16.xpose.msra.mxu0 0
      %888 = vmatprep.subr.bf16.mxu0 0
      %889 = vmatpush1.bf16.xpose.msra.mxu0 0
      %890 = vmatprep.subr.bf16.mxu0 0
      %891 = vmatpush1.bf16.xpose.msra.mxu0 0
      %892 = vmatprep.subr.bf16.mxu0 0
      %893 = vmatpush1.bf16.xpose.msra.mxu0 0
      %894 = vmatprep.subr.bf16.mxu0 0
      %895 = vmatpush1.bf16.xpose.msra.mxu0 0
      %896 = vmatprep.subr.bf16.mxu0 0
      %897 = vmatpush1.bf16.xpose.msra.mxu0 0
      %898 = vmatprep.subr.bf16.mxu0 0
      %899 = vmatpush1.bf16.xpose.msra.mxu0 0
      %900 = vmatprep.subr.bf16.mxu0 0
      %901 = vmatpush1.bf16.xpose.msra.mxu0 0
      %902 = vmatprep.subr.bf16.mxu0 0
      %903 = vmatpush1.bf16.xpose.msra.mxu0 0
      %904 = vmatprep.subr.bf16.mxu0 0
      %905 = vmatpush1.bf16.xpose.msra.mxu0 0
      %906 = vmatprep.mubr.bf16.mxu0 0
      %907 = vmatmul.mubr.bf16.gmra.mrb[0].mxu0 %v866
      %v908 = vpop.f32.mrb[0].mxu0
      %v909 = vadd.f32 %v726, %v908
      %v910 = vpop.f32.mrb[0].mxu0
      %v911 = vpop.f32.mrb[0].mxu0
      %v912 = vadd.f32 %v726, %v911
      %v913 = vpop.f32.mrb[0].mxu0
      %914 = vdwg.mxu0
      %v915 = vsel %vm779, %v909, -inf
      %916 = vmax.xlane.f32.xlu0 %v915
      %v917 = vpop.xlane.xlu0 %916
      %v918 = vsel %vm779, %v912, -inf
      %919 = vmax.xlane.f32.xlu0 %v918
      %v920 = vpop.xlane.xlu0 %919
      %v921 = vsub.f32 %v909, %v917
      %v922 = vsub.f32 %v912, %v920
      %v923 = vmul.f32 %v921, 1.442695
      %v924 = vpow.pop %v923
      %v925 = vmul.f32 %v922, 1.442695
      %v926 = vpow.pop %v925
      %v927 = vsel %vm779, %v924, 0.0
      %928 = vadd.xlane.f32.xlu0 %v927
      %v929 = vpop.xlane.xlu0 %928
      %v930 = vsel %vm779, %v926, 0.0
      %931 = vadd.xlane.f32.xlu0 %v930
      %v932 = vpop.xlane.xlu0 %931
      %v933 = vrcp.pop %v929
      %v934 = vrcp.pop %v932
      %v935 = vmul.f32 %v924, %v933
      %v936 = vmul.f32 %v926, %v934
      %v937 = vpack.c.bf16 %v936, %v935
      %940 = vrot.lane.b32.xlu0 %v720, 96
      %v941 = vpop.permute.xlu0 %940
      %942 = vrot.lane.b32.xlu0 %v721, 96
      %v943 = vpop.permute.xlu0 %942
      %v946 = vsel %vm779, %v937, 0
      %v949 = vsel %vm806, %v943, 0
      %951 = vmatprep.subr.bf16.mxu0 0
      %952 = vmatpush1.bf16.msra.mxu0 %v941
      %953 = vmatprep.subr.bf16.mxu0 0
      %954 = vmatpush1.bf16.msra.mxu0 %v949
      %955 = vmatprep.subr.bf16.mxu0 0
      %956 = vmatpush1.bf16.msra.mxu0 0
      %957 = vmatprep.subr.bf16.mxu0 0
      %958 = vmatpush1.bf16.msra.mxu0 0
      %959 = vmatprep.subr.bf16.mxu0 0
      %960 = vmatpush1.bf16.msra.mxu0 0
      %961 = vmatprep.subr.bf16.mxu0 0
      %962 = vmatpush1.bf16.msra.mxu0 0
      %963 = vmatprep.subr.bf16.mxu0 0
      %964 = vmatpush1.bf16.msra.mxu0 0
      %965 = vmatprep.subr.bf16.mxu0 0
      %966 = vmatpush1.bf16.msra.mxu0 0
      %967 = vmatprep.subr.bf16.mxu0 0
      %968 = vmatpush1.bf16.msra.mxu0 0
      %969 = vmatprep.subr.bf16.mxu0 0
      %970 = vmatpush1.bf16.msra.mxu0 0
      %971 = vmatprep.subr.bf16.mxu0 0
      %972 = vmatpush1.bf16.msra.mxu0 0
      %973 = vmatprep.subr.bf16.mxu0 0
      %974 = vmatpush1.bf16.msra.mxu0 0
      %975 = vmatprep.subr.bf16.mxu0 0
      %976 = vmatpush1.bf16.msra.mxu0 0
      %977 = vmatprep.subr.bf16.mxu0 0
      %978 = vmatpush1.bf16.msra.mxu0 0
      %979 = vmatprep.subr.bf16.mxu0 0
      %980 = vmatpush1.bf16.msra.mxu0 0
      %981 = vmatprep.subr.bf16.mxu0 0
      %982 = vmatpush1.bf16.msra.mxu0 0
      %983 = vmatprep.mubr.bf16.mxu0 0
      %984 = vmatmul.mubr.bf16.gmra.mrb[0].mxu0 %v946
      %v985 = vpop.f32.mrb[0].mxu0
      %v986 = vadd.f32 0.0, %v985
      %v987 = vpop.f32.mrb[0].mxu0
      %v988 = vpop.f32.mrb[0].mxu0
      %v989 = vadd.f32 0.0, %v988
      %v990 = vpop.f32.mrb[0].mxu0
      %991 = vdwg.mxu0
      %v992 = vpack.c.bf16 %v989, %v986
      %v993 = vld [vmem:[%s7 + $0x10] sm:$0xf]
      %v994 = vld [vmem:[%s7 + $0x14] sm:$0xf]
      %v995 = vld [vmem:[%s7 + $0x18] sm:$0xf]
      %v996 = vld [vmem:[%s7 + $0x1c] sm:$0xf]
      %v1001 = vunpack.c.l.b16 %v993
      %v1002 = vunpack.c.l.b16 %v994
      %v1003 = vunpack.c.l.b16 %v995
      %v1004 = vunpack.c.l.b16 %v996
      %v1005 = vpack.c.b16 %v1002, %v1001
      %v1006 = vpack.c.b16 %v1004, %v1003
      %v1010 = vsel %vm728, %v992, 0
      %1012 = vmatprep.subr.bf16.mxu0 0
      %1013 = vmatpush1.bf16.msra.mxu0 %v1005
      %1014 = vmatprep.subr.bf16.mxu0 0
      %1015 = vmatpush1.bf16.msra.mxu0 %v1006
      %1016 = vmatprep.subr.bf16.mxu0 0
      %1017 = vmatpush1.bf16.msra.mxu0 0
      %1018 = vmatprep.subr.bf16.mxu0 0
      %1019 = vmatpush1.bf16.msra.mxu0 0
      %1020 = vmatprep.subr.bf16.mxu0 0
      %1021 = vmatpush1.bf16.msra.mxu0 0
      %1022 = vmatprep.subr.bf16.mxu0 0
      %1023 = vmatpush1.bf16.msra.mxu0 0
      %1024 = vmatprep.subr.bf16.mxu0 0
      %1025 = vmatpush1.bf16.msra.mxu0 0
      %1026 = vmatprep.subr.bf16.mxu0 0
      %1027 = vmatpush1.bf16.msra.mxu0 0
      %1028 = vmatprep.subr.bf16.mxu0 0
      %1029 = vmatpush1.bf16.msra.mxu0 0
      %1030 = vmatprep.subr.bf16.mxu0 0
      %1031 = vmatpush1.bf16.msra.mxu0 0
      %1032 = vmatprep.subr.bf16.mxu0 0
      %1033 = vmatpush1.bf16.msra.mxu0 0
      %1034 = vmatprep.subr.bf16.mxu0 0
      %1035 = vmatpush1.bf16.msra.mxu0 0
      %1036 = vmatprep.subr.bf16.mxu0 0
      %1037 = vmatpush1.bf16.msra.mxu0 0
      %1038 = vmatprep.subr.bf16.mxu0 0
      %1039 = vmatpush1.bf16.msra.mxu0 0
      %1040 = vmatprep.subr.bf16.mxu0 0
      %1041 = vmatpush1.bf16.msra.mxu0 0
      %1042 = vmatprep.subr.bf16.mxu0 0
      %1043 = vmatpush1.bf16.msra.mxu0 0
      %1044 = vmatprep.mubr.bf16.mxu0 0
      %1045 = vmatmul.mubr.bf16.gmra.mrb[0].mxu0 %v1010
      %v1046 = vpop.f32.mrb[0].mxu0
      %v1047 = vadd.f32 0.0, %v1046
      %v1048 = vpop.f32.mrb[0].mxu0
      %v1049 = vpop.f32.mrb[0].mxu0
      %v1050 = vadd.f32 0.0, %v1049
      %v1051 = vpop.f32.mrb[0].mxu0
      %1052 = vdwg.mxu0
      %v1057 = vunpack.c.l.b16 %v852
      %v1058 = vunpack.c.l.b16 %v853
      %v1059 = vunpack.c.l.b16 %v854
      %v1060 = vunpack.c.l.b16 %v855
      %v1061 = vpack.c.b16 %v1058, %v1057
      %v1062 = vpack.c.b16 %v1060, %v1059
      %v1066 = vsel %vm728, %v851, 0
      %1068 = vmatprep.subr.bf16.mxu0 0
      %1069 = vmatpush1.bf16.msra.mxu0 %v1061
      %1070 = vmatprep.subr.bf16.mxu0 0
      %1071 = vmatpush1.bf16.msra.mxu0 %v1062
      %1072 = vmatprep.subr.bf16.mxu0 0
      %1073 = vmatpush1.bf16.msra.mxu0 0
      %1074 = vmatprep.subr.bf16.mxu0 0
      %1075 = vmatpush1.bf16.msra.mxu0 0
      %1076 = vmatprep.subr.bf16.mxu0 0
      %1077 = vmatpush1.bf16.msra.mxu0 0
      %1078 = vmatprep.subr.bf16.mxu0 0
      %1079 = vmatpush1.bf16.msra.mxu0 0
      %1080 = vmatprep.subr.bf16.mxu0 0
      %1081 = vmatpush1.bf16.msra.mxu0 0
      %1082 = vmatprep.subr.bf16.mxu0 0
      %1083 = vmatpush1.bf16.msra.mxu0 0
      %1084 = vmatprep.subr.bf16.mxu0 0
      %1085 = vmatpush1.bf16.msra.mxu0 0
      %1086 = vmatprep.subr.bf16.mxu0 0
      %1087 = vmatpush1.bf16.msra.mxu0 0
      %1088 = vmatprep.subr.bf16.mxu0 0
      %1089 = vmatpush1.bf16.msra.mxu0 0
      %1090 = vmatprep.subr.bf16.mxu0 0
      %1091 = vmatpush1.bf16.msra.mxu0 0
      %1092 = vmatprep.subr.bf16.mxu0 0
      %1093 = vmatpush1.bf16.msra.mxu0 0
      %1094 = vmatprep.subr.bf16.mxu0 0
      %1095 = vmatpush1.bf16.msra.mxu0 0
      %1096 = vmatprep.subr.bf16.mxu0 0
      %1097 = vmatpush1.bf16.msra.mxu0 0
      %1098 = vmatprep.subr.bf16.mxu0 0
      %1099 = vmatpush1.bf16.msra.mxu0 0
      %1100 = vmatprep.mubr.bf16.mxu0 0
      %1101 = vmatmul.mubr.bf16.gmra.mrb[0].mxu0 %v1066
      %v1102 = vpop.f32.mrb[0].mxu0
      %v1103 = vadd.f32 %v1047, %v1102
      %v1104 = vpop.f32.mrb[0].mxu0
      %v1105 = vpop.f32.mrb[0].mxu0
      %v1106 = vadd.f32 %v1050, %v1105
      %v1107 = vpop.f32.mrb[0].mxu0
      %1108 = vdwg.mxu0
      %1109 = vrot.lane.b32.xlu0 %v717, 64
      %v1110 = vpop.permute.xlu0 %1109
      %1111 = vrot.lane.b32.xlu0 %v718, 64
      %v1112 = vpop.permute.xlu0 %1111
      %1113 = vrot.lane.b32.xlu0 %v719, 64
      %v1114 = vpop.permute.xlu0 %1113
      %v1116 = vsel %vm728, %v1110, 0
      %v1119 = vsel %vm728, %v1112, 0
      %v1122 = vsel %vm728, %v1114, 0
      %1124 = vmatprep.subr.bf16.mxu0 0
      %1125 = vmatpush1.bf16.xpose.msra.mxu0 %v1119
      %1126 = vmatprep.subr.bf16.mxu0 0
      %1127 = vmatpush1.bf16.xpose.msra.mxu0 %v1122
      %1128 = vmatprep.subr.bf16.mxu0 0
      %1129 = vmatpush1.bf16.xpose.msra.mxu0 0
      %1130 = vmatprep.subr.bf16.mxu0 0
      %1131 = vmatpush1.bf16.xpose.msra.mxu0 0
      %1132 = vmatprep.subr.bf16.mxu0 0
      %1133 = vmatpush1.bf16.xpose.msra.mxu0 0
      %1134 = vmatprep.subr.bf16.mxu0 0
      %1135 = vmatpush1.bf16.xpose.msra.mxu0 0
      %1136 = vmatprep.subr.bf16.mxu0 0
      %1137 = vmatpush1.bf16.xpose.msra.mxu0 0
      %1138 = vmatprep.subr.bf16.mxu0 0
      %1139 = vmatpush1.bf16.xpose.msra.mxu0 0
      %1140 = vmatprep.subr.bf16.mxu0 0
      %1141 = vmatpush1.bf16.xpose.msra.mxu0 0
      %1142 = vmatprep.subr.bf16.mxu0 0
      %1143 = vmatpush1.bf16.xpose.msra.mxu0 0
      %1144 = vmatprep.subr.bf16.mxu0 0
      %1145 = vmatpush1.bf16.xpose.msra.mxu0 0
      %1146 = vmatprep.subr.bf16.mxu0 0
      %1147 = vmatpush1.bf16.xpose.msra.mxu0 0
      %1148 = vmatprep.subr.bf16.mxu0 0
      %1149 = vmatpush1.bf16.xpose.msra.mxu0 0
      %1150 = vmatprep.subr.bf16.mxu0 0
      %1151 = vmatpush1.bf16.xpose.msra.mxu0 0
      %1152 = vmatprep.subr.bf16.mxu0 0
      %1153 = vmatpush1.bf16.xpose.msra.mxu0 0
      %1154 = vmatprep.subr.bf16.mxu0 0
      %1155 = vmatpush1.bf16.xpose.msra.mxu0 0
      %1156 = vmatprep.mubr.bf16.mxu0 0
      %1157 = vmatmul.mubr.bf16.gmra.mrb[0].mxu0 %v1116
      %v1158 = vpop.f32.mrb[0].mxu0
      %v1159 = vadd.f32 %v726, %v1158
      %v1160 = vpop.f32.mrb[0].mxu0
      %v1161 = vpop.f32.mrb[0].mxu0
      %v1162 = vadd.f32 %v726, %v1161
      %v1163 = vpop.f32.mrb[0].mxu0
      %1164 = vdwg.mxu0
      %v1165 = vsel %vm779, %v1159, -inf
      %1166 = vmax.xlane.f32.xlu0 %v1165
      %v1167 = vpop.xlane.xlu0 %1166
      %v1168 = vsel %vm779, %v1162, -inf
      %1169 = vmax.xlane.f32.xlu0 %v1168
      %v1170 = vpop.xlane.xlu0 %1169
      %v1171 = vsub.f32 %v1159, %v1167
      %v1172 = vsub.f32 %v1162, %v1170
      %v1173 = vmul.f32 %v1171, 1.442695
      %v1174 = vpow.pop %v1173
      %v1175 = vmul.f32 %v1172, 1.442695
      %v1176 = vpow.pop %v1175
      %v1177 = vsel %vm779, %v1174, 0.0
      %1178 = vadd.xlane.f32.xlu0 %v1177
      %v1179 = vpop.xlane.xlu0 %1178
      %v1180 = vsel %vm779, %v1176, 0.0
      %1181 = vadd.xlane.f32.xlu0 %v1180
      %v1182 = vpop.xlane.xlu0 %1181
      %v1183 = vrcp.pop %v1179
      %v1184 = vrcp.pop %v1182
      %v1185 = vmul.f32 %v1174, %v1183
      %v1186 = vmul.f32 %v1176, %v1184
      %v1187 = vpack.c.bf16 %v1186, %v1185
      %1188 = vrot.lane.b32.xlu0 %v720, 64
      %v1189 = vpop.permute.xlu0 %1188
      %1190 = vrot.lane.b32.xlu0 %v721, 64
      %v1191 = vpop.permute.xlu0 %1190
      %v1194 = vsel %vm779, %v1187, 0
      %v1197 = vsel %vm806, %v1191, 0
      %1199 = vmatprep.subr.bf16.mxu0 0
      %1200 = vmatpush1.bf16.msra.mxu0 %v1189
      %1201 = vmatprep.subr.bf16.mxu0 0
      %1202 = vmatpush1.bf16.msra.mxu0 %v1197
      %1203 = vmatprep.subr.bf16.mxu0 0
      %1204 = vmatpush1.bf16.msra.mxu0 0
      %1205 = vmatprep.subr.bf16.mxu0 0
      %1206 = vmatpush1.bf16.msra.mxu0 0
      %1207 = vmatprep.subr.bf16.mxu0 0
      %1208 = vmatpush1.bf16.msra.mxu0 0
      %1209 = vmatprep.subr.bf16.mxu0 0
      %1210 = vmatpush1.bf16.msra.mxu0 0
      %1211 = vmatprep.subr.bf16.mxu0 0
      %1212 = vmatpush1.bf16.msra.mxu0 0
      %1213 = vmatprep.subr.bf16.mxu0 0
      %1214 = vmatpush1.bf16.msra.mxu0 0
      %1215 = vmatprep.subr.bf16.mxu0 0
      %1216 = vmatpush1.bf16.msra.mxu0 0
      %1217 = vmatprep.subr.bf16.mxu0 0
      %1218 = vmatpush1.bf16.msra.mxu0 0
      %1219 = vmatprep.subr.bf16.mxu0 0
      %1220 = vmatpush1.bf16.msra.mxu0 0
      %1221 = vmatprep.subr.bf16.mxu0 0
      %1222 = vmatpush1.bf16.msra.mxu0 0
      %1223 = vmatprep.subr.bf16.mxu0 0
      %1224 = vmatpush1.bf16.msra.mxu0 0
      %1225 = vmatprep.subr.bf16.mxu0 0
      %1226 = vmatpush1.bf16.msra.mxu0 0
      %1227 = vmatprep.subr.bf16.mxu0 0
      %1228 = vmatpush1.bf16.msra.mxu0 0
      %1229 = vmatprep.subr.bf16.mxu0 0
      %1230 = vmatpush1.bf16.msra.mxu0 0
      %1231 = vmatprep.mubr.bf16.mxu0 0
      %1232 = vmatmul.mubr.bf16.gmra.mrb[0].mxu0 %v1194
      %v1233 = vpop.f32.mrb[0].mxu0
      %v1234 = vadd.f32 0.0, %v1233
      %v1235 = vpop.f32.mrb[0].mxu0
      %v1236 = vpop.f32.mrb[0].mxu0
      %v1237 = vadd.f32 0.0, %v1236
      %v1238 = vpop.f32.mrb[0].mxu0
      %1239 = vdwg.mxu0
      %v1240 = vpack.c.bf16 %v1237, %v1234
      %v1241 = vld [vmem:[%s7 + $0x20] sm:$0xf]
      %v1242 = vld [vmem:[%s7 + $0x24] sm:$0xf]
      %v1243 = vld [vmem:[%s7 + $0x28] sm:$0xf]
      %v1244 = vld [vmem:[%s7 + $0x2c] sm:$0xf]
      %v1249 = vunpack.c.l.b16 %v1241
      %v1250 = vunpack.c.l.b16 %v1242
      %v1251 = vunpack.c.l.b16 %v1243
      %v1252 = vunpack.c.l.b16 %v1244
      %v1253 = vpack.c.b16 %v1250, %v1249
      %v1254 = vpack.c.b16 %v1252, %v1251
      %v1258 = vsel %vm728, %v1240, 0
      %1260 = vmatprep.subr.bf16.mxu0 0
      %1261 = vmatpush1.bf16.msra.mxu0 %v1253
      %1262 = vmatprep.subr.bf16.mxu0 0
      %1263 = vmatpush1.bf16.msra.mxu0 %v1254
      %1264 = vmatprep.subr.bf16.mxu0 0
      %1265 = vmatpush1.bf16.msra.mxu0 0
      %1266 = vmatprep.subr.bf16.mxu0 0
      %1267 = vmatpush1.bf16.msra.mxu0 0
      %1268 = vmatprep.subr.bf16.mxu0 0
      %1269 = vmatpush1.bf16.msra.mxu0 0
      %1270 = vmatprep.subr.bf16.mxu0 0
      %1271 = vmatpush1.bf16.msra.mxu0 0
      %1272 = vmatprep.subr.bf16.mxu0 0
      %1273 = vmatpush1.bf16.msra.mxu0 0
      %1274 = vmatprep.subr.bf16.mxu0 0
      %1275 = vmatpush1.bf16.msra.mxu0 0
      %1276 = vmatprep.subr.bf16.mxu0 0
      %1277 = vmatpush1.bf16.msra.mxu0 0
      %1278 = vmatprep.subr.bf16.mxu0 0
      %1279 = vmatpush1.bf16.msra.mxu0 0
      %1280 = vmatprep.subr.bf16.mxu0 0
      %1281 = vmatpush1.bf16.msra.mxu0 0
      %1282 = vmatprep.subr.bf16.mxu0 0
      %1283 = vmatpush1.bf16.msra.mxu0 0
      %1284 = vmatprep.subr.bf16.mxu0 0
      %1285 = vmatpush1.bf16.msra.mxu0 0
      %1286 = vmatprep.subr.bf16.mxu0 0
      %1287 = vmatpush1.bf16.msra.mxu0 0
      %1288 = vmatprep.subr.bf16.mxu0 0
      %1289 = vmatpush1.bf16.msra.mxu0 0
      %1290 = vmatprep.subr.bf16.mxu0 0
      %1291 = vmatpush1.bf16.msra.mxu0 0
      %1292 = vmatprep.mubr.bf16.mxu0 0
      %1293 = vmatmul.mubr.bf16.gmra.mrb[0].mxu0 %v1258
      %v1294 = vpop.f32.mrb[0].mxu0
      %v1295 = vadd.f32 0.0, %v1294
      %v1296 = vpop.f32.mrb[0].mxu0
      %v1297 = vpop.f32.mrb[0].mxu0
      %v1298 = vadd.f32 0.0, %v1297
      %v1299 = vpop.f32.mrb[0].mxu0
      %1300 = vdwg.mxu0
      %v1301 = vadd.f32 %v1103, %v1295
      %v1302 = vadd.f32 %v1106, %v1298
      %1303 = vrot.lane.b32.xlu0 %v717, 32
      %v1304 = vpop.permute.xlu0 %1303
      %1305 = vrot.lane.b32.xlu0 %v718, 32
      %v1306 = vpop.permute.xlu0 %1305
      %1307 = vrot.lane.b32.xlu0 %v719, 32
      %v1308 = vpop.permute.xlu0 %1307
      %v1310 = vsel %vm728, %v1304, 0
      %v1313 = vsel %vm728, %v1306, 0
      %v1316 = vsel %vm728, %v1308, 0
      %1318 = vmatprep.subr.bf16.mxu0 0
      %1319 = vmatpush1.bf16.xpose.msra.mxu0 %v1313
      %1320 = vmatprep.subr.bf16.mxu0 0
      %1321 = vmatpush1.bf16.xpose.msra.mxu0 %v1316
      %1322 = vmatprep.subr.bf16.mxu0 0
      %1323 = vmatpush1.bf16.xpose.msra.mxu0 0
      %1324 = vmatprep.subr.bf16.mxu0 0
      %1325 = vmatpush1.bf16.xpose.msra.mxu0 0
      %1326 = vmatprep.subr.bf16.mxu0 0
      %1327 = vmatpush1.bf16.xpose.msra.mxu0 0
      %1328 = vmatprep.subr.bf16.mxu0 0
      %1329 = vmatpush1.bf16.xpose.msra.mxu0 0
      %1330 = vmatprep.subr.bf16.mxu0 0
      %1331 = vmatpush1.bf16.xpose.msra.mxu0 0
      %1332 = vmatprep.subr.bf16.mxu0 0
      %1333 = vmatpush1.bf16.xpose.msra.mxu0 0
      %1334 = vmatprep.subr.bf16.mxu0 0
      %1335 = vmatpush1.bf16.xpose.msra.mxu0 0
      %1336 = vmatprep.subr.bf16.mxu0 0
      %1337 = vmatpush1.bf16.xpose.msra.mxu0 0
      %1338 = vmatprep.subr.bf16.mxu0 0
      %1339 = vmatpush1.bf16.xpose.msra.mxu0 0
      %1340 = vmatprep.subr.bf16.mxu0 0
      %1341 = vmatpush1.bf16.xpose.msra.mxu0 0
      %1342 = vmatprep.subr.bf16.mxu0 0
      %1343 = vmatpush1.bf16.xpose.msra.mxu0 0
      %1344 = vmatprep.subr.bf16.mxu0 0
      %1345 = vmatpush1.bf16.xpose.msra.mxu0 0
      %1346 = vmatprep.subr.bf16.mxu0 0
      %1347 = vmatpush1.bf16.xpose.msra.mxu0 0
      %1348 = vmatprep.subr.bf16.mxu0 0
      %1349 = vmatpush1.bf16.xpose.msra.mxu0 0
      %1350 = vmatprep.mubr.bf16.mxu0 0
      %1351 = vmatmul.mubr.bf16.gmra.mrb[0].mxu0 %v1310
      %v1352 = vpop.f32.mrb[0].mxu0
      %v1353 = vadd.f32 %v726, %v1352
      %v1354 = vpop.f32.mrb[0].mxu0
      %v1355 = vpop.f32.mrb[0].mxu0
      %v1356 = vadd.f32 %v726, %v1355
      %v1357 = vpop.f32.mrb[0].mxu0
      %1358 = vdwg.mxu0
      %v1359 = vsel %vm779, %v1353, -inf
      %1360 = vmax.xlane.f32.xlu0 %v1359
      %v1361 = vpop.xlane.xlu0 %1360
      %v1362 = vsel %vm779, %v1356, -inf
      %1363 = vmax.xlane.f32.xlu0 %v1362
      %v1364 = vpop.xlane.xlu0 %1363
      %v1365 = vsub.f32 %v1353, %v1361
      %v1366 = vsub.f32 %v1356, %v1364
      %v1367 = vmul.f32 %v1365, 1.442695
      %v1368 = vpow.pop %v1367
      %v1369 = vmul.f32 %v1366, 1.442695
      %v1370 = vpow.pop %v1369
      %v1371 = vsel %vm779, %v1368, 0.0
      %1372 = vadd.xlane.f32.xlu0 %v1371
      %v1373 = vpop.xlane.xlu0 %1372
      %v1374 = vsel %vm779, %v1370, 0.0
      %1375 = vadd.xlane.f32.xlu0 %v1374
      %v1376 = vpop.xlane.xlu0 %1375
      %v1377 = vrcp.pop %v1373
      %v1378 = vrcp.pop %v1376
      %v1379 = vmul.f32 %v1368, %v1377
      %v1380 = vmul.f32 %v1370, %v1378
      %v1381 = vpack.c.bf16 %v1380, %v1379
      %1382 = vrot.lane.b32.xlu0 %v720, 32
      %v1383 = vpop.permute.xlu0 %1382
      %1384 = vrot.lane.b32.xlu0 %v721, 32
      %v1385 = vpop.permute.xlu0 %1384
      %v1388 = vsel %vm779, %v1381, 0
      %v1391 = vsel %vm806, %v1385, 0
      %1393 = vmatprep.subr.bf16.mxu0 0
      %1394 = vmatpush1.bf16.msra.mxu0 %v1383
      %1395 = vmatprep.subr.bf16.mxu0 0
      %1396 = vmatpush1.bf16.msra.mxu0 %v1391
      %1397 = vmatprep.subr.bf16.mxu0 0
      %1398 = vmatpush1.bf16.msra.mxu0 0
      %1399 = vmatprep.subr.bf16.mxu0 0
      %1400 = vmatpush1.bf16.msra.mxu0 0
      %1401 = vmatprep.subr.bf16.mxu0 0
      %1402 = vmatpush1.bf16.msra.mxu0 0
      %1403 = vmatprep.subr.bf16.mxu0 0
      %1404 = vmatpush1.bf16.msra.mxu0 0
      %1405 = vmatprep.subr.bf16.mxu0 0
      %1406 = vmatpush1.bf16.msra.mxu0 0
      %1407 = vmatprep.subr.bf16.mxu0 0
      %1408 = vmatpush1.bf16.msra.mxu0 0
      %1409 = vmatprep.subr.bf16.mxu0 0
      %1410 = vmatpush1.bf16.msra.mxu0 0
      %1411 = vmatprep.subr.bf16.mxu0 0
      %1412 = vmatpush1.bf16.msra.mxu0 0
      %1413 = vmatprep.subr.bf16.mxu0 0
      %1414 = vmatpush1.bf16.msra.mxu0 0
      %1415 = vmatprep.subr.bf16.mxu0 0
      %1416 = vmatpush1.bf16.msra.mxu0 0
      %1417 = vmatprep.subr.bf16.mxu0 0
      %1418 = vmatpush1.bf16.msra.mxu0 0
      %1419 = vmatprep.subr.bf16.mxu0 0
      %1420 = vmatpush1.bf16.msra.mxu0 0
      %1421 = vmatprep.subr.bf16.mxu0 0
      %1422 = vmatpush1.bf16.msra.mxu0 0
      %1423 = vmatprep.subr.bf16.mxu0 0
      %1424 = vmatpush1.bf16.msra.mxu0 0
      %1425 = vmatprep.mubr.bf16.mxu0 0
      %1426 = vmatmul.mubr.bf16.gmra.mrb[0].mxu0 %v1388
      %v1427 = vpop.f32.mrb[0].mxu0
      %v1428 = vadd.f32 0.0, %v1427
      %v1429 = vpop.f32.mrb[0].mxu0
      %v1430 = vpop.f32.mrb[0].mxu0
      %v1431 = vadd.f32 0.0, %v1430
      %v1432 = vpop.f32.mrb[0].mxu0
      %1433 = vdwg.mxu0
      %v1434 = vpack.c.bf16 %v1431, %v1428
      %v1435 = vld [vmem:[%s7 + $0x30] sm:$0xf]
      %v1436 = vld [vmem:[%s7 + $0x34] sm:$0xf]
      %v1437 = vld [vmem:[%s7 + $0x38] sm:$0xf]
      %v1438 = vld [vmem:[%s7 + $0x3c] sm:$0xf]
      %v1443 = vunpack.c.l.b16 %v1435
      %v1444 = vunpack.c.l.b16 %v1436
      %v1445 = vunpack.c.l.b16 %v1437
      %v1446 = vunpack.c.l.b16 %v1438
      %v1447 = vpack.c.b16 %v1444, %v1443
      %v1448 = vpack.c.b16 %v1446, %v1445
      %v1452 = vsel %vm728, %v1434, 0
      %1454 = vmatprep.subr.bf16.mxu0 0
      %1455 = vmatpush1.bf16.msra.mxu0 %v1447
      %1456 = vmatprep.subr.bf16.mxu0 0
      %1457 = vmatpush1.bf16.msra.mxu0 %v1448
      %1458 = vmatprep.subr.bf16.mxu0 0
      %1459 = vmatpush1.bf16.msra.mxu0 0
      %1460 = vmatprep.subr.bf16.mxu0 0
      %1461 = vmatpush1.bf16.msra.mxu0 0
      %1462 = vmatprep.subr.bf16.mxu0 0
      %1463 = vmatpush1.bf16.msra.mxu0 0
      %1464 = vmatprep.subr.bf16.mxu0 0
      %1465 = vmatpush1.bf16.msra.mxu0 0
      %1466 = vmatprep.subr.bf16.mxu0 0
      %1467 = vmatpush1.bf16.msra.mxu0 0
      %1468 = vmatprep.subr.bf16.mxu0 0
      %1469 = vmatpush1.bf16.msra.mxu0 0
      %1470 = vmatprep.subr.bf16.mxu0 0
      %1471 = vmatpush1.bf16.msra.mxu0 0
      %1472 = vmatprep.subr.bf16.mxu0 0
      %1473 = vmatpush1.bf16.msra.mxu0 0
      %1474 = vmatprep.subr.bf16.mxu0 0
      %1475 = vmatpush1.bf16.msra.mxu0 0
      %1476 = vmatprep.subr.bf16.mxu0 0
      %1477 = vmatpush1.bf16.msra.mxu0 0
      %1478 = vmatprep.subr.bf16.mxu0 0
      %1479 = vmatpush1.bf16.msra.mxu0 0
      %1480 = vmatprep.subr.bf16.mxu0 0
      %1481 = vmatpush1.bf16.msra.mxu0 0
      %1482 = vmatprep.subr.bf16.mxu0 0
      %1483 = vmatpush1.bf16.msra.mxu0 0
      %1484 = vmatprep.subr.bf16.mxu0 0
      %1485 = vmatpush1.bf16.msra.mxu0 0
      %1486 = vmatprep.mubr.bf16.mxu0 0
      %1487 = vmatmul.mubr.bf16.gmra.mrb[0].mxu0 %v1452
      %v1488 = vpop.f32.mrb[0].mxu0
      %v1489 = vadd.f32 0.0, %v1488
      %v1490 = vpop.f32.mrb[0].mxu0
      %v1491 = vpop.f32.mrb[0].mxu0
      %v1492 = vadd.f32 0.0, %v1491
      %v1493 = vpop.f32.mrb[0].mxu0
      %1494 = vdwg.mxu0
      %v1495 = vadd.f32 %v1301, %v1489
      %v1496 = vadd.f32 %v1302, %v1492
      %v1497 = vunpack.c.l.bf16 %v422
      %v1498 = vunpack.c.l.bf16 %v423
      %v1499 = vadd.f32 %v1497, %v1495
      %v1500 = vadd.f32 %v1498, %v1496
      %v1501 = vld [vmem:[%s8] sm:$0x1]
      %v1503 = vlaneseq
      %v1504 = vshrl.u32 %v1503, 7
      %v1505 = vsub.s32 0, %v1504
      %v1506 = vrot.slane %v1501, %v1505
      %v1508 = vadd.f32 %v1499, %v1506
      %v1509 = vadd.f32 %v1500, %v1506
      %v1510 = vld [vmem:[%s9] sm:$0x1]
      %v1511 = vld [vmem:[%s10] sm:$0x1]
      %1512 = vadd.xlane.f32.xlu0 %v1508
      %v1513 = vpop.xlane.xlu0 %1512
      %1514 = vadd.xlane.f32.xlu0 %v1509
      %v1515 = vpop.xlane.xlu0 %1514
      %v1516 = vrcp.pop 128.0
      %v1517 = vmul.f32 %v1513, %v1516
      %v1518 = vmul.f32 %v1515, %v1516
      %v1519 = vsub.f32 %v1508, %v1517
      %v1520 = vsub.f32 %v1509, %v1518
      %v1521 = vmul.f32 %v1519, %v1519
      %v1522 = vmul.f32 %v1520, %v1520
      %1523 = vadd.xlane.f32.xlu0 %v1521
      %v1524 = vpop.xlane.xlu0 %1523
      %1525 = vadd.xlane.f32.xlu0 %v1522
      %v1526 = vpop.xlane.xlu0 %1525
      %v1527 = vmul.f32 %v1524, %v1516
      %v1528 = vmul.f32 %v1526, %v1516
      %v1529 = vadd.f32 %v1527, 1e-05
      %v1530 = vadd.f32 %v1528, 1e-05
      %v1531 = vrsqrt.pop %v1529
      %v1532 = vrsqrt.pop %v1530
      %v1533 = vmul.f32 %v1519, %v1531
      %v1534 = vmul.f32 %v1520, %v1532
      %v1536 = vlaneseq
      %v1537 = vshrl.u32 %v1536, 7
      %v1538 = vsub.s32 0, %v1537
      %v1539 = vrot.slane %v1510, %v1538
      %v1541 = vmul.f32 %v1533, %v1539
      %v1542 = vmul.f32 %v1534, %v1539
      %v1544 = vlaneseq
      %v1545 = vshrl.u32 %v1544, 7
      %v1546 = vsub.s32 0, %v1545
      %v1547 = vrot.slane %v1511, %v1546
      %v1549 = vadd.f32 %v1541, %v1547
      %v1550 = vadd.f32 %v1542, %v1547
      %v1551 = vpack.c.bf16 %v1550, %v1549
      %v1553 = vunpack.c.l.b16 %v1551
      %v1554 = vunpack.c.h.b16 %v1551
      %v1555 = vpack.c.b16 %v1553, %v1553
      %v1556 = vpack.c.b16 %v1554, %v1554
      %1559 = vst [vmem:[%s420] sm:$0xf] %v1555
      %1560 = vst [vmem:[%s420 + $0x4] sm:$0xf] %v1556
      %p1561 = scmp.lt.s32.totalorder %s22, 1
      %s1562 = scalar_select %p1561, %s22, 1
      %s1563 = smul.addr %s1562, 2
      %s1564 = smul.addr %s1563, 4
      %s1565 = scalar_lea.vmem %s11, %s1564
      // Predicated region
      $region65: #{transformer_decoder_forward.8} parent=63 // pred_check
        %p1566 = pneg %p286
      $region66: #{transformer_decoder_forward.8} parent=63 // pred_check_branch
        %1568 = sbr.rel (%p1566) target = $region68
      $region67: #{transformer_decoder_forward.8} parent=63 // pred_region
        _
      $region68: #{transformer_decoder_forward.8} parent=63 // pred_fallthru
        _
    $region64: #{transformer_decoder_forward.8} parent=5 // pred_fallthru
      _
    %p1569 = scmp.le.s32.totalorder 2, %s17
    // Predicated region
    $region69: #{transformer_decoder_forward.8} parent=5 // pred_check
      %p1570 = pneg %p1569
    $region70: #{transformer_decoder_forward.8} parent=5 // pred_check_branch
      %1572 = sbr.rel (%p1570) target = $region72
    $region71: #{transformer_decoder_forward.8} parent=5 // pred_region
      %s1573 = ssub.s32 %s17, 2
      // Predicated region
      $region73: #{transformer_decoder_forward.8} parent=71 // pred_check
        %p1574 = pneg %p292
      $region74: #{transformer_decoder_forward.8} parent=71 // pred_check_branch
        %1576 = sbr.rel (%p1574) target = $region76
      $region75: #{transformer_decoder_forward.8} parent=71 // pred_region
        %p1577 = scmp.lt.s32.totalorder %s23, 1
        %s1578 = scalar_select %p1577, %s23, 1
        %s1579 = smul.addr %s1578, 2
        %s1580 = smul.addr %s1579, 4
        %s1581 = scalar_lea.vmem %s11, %s1580
      $region76: #{transformer_decoder_forward.8} parent=71 // pred_fallthru
        _
    $region72: #{transformer_decoder_forward.8} parent=5 // pred_fallthru
      _
  $region6: #{transformer_decoder_forward.8} parent=0 // loop_footer
    %s21 = sadd.s32 1, %s17
  $region7: #{transformer_decoder_forward.8} parent=0 // loop_footer_branch
    %16 = sbr.rel target = $region3
  $region8: #{transformer_decoder_forward.8} parent=0 // loop_exit
    _

// kernel: transformer_decoder_forward.11
$region0: #{transformer_decoder_forward.11}
  #allocation0 [shape = 'u32[]', space=smem, size = 0x4, offset = 0x4, fixed_abs, tag = 'smem constant byte address 0x4 - core index']
  #allocation1 [shape = 'u32[144,128]{1,0:T(1,128)}', space=vmem, size = 0x12000, scoped, tag = 'internal scratch']
  %s0 = inlined_call_operand.vmem [shape: bf16[2,16,128], index: 0, kind: input, shape index: {}]
  %s1 = inlined_call_operand.vmem [shape: bf16[2,24,128], index: 1, kind: input, shape index: {}]
  %s2 = inlined_call_operand.vmem [shape: f32[2,1,24], index: 2, kind: input, shape index: {}]
  %s3 = inlined_call_operand.vmem [shape: bf16[128,128], index: 3, kind: input, shape index: {}]
  %s4 = inlined_call_operand.vmem [shape: f32[1,128], index: 4, kind: input, shape index: {}]
  %s5 = inlined_call_operand.vmem [shape: bf16[128,256], index: 5, kind: input, shape index: {}]
  %s6 = inlined_call_operand.vmem [shape: f32[1,256], index: 6, kind: input, shape index: {}]
  %s7 = inlined_call_operand.vmem [shape: bf16[128,128], index: 7, kind: input, shape index: {}]
  %s8 = inlined_call_operand.vmem [shape: f32[1,128], index: 8, kind: input, shape index: {}]
  %s9 = inlined_call_operand.vmem [shape: f32[1,128], index: 9, kind: input, shape index: {}]
  %s10 = inlined_call_operand.vmem [shape: f32[1,128], index: 10, kind: input, shape index: {}]
  %s11 = inlined_call_operand.vmem [shape: bf16[2,16,128], index: 11, kind: output, shape index: {0}]
  %s12 = inlined_call_operand.hbm [shape: f32[2,16,24], index: 12, kind: output, shape index: {1}]
  %13 = xla_tuple %s11, %s12
  %s14 = sld [smem:[#allocation0]]
  $region85: #{transformer_decoder_forward.11} parent=0
    _
  %s16 = ssub.s32 1, %s14
  %s17 = scalar_select 0, %s16, %s14
  $region1: #{transformer_decoder_forward.11} parent=0
    #allocation2 [shape = 'u8[16384]{0}', space=vmem, size = 0x4000, scoped, tag = 'output window, operand 1']
    #allocation3 [shape = 's32[2]{0}', space=sflag, size = 0x8, scoped, tag = 'scoped memory for transformer_decoder_forward.11']
    %18 = vsyncpa [#allocation3], 0
    %s19 = scalar_lea.sflag [#allocation3], 1
    %20 = vsyncpa %s19, 0
    loop: start=0, step=1, limit=4
    $region2: #{transformer_decoder_forward.11} parent=1 // loop_pre_header
      _
    $region3: #{transformer_decoder_forward.11} parent=1 // loop_header
      %s22 = sphi 0, %s26
      %p23 = scmp.ge.s32.totalorder %s22, 4
      %s32 = sphi 0, %s34
      %s35 = sphi 0, %s32
      %s36 = sphi 0, %s35
      %s52 = sphi 0, %s36
      %s58 = sphi 0, %s60
      %s61 = sphi 0, %s58
      %s62 = sphi 0, %s61
      %s78 = sphi 0, %s62
      %s84 = sphi 0, %s86
      %s87 = sphi 0, %s84
      %s88 = sphi 0, %s87
      %s104 = sphi 0, %s88
      %s108 = sphi 0, %s108
      %s110 = sphi 0, %s108
      %s111 = sphi 0, %s110
      %s125 = sphi 0, %s111
      %s129 = sphi 0, %s129
      %s131 = sphi 0, %s129
      %s132 = sphi 0, %s131
      %s146 = sphi 0, %s132
      %s150 = sphi 0, %s150
      %s152 = sphi 0, %s150
      %s153 = sphi 0, %s152
      %s167 = sphi 0, %s153
      %s171 = sphi 0, %s171
      %s173 = sphi 0, %s171
      %s174 = sphi 0, %s173
      %s188 = sphi 0, %s174
      %s192 = sphi 0, %s192
      %s194 = sphi 0, %s192
      %s195 = sphi 0, %s194
      %s209 = sphi 0, %s195
      %s213 = sphi 0, %s213
      %s215 = sphi 0, %s213
      %s216 = sphi 0, %s215
      %s230 = sphi 0, %s216
      %s234 = sphi 0, %s234
      %s236 = sphi 0, %s234
      %s237 = sphi 0, %s236
      %s251 = sphi 0, %s237
      %s255 = sphi 0, %s255
      %s257 = sphi 0, %s255
      %s258 = sphi 0, %s257
      %s272 = sphi 0, %s258
      %s278 = sphi 0, %s280
      %s281 = sphi 0, %s278
      %s282 = sphi 0, %s281
      %s298 = sphi 0, %s282
      %s304 = sphi 0, %s306
      %s307 = sphi 0, %s304
      %s308 = sphi 0, %s307
      %s324 = sphi 0, %s308
    $region4: #{transformer_decoder_forward.11} parent=1 // loop_header_branch
      %25 = sbr.rel (%p23) target = $region8
    $region5: #{transformer_decoder_forward.11} parent=1 // loop_body
      %s27 = ssub.s32 %s22, 1
      %s28 = ssub.s32 %s22, 2
      %s29 = sadd.s32 %s22, 1
      %s30 = ssub.s32 %s22, %s29
      %p31 = scmp.eq.s32.totalorder %s30, 0
      %s33 = sadd.s32 %s32, 1
      %s34 = scalar_select %p31, %s32, %s33
      %p37 = pneg %p31
      %p38 = scmp.eq.s32.totalorder %s22, 1
      %p39 = por %p37, %p38
      %p40 = scmp.ne.s32.totalorder %s32, %s35
      %p41 = scmp.eq.s32.totalorder %s22, 0
      %p42 = por %p40, %p41
      %p43 = scmp.ne.s32.totalorder %s32, %s35
      %p44 = scmp.eq.s32.totalorder %s27, 1
      %p45 = por %p43, %p44
      %p46 = scmp.ne.s32.totalorder %s35, %s36
      %p47 = scmp.eq.s32.totalorder %s27, 0
      %p48 = por %p46, %p47
      %p49 = scmp.ne.s32.totalorder %s35, %s36
      %p50 = scmp.eq.s32.totalorder %s28, 1
      %p51 = por %p49, %p50
      %p53 = scmp.ne.s32.totalorder %s36, %s52
      %p54 = scmp.eq.s32.totalorder %s28, 0
      %p55 = por %p53, %p54
      %s56 = ssub.s32 %s22, %s29
      %p57 = scmp.eq.s32.totalorder %s56, 0
      %s59 = sadd.s32 %s58, 1
      %s60 = scalar_select %p57, %s58, %s59
      %p63 = pneg %p57
      %p64 = scmp.eq.s32.totalorder %s22, 1
      %p65 = por %p63, %p64
      %p66 = scmp.ne.s32.totalorder %s58, %s61
      %p67 = scmp.eq.s32.totalorder %s22, 0
      %p68 = por %p66, %p67
      %p69 = scmp.ne.s32.totalorder %s58, %s61
      %p70 = scmp.eq.s32.totalorder %s27, 1
      %p71 = por %p69, %p70
      %p72 = scmp.ne.s32.totalorder %s61, %s62
      %p73 = scmp.eq.s32.totalorder %s27, 0
      %p74 = por %p72, %p73
      %p75 = scmp.ne.s32.totalorder %s61, %s62
      %p76 = scmp.eq.s32.totalorder %s28, 1
      %p77 = por %p75, %p76
      %p79 = scmp.ne.s32.totalorder %s62, %s78
      %p80 = scmp.eq.s32.totalorder %s28, 0
      %p81 = por %p79, %p80
      %s82 = ssub.s32 %s22, %s29
      %p83 = scmp.eq.s32.totalorder %s82, 0
      %s85 = sadd.s32 %s84, 1
      %s86 = scalar_select %p83, %s84, %s85
      %p89 = pneg %p83
      %p90 = scmp.eq.s32.totalorder %s22, 1
      %p91 = por %p89, %p90
      %p92 = scmp.ne.s32.totalorder %s84, %s87
      %p93 = scmp.eq.s32.totalorder %s22, 0
      %p94 = por %p92, %p93
      %p95 = scmp.ne.s32.totalorder %s84, %s87
      %p96 = scmp.eq.s32.totalorder %s27, 1
      %p97 = por %p95, %p96
      %p98 = scmp.ne.s32.totalorder %s87, %s88
      %p99 = scmp.eq.s32.totalorder %s27, 0
      %p100 = por %p98, %p99
      %p101 = scmp.ne.s32.totalorder %s87, %s88
      %p102 = scmp.eq.s32.totalorder %s28, 1
      %p103 = por %p101, %p102
      %p105 = scmp.ne.s32.totalorder %s88, %s104
      %p106 = scmp.eq.s32.totalorder %s28, 0
      %p107 = por %p105, %p106
      %s109 = sadd.s32 %s108, 1
      %p112 = scmp.eq.s32.totalorder %s22, 1
      %p113 = scmp.ne.s32.totalorder %s108, %s110
      %p114 = scmp.eq.s32.totalorder %s22, 0
      %p115 = por %p113, %p114
      %p116 = scmp.ne.s32.totalorder %s108, %s110
      %p117 = scmp.eq.s32.totalorder %s27, 1
      %p118 = por %p116, %p117
      %p119 = scmp.ne.s32.totalorder %s110, %s111
      %p120 = scmp.eq.s32.totalorder %s27, 0
      %p121 = por %p119, %p120
      %p122 = scmp.ne.s32.totalorder %s110, %s111
      %p123 = scmp.eq.s32.totalorder %s28, 1
      %p124 = por %p122, %p123
      %p126 = scmp.ne.s32.totalorder %s111, %s125
      %p127 = scmp.eq.s32.totalorder %s28, 0
      %p128 = por %p126, %p127
      %s130 = sadd.s32 %s129, 1
      %p133 = scmp.eq.s32.totalorder %s22, 1
      %p134 = scmp.ne.s32.totalorder %s129, %s131
      %p135 = scmp.eq.s32.totalorder %s22, 0
      %p136 = por %p134, %p135
      %p137 = scmp.ne.s32.totalorder %s129, %s131
      %p138 = scmp.eq.s32.totalorder %s27, 1
      %p139 = por %p137, %p138
      %p140 = scmp.ne.s32.totalorder %s131, %s132
      %p141 = scmp.eq.s32.totalorder %s27, 0
      %p142 = por %p140, %p141
      %p143 = scmp.ne.s32.totalorder %s131, %s132
      %p144 = scmp.eq.s32.totalorder %s28, 1
      %p145 = por %p143, %p144
      %p147 = scmp.ne.s32.totalorder %s132, %s146
      %p148 = scmp.eq.s32.totalorder %s28, 0
      %p149 = por %p147, %p148
      %s151 = sadd.s32 %s150, 1
      %p154 = scmp.eq.s32.totalorder %s22, 1
      %p155 = scmp.ne.s32.totalorder %s150, %s152
      %p156 = scmp.eq.s32.totalorder %s22, 0
      %p157 = por %p155, %p156
      %p158 = scmp.ne.s32.totalorder %s150, %s152
      %p159 = scmp.eq.s32.totalorder %s27, 1
      %p160 = por %p158, %p159
      %p161 = scmp.ne.s32.totalorder %s152, %s153
      %p162 = scmp.eq.s32.totalorder %s27, 0
      %p163 = por %p161, %p162
      %p164 = scmp.ne.s32.totalorder %s152, %s153
      %p165 = scmp.eq.s32.totalorder %s28, 1
      %p166 = por %p164, %p165
      %p168 = scmp.ne.s32.totalorder %s153, %s167
      %p169 = scmp.eq.s32.totalorder %s28, 0
      %p170 = por %p168, %p169
      %s172 = sadd.s32 %s171, 1
      %p175 = scmp.eq.s32.totalorder %s22, 1
      %p176 = scmp.ne.s32.totalorder %s171, %s173
      %p177 = scmp.eq.s32.totalorder %s22, 0
      %p178 = por %p176, %p177
      %p179 = scmp.ne.s32.totalorder %s171, %s173
      %p180 = scmp.eq.s32.totalorder %s27, 1
      %p181 = por %p179, %p180
      %p182 = scmp.ne.s32.totalorder %s173, %s174
      %p183 = scmp.eq.s32.totalorder %s27, 0
      %p184 = por %p182, %p183
      %p185 = scmp.ne.s32.totalorder %s173, %s174
      %p186 = scmp.eq.s32.totalorder %s28, 1
      %p187 = por %p185, %p186
      %p189 = scmp.ne.s32.totalorder %s174, %s188
      %p190 = scmp.eq.s32.totalorder %s28, 0
      %p191 = por %p189, %p190
      %s193 = sadd.s32 %s192, 1
      %p196 = scmp.eq.s32.totalorder %s22, 1
      %p197 = scmp.ne.s32.totalorder %s192, %s194
      %p198 = scmp.eq.s32.totalorder %s22, 0
      %p199 = por %p197, %p198
      %p200 = scmp.ne.s32.totalorder %s192, %s194
      %p201 = scmp.eq.s32.totalorder %s27, 1
      %p202 = por %p200, %p201
      %p203 = scmp.ne.s32.totalorder %s194, %s195
      %p204 = scmp.eq.s32.totalorder %s27, 0
      %p205 = por %p203, %p204
      %p206 = scmp.ne.s32.totalorder %s194, %s195
      %p207 = scmp.eq.s32.totalorder %s28, 1
      %p208 = por %p206, %p207
      %p210 = scmp.ne.s32.totalorder %s195, %s209
      %p211 = scmp.eq.s32.totalorder %s28, 0
      %p212 = por %p210, %p211
      %s214 = sadd.s32 %s213, 1
      %p217 = scmp.eq.s32.totalorder %s22, 1
      %p218 = scmp.ne.s32.totalorder %s213, %s215
      %p219 = scmp.eq.s32.totalorder %s22, 0
      %p220 = por %p218, %p219
      %p221 = scmp.ne.s32.totalorder %s213, %s215
      %p222 = scmp.eq.s32.totalorder %s27, 1
      %p223 = por %p221, %p222
      %p224 = scmp.ne.s32.totalorder %s215, %s216
      %p225 = scmp.eq.s32.totalorder %s27, 0
      %p226 = por %p224, %p225
      %p227 = scmp.ne.s32.totalorder %s215, %s216
      %p228 = scmp.eq.s32.totalorder %s28, 1
      %p229 = por %p227, %p228
      %p231 = scmp.ne.s32.totalorder %s216, %s230
      %p232 = scmp.eq.s32.totalorder %s28, 0
      %p233 = por %p231, %p232
      %s235 = sadd.s32 %s234, 1
      %p238 = scmp.eq.s32.totalorder %s22, 1
      %p239 = scmp.ne.s32.totalorder %s234, %s236
      %p240 = scmp.eq.s32.totalorder %s22, 0
      %p241 = por %p239, %p240
      %p242 = scmp.ne.s32.totalorder %s234, %s236
      %p243 = scmp.eq.s32.totalorder %s27, 1
      %p244 = por %p242, %p243
      %p245 = scmp.ne.s32.totalorder %s236, %s237
      %p246 = scmp.eq.s32.totalorder %s27, 0
      %p247 = por %p245, %p246
      %p248 = scmp.ne.s32.totalorder %s236, %s237
      %p249 = scmp.eq.s32.totalorder %s28, 1
      %p250 = por %p248, %p249
      %p252 = scmp.ne.s32.totalorder %s237, %s251
      %p253 = scmp.eq.s32.totalorder %s28, 0
      %p254 = por %p252, %p253
      %s256 = sadd.s32 %s255, 1
      %p259 = scmp.eq.s32.totalorder %s22, 1
      %p260 = scmp.ne.s32.totalorder %s255, %s257
      %p261 = scmp.eq.s32.totalorder %s22, 0
      %p262 = por %p260, %p261
      %p263 = scmp.ne.s32.totalorder %s255, %s257
      %p264 = scmp.eq.s32.totalorder %s27, 1
      %p265 = por %p263, %p264
      %p266 = scmp.ne.s32.totalorder %s257, %s258
      %p267 = scmp.eq.s32.totalorder %s27, 0
      %p268 = por %p266, %p267
      %p269 = scmp.ne.s32.totalorder %s257, %s258
      %p270 = scmp.eq.s32.totalorder %s28, 1
      %p271 = por %p269, %p270
      %p273 = scmp.ne.s32.totalorder %s258, %s272
      %p274 = scmp.eq.s32.totalorder %s28, 0
      %p275 = por %p273, %p274
      %s276 = ssub.s32 %s22, %s29
      %p277 = scmp.eq.s32.totalorder %s276, 0
      %s279 = sadd.s32 %s278, 1
      %s280 = scalar_select %p277, %s278, %s279
      %p283 = pneg %p277
      %p284 = scmp.eq.s32.totalorder %s22, 1
      %p285 = por %p283, %p284
      %p286 = scmp.ne.s32.totalorder %s278, %s281
      %p287 = scmp.eq.s32.totalorder %s22, 0
      %p288 = por %p286, %p287
      %p289 = scmp.ne.s32.totalorder %s278, %s281
      %p290 = scmp.eq.s32.totalorder %s27, 1
      %p291 = por %p289, %p290
      %p292 = scmp.ne.s32.totalorder %s281, %s282
      %p293 = scmp.eq.s32.totalorder %s27, 0
      %p294 = por %p292, %p293
      %p295 = scmp.ne.s32.totalorder %s281, %s282
      %p296 = scmp.eq.s32.totalorder %s28, 1
      %p297 = por %p295, %p296
      %p299 = scmp.ne.s32.totalorder %s282, %s298
      %p300 = scmp.eq.s32.totalorder %s28, 0
      %p301 = por %p299, %p300
      %s302 = ssub.s32 %s22, %s29
      %p303 = scmp.eq.s32.totalorder %s302, 0
      %s305 = sadd.s32 %s304, 1
      %s306 = scalar_select %p303, %s304, %s305
      %p309 = pneg %p303
      %p310 = scmp.eq.s32.totalorder %s22, 1
      %p311 = por %p309, %p310
      %p312 = scmp.ne.s32.totalorder %s304, %s307
      %p313 = scmp.eq.s32.totalorder %s22, 0
      %p314 = por %p312, %p313
      %p315 = scmp.ne.s32.totalorder %s304, %s307
      %p316 = scmp.eq.s32.totalorder %s27, 1
      %p317 = por %p315, %p316
      %p318 = scmp.ne.s32.totalorder %s307, %s308
      %p319 = scmp.eq.s32.totalorder %s27, 0
      %p320 = por %p318, %p319
      %p321 = scmp.ne.s32.totalorder %s307, %s308
      %p322 = scmp.eq.s32.totalorder %s28, 1
      %p323 = por %p321, %p322
      %p325 = scmp.ne.s32.totalorder %s308, %s324
      %p326 = scmp.eq.s32.totalorder %s28, 0
      %p327 = por %p325, %p326
      %p328 = scmp.le.s32.totalorder 1, %s22
      %p329 = scmp.lt.s32.totalorder %s22, 3
      %p330 = pnand %p328, %p329
      %p331 = pneg %p330
      // Predicated region
      $region9: #{transformer_decoder_forward.11} parent=5 // pred_check
        _
      $region10: #{transformer_decoder_forward.11} parent=5 // pred_check_branch
        %333 = sbr.rel (%p330) target = $region12
      $region11: #{transformer_decoder_forward.11} parent=5 // pred_region
        %s334 = ssub.s32 %s22, 1
        // Predicated region
        $region13: #{transformer_decoder_forward.11} parent=11 // pred_check
          %p335 = pneg %p121
        $region14: #{transformer_decoder_forward.11} parent=11 // pred_check_branch
          %337 = sbr.rel (%p335) target = $region16
        $region15: #{transformer_decoder_forward.11} parent=11 // pred_region
          _
        $region16: #{transformer_decoder_forward.11} parent=11 // pred_fallthru
          _
        // Predicated region
        $region17: #{transformer_decoder_forward.11} parent=11 // pred_check
          %p338 = pneg %p142
        $region18: #{transformer_decoder_forward.11} parent=11 // pred_check_branch
          %340 = sbr.rel (%p338) target = $region20
        $region19: #{transformer_decoder_forward.11} parent=11 // pred_region
          _
        $region20: #{transformer_decoder_forward.11} parent=11 // pred_fallthru
          _
        // Predicated region
        $region21: #{transformer_decoder_forward.11} parent=11 // pred_check
          %p341 = pneg %p163
        $region22: #{transformer_decoder_forward.11} parent=11 // pred_check_branch
          %343 = sbr.rel (%p341) target = $region24
        $region23: #{transformer_decoder_forward.11} parent=11 // pred_region
          _
        $region24: #{transformer_decoder_forward.11} parent=11 // pred_fallthru
          _
        // Predicated region
        $region25: #{transformer_decoder_forward.11} parent=11 // pred_check
          %p344 = pneg %p184
        $region26: #{transformer_decoder_forward.11} parent=11 // pred_check_branch
          %346 = sbr.rel (%p344) target = $region28
        $region27: #{transformer_decoder_forward.11} parent=11 // pred_region
          _
        $region28: #{transformer_decoder_forward.11} parent=11 // pred_fallthru
          _
        // Predicated region
        $region29: #{transformer_decoder_forward.11} parent=11 // pred_check
          %p347 = pneg %p205
        $region30: #{transformer_decoder_forward.11} parent=11 // pred_check_branch
          %349 = sbr.rel (%p347) target = $region32
        $region31: #{transformer_decoder_forward.11} parent=11 // pred_region
          _
        $region32: #{transformer_decoder_forward.11} parent=11 // pred_fallthru
          _
        // Predicated region
        $region33: #{transformer_decoder_forward.11} parent=11 // pred_check
          %p350 = pneg %p226
        $region34: #{transformer_decoder_forward.11} parent=11 // pred_check_branch
          %352 = sbr.rel (%p350) target = $region36
        $region35: #{transformer_decoder_forward.11} parent=11 // pred_region
          _
        $region36: #{transformer_decoder_forward.11} parent=11 // pred_fallthru
          _
        // Predicated region
        $region37: #{transformer_decoder_forward.11} parent=11 // pred_check
          %p353 = pneg %p247
        $region38: #{transformer_decoder_forward.11} parent=11 // pred_check_branch
          %355 = sbr.rel (%p353) target = $region40
        $region39: #{transformer_decoder_forward.11} parent=11 // pred_region
          _
        $region40: #{transformer_decoder_forward.11} parent=11 // pred_fallthru
          _
        // Predicated region
        $region41: #{transformer_decoder_forward.11} parent=11 // pred_check
          %p356 = pneg %p268
        $region42: #{transformer_decoder_forward.11} parent=11 // pred_check_branch
          %358 = sbr.rel (%p356) target = $region44
        $region43: #{transformer_decoder_forward.11} parent=11 // pred_region
          _
        $region44: #{transformer_decoder_forward.11} parent=11 // pred_fallthru
          _
      $region12: #{transformer_decoder_forward.11} parent=5 // pred_fallthru
        _
      %p359 = scmp.lt.s32.totalorder %s22, 2
      // Predicated region
      $region45: #{transformer_decoder_forward.11} parent=5 // pred_check
        %p360 = pneg %p359
      $region46: #{transformer_decoder_forward.11} parent=5 // pred_check_branch
        %362 = sbr.rel (%p360) target = $region48
      $region47: #{transformer_decoder_forward.11} parent=5 // pred_region
        // Predicated region
        $region49: #{transformer_decoder_forward.11} parent=47 // pred_check
          %p363 = pneg %p42
        $region50: #{transformer_decoder_forward.11} parent=47 // pred_check_branch
          %365 = sbr.rel (%p363) target = $region52
        $region51: #{transformer_decoder_forward.11} parent=47 // pred_region
          %p366 = scmp.lt.s32.totalorder %s22, 1
          %s367 = scalar_select %p366, %s22, 1
          %s368 = smul.addr %s367, 2
          %s369 = smul.addr %s368, 4
          %s370 = scalar_lea.vmem %s0, %s369
        $region52: #{transformer_decoder_forward.11} parent=47 // pred_fallthru
          _
        // Predicated region
        $region53: #{transformer_decoder_forward.11} parent=47 // pred_check
          %p371 = pneg %p68
        $region54: #{transformer_decoder_forward.11} parent=47 // pred_check_branch
          %373 = sbr.rel (%p371) target = $region56
        $region55: #{transformer_decoder_forward.11} parent=47 // pred_region
          %p374 = scmp.lt.s32.totalorder %s22, 1
          %s375 = scalar_select %p374, %s22, 1
          %s376 = smul.addr %s375, 3
          %s377 = smul.addr %s376, 4
          %s378 = scalar_lea.vmem %s1, %s377
        $region56: #{transformer_decoder_forward.11} parent=47 // pred_fallthru
          _
        // Predicated region
        $region57: #{transformer_decoder_forward.11} parent=47 // pred_check
          %p379 = pneg %p94
        $region58: #{transformer_decoder_forward.11} parent=47 // pred_check_branch
          %381 = sbr.rel (%p379) target = $region60
        $region59: #{transformer_decoder_forward.11} parent=47 // pred_region
          %p382 = scmp.lt.s32.totalorder %s22, 1
          %s383 = scalar_select %p382, %s22, 1
          %s384 = scalar_lea.vmem %s2, %s383
        $region60: #{transformer_decoder_forward.11} parent=47 // pred_fallthru
          _
      $region48: #{transformer_decoder_forward.11} parent=5 // pred_fallthru
        _
      %p385 = scmp.le.s32.totalorder 1, %s22
      %p386 = scmp.lt.s32.totalorder %s22, 3
      %p387 = pnand %p385, %p386
      %p388 = pneg %p387
      // Predicated region
      $region61: #{transformer_decoder_forward.11} parent=5 // pred_check
        _
      $region62: #{transformer_decoder_forward.11} parent=5 // pred_check_branch
        %390 = sbr.rel (%p387) target = $region64
      $region63: #{transformer_decoder_forward.11} parent=5 // pred_region
        %s391 = ssub.s32 %s22, 1
        %p392 = scmp.lt.s32.totalorder %s27, 1
        %s393 = scalar_select %p392, %s27, 1
        %s394 = smul.addr %s393, 2
        %s395 = smul.addr %s394, 4
        %s396 = scalar_lea.vmem %s0, %s395
        %p397 = pneg %p48
        %p398 = pneg %p45
        %p399 = scmp.lt.s32.totalorder %s27, 1
        %s400 = scalar_select %p399, %s27, 1
        %s401 = smul.addr %s400, 3
        %s402 = smul.addr %s401, 4
        %s403 = scalar_lea.vmem %s1, %s402
        %p404 = pneg %p74
        %p405 = pneg %p71
        %p406 = scmp.lt.s32.totalorder %s27, 1
        %s407 = scalar_select %p406, %s27, 1
        %s408 = scalar_lea.vmem %s2, %s407
        %p409 = pneg %p100
        %p410 = pneg %p97
        %p411 = pneg %p121
        %p412 = pneg %p118
        %p413 = pneg %p142
        %p414 = pneg %p139
        %p415 = pneg %p163
        %p416 = pneg %p160
        %p417 = pneg %p184
        %p418 = pneg %p181
        %p419 = pneg %p205
        %p420 = pneg %p202
        %p421 = pneg %p226
        %p422 = pneg %p223
        %p423 = pneg %p247
        %p424 = pneg %p244
        %p425 = pneg %p268
        %p426 = pneg %p265
        %p427 = pneg %p294
        %p428 = pneg %p291
        %p429 = scmp.lt.s32.totalorder %s27, 1
        %s430 = scalar_select %p429, %s27, 1
        %s431 = smul.addr %s430, 2
        %s432 = smul.addr %s431, 4
        %s433 = scalar_lea.vmem %s11, %s432
        %p434 = pneg %p320
        %p435 = pneg %p317
        %s436 = sand.u32 %s307, 1
        %s437 = scalar_lea.sflag [#allocation3], %s436
        %s438 = sand.u32 %s307, 1
        %s439 = smul.addr %s438, 16
        %s440 = scalar_lea.vmem [#allocation2], %s439
        %p441 = scmp.lt.s32.totalorder %s27, 1
        %s442 = scalar_select %p441, %s27, 1
        %s443 = smul.addr %s442, 2
        %s444 = smul.addr %s443, 4
        %s445 = scalar_lea.vmem %s0, %s444
        %p446 = scmp.lt.s32.totalorder %s27, 1
        %s447 = scalar_select %p446, %s27, 1
        %s448 = smul.addr %s447, 3
        %s449 = smul.addr %s448, 4
        %s450 = scalar_lea.vmem %s1, %s449
        %p451 = scmp.lt.s32.totalorder %s27, 1
        %s452 = scalar_select %p451, %s27, 1
        %s453 = scalar_lea.vmem %s2, %s452
        %p454 = scmp.lt.s32.totalorder %s27, 1
        %s455 = scalar_select %p454, %s27, 1
        %s456 = smul.addr %s455, 2
        %s457 = smul.addr %s456, 4
        %s458 = scalar_lea.vmem %s11, %s457
        %v460 = vld [vmem:[%s445] sm:$0xf]
        %v461 = vld [vmem:[%s445 + $0x4] sm:$0xf]
        %v462 = vld [vmem:[%s450] sm:$0xf]
        %v463 = vld [vmem:[%s450 + $0x4] sm:$0xf]
        %v464 = vld [vmem:[%s450 + $0x8] sm:$0xf]
        %v465 = vld [vmem:[%s3] sm:$0xf]
        %v466 = vld [vmem:[%s3 + $0x4] sm:$0xf]
        %v467 = vld [vmem:[%s3 + $0x8] sm:$0xf]
        %v468 = vld [vmem:[%s3 + $0xc] sm:$0xf]
        %v469 = vld [vmem:[%s3 + $0x10] sm:$0xf]
        %v470 = vld [vmem:[%s3 + $0x14] sm:$0xf]
        %v471 = vld [vmem:[%s3 + $0x18] sm:$0xf]
        %v472 = vld [vmem:[%s3 + $0x1c] sm:$0xf]
        %v473 = vld [vmem:[%s3 + $0x20] sm:$0xf]
        %v474 = vld [vmem:[%s3 + $0x24] sm:$0xf]
        %v475 = vld [vmem:[%s3 + $0x28] sm:$0xf]
        %v476 = vld [vmem:[%s3 + $0x2c] sm:$0xf]
        %v477 = vld [vmem:[%s3 + $0x30] sm:$0xf]
        %v478 = vld [vmem:[%s3 + $0x34] sm:$0xf]
        %v479 = vld [vmem:[%s3 + $0x38] sm:$0xf]
        %v480 = vld [vmem:[%s3 + $0x3c] sm:$0xf]
        %v481 = vld [vmem:[%s4] sm:$0x1]
        %v483 = vlaneseq
        %v484 = vshrl.u32 %v483, 7
        %v485 = vsub.s32 0, %v484
        %v486 = vrot.slane %v481, %v485
        %v490 = vunpack.c.l.b16 %v460
        %v491 = vunpack.c.l.b16 %v461
        %v492 = vpack.c.b16 %v491, %v490
        %v510 = vunpack.c.l.b16 %v465
        %v511 = vunpack.c.l.b16 %v466
        %v512 = vunpack.c.l.b16 %v467
        %v513 = vunpack.c.l.b16 %v468
        %v514 = vunpack.c.l.b16 %v469
        %v515 = vunpack.c.l.b16 %v470
        %v516 = vunpack.c.l.b16 %v471
        %v517 = vunpack.c.l.b16 %v472
        %v518 = vunpack.c.l.b16 %v473
        %v519 = vunpack.c.l.b16 %v474
        %v520 = vunpack.c.l.b16 %v475
        %v521 = vunpack.c.l.b16 %v476
        %v522 = vunpack.c.l.b16 %v477
        %v523 = vunpack.c.l.b16 %v478
        %v524 = vunpack.c.l.b16 %v479
        %v525 = vunpack.c.l.b16 %v480
        %v526 = vpack.c.b16 %v511, %v510
        %v527 = vpack.c.b16 %v513, %v512
        %v528 = vpack.c.b16 %v515, %v514
        %v529 = vpack.c.b16 %v517, %v516
        %v530 = vpack.c.b16 %v519, %v518
        %v531 = vpack.c.b16 %v521, %v520
        %v532 = vpack.c.b16 %v523, %v522
        %v533 = vpack.c.b16 %v525, %v524
        %542 = vmatprep.subr.bf16.mxu0 0
        %543 = vmatpush1.bf16.msra.mxu0 %v526
        %544 = vmatprep.subr.bf16.mxu0 0
        %545 = vmatpush1.bf16.msra.mxu0 %v527
        %546 = vmatprep.subr.bf16.mxu0 0
        %547 = vmatpush1.bf16.msra.mxu0 %v528
        %548 = vmatprep.subr.bf16.mxu0 0
        %549 = vmatpush1.bf16.msra.mxu0 %v529
        %550 = vmatprep.subr.bf16.mxu0 0
        %551 = vmatpush1.bf16.msra.mxu0 %v530
        %552 = vmatprep.subr.bf16.mxu0 0
        %553 = vmatpush1.bf16.msra.mxu0 %v531
        %554 = vmatprep.subr.bf16.mxu0 0
        %555 = vmatpush1.bf16.msra.mxu0 %v532
        %556 = vmatprep.subr.bf16.mxu0 0
        %557 = vmatpush1.bf16.msra.mxu0 %v533
        %558 = vmatprep.subr.bf16.mxu0 0
        %559 = vmatpush1.bf16.msra.mxu0 0
        %560 = vmatprep.subr.bf16.mxu0 0
        %561 = vmatpush1.bf16.msra.mxu0 0
        %562 = vmatprep.subr.bf16.mxu0 0
        %563 = vmatpush1.bf16.msra.mxu0 0
        %564 = vmatprep.subr.bf16.mxu0 0
        %565 = vmatpush1.bf16.msra.mxu0 0
        %566 = vmatprep.subr.bf16.mxu0 0
        %567 = vmatpush1.bf16.msra.mxu0 0
        %568 = vmatprep.subr.bf16.mxu0 0
        %569 = vmatpush1.bf16.msra.mxu0 0
        %570 = vmatprep.subr.bf16.mxu0 0
        %571 = vmatpush1.bf16.msra.mxu0 0
        %572 = vmatprep.subr.bf16.mxu0 0
        %573 = vmatpush1.bf16.msra.mxu0 0
        %574 = vmatprep.mubr.bf16.mxu0 0
        %575 = vmatmul.mubr.bf16.gmra.mrb[0].mxu0 %v492
        %v576 = vpop.f32.mrb[0].mxu0
        %v577 = vadd.f32 %v486, %v576
        %v578 = vpop.f32.mrb[0].mxu0
        %v579 = vpop.f32.mrb[0].mxu0
        %v580 = vadd.f32 %v486, %v579
        %v581 = vpop.f32.mrb[0].mxu0
        %582 = vdwg.mxu0
        %v583 = vld [vmem:[%s5] sm:$0xff]
        %v584 = vld [vmem:[%s5 + $0x8] sm:$0xff]
        %v585 = vld [vmem:[%s5 + $0x10] sm:$0xff]
        %v586 = vld [vmem:[%s5 + $0x18] sm:$0xff]
        %v587 = vld [vmem:[%s5 + $0x20] sm:$0xff]
        %v588 = vld [vmem:[%s5 + $0x28] sm:$0xff]
        %v589 = vld [vmem:[%s5 + $0x30] sm:$0xff]
        %v590 = vld [vmem:[%s5 + $0x38] sm:$0xff]
        %v591 = vld [vmem:[%s5 + $0x40] sm:$0xff]
        %v592 = vld [vmem:[%s5 + $0x48] sm:$0xff]
        %v593 = vld [vmem:[%s5 + $0x50] sm:$0xff]
        %v594 = vld [vmem:[%s5 + $0x58] sm:$0xff]
        %v595 = vld [vmem:[%s5 + $0x60] sm:$0xff]
        %v596 = vld [vmem:[%s5 + $0x68] sm:$0xff]
        %v597 = vld [vmem:[%s5 + $0x70] sm:$0xff]
        %v598 = vld [vmem:[%s5 + $0x78] sm:$0xff]
        %v599 = vld [vmem:[%s6] sm:$0x3]
        %v601 = vlaneseq
        %v602 = vshrl.u32 %v601, 7
        %v603 = vsub.s32 0, %v602
        %v604 = vrot.slane %v599, %v603
        %v605 = vlaneseq
        %v606 = vshrl.u32 %v605, 7
        %v607 = vsub.s32 1, %v606
        %v608 = vrot.slane %v599, %v607
        %v614 = vunpack.c.l.b16 %v462
        %v615 = vunpack.c.l.b16 %v463
        %v616 = vunpack.c.l.b16 %v464
        %v617 = vpack.c.b16 %v615, %v614
        %v618 = vpack.c.b16 %v616, %v616
        %v637 = vunpack.c.l.b16 %v583
        %v638 = vunpack.c.h.b16 %v583
        %v639 = vunpack.c.l.b16 %v584
        %v640 = vunpack.c.h.b16 %v584
        %v641 = vunpack.c.l.b16 %v585
        %v642 = vunpack.c.h.b16 %v585
        %v643 = vunpack.c.l.b16 %v586
        %v644 = vunpack.c.h.b16 %v586
        %v645 = vunpack.c.l.b16 %v587
        %v646 = vunpack.c.h.b16 %v587
        %v647 = vunpack.c.l.b16 %v588
        %v648 = vunpack.c.h.b16 %v588
        %v649 = vunpack.c.l.b16 %v589
        %v650 = vunpack.c.h.b16 %v589
        %v651 = vunpack.c.l.b16 %v590
        %v652 = vunpack.c.h.b16 %v590
        %v653 = vunpack.c.l.b16 %v591
        %v654 = vunpack.c.h.b16 %v591
        %v655 = vunpack.c.l.b16 %v592
        %v656 = vunpack.c.h.b16 %v592
        %v657 = vunpack.c.l.b16 %v593
        %v658 = vunpack.c.h.b16 %v593
        %v659 = vunpack.c.l.b16 %v594
        %v660 = vunpack.c.h.b16 %v594
        %v661 = vunpack.c.l.b16 %v595
        %v662 = vunpack.c.h.b16 %v595
        %v663 = vunpack.c.l.b16 %v596
        %v664 = vunpack.c.h.b16 %v596
        %v665 = vunpack.c.l.b16 %v597
        %v666 = vunpack.c.h.b16 %v597
        %v667 = vunpack.c.l.b16 %v598
        %v668 = vunpack.c.h.b16 %v598
        %v669 = vpack.c.b16 %v639, %v637
        %v670 = vpack.c.b16 %v640, %v638
        %v671 = vpack.c.b16 %v643, %v641
        %v672 = vpack.c.b16 %v644, %v642
        %v673 = vpack.c.b16 %v647, %v645
        %v674 = vpack.c.b16 %v648, %v646
        %v675 = vpack.c.b16 %v651, %v649
        %v676 = vpack.c.b16 %v652, %v650
        %v677 = vpack.c.b16 %v655, %v653
        %v678 = vpack.c.b16 %v656, %v654
        %v679 = vpack.c.b16 %v659, %v657
        %v680 = vpack.c.b16 %v660, %v658
        %v681 = vpack.c.b16 %v663, %v661
        %v682 = vpack.c.b16 %v664, %v662
        %v683 = vpack.c.b16 %v667, %v665
        %v684 = vpack.c.b16 %v668, %v666
        %701 = vmatprep.subr.bf16.mxu0 %v670
        %702 = vmatpush1.bf16.msra.mxu0 %v669
        %703 = vmatprep.subr.bf16.mxu0 %v672
        %704 = vmatpush1.bf16.msra.mxu0 %v671
        %705 = vmatprep.subr.bf16.mxu0 %v674
        %706 = vmatpush1.bf16.msra.mxu0 %v673
        %707 = vmatprep.subr.bf16.mxu0 %v676
        %708 = vmatpush1.bf16.msra.mxu0 %v675
        %709 = vmatprep.subr.bf16.mxu0 %v678
        %710 = vmatpush1.bf16.msra.mxu0 %v677
        %711 = vmatprep.subr.bf16.mxu0 %v680
        %712 = vmatpush1.bf16.msra.mxu0 %v679
        %713 = vmatprep.subr.bf16.mxu0 %v682
        %714 = vmatpush1.bf16.msra.mxu0 %v681
        %715 = vmatprep.subr.bf16.mxu0 %v684
        %716 = vmatpush1.bf16.msra.mxu0 %v683
        %717 = vmatprep.subr.bf16.mxu0 0
        %718 = vmatpush1.bf16.msra.mxu0 0
        %719 = vmatprep.subr.bf16.mxu0 0
        %720 = vmatpush1.bf16.msra.mxu0 0
        %721 = vmatprep.subr.bf16.mxu0 0
        %722 = vmatpush1.bf16.msra.mxu0 0
        %723 = vmatprep.subr.bf16.mxu0 0
        %724 = vmatpush1.bf16.msra.mxu0 0
        %725 = vmatprep.subr.bf16.mxu0 0
        %726 = vmatpush1.bf16.msra.mxu0 0
        %727 = vmatprep.subr.bf16.mxu0 0
        %728 = vmatpush1.bf16.msra.mxu0 0
        %729 = vmatprep.subr.bf16.mxu0 0
        %730 = vmatpush1.bf16.msra.mxu0 0
        %731 = vmatprep.subr.bf16.mxu0 0
        %732 = vmatpush1.bf16.msra.mxu0 0
        %733 = vmatprep.mubr.bf16.mxu0 0
        %734 = vmatmul.mubr.bf16.gmra.mrb[0].mxu0 %v617
        %v735 = vpop.f32.mrb[0].mxu0
        %v736 = vadd.f32 %v604, %v735
        %v737 = vpop.f32.mrb[0].mxu0
        %v738 = vadd.f32 %v608, %v737
        %v739 = vpop.f32.mrb[0].mxu0
        %v740 = vadd.f32 %v604, %v739
        %v741 = vpop.f32.mrb[0].mxu0
        %v742 = vadd.f32 %v608, %v741
        %743 = vmatprep.mubr.bf16.mxu0 0
        %744 = vmatmul.mubr.bf16.gmra.mrb[0].mxu0 %v618
        %v745 = vpop.f32.mrb[0].mxu0
        %v746 = vadd.f32 %v604, %v745
        %v747 = vpop.f32.mrb[0].mxu0
        %v748 = vadd.f32 %v608, %v747
        %v749 = vpop.f32.mrb[0].mxu0
        %v750 = vpop.f32.mrb[0].mxu0
        %751 = vdwg.mxu0
        %v752 = vld [vmem:[%s453] sm:$0x1]
        %v753 = vmul.f32 %v577, 0.17677669
        %v754 = vmul.f32 %v580, 0.17677669
        %v755 = vpack.c.bf16 %v754, %v753
        %v756 = vpack.c.bf16 %v740, %v736
        %v757 = vpack.c.bf16 %v746, %v746
        %v758 = vpack.c.bf16 %v742, %v738
        %v759 = vpack.c.bf16 %v748, %v748
        %v761 = vlaneseq
        %v762 = vshrl.u32 %v761, 7
        %v763 = vsub.s32 0, %v762
        %v764 = vrot.slane %v752, %v763
        %vm766 = vcmask 261120
        %v768 = vsel %vm766, %v755, 0
        %v771 = vsel %vm766, %v756, 0
        %v774 = vsel %vm766, %v757, 0
        %776 = vmatprep.subr.bf16.mxu0 0
        %777 = vmatpush1.bf16.xpose.msra.mxu0 %v771
        %778 = vmatprep.subr.bf16.mxu0 0
        %779 = vmatpush1.bf16.xpose.msra.mxu0 %v774
        %780 = vmatprep.subr.bf16.mxu0 0
        %781 = vmatpush1.bf16.xpose.msra.mxu0 0
        %782 = vmatprep.subr.bf16.mxu0 0
        %783 = vmatpush1.bf16.xpose.msra.mxu0 0
        %784 = vmatprep.subr.bf16.mxu0 0
        %785 = vmatpush1.bf16.xpose.msra.mxu0 0
        %786 = vmatprep.subr.bf16.mxu0 0
        %787 = vmatpush1.bf16.xpose.msra.mxu0 0
        %788 = vmatprep.subr.bf16.mxu0 0
        %789 = vmatpush1.bf16.xpose.msra.mxu0 0
        %790 = vmatprep.subr.bf16.mxu0 0
        %791 = vmatpush1.bf16.xpose.msra.mxu0 0
        %792 = vmatprep.subr.bf16.mxu0 0
        %793 = vmatpush1.bf16.xpose.msra.mxu0 0
        %794 = vmatprep.subr.bf16.mxu0 0
        %795 = vmatpush1.bf16.xpose.msra.mxu0 0
        %796 = vmatprep.subr.bf16.mxu0 0
        %797 = vmatpush1.bf16.xpose.msra.mxu0 0
        %798 = vmatprep.subr.bf16.mxu0 0
        %799 = vmatpush1.bf16.xpose.msra.mxu0 0
        %800 = vmatprep.subr.bf16.mxu0 0
        %801 = vmatpush1.bf16.xpose.msra.mxu0 0
        %802 = vmatprep.subr.bf16.mxu0 0
        %803 = vmatpush1.bf16.xpose.msra.mxu0 0
        %804 = vmatprep.subr.bf16.mxu0 0
        %805 = vmatpush1.bf16.xpose.msra.mxu0 0
        %806 = vmatprep.subr.bf16.mxu0 0
        %807 = vmatpush1.bf16.xpose.msra.mxu0 0
        %808 = vmatprep.mubr.bf16.mxu0 0
        %809 = vmatmul.mubr.bf16.gmra.mrb[0].mxu0 %v768
        %v810 = vpop.f32.mrb[0].mxu0
        %v811 = vadd.f32 %v764, %v810
        %v812 = vpop.f32.mrb[0].mxu0
        %v813 = vpop.f32.mrb[0].mxu0
        %v814 = vadd.f32 %v764, %v813
        %v815 = vpop.f32.mrb[0].mxu0
        %816 = vdwg.mxu0
        %vm817 = vcmask 195584
        %v818 = vsel %vm817, %v811, -inf
        %819 = vmax.xlane.f32.xlu0 %v818
        %v820 = vpop.xlane.xlu0 %819
        %v821 = vsel %vm817, %v814, -inf
        %822 = vmax.xlane.f32.xlu0 %v821
        %v823 = vpop.xlane.xlu0 %822
        %v824 = vsub.f32 %v811, %v820
        %v825 = vsub.f32 %v814, %v823
        %v826 = vmul.f32 %v824, 1.442695
        %v827 = vpow.pop %v826
        %v828 = vmul.f32 %v825, 1.442695
        %v829 = vpow.pop %v828
        %v830 = vsel %vm817, %v827, 0.0
        %831 = vadd.xlane.f32.xlu0 %v830
        %v832 = vpop.xlane.xlu0 %831
        %v833 = vsel %vm817, %v829, 0.0
        %834 = vadd.xlane.f32.xlu0 %v833
        %v835 = vpop.xlane.xlu0 %834
        %v836 = vrcp.pop %v832
        %v837 = vrcp.pop %v835
        %v838 = vmul.f32 %v827, %v836
        %v839 = vmul.f32 %v829, %v837
        %v840 = vadd.f32 %v838, 0.0
        %v841 = vadd.f32 %v839, 0.0
        %v842 = vpack.c.bf16 %v839, %v838
        %v844 = vsel %vm817, %v842, 0
        %vm846 = vcmask 1043456
        %v848 = vsel %vm846, %v759, 0
        %850 = vmatprep.subr.bf16.mxu0 0
        %851 = vmatpush1.bf16.msra.mxu0 %v758
        %852 = vmatprep.subr.bf16.mxu0 0
        %853 = vmatpush1.bf16.msra.mxu0 %v848
        %854 = vmatprep.subr.bf16.mxu0 0
        %855 = vmatpush1.bf16.msra.mxu0 0
        %856 = vmatprep.subr.bf16.mxu0 0
        %857 = vmatpush1.bf16.msra.mxu0 0
        %858 = vmatprep.subr.bf16.mxu0 0
        %859 = vmatpush1.bf16.msra.mxu0 0
        %860 = vmatprep.subr.bf16.mxu0 0
        %861 = vmatpush1.bf16.msra.mxu0 0
        %862 = vmatprep.subr.bf16.mxu0 0
        %863 = vmatpush1.bf16.msra.mxu0 0
        %864 = vmatprep.subr.bf16.mxu0 0
        %865 = vmatpush1.bf16.msra.mxu0 0
        %866 = vmatprep.subr.bf16.mxu0 0
        %867 = vmatpush1.bf16.msra.mxu0 0
        %868 = vmatprep.subr.bf16.mxu0 0
        %869 = vmatpush1.bf16.msra.mxu0 0
        %870 = vmatprep.subr.bf16.mxu0 0
        %871 = vmatpush1.bf16.msra.mxu0 0
        %872 = vmatprep.subr.bf16.mxu0 0
        %873 = vmatpush1.bf16.msra.mxu0 0
        %874 = vmatprep.subr.bf16.mxu0 0
        %875 = vmatpush1.bf16.msra.mxu0 0
        %876 = vmatprep.subr.bf16.mxu0 0
        %877 = vmatpush1.bf16.msra.mxu0 0
        %878 = vmatprep.subr.bf16.mxu0 0
        %879 = vmatpush1.bf16.msra.mxu0 0
        %880 = vmatprep.subr.bf16.mxu0 0
        %881 = vmatpush1.bf16.msra.mxu0 0
        %882 = vmatprep.mubr.bf16.mxu0 0
        %883 = vmatmul.mubr.bf16.gmra.mrb[0].mxu0 %v844
        %v884 = vpop.f32.mrb[0].mxu0
        %v885 = vadd.f32 0.0, %v884
        %v886 = vpop.f32.mrb[0].mxu0
        %v887 = vpop.f32.mrb[0].mxu0
        %v888 = vadd.f32 0.0, %v887
        %v889 = vpop.f32.mrb[0].mxu0
        %890 = vdwg.mxu0
        %v891 = vpack.c.bf16 %v888, %v885
        %v892 = vld [vmem:[%s7] sm:$0xf]
        %v893 = vld [vmem:[%s7 + $0x4] sm:$0xf]
        %v894 = vld [vmem:[%s7 + $0x8] sm:$0xf]
        %v895 = vld [vmem:[%s7 + $0xc] sm:$0xf]
        %897 = vrot.lane.b32.xlu0 %v755, 96
        %v898 = vpop.permute.xlu0 %897
        %901 = vrot.lane.b32.xlu0 %v756, 96
        %v902 = vpop.permute.xlu0 %901
        %903 = vrot.lane.b32.xlu0 %v757, 96
        %v904 = vpop.permute.xlu0 %903
        %v906 = vsel %vm766, %v898, 0
        %v909 = vsel %vm766, %v902, 0
        %v912 = vsel %vm766, %v904, 0
        %914 = vmatprep.subr.bf16.mxu0 0
        %915 = vmatpush1.bf16.xpose.msra.mxu0 %v909
        %916 = vmatprep.subr.bf16.mxu0 0
        %917 = vmatpush1.bf16.xpose.msra.mxu0 %v912
        %918 = vmatprep.subr.bf16.mxu0 0
        %919 = vmatpush1.bf16.xpose.msra.mxu0 0
        %920 = vmatprep.subr.bf16.mxu0 0
        %921 = vmatpush1.bf16.xpose.msra.mxu0 0
        %922 = vmatprep.subr.bf16.mxu0 0
        %923 = vmatpush1.bf16.xpose.msra.mxu0 0
        %924 = vmatprep.subr.bf16.mxu0 0
        %925 = vmatpush1.bf16.xpose.msra.mxu0 0
        %926 = vmatprep.subr.bf16.mxu0 0
        %927 = vmatpush1.bf16.xpose.msra.mxu0 0
        %928 = vmatprep.subr.bf16.mxu0 0
        %929 = vmatpush1.bf16.xpose.msra.mxu0 0
        %930 = vmatprep.subr.bf16.mxu0 0
        %931 = vmatpush1.bf16.xpose.msra.mxu0 0
        %932 = vmatprep.subr.bf16.mxu0 0
        %933 = vmatpush1.bf16.xpose.msra.mxu0 0
        %934 = vmatprep.subr.bf16.mxu0 0
        %935 = vmatpush1.bf16.xpose.msra.mxu0 0
        %936 = vmatprep.subr.bf16.mxu0 0
        %937 = vmatpush1.bf16.xpose.msra.mxu0 0
        %938 = vmatprep.subr.bf16.mxu0 0
        %939 = vmatpush1.bf16.xpose.msra.mxu0 0
        %940 = vmatprep.subr.bf16.mxu0 0
        %941 = vmatpush1.bf16.xpose.msra.mxu0 0
        %942 = vmatprep.subr.bf16.mxu0 0
        %943 = vmatpush1.bf16.xpose.msra.mxu0 0
        %944 = vmatprep.subr.bf16.mxu0 0
        %945 = vmatpush1.bf16.xpose.msra.mxu0 0
        %946 = vmatprep.mubr.bf16.mxu0 0
        %947 = vmatmul.mubr.bf16.gmra.mrb[0].mxu0 %v906
        %v948 = vpop.f32.mrb[0].mxu0
        %v949 = vadd.f32 %v764, %v948
        %v950 = vpop.f32.mrb[0].mxu0
        %v951 = vpop.f32.mrb[0].mxu0
        %v952 = vadd.f32 %v764, %v951
        %v953 = vpop.f32.mrb[0].mxu0
        %954 = vdwg.mxu0
        %v955 = vsel %vm817, %v949, -inf
        %956 = vmax.xlane.f32.xlu0 %v955
        %v957 = vpop.xlane.xlu0 %956
        %v958 = vsel %vm817, %v952, -inf
        %959 = vmax.xlane.f32.xlu0 %v958
        %v960 = vpop.xlane.xlu0 %959
        %v961 = vsub.f32 %v949, %v957
        %v962 = vsub.f32 %v952, %v960
        %v963 = vmul.f32 %v961, 1.442695
        %v964 = vpow.pop %v963
        %v965 = vmul.f32 %v962, 1.442695
        %v966 = vpow.pop %v965
        %v967 = vsel %vm817, %v964, 0.0
        %968 = vadd.xlane.f32.xlu0 %v967
        %v969 = vpop.xlane.xlu0 %968
        %v970 = vsel %vm817, %v966, 0.0
        %971 = vadd.xlane.f32.xlu0 %v970
        %v972 = vpop.xlane.xlu0 %971
        %v973 = vrcp.pop %v969
        %v974 = vrcp.pop %v972
        %v975 = vmul.f32 %v964, %v973
        %v976 = vmul.f32 %v966, %v974
        %v977 = vadd.f32 %v840, %v975
        %v978 = vadd.f32 %v841, %v976
        %v979 = vpack.c.bf16 %v976, %v975
        %982 = vrot.lane.b32.xlu0 %v758, 96
        %v983 = vpop.permute.xlu0 %982
        %984 = vrot.lane.b32.xlu0 %v759, 96
        %v985 = vpop.permute.xlu0 %984
        %v988 = vsel %vm817, %v979, 0
        %v991 = vsel %vm846, %v985, 0
        %993 = vmatprep.subr.bf16.mxu0 0
        %994 = vmatpush1.bf16.msra.mxu0 %v983
        %995 = vmatprep.subr.bf16.mxu0 0
        %996 = vmatpush1.bf16.msra.mxu0 %v991
        %997 = vmatprep.subr.bf16.mxu0 0
        %998 = vmatpush1.bf16.msra.mxu0 0
        %999 = vmatprep.subr.bf16.mxu0 0
        %1000 = vmatpush1.bf16.msra.mxu0 0
        %1001 = vmatprep.subr.bf16.mxu0 0
        %1002 = vmatpush1.bf16.msra.mxu0 0
        %1003 = vmatprep.subr.bf16.mxu0 0
        %1004 = vmatpush1.bf16.msra.mxu0 0
        %1005 = vmatprep.subr.bf16.mxu0 0
        %1006 = vmatpush1.bf16.msra.mxu0 0
        %1007 = vmatprep.subr.bf16.mxu0 0
        %1008 = vmatpush1.bf16.msra.mxu0 0
        %1009 = vmatprep.subr.bf16.mxu0 0
        %1010 = vmatpush1.bf16.msra.mxu0 0
        %1011 = vmatprep.subr.bf16.mxu0 0
        %1012 = vmatpush1.bf16.msra.mxu0 0
        %1013 = vmatprep.subr.bf16.mxu0 0
        %1014 = vmatpush1.bf16.msra.mxu0 0
        %1015 = vmatprep.subr.bf16.mxu0 0
        %1016 = vmatpush1.bf16.msra.mxu0 0
        %1017 = vmatprep.subr.bf16.mxu0 0
        %1018 = vmatpush1.bf16.msra.mxu0 0
        %1019 = vmatprep.subr.bf16.mxu0 0
        %1020 = vmatpush1.bf16.msra.mxu0 0
        %1021 = vmatprep.subr.bf16.mxu0 0
        %1022 = vmatpush1.bf16.msra.mxu0 0
        %1023 = vmatprep.subr.bf16.mxu0 0
        %1024 = vmatpush1.bf16.msra.mxu0 0
        %1025 = vmatprep.mubr.bf16.mxu0 0
        %1026 = vmatmul.mubr.bf16.gmra.mrb[0].mxu0 %v988
        %v1027 = vpop.f32.mrb[0].mxu0
        %v1028 = vadd.f32 0.0, %v1027
        %v1029 = vpop.f32.mrb[0].mxu0
        %v1030 = vpop.f32.mrb[0].mxu0
        %v1031 = vadd.f32 0.0, %v1030
        %v1032 = vpop.f32.mrb[0].mxu0
        %1033 = vdwg.mxu0
        %v1034 = vpack.c.bf16 %v1031, %v1028
        %v1035 = vld [vmem:[%s7 + $0x10] sm:$0xf]
        %v1036 = vld [vmem:[%s7 + $0x14] sm:$0xf]
        %v1037 = vld [vmem:[%s7 + $0x18] sm:$0xf]
        %v1038 = vld [vmem:[%s7 + $0x1c] sm:$0xf]
        %v1043 = vunpack.c.l.b16 %v1035
        %v1044 = vunpack.c.l.b16 %v1036
        %v1045 = vunpack.c.l.b16 %v1037
        %v1046 = vunpack.c.l.b16 %v1038
        %v1047 = vpack.c.b16 %v1044, %v1043
        %v1048 = vpack.c.b16 %v1046, %v1045
        %v1052 = vsel %vm766, %v1034, 0
        %1054 = vmatprep.subr.bf16.mxu0 0
        %1055 = vmatpush1.bf16.msra.mxu0 %v1047
        %1056 = vmatprep.subr.bf16.mxu0 0
        %1057 = vmatpush1.bf16.msra.mxu0 %v1048
        %1058 = vmatprep.subr.bf16.mxu0 0
        %1059 = vmatpush1.bf16.msra.mxu0 0
        %1060 = vmatprep.subr.bf16.mxu0 0
        %1061 = vmatpush1.bf16.msra.mxu0 0
        %1062 = vmatprep.subr.bf16.mxu0 0
        %1063 = vmatpush1.bf16.msra.mxu0 0
        %1064 = vmatprep.subr.bf16.mxu0 0
        %1065 = vmatpush1.bf16.msra.mxu0 0
        %1066 = vmatprep.subr.bf16.mxu0 0
        %1067 = vmatpush1.bf16.msra.mxu0 0
        %1068 = vmatprep.subr.bf16.mxu0 0
        %1069 = vmatpush1.bf16.msra.mxu0 0
        %1070 = vmatprep.subr.bf16.mxu0 0
        %1071 = vmatpush1.bf16.msra.mxu0 0
        %1072 = vmatprep.subr.bf16.mxu0 0
        %1073 = vmatpush1.bf16.msra.mxu0 0
        %1074 = vmatprep.subr.bf16.mxu0 0
        %1075 = vmatpush1.bf16.msra.mxu0 0
        %1076 = vmatprep.subr.bf16.mxu0 0
        %1077 = vmatpush1.bf16.msra.mxu0 0
        %1078 = vmatprep.subr.bf16.mxu0 0
        %1079 = vmatpush1.bf16.msra.mxu0 0
        %1080 = vmatprep.subr.bf16.mxu0 0
        %1081 = vmatpush1.bf16.msra.mxu0 0
        %1082 = vmatprep.subr.bf16.mxu0 0
        %1083 = vmatpush1.bf16.msra.mxu0 0
        %1084 = vmatprep.subr.bf16.mxu0 0
        %1085 = vmatpush1.bf16.msra.mxu0 0
        %1086 = vmatprep.mubr.bf16.mxu0 0
        %1087 = vmatmul.mubr.bf16.gmra.mrb[0].mxu0 %v1052
        %v1088 = vpop.f32.mrb[0].mxu0
        %v1089 = vadd.f32 0.0, %v1088
        %v1090 = vpop.f32.mrb[0].mxu0
        %v1091 = vpop.f32.mrb[0].mxu0
        %v1092 = vadd.f32 0.0, %v1091
        %v1093 = vpop.f32.mrb[0].mxu0
        %1094 = vdwg.mxu0
        %v1099 = vunpack.c.l.b16 %v892
        %v1100 = vunpack.c.l.b16 %v893
        %v1101 = vunpack.c.l.b16 %v894
        %v1102 = vunpack.c.l.b16 %v895
        %v1103 = vpack.c.b16 %v1100, %v1099
        %v1104 = vpack.c.b16 %v1102, %v1101
        %v1108 = vsel %vm766, %v891, 0
        %1110 = vmatprep.subr.bf16.mxu0 0
        %1111 = vmatpush1.bf16.msra.mxu0 %v1103
        %1112 = vmatprep.subr.bf16.mxu0 0
        %1113 = vmatpush1.bf16.msra.mxu0 %v1104
        %1114 = vmatprep.subr.bf16.mxu0 0
        %1115 = vmatpush1.bf16.msra.mxu0 0
        %1116 = vmatprep.subr.bf16.mxu0 0
        %1117 = vmatpush1.bf16.msra.mxu0 0
        %1118 = vmatprep.subr.bf16.mxu0 0
        %1119 = vmatpush1.bf16.msra.mxu0 0
        %1120 = vmatprep.subr.bf16.mxu0 0
        %1121 = vmatpush1.bf16.msra.mxu0 0
        %1122 = vmatprep.subr.bf16.mxu0 0
        %1123 = vmatpush1.bf16.msra.mxu0 0
        %1124 = vmatprep.subr.bf16.mxu0 0
        %1125 = vmatpush1.bf16.msra.mxu0 0
        %1126 = vmatprep.subr.bf16.mxu0 0
        %1127 = vmatpush1.bf16.msra.mxu0 0
        %1128 = vmatprep.subr.bf16.mxu0 0
        %1129 = vmatpush1.bf16.msra.mxu0 0
        %1130 = vmatprep.subr.bf16.mxu0 0
        %1131 = vmatpush1.bf16.msra.mxu0 0
        %1132 = vmatprep.subr.bf16.mxu0 0
        %1133 = vmatpush1.bf16.msra.mxu0 0
        %1134 = vmatprep.subr.bf16.mxu0 0
        %1135 = vmatpush1.bf16.msra.mxu0 0
        %1136 = vmatprep.subr.bf16.mxu0 0
        %1137 = vmatpush1.bf16.msra.mxu0 0
        %1138 = vmatprep.subr.bf16.mxu0 0
        %1139 = vmatpush1.bf16.msra.mxu0 0
        %1140 = vmatprep.subr.bf16.mxu0 0
        %1141 = vmatpush1.bf16.msra.mxu0 0
        %1142 = vmatprep.mubr.bf16.mxu0 0
        %1143 = vmatmul.mubr.bf16.gmra.mrb[0].mxu0 %v1108
        %v1144 = vpop.f32.mrb[0].mxu0
        %v1145 = vadd.f32 %v1089, %v1144
        %v1146 = vpop.f32.mrb[0].mxu0
        %v1147 = vpop.f32.mrb[0].mxu0
        %v1148 = vadd.f32 %v1092, %v1147
        %v1149 = vpop.f32.mrb[0].mxu0
        %1150 = vdwg.mxu0
        %1151 = vrot.lane.b32.xlu0 %v755, 64
        %v1152 = vpop.permute.xlu0 %1151
        %1153 = vrot.lane.b32.xlu0 %v756, 64
        %v1154 = vpop.permute.xlu0 %1153
        %1155 = vrot.lane.b32.xlu0 %v757, 64
        %v1156 = vpop.permute.xlu0 %1155
        %v1158 = vsel %vm766, %v1152, 0
        %v1161 = vsel %vm766, %v1154, 0
        %v1164 = vsel %vm766, %v1156, 0
        %1166 = vmatprep.subr.bf16.mxu0 0
        %1167 = vmatpush1.bf16.xpose.msra.mxu0 %v1161
        %1168 = vmatprep.subr.bf16.mxu0 0
        %1169 = vmatpush1.bf16.xpose.msra.mxu0 %v1164
        %1170 = vmatprep.subr.bf16.mxu0 0
        %1171 = vmatpush1.bf16.xpose.msra.mxu0 0
        %1172 = vmatprep.subr.bf16.mxu0 0
        %1173 = vmatpush1.bf16.xpose.msra.mxu0 0
        %1174 = vmatprep.subr.bf16.mxu0 0
        %1175 = vmatpush1.bf16.xpose.msra.mxu0 0
        %1176 = vmatprep.subr.bf16.mxu0 0
        %1177 = vmatpush1.bf16.xpose.msra.mxu0 0
        %1178 = vmatprep.subr.bf16.mxu0 0
        %1179 = vmatpush1.bf16.xpose.msra.mxu0 0
        %1180 = vmatprep.subr.bf16.mxu0 0
        %1181 = vmatpush1.bf16.xpose.msra.mxu0 0
        %1182 = vmatprep.subr.bf16.mxu0 0
        %1183 = vmatpush1.bf16.xpose.msra.mxu0 0
        %1184 = vmatprep.subr.bf16.mxu0 0
        %1185 = vmatpush1.bf16.xpose.msra.mxu0 0
        %1186 = vmatprep.subr.bf16.mxu0 0
        %1187 = vmatpush1.bf16.xpose.msra.mxu0 0
        %1188 = vmatprep.subr.bf16.mxu0 0
        %1189 = vmatpush1.bf16.xpose.msra.mxu0 0
        %1190 = vmatprep.subr.bf16.mxu0 0
        %1191 = vmatpush1.bf16.xpose.msra.mxu0 0
        %1192 = vmatprep.subr.bf16.mxu0 0
        %1193 = vmatpush1.bf16.xpose.msra.mxu0 0
        %1194 = vmatprep.subr.bf16.mxu0 0
        %1195 = vmatpush1.bf16.xpose.msra.mxu0 0
        %1196 = vmatprep.subr.bf16.mxu0 0
        %1197 = vmatpush1.bf16.xpose.msra.mxu0 0
        %1198 = vmatprep.mubr.bf16.mxu0 0
        %1199 = vmatmul.mubr.bf16.gmra.mrb[0].mxu0 %v1158
        %v1200 = vpop.f32.mrb[0].mxu0
        %v1201 = vadd.f32 %v764, %v1200
        %v1202 = vpop.f32.mrb[0].mxu0
        %v1203 = vpop.f32.mrb[0].mxu0
        %v1204 = vadd.f32 %v764, %v1203
        %v1205 = vpop.f32.mrb[0].mxu0
        %1206 = vdwg.mxu0
        %v1207 = vsel %vm817, %v1201, -inf
        %1208 = vmax.xlane.f32.xlu0 %v1207
        %v1209 = vpop.xlane.xlu0 %1208
        %v1210 = vsel %vm817, %v1204, -inf
        %1211 = vmax.xlane.f32.xlu0 %v1210
        %v1212 = vpop.xlane.xlu0 %1211
        %v1213 = vsub.f32 %v1201, %v1209
        %v1214 = vsub.f32 %v1204, %v1212
        %v1215 = vmul.f32 %v1213, 1.442695
        %v1216 = vpow.pop %v1215
        %v1217 = vmul.f32 %v1214, 1.442695
        %v1218 = vpow.pop %v1217
        %v1219 = vsel %vm817, %v1216, 0.0
        %1220 = vadd.xlane.f32.xlu0 %v1219
        %v1221 = vpop.xlane.xlu0 %1220
        %v1222 = vsel %vm817, %v1218, 0.0
        %1223 = vadd.xlane.f32.xlu0 %v1222
        %v1224 = vpop.xlane.xlu0 %1223
        %v1225 = vrcp.pop %v1221
        %v1226 = vrcp.pop %v1224
        %v1227 = vmul.f32 %v1216, %v1225
        %v1228 = vmul.f32 %v1218, %v1226
        %v1229 = vadd.f32 %v977, %v1227
        %v1230 = vadd.f32 %v978, %v1228
        %v1231 = vpack.c.bf16 %v1228, %v1227
        %1232 = vrot.lane.b32.xlu0 %v758, 64
        %v1233 = vpop.permute.xlu0 %1232
        %1234 = vrot.lane.b32.xlu0 %v759, 64
        %v1235 = vpop.permute.xlu0 %1234
        %v1238 = vsel %vm817, %v1231, 0
        %v1241 = vsel %vm846, %v1235, 0
        %1243 = vmatprep.subr.bf16.mxu0 0
        %1244 = vmatpush1.bf16.msra.mxu0 %v1233
        %1245 = vmatprep.subr.bf16.mxu0 0
        %1246 = vmatpush1.bf16.msra.mxu0 %v1241
        %1247 = vmatprep.subr.bf16.mxu0 0
        %1248 = vmatpush1.bf16.msra.mxu0 0
        %1249 = vmatprep.subr.bf16.mxu0 0
        %1250 = vmatpush1.bf16.msra.mxu0 0
        %1251 = vmatprep.subr.bf16.mxu0 0
        %1252 = vmatpush1.bf16.msra.mxu0 0
        %1253 = vmatprep.subr.bf16.mxu0 0
        %1254 = vmatpush1.bf16.msra.mxu0 0
        %1255 = vmatprep.subr.bf16.mxu0 0
        %1256 = vmatpush1.bf16.msra.mxu0 0
        %1257 = vmatprep.subr.bf16.mxu0 0
        %1258 = vmatpush1.bf16.msra.mxu0 0
        %1259 = vmatprep.subr.bf16.mxu0 0
        %1260 = vmatpush1.bf16.msra.mxu0 0
        %1261 = vmatprep.subr.bf16.mxu0 0
        %1262 = vmatpush1.bf16.msra.mxu0 0
        %1263 = vmatprep.subr.bf16.mxu0 0
        %1264 = vmatpush1.bf16.msra.mxu0 0
        %1265 = vmatprep.subr.bf16.mxu0 0
        %1266 = vmatpush1.bf16.msra.mxu0 0
        %1267 = vmatprep.subr.bf16.mxu0 0
        %1268 = vmatpush1.bf16.msra.mxu0 0
        %1269 = vmatprep.subr.bf16.mxu0 0
        %1270 = vmatpush1.bf16.msra.mxu0 0
        %1271 = vmatprep.subr.bf16.mxu0 0
        %1272 = vmatpush1.bf16.msra.mxu0 0
        %1273 = vmatprep.subr.bf16.mxu0 0
        %1274 = vmatpush1.bf16.msra.mxu0 0
        %1275 = vmatprep.mubr.bf16.mxu0 0
        %1276 = vmatmul.mubr.bf16.gmra.mrb[0].mxu0 %v1238
        %v1277 = vpop.f32.mrb[0].mxu0
        %v1278 = vadd.f32 0.0, %v1277
        %v1279 = vpop.f32.mrb[0].mxu0
        %v1280 = vpop.f32.mrb[0].mxu0
        %v1281 = vadd.f32 0.0, %v1280
        %v1282 = vpop.f32.mrb[0].mxu0
        %1283 = vdwg.mxu0
        %v1284 = vpack.c.bf16 %v1281, %v1278
        %v1285 = vld [vmem:[%s7 + $0x20] sm:$0xf]
        %v1286 = vld [vmem:[%s7 + $0x24] sm:$0xf]
        %v1287 = vld [vmem:[%s7 + $0x28] sm:$0xf]
        %v1288 = vld [vmem:[%s7 + $0x2c] sm:$0xf]
        %v1293 = vunpack.c.l.b16 %v1285
        %v1294 = vunpack.c.l.b16 %v1286
        %v1295 = vunpack.c.l.b16 %v1287
        %v1296 = vunpack.c.l.b16 %v1288
        %v1297 = vpack.c.b16 %v1294, %v1293
        %v1298 = vpack.c.b16 %v1296, %v1295
        %v1302 = vsel %vm766, %v1284, 0
        %1304 = vmatprep.subr.bf16.mxu0 0
        %1305 = vmatpush1.bf16.msra.mxu0 %v1297
        %1306 = vmatprep.subr.bf16.mxu0 0
        %1307 = vmatpush1.bf16.msra.mxu0 %v1298
        %1308 = vmatprep.subr.bf16.mxu0 0
        %1309 = vmatpush1.bf16.msra.mxu0 0
        %1310 = vmatprep.subr.bf16.mxu0 0
        %1311 = vmatpush1.bf16.msra.mxu0 0
        %1312 = vmatprep.subr.bf16.mxu0 0
        %1313 = vmatpush1.bf16.msra.mxu0 0
        %1314 = vmatprep.subr.bf16.mxu0 0
        %1315 = vmatpush1.bf16.msra.mxu0 0
        %1316 = vmatprep.subr.bf16.mxu0 0
        %1317 = vmatpush1.bf16.msra.mxu0 0
        %1318 = vmatprep.subr.bf16.mxu0 0
        %1319 = vmatpush1.bf16.msra.mxu0 0
        %1320 = vmatprep.subr.bf16.mxu0 0
        %1321 = vmatpush1.bf16.msra.mxu0 0
        %1322 = vmatprep.subr.bf16.mxu0 0
        %1323 = vmatpush1.bf16.msra.mxu0 0
        %1324 = vmatprep.subr.bf16.mxu0 0
        %1325 = vmatpush1.bf16.msra.mxu0 0
        %1326 = vmatprep.subr.bf16.mxu0 0
        %1327 = vmatpush1.bf16.msra.mxu0 0
        %1328 = vmatprep.subr.bf16.mxu0 0
        %1329 = vmatpush1.bf16.msra.mxu0 0
        %1330 = vmatprep.subr.bf16.mxu0 0
        %1331 = vmatpush1.bf16.msra.mxu0 0
        %1332 = vmatprep.subr.bf16.mxu0 0
        %1333 = vmatpush1.bf16.msra.mxu0 0
        %1334 = vmatprep.subr.bf16.mxu0 0
        %1335 = vmatpush1.bf16.msra.mxu0 0
        %1336 = vmatprep.mubr.bf16.mxu0 0
        %1337 = vmatmul.mubr.bf16.gmra.mrb[0].mxu0 %v1302
        %v1338 = vpop.f32.mrb[0].mxu0
        %v1339 = vadd.f32 0.0, %v1338
        %v1340 = vpop.f32.mrb[0].mxu0
        %v1341 = vpop.f32.mrb[0].mxu0
        %v1342 = vadd.f32 0.0, %v1341
        %v1343 = vpop.f32.mrb[0].mxu0
        %1344 = vdwg.mxu0
        %v1345 = vadd.f32 %v1145, %v1339
        %v1346 = vadd.f32 %v1148, %v1342
        %1347 = vrot.lane.b32.xlu0 %v755, 32
        %v1348 = vpop.permute.xlu0 %1347
        %1349 = vrot.lane.b32.xlu0 %v756, 32
        %v1350 = vpop.permute.xlu0 %1349
        %1351 = vrot.lane.b32.xlu0 %v757, 32
        %v1352 = vpop.permute.xlu0 %1351
        %v1354 = vsel %vm766, %v1348, 0
        %v1357 = vsel %vm766, %v1350, 0
        %v1360 = vsel %vm766, %v1352, 0
        %1362 = vmatprep.subr.bf16.mxu0 0
        %1363 = vmatpush1.bf16.xpose.msra.mxu0 %v1357
        %1364 = vmatprep.subr.bf16.mxu0 0
        %1365 = vmatpush1.bf16.xpose.msra.mxu0 %v1360
        %1366 = vmatprep.subr.bf16.mxu0 0
        %1367 = vmatpush1.bf16.xpose.msra.mxu0 0
        %1368 = vmatprep.subr.bf16.mxu0 0
        %1369 = vmatpush1.bf16.xpose.msra.mxu0 0
        %1370 = vmatprep.subr.bf16.mxu0 0
        %1371 = vmatpush1.bf16.xpose.msra.mxu0 0
        %1372 = vmatprep.subr.bf16.mxu0 0
        %1373 = vmatpush1.bf16.xpose.msra.mxu0 0
        %1374 = vmatprep.subr.bf16.mxu0 0
        %1375 = vmatpush1.bf16.xpose.msra.mxu0 0
        %1376 = vmatprep.subr.bf16.mxu0 0
        %1377 = vmatpush1.bf16.xpose.msra.mxu0 0
        %1378 = vmatprep.subr.bf16.mxu0 0
        %1379 = vmatpush1.bf16.xpose.msra.mxu0 0
        %1380 = vmatprep.subr.bf16.mxu0 0
        %1381 = vmatpush1.bf16.xpose.msra.mxu0 0
        %1382 = vmatprep.subr.bf16.mxu0 0
        %1383 = vmatpush1.bf16.xpose.msra.mxu0 0
        %1384 = vmatprep.subr.bf16.mxu0 0
        %1385 = vmatpush1.bf16.xpose.msra.mxu0 0
        %1386 = vmatprep.subr.bf16.mxu0 0
        %1387 = vmatpush1.bf16.xpose.msra.mxu0 0
        %1388 = vmatprep.subr.bf16.mxu0 0
        %1389 = vmatpush1.bf16.xpose.msra.mxu0 0
        %1390 = vmatprep.subr.bf16.mxu0 0
        %1391 = vmatpush1.bf16.xpose.msra.mxu0 0
        %1392 = vmatprep.subr.bf16.mxu0 0
        %1393 = vmatpush1.bf16.xpose.msra.mxu0 0
        %1394 = vmatprep.mubr.bf16.mxu0 0
        %1395 = vmatmul.mubr.bf16.gmra.mrb[0].mxu0 %v1354
        %v1396 = vpop.f32.mrb[0].mxu0
        %v1397 = vadd.f32 %v764, %v1396
        %v1398 = vpop.f32.mrb[0].mxu0
        %v1399 = vpop.f32.mrb[0].mxu0
        %v1400 = vadd.f32 %v764, %v1399
        %v1401 = vpop.f32.mrb[0].mxu0
        %1402 = vdwg.mxu0
        %v1403 = vsel %vm817, %v1397, -inf
        %1404 = vmax.xlane.f32.xlu0 %v1403
        %v1405 = vpop.xlane.xlu0 %1404
        %v1406 = vsel %vm817, %v1400, -inf
        %1407 = vmax.xlane.f32.xlu0 %v1406
        %v1408 = vpop.xlane.xlu0 %1407
        %v1409 = vsub.f32 %v1397, %v1405
        %v1410 = vsub.f32 %v1400, %v1408
        %v1411 = vmul.f32 %v1409, 1.442695
        %v1412 = vpow.pop %v1411
        %v1413 = vmul.f32 %v1410, 1.442695
        %v1414 = vpow.pop %v1413
        %v1415 = vsel %vm817, %v1412, 0.0
        %1416 = vadd.xlane.f32.xlu0 %v1415
        %v1417 = vpop.xlane.xlu0 %1416
        %v1418 = vsel %vm817, %v1414, 0.0
        %1419 = vadd.xlane.f32.xlu0 %v1418
        %v1420 = vpop.xlane.xlu0 %1419
        %v1421 = vrcp.pop %v1417
        %v1422 = vrcp.pop %v1420
        %v1423 = vmul.f32 %v1412, %v1421
        %v1424 = vmul.f32 %v1414, %v1422
        %v1425 = vadd.f32 %v1229, %v1423
        %v1426 = vadd.f32 %v1230, %v1424
        %v1427 = vpack.c.bf16 %v1424, %v1423
        %1428 = vrot.lane.b32.xlu0 %v758, 32
        %v1429 = vpop.permute.xlu0 %1428
        %1430 = vrot.lane.b32.xlu0 %v759, 32
        %v1431 = vpop.permute.xlu0 %1430
        %v1434 = vsel %vm817, %v1427, 0
        %v1437 = vsel %vm846, %v1431, 0
        %1439 = vmatprep.subr.bf16.mxu0 0
        %1440 = vmatpush1.bf16.msra.mxu0 %v1429
        %1441 = vmatprep.subr.bf16.mxu0 0
        %1442 = vmatpush1.bf16.msra.mxu0 %v1437
        %1443 = vmatprep.subr.bf16.mxu0 0
        %1444 = vmatpush1.bf16.msra.mxu0 0
        %1445 = vmatprep.subr.bf16.mxu0 0
        %1446 = vmatpush1.bf16.msra.mxu0 0
        %1447 = vmatprep.subr.bf16.mxu0 0
        %1448 = vmatpush1.bf16.msra.mxu0 0
        %1449 = vmatprep.subr.bf16.mxu0 0
        %1450 = vmatpush1.bf16.msra.mxu0 0
        %1451 = vmatprep.subr.bf16.mxu0 0
        %1452 = vmatpush1.bf16.msra.mxu0 0
        %1453 = vmatprep.subr.bf16.mxu0 0
        %1454 = vmatpush1.bf16.msra.mxu0 0
        %1455 = vmatprep.subr.bf16.mxu0 0
        %1456 = vmatpush1.bf16.msra.mxu0 0
        %1457 = vmatprep.subr.bf16.mxu0 0
        %1458 = vmatpush1.bf16.msra.mxu0 0
        %1459 = vmatprep.subr.bf16.mxu0 0
        %1460 = vmatpush1.bf16.msra.mxu0 0
        %1461 = vmatprep.subr.bf16.mxu0 0
        %1462 = vmatpush1.bf16.msra.mxu0 0
        %1463 = vmatprep.subr.bf16.mxu0 0
        %1464 = vmatpush1.bf16.msra.mxu0 0
        %1465 = vmatprep.subr.bf16.mxu0 0
        %1466 = vmatpush1.bf16.msra.mxu0 0
        %1467 = vmatprep.subr.bf16.mxu0 0
        %1468 = vmatpush1.bf16.msra.mxu0 0
        %1469 = vmatprep.subr.bf16.mxu0 0
        %1470 = vmatpush1.bf16.msra.mxu0 0
        %1471 = vmatprep.mubr.bf16.mxu0 0
        %1472 = vmatmul.mubr.bf16.gmra.mrb[0].mxu0 %v1434
        %v1473 = vpop.f32.mrb[0].mxu0
        %v1474 = vadd.f32 0.0, %v1473
        %v1475 = vpop.f32.mrb[0].mxu0
        %v1476 = vpop.f32.mrb[0].mxu0
        %v1477 = vadd.f32 0.0, %v1476
        %v1478 = vpop.f32.mrb[0].mxu0
        %1479 = vdwg.mxu0
        %v1480 = vpack.c.bf16 %v1477, %v1474
        %v1481 = vld [vmem:[%s7 + $0x30] sm:$0xf]
        %v1482 = vld [vmem:[%s7 + $0x34] sm:$0xf]
        %v1483 = vld [vmem:[%s7 + $0x38] sm:$0xf]
        %v1484 = vld [vmem:[%s7 + $0x3c] sm:$0xf]
        %v1489 = vunpack.c.l.b16 %v1481
        %v1490 = vunpack.c.l.b16 %v1482
        %v1491 = vunpack.c.l.b16 %v1483
        %v1492 = vunpack.c.l.b16 %v1484
        %v1493 = vpack.c.b16 %v1490, %v1489
        %v1494 = vpack.c.b16 %v1492, %v1491
        %v1498 = vsel %vm766, %v1480, 0
        %1500 = vmatprep.subr.bf16.mxu0 0
        %1501 = vmatpush1.bf16.msra.mxu0 %v1493
        %1502 = vmatprep.subr.bf16.mxu0 0
        %1503 = vmatpush1.bf16.msra.mxu0 %v1494
        %1504 = vmatprep.subr.bf16.mxu0 0
        %1505 = vmatpush1.bf16.msra.mxu0 0
        %1506 = vmatprep.subr.bf16.mxu0 0
        %1507 = vmatpush1.bf16.msra.mxu0 0
        %1508 = vmatprep.subr.bf16.mxu0 0
        %1509 = vmatpush1.bf16.msra.mxu0 0
        %1510 = vmatprep.subr.bf16.mxu0 0
        %1511 = vmatpush1.bf16.msra.mxu0 0
        %1512 = vmatprep.subr.bf16.mxu0 0
        %1513 = vmatpush1.bf16.msra.mxu0 0
        %1514 = vmatprep.subr.bf16.mxu0 0
        %1515 = vmatpush1.bf16.msra.mxu0 0
        %1516 = vmatprep.subr.bf16.mxu0 0
        %1517 = vmatpush1.bf16.msra.mxu0 0
        %1518 = vmatprep.subr.bf16.mxu0 0
        %1519 = vmatpush1.bf16.msra.mxu0 0
        %1520 = vmatprep.subr.bf16.mxu0 0
        %1521 = vmatpush1.bf16.msra.mxu0 0
        %1522 = vmatprep.subr.bf16.mxu0 0
        %1523 = vmatpush1.bf16.msra.mxu0 0
        %1524 = vmatprep.subr.bf16.mxu0 0
        %1525 = vmatpush1.bf16.msra.mxu0 0
        %1526 = vmatprep.subr.bf16.mxu0 0
        %1527 = vmatpush1.bf16.msra.mxu0 0
        %1528 = vmatprep.subr.bf16.mxu0 0
        %1529 = vmatpush1.bf16.msra.mxu0 0
        %1530 = vmatprep.subr.bf16.mxu0 0
        %1531 = vmatpush1.bf16.msra.mxu0 0
        %1532 = vmatprep.mubr.bf16.mxu0 0
        %1533 = vmatmul.mubr.bf16.gmra.mrb[0].mxu0 %v1498
        %v1534 = vpop.f32.mrb[0].mxu0
        %v1535 = vadd.f32 0.0, %v1534
        %v1536 = vpop.f32.mrb[0].mxu0
        %v1537 = vpop.f32.mrb[0].mxu0
        %v1538 = vadd.f32 0.0, %v1537
        %v1539 = vpop.f32.mrb[0].mxu0
        %1540 = vdwg.mxu0
        %v1541 = vadd.f32 %v1345, %v1535
        %v1542 = vadd.f32 %v1346, %v1538
        %v1543 = vunpack.c.l.bf16 %v460
        %v1544 = vunpack.c.l.bf16 %v461
        %v1545 = vadd.f32 %v1543, %v1541
        %v1546 = vadd.f32 %v1544, %v1542
        %v1547 = vld [vmem:[%s8] sm:$0x1]
        %v1549 = vlaneseq
        %v1550 = vshrl.u32 %v1549, 7
        %v1551 = vsub.s32 0, %v1550
        %v1552 = vrot.slane %v1547, %v1551
        %v1554 = vadd.f32 %v1545, %v1552
        %v1555 = vadd.f32 %v1546, %v1552
        %v1556 = vld [vmem:[%s9] sm:$0x1]
        %v1557 = vld [vmem:[%s10] sm:$0x1]
        %1558 = vadd.xlane.f32.xlu0 %v1554
        %v1559 = vpop.xlane.xlu0 %1558
        %1560 = vadd.xlane.f32.xlu0 %v1555
        %v1561 = vpop.xlane.xlu0 %1560
        %v1562 = vrcp.pop 128.0
        %v1563 = vmul.f32 %v1559, %v1562
        %v1564 = vmul.f32 %v1561, %v1562
        %v1565 = vsub.f32 %v1554, %v1563
        %v1566 = vsub.f32 %v1555, %v1564
        %v1567 = vmul.f32 %v1565, %v1565
        %v1568 = vmul.f32 %v1566, %v1566
        %1569 = vadd.xlane.f32.xlu0 %v1567
        %v1570 = vpop.xlane.xlu0 %1569
        %1571 = vadd.xlane.f32.xlu0 %v1568
        %v1572 = vpop.xlane.xlu0 %1571
        %v1573 = vmul.f32 %v1570, %v1562
        %v1574 = vmul.f32 %v1572, %v1562
        %v1575 = vadd.f32 %v1573, 1e-05
        %v1576 = vadd.f32 %v1574, 1e-05
        %v1577 = vrsqrt.pop %v1575
        %v1578 = vrsqrt.pop %v1576
        %v1579 = vmul.f32 %v1565, %v1577
        %v1580 = vmul.f32 %v1566, %v1578
        %v1582 = vlaneseq
        %v1583 = vshrl.u32 %v1582, 7
        %v1584 = vsub.s32 0, %v1583
        %v1585 = vrot.slane %v1556, %v1584
        %v1587 = vmul.f32 %v1579, %v1585
        %v1588 = vmul.f32 %v1580, %v1585
        %v1590 = vlaneseq
        %v1591 = vshrl.u32 %v1590, 7
        %v1592 = vsub.s32 0, %v1591
        %v1593 = vrot.slane %v1557, %v1592
        %v1595 = vadd.f32 %v1587, %v1593
        %v1596 = vadd.f32 %v1588, %v1593
        %v1597 = vpack.c.bf16 %v1596, %v1595
        %v1599 = vunpack.c.l.b16 %v1597
        %v1600 = vunpack.c.h.b16 %v1597
        %v1601 = vpack.c.b16 %v1599, %v1599
        %v1602 = vpack.c.b16 %v1600, %v1600
        %1605 = vst [vmem:[%s458] sm:$0xf] %v1601
        %1606 = vst [vmem:[%s458 + $0x4] sm:$0xf] %v1602
        %v1607 = vmul.f32 %v1425, 0.25
        %v1608 = vmul.f32 %v1426, 0.25
        %1609 = vst.msk [vmem:[%s440] sm:$0xff] %vm817, %v1607
        %1610 = vst.msk [vmem:[%s440 + $0x8] sm:$0xff] %vm817, %v1608
        %p1611 = scmp.lt.s32.totalorder %s27, 1
        %s1612 = scalar_select %p1611, %s27, 1
        %s1613 = smul.addr %s1612, 2
        %s1614 = smul.addr %s1613, 4
        %s1615 = scalar_lea.vmem %s11, %s1614
        %s1616 = sand.u32 %s307, 1
        %s1617 = scalar_lea.sflag [#allocation3], %s1616
        %s1618 = sand.u32 %s307, 1
        %s1619 = smul.addr %s1618, 16
        %s1620 = scalar_lea.vmem [#allocation2], %s1619
        // Predicated region
        $region65: #{transformer_decoder_forward.11} parent=63 // pred_check
          %p1621 = pneg %p291
        $region66: #{transformer_decoder_forward.11} parent=63 // pred_check_branch
          %1623 = sbr.rel (%p1621) target = $region68
        $region67: #{transformer_decoder_forward.11} parent=63 // pred_region
          _
        $region68: #{transformer_decoder_forward.11} parent=63 // pred_fallthru
          _
        // Predicated region
        $region69: #{transformer_decoder_forward.11} parent=63 // pred_check
          %p1624 = pneg %p317
        $region70: #{transformer_decoder_forward.11} parent=63 // pred_check_branch
          %1626 = sbr.rel (%p1624) target = $region72
        $region71: #{transformer_decoder_forward.11} parent=63 // pred_region
          %s1628 = ssub.s32 256, 256
          %1629 = vsyncadd %s1617, %s1628
          %s1630 = smul.addr %s27, 2
          %s1631 = smul.addr %s1630, 128
          %s1632 = scalar_lea.hbm %s12, %s1631
          %s1633 = sshll.u32 %s1620, 4
          %s1634 = int_to_ptr.vmem [resolvable:$true] %s1633
          %1639 = dma.vmem_to_hbm [thread:$0]  %s1634, 256, %s1632, %s1617, 128, 128, 8
        $region72: #{transformer_decoder_forward.11} parent=63 // pred_fallthru
          _
      $region64: #{transformer_decoder_forward.11} parent=5 // pred_fallthru
        _
      %p1640 = scmp.le.s32.totalorder 2, %s22
      // Predicated region
      $region73: #{transformer_decoder_forward.11} parent=5 // pred_check
        %p1641 = pneg %p1640
      $region74: #{transformer_decoder_forward.11} parent=5 // pred_check_branch
        %1643 = sbr.rel (%p1641) target = $region76
      $region75: #{transformer_decoder_forward.11} parent=5 // pred_region
        %s1644 = ssub.s32 %s22, 2
        // Predicated region
        $region77: #{transformer_decoder_forward.11} parent=75 // pred_check
          %p1645 = pneg %p297
        $region78: #{transformer_decoder_forward.11} parent=75 // pred_check_branch
          %1647 = sbr.rel (%p1645) target = $region80
        $region79: #{transformer_decoder_forward.11} parent=75 // pred_region
          %p1648 = scmp.lt.s32.totalorder %s28, 1
          %s1649 = scalar_select %p1648, %s28, 1
          %s1650 = smul.addr %s1649, 2
          %s1651 = smul.addr %s1650, 4
          %s1652 = scalar_lea.vmem %s11, %s1651
        $region80: #{transformer_decoder_forward.11} parent=75 // pred_fallthru
          _
        // Predicated region
        $region81: #{transformer_decoder_forward.11} parent=75 // pred_check
          %p1653 = pneg %p323
        $region82: #{transformer_decoder_forward.11} parent=75 // pred_check_branch
          %1655 = sbr.rel (%p1653) target = $region84
        $region83: #{transformer_decoder_forward.11} parent=75 // pred_region
          %s1656 = sand.u32 %s308, 1
          %s1657 = scalar_lea.sflag [#allocation3], %s1656
          %s1658 = sand.u32 %s308, 1
          %s1659 = smul.addr %s1658, 16
          %s1660 = scalar_lea.vmem [#allocation2], %s1659
          %1661 = dma.done %s1657, 256
        $region84: #{transformer_decoder_forward.11} parent=75 // pred_fallthru
          _
      $region76: #{transformer_decoder_forward.11} parent=5 // pred_fallthru
        _
    $region6: #{transformer_decoder_forward.11} parent=1 // loop_footer
      %s26 = sadd.s32 1, %s22
    $region7: #{transformer_decoder_forward.11} parent=1 // loop_footer_branch
      %21 = sbr.rel target = $region3
    $region8: #{transformer_decoder_forward.11} parent=1 // loop_exit
      _
    %1662 = vsyncpa [#allocation3], 1
    %s1663 = scalar_lea.sflag [#allocation3], 1
    %1664 = vsyncpa %s1663, 1

// kernel: transformer_decoder_forward.13
$region0: #{transformer_decoder_forward.13}
  #allocation0 [shape = 'u32[]', space=smem, size = 0x4, offset = 0x4, fixed_abs, tag = 'smem constant byte address 0x4 - core index']
  #allocation1 [shape = 'u32[144,128]{1,0:T(1,128)}', space=vmem, size = 0x12000, scoped, tag = 'internal scratch']
  %s0 = inlined_call_operand.vmem [shape: bf16[32,128], index: 0, kind: input, shape index: {}]
  %s1 = inlined_call_operand.vmem [shape: bf16[128,512], index: 1, kind: input, shape index: {}]
  %s2 = inlined_call_operand.hbm [shape: f32[32,512], index: 2, kind: output, shape index: {}]
  %s3 = sld [smem:[#allocation0]]
  $region18: #{transformer_decoder_forward.13} parent=0
    _
  %s5 = ssub.s32 1, %s3
  %s6 = scalar_select 0, %s5, %s3
  $region1: #{transformer_decoder_forward.13} parent=0
    #allocation2 [shape = 'u8[65536]{0}', space=vmem, size = 0x10000, scoped, tag = 'output window, operand 0, single buffered']
    #allocation3 [shape = 's32[1]{0}', space=sflag, size = 0x4, scoped, tag = 'scoped memory for transformer_decoder_forward.13']
    %7 = vsyncpa [#allocation3], 0
    // Predicated region
    $region2: #{transformer_decoder_forward.13} parent=1 // pred_check
      _
    $region3: #{transformer_decoder_forward.13} parent=1 // pred_check_branch
      %9 = sbr.rel (0) target = $region5
    $region4: #{transformer_decoder_forward.13} parent=1 // pred_region
      _
    $region5: #{transformer_decoder_forward.13} parent=1 // pred_fallthru
      _
    // Predicated region
    $region6: #{transformer_decoder_forward.13} parent=1 // pred_check
      _
    $region7: #{transformer_decoder_forward.13} parent=1 // pred_check_branch
      %11 = sbr.rel (0) target = $region9
    $region8: #{transformer_decoder_forward.13} parent=1 // pred_region
      _
    $region9: #{transformer_decoder_forward.13} parent=1 // pred_fallthru
      _
    %v13 = vld [vmem:[%s0] sm:$0xf]
    %v14 = vld [vmem:[%s0 + $0x4] sm:$0xf]
    %v15 = vld [vmem:[%s0 + $0x8] sm:$0xf]
    %v16 = vld [vmem:[%s0 + $0xc] sm:$0xf]
    %v17 = vld [vmem:[%s1] sm:$0xff]
    %v18 = vld [vmem:[%s1 + $0x8] sm:$0xff]
    %v19 = vld [vmem:[%s1 + $0x10] sm:$0xff]
    %v20 = vld [vmem:[%s1 + $0x18] sm:$0xff]
    %v21 = vld [vmem:[%s1 + $0x20] sm:$0xff]
    %v22 = vld [vmem:[%s1 + $0x28] sm:$0xff]
    %v23 = vld [vmem:[%s1 + $0x30] sm:$0xff]
    %v24 = vld [vmem:[%s1 + $0x38] sm:$0xff]
    %v25 = vld [vmem:[%s1 + $0x40] sm:$0xff]
    %v26 = vld [vmem:[%s1 + $0x48] sm:$0xff]
    %v27 = vld [vmem:[%s1 + $0x50] sm:$0xff]
    %v28 = vld [vmem:[%s1 + $0x58] sm:$0xff]
    %v29 = vld [vmem:[%s1 + $0x60] sm:$0xff]
    %v30 = vld [vmem:[%s1 + $0x68] sm:$0xff]
    %v31 = vld [vmem:[%s1 + $0x70] sm:$0xff]
    %v32 = vld [vmem:[%s1 + $0x78] sm:$0xff]
    %v33 = vld [vmem:[%s1 + $0x80] sm:$0xff]
    %v34 = vld [vmem:[%s1 + $0x88] sm:$0xff]
    %v35 = vld [vmem:[%s1 + $0x90] sm:$0xff]
    %v36 = vld [vmem:[%s1 + $0x98] sm:$0xff]
    %v37 = vld [vmem:[%s1 + $0xa0] sm:$0xff]
    %v38 = vld [vmem:[%s1 + $0xa8] sm:$0xff]
    %v39 = vld [vmem:[%s1 + $0xb0] sm:$0xff]
    %v40 = vld [vmem:[%s1 + $0xb8] sm:$0xff]
    %v41 = vld [vmem:[%s1 + $0xc0] sm:$0xff]
    %v42 = vld [vmem:[%s1 + $0xc8] sm:$0xff]
    %v43 = vld [vmem:[%s1 + $0xd0] sm:$0xff]
    %v44 = vld [vmem:[%s1 + $0xd8] sm:$0xff]
    %v45 = vld [vmem:[%s1 + $0xe0] sm:$0xff]
    %v46 = vld [vmem:[%s1 + $0xe8] sm:$0xff]
    %v47 = vld [vmem:[%s1 + $0xf0] sm:$0xff]
    %v48 = vld [vmem:[%s1 + $0xf8] sm:$0xff]
    %v53 = vunpack.c.l.b16 %v13
    %v54 = vunpack.c.l.b16 %v14
    %v55 = vunpack.c.l.b16 %v15
    %v56 = vunpack.c.l.b16 %v16
    %v57 = vpack.c.b16 %v54, %v53
    %v58 = vpack.c.b16 %v56, %v55
    %v93 = vunpack.c.l.b16 %v17
    %v94 = vunpack.c.h.b16 %v17
    %v95 = vunpack.c.l.b16 %v18
    %v96 = vunpack.c.h.b16 %v18
    %v97 = vunpack.c.l.b16 %v19
    %v98 = vunpack.c.h.b16 %v19
    %v99 = vunpack.c.l.b16 %v20
    %v100 = vunpack.c.h.b16 %v20
    %v101 = vunpack.c.l.b16 %v21
    %v102 = vunpack.c.h.b16 %v21
    %v103 = vunpack.c.l.b16 %v22
    %v104 = vunpack.c.h.b16 %v22
    %v105 = vunpack.c.l.b16 %v23
    %v106 = vunpack.c.h.b16 %v23
    %v107 = vunpack.c.l.b16 %v24
    %v108 = vunpack.c.h.b16 %v24
    %v109 = vunpack.c.l.b16 %v25
    %v110 = vunpack.c.h.b16 %v25
    %v111 = vunpack.c.l.b16 %v26
    %v112 = vunpack.c.h.b16 %v26
    %v113 = vunpack.c.l.b16 %v27
    %v114 = vunpack.c.h.b16 %v27
    %v115 = vunpack.c.l.b16 %v28
    %v116 = vunpack.c.h.b16 %v28
    %v117 = vunpack.c.l.b16 %v29
    %v118 = vunpack.c.h.b16 %v29
    %v119 = vunpack.c.l.b16 %v30
    %v120 = vunpack.c.h.b16 %v30
    %v121 = vunpack.c.l.b16 %v31
    %v122 = vunpack.c.h.b16 %v31
    %v123 = vunpack.c.l.b16 %v32
    %v124 = vunpack.c.h.b16 %v32
    %v125 = vunpack.c.l.b16 %v33
    %v126 = vunpack.c.h.b16 %v33
    %v127 = vunpack.c.l.b16 %v34
    %v128 = vunpack.c.h.b16 %v34
    %v129 = vunpack.c.l.b16 %v35
    %v130 = vunpack.c.h.b16 %v35
    %v131 = vunpack.c.l.b16 %v36
    %v132 = vunpack.c.h.b16 %v36
    %v133 = vunpack.c.l.b16 %v37
    %v134 = vunpack.c.h.b16 %v37
    %v135 = vunpack.c.l.b16 %v38
    %v136 = vunpack.c.h.b16 %v38
    %v137 = vunpack.c.l.b16 %v39
    %v138 = vunpack.c.h.b16 %v39
    %v139 = vunpack.c.l.b16 %v40
    %v140 = vunpack.c.h.b16 %v40
    %v141 = vunpack.c.l.b16 %v41
    %v142 = vunpack.c.h.b16 %v41
    %v143 = vunpack.c.l.b16 %v42
    %v144 = vunpack.c.h.b16 %v42
    %v145 = vunpack.c.l.b16 %v43
    %v146 = vunpack.c.h.b16 %v43
    %v147 = vunpack.c.l.b16 %v44
    %v148 = vunpack.c.h.b16 %v44
    %v149 = vunpack.c.l.b16 %v45
    %v150 = vunpack.c.h.b16 %v45
    %v151 = vunpack.c.l.b16 %v46
    %v152 = vunpack.c.h.b16 %v46
    %v153 = vunpack.c.l.b16 %v47
    %v154 = vunpack.c.h.b16 %v47
    %v155 = vunpack.c.l.b16 %v48
    %v156 = vunpack.c.h.b16 %v48
    %v157 = vpack.c.b16 %v97, %v93
    %v158 = vpack.c.b16 %v98, %v94
    %v159 = vpack.c.b16 %v99, %v95
    %v160 = vpack.c.b16 %v100, %v96
    %v161 = vpack.c.b16 %v105, %v101
    %v162 = vpack.c.b16 %v106, %v102
    %v163 = vpack.c.b16 %v107, %v103
    %v164 = vpack.c.b16 %v108, %v104
    %v165 = vpack.c.b16 %v113, %v109
    %v166 = vpack.c.b16 %v114, %v110
    %v167 = vpack.c.b16 %v115, %v111
    %v168 = vpack.c.b16 %v116, %v112
    %v169 = vpack.c.b16 %v121, %v117
    %v170 = vpack.c.b16 %v122, %v118
    %v171 = vpack.c.b16 %v123, %v119
    %v172 = vpack.c.b16 %v124, %v120
    %v173 = vpack.c.b16 %v129, %v125
    %v174 = vpack.c.b16 %v130, %v126
    %v175 = vpack.c.b16 %v131, %v127
    %v176 = vpack.c.b16 %v132, %v128
    %v177 = vpack.c.b16 %v137, %v133
    %v178 = vpack.c.b16 %v138, %v134
    %v179 = vpack.c.b16 %v139, %v135
    %v180 = vpack.c.b16 %v140, %v136
    %v181 = vpack.c.b16 %v145, %v141
    %v182 = vpack.c.b16 %v146, %v142
    %v183 = vpack.c.b16 %v147, %v143
    %v184 = vpack.c.b16 %v148, %v144
    %v185 = vpack.c.b16 %v153, %v149
    %v186 = vpack.c.b16 %v154, %v150
    %v187 = vpack.c.b16 %v155, %v151
    %v188 = vpack.c.b16 %v156, %v152
    %221 = vmatprep.subr.bf16.mxu0 %v158
    %222 = vmatpush1.bf16.msra.mxu0 %v157
    %223 = vmatprep.subr.bf16.mxu0 %v162
    %224 = vmatpush1.bf16.msra.mxu0 %v161
    %225 = vmatprep.subr.bf16.mxu0 %v166
    %226 = vmatpush1.bf16.msra.mxu0 %v165
    %227 = vmatprep.subr.bf16.mxu0 %v170
    %228 = vmatpush1.bf16.msra.mxu0 %v169
    %229 = vmatprep.subr.bf16.mxu0 %v174
    %230 = vmatpush1.bf16.msra.mxu0 %v173
    %231 = vmatprep.subr.bf16.mxu0 %v178
    %232 = vmatpush1.bf16.msra.mxu0 %v177
    %233 = vmatprep.subr.bf16.mxu0 %v182
    %234 = vmatpush1.bf16.msra.mxu0 %v181
    %235 = vmatprep.subr.bf16.mxu0 %v186
    %236 = vmatpush1.bf16.msra.mxu0 %v185
    %237 = vmatprep.subr.bf16.mxu0 0
    %238 = vmatpush1.bf16.msra.mxu0 0
    %239 = vmatprep.subr.bf16.mxu0 0
    %240 = vmatpush1.bf16.msra.mxu0 0
    %241 = vmatprep.subr.bf16.mxu0 0
    %242 = vmatpush1.bf16.msra.mxu0 0
    %243 = vmatprep.subr.bf16.mxu0 0
    %244 = vmatpush1.bf16.msra.mxu0 0
    %245 = vmatprep.subr.bf16.mxu0 0
    %246 = vmatpush1.bf16.msra.mxu0 0
    %247 = vmatprep.subr.bf16.mxu0 0
    %248 = vmatpush1.bf16.msra.mxu0 0
    %249 = vmatprep.subr.bf16.mxu0 0
    %250 = vmatpush1.bf16.msra.mxu0 0
    %251 = vmatprep.subr.bf16.mxu0 0
    %252 = vmatpush1.bf16.msra.mxu0 0
    %253 = vmatprep.mubr.bf16.mxu0 0
    %254 = vmatmul.mubr.bf16.gmra.mrb[0].mxu0 %v57
    %v255 = vpop.f32.mrb[0].mxu0
    %v256 = vadd.f32 0.0, %v255
    %v257 = vpop.f32.mrb[0].mxu0
    %v258 = vadd.f32 0.0, %v257
    %v259 = vpop.f32.mrb[0].mxu0
    %v260 = vadd.f32 0.0, %v259
    %v261 = vpop.f32.mrb[0].mxu0
    %v262 = vadd.f32 0.0, %v261
    %263 = vmatprep.mubr.bf16.mxu0 0
    %264 = vmatmul.mubr.bf16.gmra.mrb[0].mxu0 %v58
    %v265 = vpop.f32.mrb[0].mxu0
    %v266 = vadd.f32 0.0, %v265
    %v267 = vpop.f32.mrb[0].mxu0
    %v268 = vadd.f32 0.0, %v267
    %v269 = vpop.f32.mrb[0].mxu0
    %v270 = vadd.f32 0.0, %v269
    %v271 = vpop.f32.mrb[0].mxu0
    %v272 = vadd.f32 0.0, %v271
    %273 = vdwg.mxu0
    %274 = vmatprep.subr.bf16.mxu0 %v160
    %275 = vmatpush1.bf16.msra.mxu0 %v159
    %276 = vmatprep.subr.bf16.mxu0 %v164
    %277 = vmatpush1.bf16.msra.mxu0 %v163
    %278 = vmatprep.subr.bf16.mxu0 %v168
    %279 = vmatpush1.bf16.msra.mxu0 %v167
    %280 = vmatprep.subr.bf16.mxu0 %v172
    %281 = vmatpush1.bf16.msra.mxu0 %v171
    %282 = vmatprep.subr.bf16.mxu0 %v176
    %283 = vmatpush1.bf16.msra.mxu0 %v175
    %284 = vmatprep.subr.bf16.mxu0 %v180
    %285 = vmatpush1.bf16.msra.mxu0 %v179
    %286 = vmatprep.subr.bf16.mxu0 %v184
    %287 = vmatpush1.bf16.msra.mxu0 %v183
    %288 = vmatprep.subr.bf16.mxu0 %v188
    %289 = vmatpush1.bf16.msra.mxu0 %v187
    %290 = vmatprep.subr.bf16.mxu0 0
    %291 = vmatpush1.bf16.msra.mxu0 0
    %292 = vmatprep.subr.bf16.mxu0 0
    %293 = vmatpush1.bf16.msra.mxu0 0
    %294 = vmatprep.subr.bf16.mxu0 0
    %295 = vmatpush1.bf16.msra.mxu0 0
    %296 = vmatprep.subr.bf16.mxu0 0
    %297 = vmatpush1.bf16.msra.mxu0 0
    %298 = vmatprep.subr.bf16.mxu0 0
    %299 = vmatpush1.bf16.msra.mxu0 0
    %300 = vmatprep.subr.bf16.mxu0 0
    %301 = vmatpush1.bf16.msra.mxu0 0
    %302 = vmatprep.subr.bf16.mxu0 0
    %303 = vmatpush1.bf16.msra.mxu0 0
    %304 = vmatprep.subr.bf16.mxu0 0
    %305 = vmatpush1.bf16.msra.mxu0 0
    %306 = vmatprep.mubr.bf16.mxu0 0
    %307 = vmatmul.mubr.bf16.gmra.mrb[0].mxu0 %v57
    %v308 = vpop.f32.mrb[0].mxu0
    %v309 = vadd.f32 0.0, %v308
    %v310 = vpop.f32.mrb[0].mxu0
    %v311 = vadd.f32 0.0, %v310
    %v312 = vpop.f32.mrb[0].mxu0
    %v313 = vadd.f32 0.0, %v312
    %v314 = vpop.f32.mrb[0].mxu0
    %v315 = vadd.f32 0.0, %v314
    %316 = vmatprep.mubr.bf16.mxu0 0
    %317 = vmatmul.mubr.bf16.gmra.mrb[0].mxu0 %v58
    %v318 = vpop.f32.mrb[0].mxu0
    %v319 = vadd.f32 0.0, %v318
    %v320 = vpop.f32.mrb[0].mxu0
    %v321 = vadd.f32 0.0, %v320
    %v322 = vpop.f32.mrb[0].mxu0
    %v323 = vadd.f32 0.0, %v322
    %v324 = vpop.f32.mrb[0].mxu0
    %v325 = vadd.f32 0.0, %v324
    %326 = vdwg.mxu0
    %327 = vst [vmem:[#allocation2] sm:$0xff] %v256
    %328 = vst [vmem:[#allocation2 + $0x8] sm:$0xff] %v258
    %329 = vst [vmem:[#allocation2 + $0x10] sm:$0xff] %v309
    %330 = vst [vmem:[#allocation2 + $0x18] sm:$0xff] %v311
    %331 = vst [vmem:[#allocation2 + $0x20] sm:$0xff] %v260
    %332 = vst [vmem:[#allocation2 + $0x28] sm:$0xff] %v262
    %333 = vst [vmem:[#allocation2 + $0x30] sm:$0xff] %v313
    %334 = vst [vmem:[#allocation2 + $0x38] sm:$0xff] %v315
    %335 = vst [vmem:[#allocation2 + $0x40] sm:$0xff] %v266
    %336 = vst [vmem:[#allocation2 + $0x48] sm:$0xff] %v268
    %337 = vst [vmem:[#allocation2 + $0x50] sm:$0xff] %v319
    %338 = vst [vmem:[#allocation2 + $0x58] sm:$0xff] %v321
    %339 = vst [vmem:[#allocation2 + $0x60] sm:$0xff] %v270
    %340 = vst [vmem:[#allocation2 + $0x68] sm:$0xff] %v272
    %341 = vst [vmem:[#allocation2 + $0x70] sm:$0xff] %v323
    %342 = vst [vmem:[#allocation2 + $0x78] sm:$0xff] %v325
    // Predicated region
    $region10: #{transformer_decoder_forward.13} parent=1 // pred_check
      _
    $region11: #{transformer_decoder_forward.13} parent=1 // pred_check_branch
      %344 = sbr.rel (0) target = $region13
    $region12: #{transformer_decoder_forward.13} parent=1 // pred_region
      %s346 = ssub.s32 2048, 2048
      %347 = vsyncadd [#allocation3], %s346
      %s348 = sshll.u32 [#allocation2], 4
      %s349 = int_to_ptr.vmem [resolvable:$true] %s348
      %354 = dma.vmem_to_hbm [thread:$0]  %s349, 2048, %s2, [#allocation3], 512, 512, 32
    $region13: #{transformer_decoder_forward.13} parent=1 // pred_fallthru
      _
    // Predicated region
    $region14: #{transformer_decoder_forward.13} parent=1 // pred_check
      _
    $region15: #{transformer_decoder_forward.13} parent=1 // pred_check_branch
      %356 = sbr.rel (0) target = $region17
    $region16: #{transformer_decoder_forward.13} parent=1 // pred_region
      %357 = dma.done [#allocation3], 2048
    $region17: #{transformer_decoder_forward.13} parent=1 // pred_fallthru
      _
    %358 = vsyncpa [#allocation3], 1

</llo_original>
